<compile_context>
chip_gen: v7x
topology: tpu7x:2x2x1
jax: 0.10.0
libtpu: 0.0.40
codegen_flags: <defaults>
</compile_context>

<pallas_src>
import functools

import numpy as np
import jax
import jax.numpy as jnp
from jax.experimental import pallas as pl
from jax.experimental.pallas import tpu as pltpu


def _round_up(x, m):
    return ((x + m - 1) // m) * m


def _vmem_tile_bytes(shape, dtype):
    """Rough VMEM footprint of one block, accounting for (sublane, 128) tiling."""
    itemsize = jnp.dtype(dtype).itemsize
    sub = max(32 // itemsize, 8)
    *lead, s, l = shape
    n = 1
    for d in lead:
        n *= d
    return n * _round_up(s, sub) * _round_up(l, 128) * itemsize


# ----------------------------- Pallas kernel ------------------------------ #

def _upconv_kernel(x_ref, w_ref, b_ref, o_ref, *, tm, extra, offs):
    """One (image n, row-tile t) grid step.

    x_ref : (1, Ci_rows, inc_p) flattened zero-padded canvas of image n
            (block index constant over t -> DMA'd once per image)
    w_ref : (9, inc_p, Dpad)    per-tap effective dense-conv weights (resident)
    b_ref : (1, Dpad)           bias replicated per output parity (f32, resident)
    o_ref : (1, tm, Dpad)       output tile (lane-dense, Dpad % 128 == 0)

    No im2col scratch: 9 accumulated MXU dots over statically shifted slices of
    one aligned window load (removes the masked lane-narrow scratch stores, the
    K padding and its zeroing, and the (tm, Kp) VMEM scratch).
    """
    t = pl.program_id(1)
    base = pl.multiple_of(t * tm, 8)                  # sublane-aligned dyn start
    window = x_ref[0, pl.ds(base, tm + extra), :]     # (tm+extra, inc_p), 1 load
    acc = None
    for k, off in enumerate(offs):                    # static python loop, 9 taps
        part = jnp.dot(window[off:off + tm, :], w_ref[k],
                       preferred_element_type=jnp.float32)
        acc = part if acc is None else acc + part
    o_ref[0, :, :] = (acc + b_ref[...]).astype(o_ref.dtype)


# --------------------- one-time parameter preparation ---------------------- #

def init_up_params(weight, bias):
    """Precompute (once, at init) the per-tap effective dense-conv weight/bias.

    weight: (inc, outc, 4, 4) PyTorch ConvTranspose2d layout.  Only valid for
    kernel_size=4, stride=2, padding=1 (Up_ is hard-wired to that).
    Returns:
      w_eff: (9, inc_p, Dpad) float32 — tap (dh*3+dw), rows ci, cols (r, s, co)
      b_eff: (1, Dpad)        float32
    """
    inc, outc = int(weight.shape[0]), int(weight.shape[1])
    assert weight.shape[2:] == (4, 4), "Up_ is hard-wired to k=4, s=2, p=1"
    inc_p = _round_up(inc, 8)
    # 256-granular Dpad once outc is big enough to matter (v6e/v7x 256-wide MXU);
    # minimal 128-lane padding for small outc to keep HBM writeback low.
    outc_p = _round_up(outc, 64) if outc > 32 else _round_up(outc, 32)
    dpad = 4 * outc_p

    # out[2p+r, 2q+s] = sum_{dh,dw,ci} x_pad[p+dh, q+dw, ci] * W[ci, co, kh, kw]
    # with kh = r + 3 - 2*dh (valid in [0,4)), same for kw.
    kh_map = {0: {0: 3, 1: 1, 2: None},
              1: {0: None, 1: 2, 2: 0}}
    w_eff = jnp.zeros((9, inc_p, dpad), jnp.float32)
    for r in range(2):
        for s in range(2):
            for dh in range(3):
                for dw in range(3):
                    kh = kh_map[r][dh]
                    kw = kh_map[s][dw]
                    if kh is None or kw is None:
                        continue
                    tap = dh * 3 + dw
                    col = (r * 2 + s) * outc_p
                    w_eff = w_eff.at[tap, :inc, col:col + outc].set(
                        weight[:, :, kh, kw])

    b_eff = jnp.zeros((1, dpad), jnp.float32)
    for rs in range(4):
        b_eff = b_eff.at[0, rs * outc_p:rs * outc_p + outc].set(bias)
    return w_eff, b_eff


# ------------------------------ forward pass ------------------------------- #

@functools.partial(jax.jit,
                   static_argnames=("outc", "tm", "compute_dtype",
                                    "single_buffer_consts"))
def up_forward(x, w_eff, b_eff, *, outc, tm=512, compute_dtype=jnp.float32,
               single_buffer_consts=True):
    """Pallas implementation of Up_.forward (NCHW in / NCHW out, f32 result)."""
    N, inc, H, W = x.shape
    inc_p = w_eff.shape[1]
    dpad = b_eff.shape[1]
    outc_p = dpad // 4
    assert w_eff.shape[0] == 9 and w_eff.shape[2] == dpad and inc_p >= inc

    # Per-image flattened canvas geometry.
    wp = W + 2                       # padded width (anchors sweep it; 2 garbage cols/row)
    mi = H * wp                      # anchors per image
    offs = tuple(dh * wp + dw for dh in range(3) for dw in range(3))
    extra = _round_up(2 * wp + 2, 8)

    def geom(tm_req):
        tm_u = _round_up(min(tm_req, _round_up(mi, 8)), 8)
        tiles_ = -(-mi // tm_u)
        mi_pad_ = tiles_ * tm_u
        ci_rows_ = _round_up(max((H + 2) * wp, mi_pad_ + extra), 8)
        return tm_u, tiles_, mi_pad_, ci_rows_

    wbuf = 1 if single_buffer_consts else 2

    def est_vmem(tm_u, ci_rows_):
        return (2 * _vmem_tile_bytes((1, ci_rows_, inc_p), compute_dtype)   # canvas (dbl buf)
                + wbuf * _vmem_tile_bytes((9, inc_p, dpad), compute_dtype)  # weights
                + wbuf * _vmem_tile_bytes((1, dpad), jnp.float32)           # bias
                + 2 * _vmem_tile_bytes((1, tm_u, dpad), compute_dtype)      # output (dbl buf)
                + _vmem_tile_bytes((tm_u + extra, inc_p), compute_dtype)    # live window value
                + _vmem_tile_bytes((tm_u, dpad), jnp.float32))              # f32 accumulator

    # Auto-derive the row tile against a conservative cross-chip VMEM budget.
    budget = 40 << 20
    tm_used, tiles, mi_pad, ci_rows = geom(tm)
    while est_vmem(tm_used, ci_rows) > budget and tm_used > 64:
        tm_used, tiles, mi_pad, ci_rows = geom(tm_used // 2)
    # TODO(synk): if the resident per-image canvas alone exceeds the budget
    # (very large H*W*inc), go manual-DMA halo windows (memory_space=pl.ANY).

    vmem_limit = int(min(max(est_vmem(tm_used, ci_rows) * 5 // 4 + (2 << 20),
                             16 << 20), 64 << 20))

    # --- glue: NCHW -> zero-padded, channel-padded NHWC canvas (one HBM pass) ---
    # TODO(synk): keep activations NHWC end-to-end in the surrounding network to
    # drop this transpose entirely on bandwidth-bound chips (v5e/v6e).
    x_nhwc = jnp.transpose(x, (0, 2, 3, 1))
    canvas = jnp.pad(x_nhwc, ((0, 0), (1, 1), (1, 1), (0, inc_p - inc)))
    canvas = canvas.reshape(N, (H + 2) * wp, inc_p)
    x_slab = jnp.pad(canvas, ((0, 0), (0, ci_rows - (H + 2) * wp), (0, 0)))
    x_slab = x_slab.astype(compute_dtype)
    w = w_eff.astype(compute_dtype)
    b = b_eff                                    # bias + accumulate stay f32

    kernel = functools.partial(_upconv_kernel, tm=tm_used, extra=extra, offs=offs)

    itemsize = jnp.dtype(compute_dtype).itemsize
    flops = 2 * N * mi_pad * (9 * inc_p) * dpad
    bytes_accessed = (N * ci_rows * inc_p * itemsize
                      + 9 * inc_p * dpad * itemsize
                      + dpad * 4
                      + N * mi_pad * dpad * itemsize)

    if single_buffer_consts:
        # Constant-index blocks: single-buffer so large weights are not held
        # twice in VMEM (the v7x 64 MiB fit for big inc/outc).
        w_spec = pl.BlockSpec((9, inc_p, dpad), lambda n, t: (0, 0, 0),
                              pipeline_mode=pl.Buffered(1))
        b_spec = pl.BlockSpec((1, dpad), lambda n, t: (0, 0),
                              pipeline_mode=pl.Buffered(1))
    else:
        w_spec = pl.BlockSpec((9, inc_p, dpad), lambda n, t: (0, 0, 0))
        b_spec = pl.BlockSpec((1, dpad), lambda n, t: (0, 0))

    out_raw = pl.pallas_call(
        kernel,
        out_shape=jax.ShapeDtypeStruct((N, mi_pad, dpad), compute_dtype),
        grid_spec=pltpu.PrefetchScalarGridSpec(
            num_scalar_prefetch=0,
            grid=(N, tiles),
            in_specs=[
                # whole per-image canvas; constant block index over the tile axis
                pl.BlockSpec((1, ci_rows, inc_p), lambda n, t: (n, 0, 0)),
                w_spec,
                b_spec,
            ],
            out_specs=pl.BlockSpec((1, tm_used, dpad), lambda n, t: (n, t, 0)),
        ),
        compiler_params=pltpu.CompilerParams(
            dimension_semantics=("parallel", "arbitrary"),
            vmem_limit_bytes=vmem_limit),
        cost_estimate=pl.CostEstimate(flops=flops, transcendentals=0,
                                      bytes_accessed=bytes_accessed),
    )(x_slab, w, b)

    # --- glue: drop padding, pixel-shuffle parities back to NCHW, f32 out ---
    out = out_raw[:, :mi, :].reshape(N, H, wp, 2, 2, outc_p)   # (n, p, q, r, s, co)
    out = out[:, :, :W, :, :, :outc]
    out = jnp.transpose(out, (0, 5, 1, 3, 2, 4))               # (n, co, p, r, q, s)
    return out.reshape(N, outc, 2 * H, 2 * W).astype(jnp.float32)


# ------------------------------- reference --------------------------------- #

def _reference_conv_transpose(x_np, W_np, b_np):
    N, inc, H, Wsp = x_np.shape
    outc = W_np.shape[1]
    out_full = np.zeros((N, outc, 2 * H + 2, 2 * Wsp + 2), np.float32)
    for kh in range(4):
        for kw in range(4):
            contrib = np.einsum('ncij,cd->ndij', x_np, W_np[:, :, kh, kw])
            out_full[:, :, kh:kh + 2 * H:2, kw:kw + 2 * Wsp:2] += contrib
    out = out_full[:, :, 1:1 + 2 * H, 1:1 + 2 * Wsp]
    return out + b_np[None, :, None, None]


# ---------------------------------- main ----------------------------------- #

if __name__ == "__main__":
    N, inc, outc, H, Wsp = 2, 4, 6, 16, 16

    key = jax.random.PRNGKey(0)
    kx, kw, kb = jax.random.split(key, 3)
    x = jax.random.normal(kx, (N, inc, H, Wsp), jnp.float32)
    weight = 0.1 * jax.random.normal(kw, (inc, outc, 4, 4), jnp.float32)
    bias = 0.1 * jax.random.normal(kb, (outc,), jnp.float32)

    # One-time init (jit-compatible, no host round-trips in the forward path).
    w_eff, b_eff = init_up_params(weight, bias)

    def run(compute_dtype):
        try:
            return jax.block_until_ready(
                up_forward(x, w_eff, b_eff, outc=outc,
                           compute_dtype=compute_dtype))
        except Exception:
            # pl.Buffered(1) not accepted by this jax build -> fall back to the
            # default double-buffered constant weight/bias (perf-only change).
            return jax.block_until_ready(
                up_forward(x, w_eff, b_eff, outc=outc,
                           compute_dtype=compute_dtype,
                           single_buffer_consts=False))

    out = run(jnp.float32)

    ref = _reference_conv_transpose(np.asarray(x), np.asarray(weight),
                                    np.asarray(bias))
    np.testing.assert_allclose(np.asarray(out), ref, rtol=1e-4, atol=1e-4)
    assert out.shape == (N, outc, 2 * H, 2 * Wsp)

    # bf16 compute path (recommended on v6e/v7x): bf16 canvas/weights/output,
    # f32 accumulation inside the kernel; looser tolerance (input quantization).
    out_bf16 = run(jnp.bfloat16)
    np.testing.assert_allclose(np.asarray(out_bf16), ref, rtol=5e-2, atol=5e-2)

    print("KERNEL_OK")
</pallas_src>

<mosaic_0001>
module attributes {stable_mosaic.version = 11 : i64} {
  func.func @_upconv_kernel(%arg0: i32, %arg1: i32, %arg2: memref<1x328x8xf32, #tpu.memory_space<vmem>>, %arg3: memref<9x8x128xf32, #tpu.memory_space<vmem>>, %arg4: memref<1x128xf32, #tpu.memory_space<vmem>>, %arg5: memref<1x288x128xf32, #tpu.memory_space<vmem>>) attributes {dimension_semantics = [#tpu.dimension_semantics<parallel>, #tpu.dimension_semantics<arbitrary>], iteration_bounds = array<i64: 2, 1>, scalar_prefetch = 0 : i64, scratch_operands = 0 : i64, tpu.core_type = #tpu.core_type<tc>, window_params = [{transform_indices = @transform_0, window_bounds = array<i64: 1, 328, 8>}, {pipeline_mode = #tpu.pipeline_mode<synchronous>, transform_indices = @transform_1, window_bounds = array<i64: 9, 8, 128>}, {pipeline_mode = #tpu.pipeline_mode<synchronous>, transform_indices = @transform_2, window_bounds = array<i64: 1, 128>}, {transform_indices = @transform_3, window_bounds = array<i64: 1, 288, 128>}]} {
    %c288_i32 = arith.constant 288 : i32
    %0 = arith.muli %arg1, %c288_i32 : i32
    %1 = tpu.assume_multiple %0, 8 : i32
    %c0 = arith.constant 0 : index
    %2 = arith.index_cast %1 : i32 to index
    %c0_0 = arith.constant 0 : index
    %3 = vector.load %arg2[%c0, %2, %c0_0] : memref<1x328x8xf32, #tpu.memory_space<vmem>>, vector<1x328x8xf32>
    %4 = vector.shape_cast %3 : vector<1x328x8xf32> to vector<328x8xf32>
    %5 = vector.extract_strided_slice %4 {offsets = [0, 0], sizes = [288, 8], strides = [1, 1]} : vector<328x8xf32> to vector<288x8xf32>
    %c0_1 = arith.constant 0 : index
    %c0_2 = arith.constant 0 : index
    %c0_3 = arith.constant 0 : index
    %6 = vector.load %arg3[%c0_1, %c0_2, %c0_3] : memref<9x8x128xf32, #tpu.memory_space<vmem>>, vector<1x8x128xf32>
    %7 = vector.shape_cast %6 : vector<1x8x128xf32> to vector<8x128xf32>
    %cst = arith.constant dense<0.000000e+00> : vector<288x128xf32>
    %8 = tpu.matmul %5, %7, %cst {dimension_numbers = #tpu.dot_dimension_numbers<[1], [0], [0], [1], [0, 0, 1, 1], [], []>} : vector<288x8xf32>, vector<8x128xf32>, vector<288x128xf32> -> vector<288x128xf32>
    %9 = vector.extract_strided_slice %4 {offsets = [1, 0], sizes = [288, 8], strides = [1, 1]} : vector<328x8xf32> to vector<288x8xf32>
    %c1 = arith.constant 1 : index
    %c0_4 = arith.constant 0 : index
    %c0_5 = arith.constant 0 : index
    %10 = vector.load %arg3[%c1, %c0_4, %c0_5] : memref<9x8x128xf32, #tpu.memory_space<vmem>>, vector<1x8x128xf32>
    %11 = vector.shape_cast %10 : vector<1x8x128xf32> to vector<8x128xf32>
    %cst_6 = arith.constant dense<0.000000e+00> : vector<288x128xf32>
    %12 = tpu.matmul %9, %11, %cst_6 {dimension_numbers = #tpu.dot_dimension_numbers<[1], [0], [0], [1], [0, 0, 1, 1], [], []>} : vector<288x8xf32>, vector<8x128xf32>, vector<288x128xf32> -> vector<288x128xf32>
    %13 = arith.addf %8, %12 : vector<288x128xf32>
    %14 = vector.extract_strided_slice %4 {offsets = [2, 0], sizes = [288, 8], strides = [1, 1]} : vector<328x8xf32> to vector<288x8xf32>
    %c2 = arith.constant 2 : index
    %c0_7 = arith.constant 0 : index
    %c0_8 = arith.constant 0 : index
    %15 = vector.load %arg3[%c2, %c0_7, %c0_8] : memref<9x8x128xf32, #tpu.memory_space<vmem>>, vector<1x8x128xf32>
    %16 = vector.shape_cast %15 : vector<1x8x128xf32> to vector<8x128xf32>
    %cst_9 = arith.constant dense<0.000000e+00> : vector<288x128xf32>
    %17 = tpu.matmul %14, %16, %cst_9 {dimension_numbers = #tpu.dot_dimension_numbers<[1], [0], [0], [1], [0, 0, 1, 1], [], []>} : vector<288x8xf32>, vector<8x128xf32>, vector<288x128xf32> -> vector<288x128xf32>
    %18 = arith.addf %13, %17 : vector<288x128xf32>
    %19 = vector.extract_strided_slice %4 {offsets = [18, 0], sizes = [288, 8], strides = [1, 1]} : vector<328x8xf32> to vector<288x8xf32>
    %c3 = arith.constant 3 : index
    %c0_10 = arith.constant 0 : index
    %c0_11 = arith.constant 0 : index
    %20 = vector.load %arg3[%c3, %c0_10, %c0_11] : memref<9x8x128xf32, #tpu.memory_space<vmem>>, vector<1x8x128xf32>
    %21 = vector.shape_cast %20 : vector<1x8x128xf32> to vector<8x128xf32>
    %cst_12 = arith.constant dense<0.000000e+00> : vector<288x128xf32>
    %22 = tpu.matmul %19, %21, %cst_12 {dimension_numbers = #tpu.dot_dimension_numbers<[1], [0], [0], [1], [0, 0, 1, 1], [], []>} : vector<288x8xf32>, vector<8x128xf32>, vector<288x128xf32> -> vector<288x128xf32>
    %23 = arith.addf %18, %22 : vector<288x128xf32>
    %24 = vector.extract_strided_slice %4 {offsets = [19, 0], sizes = [288, 8], strides = [1, 1]} : vector<328x8xf32> to vector<288x8xf32>
    %c4 = arith.constant 4 : index
    %c0_13 = arith.constant 0 : index
    %c0_14 = arith.constant 0 : index
    %25 = vector.load %arg3[%c4, %c0_13, %c0_14] : memref<9x8x128xf32, #tpu.memory_space<vmem>>, vector<1x8x128xf32>
    %26 = vector.shape_cast %25 : vector<1x8x128xf32> to vector<8x128xf32>
    %cst_15 = arith.constant dense<0.000000e+00> : vector<288x128xf32>
    %27 = tpu.matmul %24, %26, %cst_15 {dimension_numbers = #tpu.dot_dimension_numbers<[1], [0], [0], [1], [0, 0, 1, 1], [], []>} : vector<288x8xf32>, vector<8x128xf32>, vector<288x128xf32> -> vector<288x128xf32>
    %28 = arith.addf %23, %27 : vector<288x128xf32>
    %29 = vector.extract_strided_slice %4 {offsets = [20, 0], sizes = [288, 8], strides = [1, 1]} : vector<328x8xf32> to vector<288x8xf32>
    %c5 = arith.constant 5 : index
    %c0_16 = arith.constant 0 : index
    %c0_17 = arith.constant 0 : index
    %30 = vector.load %arg3[%c5, %c0_16, %c0_17] : memref<9x8x128xf32, #tpu.memory_space<vmem>>, vector<1x8x128xf32>
    %31 = vector.shape_cast %30 : vector<1x8x128xf32> to vector<8x128xf32>
    %cst_18 = arith.constant dense<0.000000e+00> : vector<288x128xf32>
    %32 = tpu.matmul %29, %31, %cst_18 {dimension_numbers = #tpu.dot_dimension_numbers<[1], [0], [0], [1], [0, 0, 1, 1], [], []>} : vector<288x8xf32>, vector<8x128xf32>, vector<288x128xf32> -> vector<288x128xf32>
    %33 = arith.addf %28, %32 : vector<288x128xf32>
    %34 = vector.extract_strided_slice %4 {offsets = [36, 0], sizes = [288, 8], strides = [1, 1]} : vector<328x8xf32> to vector<288x8xf32>
    %c6 = arith.constant 6 : index
    %c0_19 = arith.constant 0 : index
    %c0_20 = arith.constant 0 : index
    %35 = vector.load %arg3[%c6, %c0_19, %c0_20] : memref<9x8x128xf32, #tpu.memory_space<vmem>>, vector<1x8x128xf32>
    %36 = vector.shape_cast %35 : vector<1x8x128xf32> to vector<8x128xf32>
    %cst_21 = arith.constant dense<0.000000e+00> : vector<288x128xf32>
    %37 = tpu.matmul %34, %36, %cst_21 {dimension_numbers = #tpu.dot_dimension_numbers<[1], [0], [0], [1], [0, 0, 1, 1], [], []>} : vector<288x8xf32>, vector<8x128xf32>, vector<288x128xf32> -> vector<288x128xf32>
    %38 = arith.addf %33, %37 : vector<288x128xf32>
    %39 = vector.extract_strided_slice %4 {offsets = [37, 0], sizes = [288, 8], strides = [1, 1]} : vector<328x8xf32> to vector<288x8xf32>
    %c7 = arith.constant 7 : index
    %c0_22 = arith.constant 0 : index
    %c0_23 = arith.constant 0 : index
    %40 = vector.load %arg3[%c7, %c0_22, %c0_23] : memref<9x8x128xf32, #tpu.memory_space<vmem>>, vector<1x8x128xf32>
    %41 = vector.shape_cast %40 : vector<1x8x128xf32> to vector<8x128xf32>
    %cst_24 = arith.constant dense<0.000000e+00> : vector<288x128xf32>
    %42 = tpu.matmul %39, %41, %cst_24 {dimension_numbers = #tpu.dot_dimension_numbers<[1], [0], [0], [1], [0, 0, 1, 1], [], []>} : vector<288x8xf32>, vector<8x128xf32>, vector<288x128xf32> -> vector<288x128xf32>
    %43 = arith.addf %38, %42 : vector<288x128xf32>
    %44 = vector.extract_strided_slice %4 {offsets = [38, 0], sizes = [288, 8], strides = [1, 1]} : vector<328x8xf32> to vector<288x8xf32>
    %c8 = arith.constant 8 : index
    %c0_25 = arith.constant 0 : index
    %c0_26 = arith.constant 0 : index
    %45 = vector.load %arg3[%c8, %c0_25, %c0_26] : memref<9x8x128xf32, #tpu.memory_space<vmem>>, vector<1x8x128xf32>
    %46 = vector.shape_cast %45 : vector<1x8x128xf32> to vector<8x128xf32>
    %cst_27 = arith.constant dense<0.000000e+00> : vector<288x128xf32>
    %47 = tpu.matmul %44, %46, %cst_27 {dimension_numbers = #tpu.dot_dimension_numbers<[1], [0], [0], [1], [0, 0, 1, 1], [], []>} : vector<288x8xf32>, vector<8x128xf32>, vector<288x128xf32> -> vector<288x128xf32>
    %48 = arith.addf %43, %47 : vector<288x128xf32>
    %c0_28 = arith.constant 0 : index
    %c0_29 = arith.constant 0 : index
    %49 = vector.load %arg4[%c0_28, %c0_29] : memref<1x128xf32, #tpu.memory_space<vmem>>, vector<1x128xf32>
    %50 = vector.broadcast %49 : vector<1x128xf32> to vector<288x128xf32>
    %51 = arith.addf %48, %50 : vector<288x128xf32>
    %c0_30 = arith.constant 0 : index
    %c0_31 = arith.constant 0 : index
    %c0_32 = arith.constant 0 : index
    %52 = vector.load %arg5[%c0_30, %c0_31, %c0_32] : memref<1x288x128xf32, #tpu.memory_space<vmem>>, vector<1x288x128xf32>
    %53 = vector.shape_cast %52 : vector<1x288x128xf32> to vector<288x128xf32>
    %54 = vector.shape_cast %51 : vector<288x128xf32> to vector<1x288x128xf32>
    tpu.vector_store %arg5[%c0_30, %c0_31, %c0_32], %54 {strides = array<i32>} : memref<1x288x128xf32, #tpu.memory_space<vmem>>, vector<1x288x128xf32>,
    return
  }
  func.func @transform_0(%arg0: i32, %arg1: i32) -> (i32, i32, i32) {
    %c0_i32 = arith.constant 0 : i32
    %c0_i32_0 = arith.constant 0 : i32
    %c0_i32_1 = arith.constant 0 : i32
    return %arg0, %c0_i32, %c0_i32_0 : i32, i32, i32
  }
  func.func @transform_1(%arg0: i32, %arg1: i32) -> (i32, i32, i32) {
    %c0_i32 = arith.constant 0 : i32
    %c0_i32_0 = arith.constant 0 : i32
    %c0_i32_1 = arith.constant 0 : i32
    %c0_i32_2 = arith.constant 0 : i32
    return %c0_i32, %c0_i32_0, %c0_i32_1 : i32, i32, i32
  }
  func.func @transform_2(%arg0: i32, %arg1: i32) -> (i32, i32) {
    %c0_i32 = arith.constant 0 : i32
    %c0_i32_0 = arith.constant 0 : i32
    %c0_i32_1 = arith.constant 0 : i32
    return %c0_i32, %c0_i32_0 : i32, i32
  }
  func.func @transform_3(%arg0: i32, %arg1: i32) -> (i32, i32, i32) {
    %c0_i32 = arith.constant 0 : i32
    %c0_i32_0 = arith.constant 0 : i32
    return %arg0, %arg1, %c0_i32 : i32, i32, i32
  }
}

module attributes {stable_mosaic.version = 11 : i64} {
  func.func @_upconv_kernel(%arg0: i32, %arg1: i32, %arg2: memref<1x328x8xf32, #tpu.memory_space<vmem>>, %arg3: memref<9x8x128xf32, #tpu.memory_space<vmem>>, %arg4: memref<1x128xf32, #tpu.memory_space<vmem>>, %arg5: memref<1x288x128xf32, #tpu.memory_space<vmem>>) attributes {dimension_semantics = [#tpu.dimension_semantics<parallel>, #tpu.dimension_semantics<arbitrary>], iteration_bounds = array<i64: 2, 1>, scalar_prefetch = 0 : i64, scratch_operands = 0 : i64, tpu.core_type = #tpu.core_type<tc>, window_params = [{transform_indices = @transform_0, window_bounds = array<i64: 1, 328, 8>}, {pipeline_mode = #tpu.pipeline_mode<synchronous>, transform_indices = @transform_1, window_bounds = array<i64: 9, 8, 128>}, {pipeline_mode = #tpu.pipeline_mode<synchronous>, transform_indices = @transform_2, window_bounds = array<i64: 1, 128>}, {transform_indices = @transform_3, window_bounds = array<i64: 1, 288, 128>}]} {
    %c288_i32 = arith.constant 288 : i32
    %0 = arith.muli %arg1, %c288_i32 : i32
    %1 = tpu.assume_multiple %0, 8 : i32
    %c0 = arith.constant 0 : index
    %2 = arith.index_cast %1 : i32 to index
    %c0_0 = arith.constant 0 : index
    %3 = vector.load %arg2[%c0, %2, %c0_0] : memref<1x328x8xf32, #tpu.memory_space<vmem>>, vector<1x328x8xf32>
    %4 = vector.shape_cast %3 : vector<1x328x8xf32> to vector<328x8xf32>
    %5 = vector.extract_strided_slice %4 {offsets = [0, 0], sizes = [288, 8], strides = [1, 1]} : vector<328x8xf32> to vector<288x8xf32>
    %c0_1 = arith.constant 0 : index
    %c0_2 = arith.constant 0 : index
    %c0_3 = arith.constant 0 : index
    %6 = vector.load %arg3[%c0_1, %c0_2, %c0_3] : memref<9x8x128xf32, #tpu.memory_space<vmem>>, vector<1x8x128xf32>
    %7 = vector.shape_cast %6 : vector<1x8x128xf32> to vector<8x128xf32>
    %cst = arith.constant dense<0.000000e+00> : vector<288x128xf32>
    %8 = tpu.matmul %5, %7, %cst {dimension_numbers = #tpu.dot_dimension_numbers<[1], [0], [0], [1], [0, 0, 1, 1], [], []>} : vector<288x8xf32>, vector<8x128xf32>, vector<288x128xf32> -> vector<288x128xf32>
    %9 = vector.extract_strided_slice %4 {offsets = [1, 0], sizes = [288, 8], strides = [1, 1]} : vector<328x8xf32> to vector<288x8xf32>
    %c1 = arith.constant 1 : index
    %c0_4 = arith.constant 0 : index
    %c0_5 = arith.constant 0 : index
    %10 = vector.load %arg3[%c1, %c0_4, %c0_5] : memref<9x8x128xf32, #tpu.memory_space<vmem>>, vector<1x8x128xf32>
    %11 = vector.shape_cast %10 : vector<1x8x128xf32> to vector<8x128xf32>
    %cst_6 = arith.constant dense<0.000000e+00> : vector<288x128xf32>
    %12 = tpu.matmul %9, %11, %cst_6 {dimension_numbers = #tpu.dot_dimension_numbers<[1], [0], [0], [1], [0, 0, 1, 1], [], []>} : vector<288x8xf32>, vector<8x128xf32>, vector<288x128xf32> -> vector<288x128xf32>
    %13 = arith.addf %8, %12 : vector<288x128xf32>
    %14 = vector.extract_strided_slice %4 {offsets = [2, 0], sizes = [288, 8], strides = [1, 1]} : vector<328x8xf32> to vector<288x8xf32>
    %c2 = arith.constant 2 : index
    %c0_7 = arith.constant 0 : index
    %c0_8 = arith.constant 0 : index
    %15 = vector.load %arg3[%c2, %c0_7, %c0_8] : memref<9x8x128xf32, #tpu.memory_space<vmem>>, vector<1x8x128xf32>
    %16 = vector.shape_cast %15 : vector<1x8x128xf32> to vector<8x128xf32>
    %cst_9 = arith.constant dense<0.000000e+00> : vector<288x128xf32>
    %17 = tpu.matmul %14, %16, %cst_9 {dimension_numbers = #tpu.dot_dimension_numbers<[1], [0], [0], [1], [0, 0, 1, 1], [], []>} : vector<288x8xf32>, vector<8x128xf32>, vector<288x128xf32> -> vector<288x128xf32>
    %18 = arith.addf %13, %17 : vector<288x128xf32>
    %19 = vector.extract_strided_slice %4 {offsets = [18, 0], sizes = [288, 8], strides = [1, 1]} : vector<328x8xf32> to vector<288x8xf32>
    %c3 = arith.constant 3 : index
    %c0_10 = arith.constant 0 : index
    %c0_11 = arith.constant 0 : index
    %20 = vector.load %arg3[%c3, %c0_10, %c0_11] : memref<9x8x128xf32, #tpu.memory_space<vmem>>, vector<1x8x128xf32>
    %21 = vector.shape_cast %20 : vector<1x8x128xf32> to vector<8x128xf32>
    %cst_12 = arith.constant dense<0.000000e+00> : vector<288x128xf32>
    %22 = tpu.matmul %19, %21, %cst_12 {dimension_numbers = #tpu.dot_dimension_numbers<[1], [0], [0], [1], [0, 0, 1, 1], [], []>} : vector<288x8xf32>, vector<8x128xf32>, vector<288x128xf32> -> vector<288x128xf32>
    %23 = arith.addf %18, %22 : vector<288x128xf32>
    %24 = vector.extract_strided_slice %4 {offsets = [19, 0], sizes = [288, 8], strides = [1, 1]} : vector<328x8xf32> to vector<288x8xf32>
    %c4 = arith.constant 4 : index
    %c0_13 = arith.constant 0 : index
    %c0_14 = arith.constant 0 : index
    %25 = vector.load %arg3[%c4, %c0_13, %c0_14] : memref<9x8x128xf32, #tpu.memory_space<vmem>>, vector<1x8x128xf32>
    %26 = vector.shape_cast %25 : vector<1x8x128xf32> to vector<8x128xf32>
    %cst_15 = arith.constant dense<0.000000e+00> : vector<288x128xf32>
    %27 = tpu.matmul %24, %26, %cst_15 {dimension_numbers = #tpu.dot_dimension_numbers<[1], [0], [0], [1], [0, 0, 1, 1], [], []>} : vector<288x8xf32>, vector<8x128xf32>, vector<288x128xf32> -> vector<288x128xf32>
    %28 = arith.addf %23, %27 : vector<288x128xf32>
    %29 = vector.extract_strided_slice %4 {offsets = [20, 0], sizes = [288, 8], strides = [1, 1]} : vector<328x8xf32> to vector<288x8xf32>
    %c5 = arith.constant 5 : index
    %c0_16 = arith.constant 0 : index
    %c0_17 = arith.constant 0 : index
    %30 = vector.load %arg3[%c5, %c0_16, %c0_17] : memref<9x8x128xf32, #tpu.memory_space<vmem>>, vector<1x8x128xf32>
    %31 = vector.shape_cast %30 : vector<1x8x128xf32> to vector<8x128xf32>
    %cst_18 = arith.constant dense<0.000000e+00> : vector<288x128xf32>
    %32 = tpu.matmul %29, %31, %cst_18 {dimension_numbers = #tpu.dot_dimension_numbers<[1], [0], [0], [1], [0, 0, 1, 1], [], []>} : vector<288x8xf32>, vector<8x128xf32>, vector<288x128xf32> -> vector<288x128xf32>
    %33 = arith.addf %28, %32 : vector<288x128xf32>
    %34 = vector.extract_strided_slice %4 {offsets = [36, 0], sizes = [288, 8], strides = [1, 1]} : vector<328x8xf32> to vector<288x8xf32>
    %c6 = arith.constant 6 : index
    %c0_19 = arith.constant 0 : index
    %c0_20 = arith.constant 0 : index
    %35 = vector.load %arg3[%c6, %c0_19, %c0_20] : memref<9x8x128xf32, #tpu.memory_space<vmem>>, vector<1x8x128xf32>
    %36 = vector.shape_cast %35 : vector<1x8x128xf32> to vector<8x128xf32>
    %cst_21 = arith.constant dense<0.000000e+00> : vector<288x128xf32>
    %37 = tpu.matmul %34, %36, %cst_21 {dimension_numbers = #tpu.dot_dimension_numbers<[1], [0], [0], [1], [0, 0, 1, 1], [], []>} : vector<288x8xf32>, vector<8x128xf32>, vector<288x128xf32> -> vector<288x128xf32>
    %38 = arith.addf %33, %37 : vector<288x128xf32>
    %39 = vector.extract_strided_slice %4 {offsets = [37, 0], sizes = [288, 8], strides = [1, 1]} : vector<328x8xf32> to vector<288x8xf32>
    %c7 = arith.constant 7 : index
    %c0_22 = arith.constant 0 : index
    %c0_23 = arith.constant 0 : index
    %40 = vector.load %arg3[%c7, %c0_22, %c0_23] : memref<9x8x128xf32, #tpu.memory_space<vmem>>, vector<1x8x128xf32>
    %41 = vector.shape_cast %40 : vector<1x8x128xf32> to vector<8x128xf32>
    %cst_24 = arith.constant dense<0.000000e+00> : vector<288x128xf32>
    %42 = tpu.matmul %39, %41, %cst_24 {dimension_numbers = #tpu.dot_dimension_numbers<[1], [0], [0], [1], [0, 0, 1, 1], [], []>} : vector<288x8xf32>, vector<8x128xf32>, vector<288x128xf32> -> vector<288x128xf32>
    %43 = arith.addf %38, %42 : vector<288x128xf32>
    %44 = vector.extract_strided_slice %4 {offsets = [38, 0], sizes = [288, 8], strides = [1, 1]} : vector<328x8xf32> to vector<288x8xf32>
    %c8 = arith.constant 8 : index
    %c0_25 = arith.constant 0 : index
    %c0_26 = arith.constant 0 : index
    %45 = vector.load %arg3[%c8, %c0_25, %c0_26] : memref<9x8x128xf32, #tpu.memory_space<vmem>>, vector<1x8x128xf32>
    %46 = vector.shape_cast %45 : vector<1x8x128xf32> to vector<8x128xf32>
    %cst_27 = arith.constant dense<0.000000e+00> : vector<288x128xf32>
    %47 = tpu.matmul %44, %46, %cst_27 {dimension_numbers = #tpu.dot_dimension_numbers<[1], [0], [0], [1], [0, 0, 1, 1], [], []>} : vector<288x8xf32>, vector<8x128xf32>, vector<288x128xf32> -> vector<288x128xf32>
    %48 = arith.addf %43, %47 : vector<288x128xf32>
    %c0_28 = arith.constant 0 : index
    %c0_29 = arith.constant 0 : index
    %49 = vector.load %arg4[%c0_28, %c0_29] : memref<1x128xf32, #tpu.memory_space<vmem>>, vector<1x128xf32>
    %50 = vector.broadcast %49 : vector<1x128xf32> to vector<288x128xf32>
    %51 = arith.addf %48, %50 : vector<288x128xf32>
    %c0_30 = arith.constant 0 : index
    %c0_31 = arith.constant 0 : index
    %c0_32 = arith.constant 0 : index
    %52 = vector.load %arg5[%c0_30, %c0_31, %c0_32] : memref<1x288x128xf32, #tpu.memory_space<vmem>>, vector<1x288x128xf32>
    %53 = vector.shape_cast %52 : vector<1x288x128xf32> to vector<288x128xf32>
    %54 = vector.shape_cast %51 : vector<288x128xf32> to vector<1x288x128xf32>
    tpu.vector_store %arg5[%c0_30, %c0_31, %c0_32], %54 {strides = array<i32>} : memref<1x288x128xf32, #tpu.memory_space<vmem>>, vector<1x288x128xf32>,
    return
  }
  func.func @transform_0(%arg0: i32, %arg1: i32) -> (i32, i32, i32) {
    %c0_i32 = arith.constant 0 : i32
    %c0_i32_0 = arith.constant 0 : i32
    %c0_i32_1 = arith.constant 0 : i32
    return %arg0, %c0_i32, %c0_i32_0 : i32, i32, i32
  }
  func.func @transform_1(%arg0: i32, %arg1: i32) -> (i32, i32, i32) {
    %c0_i32 = arith.constant 0 : i32
    %c0_i32_0 = arith.constant 0 : i32
    %c0_i32_1 = arith.constant 0 : i32
    %c0_i32_2 = arith.constant 0 : i32
    return %c0_i32, %c0_i32_0, %c0_i32_1 : i32, i32, i32
  }
  func.func @transform_2(%arg0: i32, %arg1: i32) -> (i32, i32) {
    %c0_i32 = arith.constant 0 : i32
    %c0_i32_0 = arith.constant 0 : i32
    %c0_i32_1 = arith.constant 0 : i32
    return %c0_i32, %c0_i32_0 : i32, i32
  }
  func.func @transform_3(%arg0: i32, %arg1: i32) -> (i32, i32, i32) {
    %c0_i32 = arith.constant 0 : i32
    %c0_i32_0 = arith.constant 0 : i32
    return %arg0, %arg1, %c0_i32 : i32, i32, i32
  }
}

</mosaic_0001>

<llo_original>
// kernel: up_forward.1
$region0: #{up_forward.1}
  #allocation0 [shape = 'u32[]', space=smem, size = 0x4, offset = 0x4, fixed_abs, tag = 'smem constant byte address 0x4 - core index']
  #allocation1 [shape = 'u32[144,128]{1,0:T(1,128)}', space=vmem, size = 0x12000, scoped, tag = 'internal scratch']
  %s0 = inlined_call_operand.vmem [shape: f32[2,328,8], index: 0, kind: input, shape index: {}]
  %s1 = inlined_call_operand.vmem [shape: f32[9,8,128], index: 1, kind: input, shape index: {}]
  %s2 = inlined_call_operand.vmem [shape: f32[1,128], index: 2, kind: input, shape index: {}]
  %s3 = inlined_call_operand.vmem [shape: f32[2,288,128], index: 3, kind: output, shape index: {}]
  %s4 = sld [smem:[#allocation0]]
  $region45: #{up_forward.1} parent=0
    _
  %s6 = ssub.s32 1, %s4
  %s7 = scalar_select 0, %s6, %s4
  loop: start=0, step=1, limit=4
  $region2: #{up_forward.1} parent=0 // loop_pre_header
    _
  $region3: #{up_forward.1} parent=0 // loop_header
    %s9 = sphi 0, %s13
    %p10 = scmp.ge.s32.totalorder %s9, 4
    %s16 = sphi 0, %s28
    %s17 = sphi 0, %s24
    %s18 = sphi 0, %s16
    %s19 = sphi 0, %s17
    %s20 = sphi 0, %s18
    %s21 = sphi 0, %s19
    %s31 = sphi 0, %s33
    %s34 = sphi 0, %s31
    %s35 = sphi 0, %s34
    %s51 = sphi 0, %s35
    %s55 = sphi 0, %s55
    %s57 = sphi 0, %s55
    %s58 = sphi 0, %s57
    %s72 = sphi 0, %s58
    %s76 = sphi 0, %s76
    %s78 = sphi 0, %s76
    %s79 = sphi 0, %s78
    %s93 = sphi 0, %s79
    %s101 = sphi 0, %s103
    %s104 = sphi 0, %s101
    %s105 = sphi 0, %s104
    %s121 = sphi 0, %s105
  $region4: #{up_forward.1} parent=0 // loop_header_branch
    %12 = sbr.rel (%p10) target = $region8
  $region5: #{up_forward.1} parent=0 // loop_body
    %s14 = ssub.s32 %s9, 1
    %s15 = ssub.s32 %s9, 2
    %s22 = sadd.s32 1, %s17
    %p23 = scmp.ge.s32.totalorder %s22, 1
    %s24 = scalar_select %p23, 0, %s22
    %s25 = sadd.s32 1, %s16
    %s26 = scalar_select %p23, %s25, %s16
    %p27 = scmp.ge.s32.totalorder %s26, 2
    %s28 = scalar_select %p27, 0, %s26
    %s29 = ssub.s32 %s16, %s28
    %p30 = scmp.eq.s32.totalorder %s29, 0
    %s32 = sadd.s32 %s31, 1
    %s33 = scalar_select %p30, %s31, %s32
    %p36 = pneg %p30
    %p37 = scmp.eq.s32.totalorder %s9, 1
    %p38 = por %p36, %p37
    %p39 = scmp.ne.s32.totalorder %s31, %s34
    %p40 = scmp.eq.s32.totalorder %s9, 0
    %p41 = por %p39, %p40
    %p42 = scmp.ne.s32.totalorder %s31, %s34
    %p43 = scmp.eq.s32.totalorder %s14, 1
    %p44 = por %p42, %p43
    %p45 = scmp.ne.s32.totalorder %s34, %s35
    %p46 = scmp.eq.s32.totalorder %s14, 0
    %p47 = por %p45, %p46
    %p48 = scmp.ne.s32.totalorder %s34, %s35
    %p49 = scmp.eq.s32.totalorder %s15, 1
    %p50 = por %p48, %p49
    %p52 = scmp.ne.s32.totalorder %s35, %s51
    %p53 = scmp.eq.s32.totalorder %s15, 0
    %p54 = por %p52, %p53
    %s56 = sadd.s32 %s55, 1
    %p59 = scmp.eq.s32.totalorder %s9, 1
    %p60 = scmp.ne.s32.totalorder %s55, %s57
    %p61 = scmp.eq.s32.totalorder %s9, 0
    %p62 = por %p60, %p61
    %p63 = scmp.ne.s32.totalorder %s55, %s57
    %p64 = scmp.eq.s32.totalorder %s14, 1
    %p65 = por %p63, %p64
    %p66 = scmp.ne.s32.totalorder %s57, %s58
    %p67 = scmp.eq.s32.totalorder %s14, 0
    %p68 = por %p66, %p67
    %p69 = scmp.ne.s32.totalorder %s57, %s58
    %p70 = scmp.eq.s32.totalorder %s15, 1
    %p71 = por %p69, %p70
    %p73 = scmp.ne.s32.totalorder %s58, %s72
    %p74 = scmp.eq.s32.totalorder %s15, 0
    %p75 = por %p73, %p74
    %s77 = sadd.s32 %s76, 1
    %p80 = scmp.eq.s32.totalorder %s9, 1
    %p81 = scmp.ne.s32.totalorder %s76, %s78
    %p82 = scmp.eq.s32.totalorder %s9, 0
    %p83 = por %p81, %p82
    %p84 = scmp.ne.s32.totalorder %s76, %s78
    %p85 = scmp.eq.s32.totalorder %s14, 1
    %p86 = por %p84, %p85
    %p87 = scmp.ne.s32.totalorder %s78, %s79
    %p88 = scmp.eq.s32.totalorder %s14, 0
    %p89 = por %p87, %p88
    %p90 = scmp.ne.s32.totalorder %s78, %s79
    %p91 = scmp.eq.s32.totalorder %s15, 1
    %p92 = por %p90, %p91
    %p94 = scmp.ne.s32.totalorder %s79, %s93
    %p95 = scmp.eq.s32.totalorder %s15, 0
    %p96 = por %p94, %p95
    %s97 = ssub.s32 %s16, %s28
    %s98 = ssub.s32 %s17, %s24
    %s99 = sor.u32 %s97, %s98
    %p100 = scmp.eq.s32.totalorder %s99, 0
    %s102 = sadd.s32 %s101, 1
    %s103 = scalar_select %p100, %s101, %s102
    %p106 = pneg %p100
    %p107 = scmp.eq.s32.totalorder %s9, 1
    %p108 = por %p106, %p107
    %p109 = scmp.ne.s32.totalorder %s101, %s104
    %p110 = scmp.eq.s32.totalorder %s9, 0
    %p111 = por %p109, %p110
    %p112 = scmp.ne.s32.totalorder %s101, %s104
    %p113 = scmp.eq.s32.totalorder %s14, 1
    %p114 = por %p112, %p113
    %p115 = scmp.ne.s32.totalorder %s104, %s105
    %p116 = scmp.eq.s32.totalorder %s14, 0
    %p117 = por %p115, %p116
    %p118 = scmp.ne.s32.totalorder %s104, %s105
    %p119 = scmp.eq.s32.totalorder %s15, 1
    %p120 = por %p118, %p119
    %p122 = scmp.ne.s32.totalorder %s105, %s121
    %p123 = scmp.eq.s32.totalorder %s15, 0
    %p124 = por %p122, %p123
    %p125 = scmp.le.s32.totalorder 1, %s9
    %p126 = scmp.lt.s32.totalorder %s9, 3
    %p127 = pnand %p125, %p126
    %p128 = pneg %p127
    // Predicated region
    $region9: #{up_forward.1} parent=5 // pred_check
      _
    $region10: #{up_forward.1} parent=5 // pred_check_branch
      %130 = sbr.rel (%p127) target = $region12
    $region11: #{up_forward.1} parent=5 // pred_region
      %s131 = ssub.s32 %s9, 1
      // Predicated region
      $region13: #{up_forward.1} parent=11 // pred_check
        %p132 = pneg %p68
      $region14: #{up_forward.1} parent=11 // pred_check_branch
        %134 = sbr.rel (%p132) target = $region16
      $region15: #{up_forward.1} parent=11 // pred_region
        _
      $region16: #{up_forward.1} parent=11 // pred_fallthru
        _
      // Predicated region
      $region17: #{up_forward.1} parent=11 // pred_check
        %p135 = pneg %p89
      $region18: #{up_forward.1} parent=11 // pred_check_branch
        %137 = sbr.rel (%p135) target = $region20
      $region19: #{up_forward.1} parent=11 // pred_region
        _
      $region20: #{up_forward.1} parent=11 // pred_fallthru
        _
    $region12: #{up_forward.1} parent=5 // pred_fallthru
      _
    %p138 = scmp.lt.s32.totalorder %s9, 2
    // Predicated region
    $region21: #{up_forward.1} parent=5 // pred_check
      %p139 = pneg %p138
    $region22: #{up_forward.1} parent=5 // pred_check_branch
      %141 = sbr.rel (%p139) target = $region24
    $region23: #{up_forward.1} parent=5 // pred_region
      // Predicated region
      $region25: #{up_forward.1} parent=23 // pred_check
        %p142 = pneg %p41
      $region26: #{up_forward.1} parent=23 // pred_check_branch
        %144 = sbr.rel (%p142) target = $region28
      $region27: #{up_forward.1} parent=23 // pred_region
        %p145 = scmp.lt.s32.totalorder %s16, 1
        %s146 = scalar_select %p145, %s16, 1
        %s147 = smul.addr %s146, 41
        %s148 = smul.addr %s147, 8
        %s149 = scalar_lea.vmem %s0, %s148
      $region28: #{up_forward.1} parent=23 // pred_fallthru
        _
    $region24: #{up_forward.1} parent=5 // pred_fallthru
      _
    %p150 = scmp.le.s32.totalorder 1, %s9
    %p151 = scmp.lt.s32.totalorder %s9, 3
    %p152 = pnand %p150, %p151
    %p153 = pneg %p152
    // Predicated region
    $region29: #{up_forward.1} parent=5 // pred_check
      _
    $region30: #{up_forward.1} parent=5 // pred_check_branch
      %155 = sbr.rel (%p152) target = $region32
    $region31: #{up_forward.1} parent=5 // pred_region
      %s156 = ssub.s32 %s9, 1
      %p157 = scmp.lt.s32.totalorder %s18, 1
      %s158 = scalar_select %p157, %s18, 1
      %s159 = smul.addr %s158, 41
      %s160 = smul.addr %s159, 8
      %s161 = scalar_lea.vmem %s0, %s160
      %p162 = pneg %p47
      %p163 = pneg %p44
      %p164 = pneg %p68
      %p165 = pneg %p65
      %p166 = pneg %p89
      %p167 = pneg %p86
      %p168 = pneg %p117
      %p169 = pneg %p114
      %s170 = smul.u32 36, %s19
      %p171 = scmp.lt.s32.totalorder %s18, 1
      %s172 = scalar_select %p171, %s18, 1
      %p173 = scmp.lt.s32.totalorder %s170, 35
      %s174 = scalar_select %p173, %s170, 35
      %s175 = smul.addr %s172, 36
      %s176 = sadd.s32 %s174, %s175
      %s177 = smul.addr %s176, 8
      %s178 = scalar_lea.vmem %s3, %s177
      %p179 = scmp.lt.s32.totalorder %s18, 1
      %s180 = scalar_select %p179, %s18, 1
      %s181 = smul.addr %s180, 41
      %s182 = smul.addr %s181, 8
      %s183 = scalar_lea.vmem %s0, %s182
      %s184 = smul.u32 36, %s19
      %p185 = scmp.lt.s32.totalorder %s18, 1
      %s186 = scalar_select %p185, %s18, 1
      %p187 = scmp.lt.s32.totalorder %s184, 35
      %s188 = scalar_select %p187, %s184, 35
      %s189 = smul.addr %s186, 36
      %s190 = sadd.s32 %s188, %s189
      %s191 = smul.addr %s190, 8
      %s192 = scalar_lea.vmem %s3, %s191
      %s193 = smul.u32 36, %s19
      %s194 = smul.u32 %s19, 288
      %s195 = scalar_lea.vmem %s183, %s194
      %v196 = vld [vmem:[%s195] sm:$0xff]
      %v197 = vld [vmem:[%s195 + $0x8] sm:$0xff]
      %v198 = vld [vmem:[%s195 + $0x10] sm:$0xff]
      %v199 = vld [vmem:[%s195 + $0x18] sm:$0xff]
      %v200 = vld [vmem:[%s195 + $0x20] sm:$0xff]
      %v201 = vld [vmem:[%s195 + $0x28] sm:$0xff]
      %v202 = vld [vmem:[%s195 + $0x30] sm:$0xff]
      %v203 = vld [vmem:[%s195 + $0x38] sm:$0xff]
      %v204 = vld [vmem:[%s195 + $0x40] sm:$0xff]
      %v205 = vld [vmem:[%s195 + $0x48] sm:$0xff]
      %v206 = vld [vmem:[%s195 + $0x50] sm:$0xff]
      %v207 = vld [vmem:[%s195 + $0x58] sm:$0xff]
      %v208 = vld [vmem:[%s195 + $0x60] sm:$0xff]
      %v209 = vld [vmem:[%s195 + $0x68] sm:$0xff]
      %v210 = vld [vmem:[%s195 + $0x70] sm:$0xff]
      %v211 = vld [vmem:[%s195 + $0x78] sm:$0xff]
      %v212 = vld [vmem:[%s195 + $0x80] sm:$0xff]
      %v213 = vld [vmem:[%s195 + $0x88] sm:$0xff]
      %v214 = vld [vmem:[%s195 + $0x90] sm:$0xff]
      %v215 = vld [vmem:[%s195 + $0x98] sm:$0xff]
      %v216 = vld [vmem:[%s195 + $0xa0] sm:$0xff]
      %v217 = vld [vmem:[%s195 + $0xa8] sm:$0xff]
      %v218 = vld [vmem:[%s195 + $0xb0] sm:$0xff]
      %v219 = vld [vmem:[%s195 + $0xb8] sm:$0xff]
      %v220 = vld [vmem:[%s195 + $0xc0] sm:$0xff]
      %v221 = vld [vmem:[%s195 + $0xc8] sm:$0xff]
      %v222 = vld [vmem:[%s195 + $0xd0] sm:$0xff]
      %v223 = vld [vmem:[%s195 + $0xd8] sm:$0xff]
      %v224 = vld [vmem:[%s195 + $0xe0] sm:$0xff]
      %v225 = vld [vmem:[%s195 + $0xe8] sm:$0xff]
      %v226 = vld [vmem:[%s195 + $0xf0] sm:$0xff]
      %v227 = vld [vmem:[%s195 + $0xf8] sm:$0xff]
      %v228 = vld [vmem:[%s195 + $0x100] sm:$0xff]
      %v229 = vld [vmem:[%s195 + $0x108] sm:$0xff]
      %v230 = vld [vmem:[%s195 + $0x110] sm:$0xff]
      %v231 = vld [vmem:[%s195 + $0x118] sm:$0xff]
      %v232 = vld [vmem:[%s195 + $0x120] sm:$0xff]
      %v233 = vld [vmem:[%s195 + $0x128] sm:$0xff]
      %v234 = vld [vmem:[%s195 + $0x130] sm:$0xff]
      %v235 = vld [vmem:[%s195 + $0x138] sm:$0xff]
      %v236 = vld [vmem:[%s195 + $0x140] sm:$0xff]
      %v237 = vld [vmem:[%s1] sm:$0xff]
      %s238 = scalar_lea.vmem %s1, 8
      %v239 = vld [vmem:[%s238] sm:$0xff]
      %vm277 = vcmask 1046528
      %v278 = vrot.slane %v196, 1
      %v279 = vrot.slane %v197, 1
      %v280 = vsel %vm277, %v278, %v279
      %v281 = vrot.slane %v198, 1
      %v282 = vsel %vm277, %v279, %v281
      %v283 = vrot.slane %v199, 1
      %v284 = vsel %vm277, %v281, %v283
      %v285 = vrot.slane %v200, 1
      %v286 = vsel %vm277, %v283, %v285
      %v287 = vrot.slane %v201, 1
      %v288 = vsel %vm277, %v285, %v287
      %v289 = vrot.slane %v202, 1
      %v290 = vsel %vm277, %v287, %v289
      %v291 = vrot.slane %v203, 1
      %v292 = vsel %vm277, %v289, %v291
      %v293 = vrot.slane %v204, 1
      %v294 = vsel %vm277, %v291, %v293
      %v295 = vrot.slane %v205, 1
      %v296 = vsel %vm277, %v293, %v295
      %v297 = vrot.slane %v206, 1
      %v298 = vsel %vm277, %v295, %v297
      %v299 = vrot.slane %v207, 1
      %v300 = vsel %vm277, %v297, %v299
      %v301 = vrot.slane %v208, 1
      %v302 = vsel %vm277, %v299, %v301
      %v303 = vrot.slane %v209, 1
      %v304 = vsel %vm277, %v301, %v303
      %v305 = vrot.slane %v210, 1
      %v306 = vsel %vm277, %v303, %v305
      %v307 = vrot.slane %v211, 1
      %v308 = vsel %vm277, %v305, %v307
      %v309 = vrot.slane %v212, 1
      %v310 = vsel %vm277, %v307, %v309
      %v311 = vrot.slane %v213, 1
      %v312 = vsel %vm277, %v309, %v311
      %v313 = vrot.slane %v214, 1
      %v314 = vsel %vm277, %v311, %v313
      %v315 = vrot.slane %v215, 1
      %v316 = vsel %vm277, %v313, %v315
      %v317 = vrot.slane %v216, 1
      %v318 = vsel %vm277, %v315, %v317
      %v319 = vrot.slane %v217, 1
      %v320 = vsel %vm277, %v317, %v319
      %v321 = vrot.slane %v218, 1
      %v322 = vsel %vm277, %v319, %v321
      %v323 = vrot.slane %v219, 1
      %v324 = vsel %vm277, %v321, %v323
      %v325 = vrot.slane %v220, 1
      %v326 = vsel %vm277, %v323, %v325
      %v327 = vrot.slane %v221, 1
      %v328 = vsel %vm277, %v325, %v327
      %v329 = vrot.slane %v222, 1
      %v330 = vsel %vm277, %v327, %v329
      %v331 = vrot.slane %v223, 1
      %v332 = vsel %vm277, %v329, %v331
      %v333 = vrot.slane %v224, 1
      %v334 = vsel %vm277, %v331, %v333
      %v335 = vrot.slane %v225, 1
      %v336 = vsel %vm277, %v333, %v335
      %v337 = vrot.slane %v226, 1
      %v338 = vsel %vm277, %v335, %v337
      %v339 = vrot.slane %v227, 1
      %v340 = vsel %vm277, %v337, %v339
      %v341 = vrot.slane %v228, 1
      %v342 = vsel %vm277, %v339, %v341
      %v343 = vrot.slane %v229, 1
      %v344 = vsel %vm277, %v341, %v343
      %v345 = vrot.slane %v230, 1
      %v346 = vsel %vm277, %v343, %v345
      %v347 = vrot.slane %v231, 1
      %v348 = vsel %vm277, %v345, %v347
      %v349 = vrot.slane %v232, 1
      %v350 = vsel %vm277, %v347, %v349
      %vm351 = vcmask 64512
      %v352 = vsel %vm351, %v280, 0
      %v354 = vsel %vm351, %v282, 0
      %v356 = vsel %vm351, %v284, 0
      %v358 = vsel %vm351, %v286, 0
      %v360 = vsel %vm351, %v288, 0
      %v362 = vsel %vm351, %v290, 0
      %v364 = vsel %vm351, %v292, 0
      %v366 = vsel %vm351, %v294, 0
      %v368 = vsel %vm351, %v296, 0
      %v370 = vsel %vm351, %v298, 0
      %v372 = vsel %vm351, %v300, 0
      %v374 = vsel %vm351, %v302, 0
      %v376 = vsel %vm351, %v304, 0
      %v378 = vsel %vm351, %v306, 0
      %v380 = vsel %vm351, %v308, 0
      %v382 = vsel %vm351, %v310, 0
      %v384 = vsel %vm351, %v312, 0
      %v386 = vsel %vm351, %v314, 0
      %v388 = vsel %vm351, %v316, 0
      %v390 = vsel %vm351, %v318, 0
      %v392 = vsel %vm351, %v320, 0
      %v394 = vsel %vm351, %v322, 0
      %v396 = vsel %vm351, %v324, 0
      %v398 = vsel %vm351, %v326, 0
      %v400 = vsel %vm351, %v328, 0
      %v402 = vsel %vm351, %v330, 0
      %v404 = vsel %vm351, %v332, 0
      %v406 = vsel %vm351, %v334, 0
      %v408 = vsel %vm351, %v336, 0
      %v410 = vsel %vm351, %v338, 0
      %v412 = vsel %vm351, %v340, 0
      %v414 = vsel %vm351, %v342, 0
      %v416 = vsel %vm351, %v344, 0
      %v418 = vsel %vm351, %v346, 0
      %v420 = vsel %vm351, %v348, 0
      %v422 = vsel %vm351, %v350, 0
      %424 = vmatprep.subr.mxu0 0.0
      %425 = vmatpush1.msra.mxu0 %v239
      %426 = vmatprep.subr.mxu0 0.0
      %427 = vmatpush1.msra.mxu0 0.0
      %428 = vmatprep.subr.mxu0 0.0
      %429 = vmatpush1.msra.mxu0 0.0
      %430 = vmatprep.subr.mxu0 0.0
      %431 = vmatpush1.msra.mxu0 0.0
      %432 = vmatprep.subr.mxu0 0.0
      %433 = vmatpush1.msra.mxu0 0.0
      %434 = vmatprep.subr.mxu0 0.0
      %435 = vmatpush1.msra.mxu0 0.0
      %436 = vmatprep.subr.mxu0 0.0
      %437 = vmatpush1.msra.mxu0 0.0
      %438 = vmatprep.subr.mxu0 0.0
      %439 = vmatpush1.msra.mxu0 0.0
      %440 = vmatprep.subr.mxu0 0.0
      %441 = vmatpush1.msra.mxu0 0.0
      %442 = vmatprep.subr.mxu0 0.0
      %443 = vmatpush1.msra.mxu0 0.0
      %444 = vmatprep.subr.mxu0 0.0
      %445 = vmatpush1.msra.mxu0 0.0
      %446 = vmatprep.subr.mxu0 0.0
      %447 = vmatpush1.msra.mxu0 0.0
      %448 = vmatprep.subr.mxu0 0.0
      %449 = vmatpush1.msra.mxu0 0.0
      %450 = vmatprep.subr.mxu0 0.0
      %451 = vmatpush1.msra.mxu0 0.0
      %452 = vmatprep.subr.mxu0 0.0
      %453 = vmatpush1.msra.mxu0 0.0
      %454 = vmatprep.subr.mxu0 0.0
      %455 = vmatpush1.msra.mxu0 0.0
      %456 = vmatprep.subr.mxu0 0.0
      %457 = vmatpush1.msra.mxu0 0.0
      %458 = vmatprep.subr.mxu0 0.0
      %459 = vmatpush1.msra.mxu0 0.0
      %460 = vmatprep.subr.mxu0 0.0
      %461 = vmatpush1.msra.mxu0 0.0
      %462 = vmatprep.subr.mxu0 0.0
      %463 = vmatpush1.msra.mxu0 0.0
      %464 = vmatprep.subr.mxu0 0.0
      %465 = vmatpush1.msra.mxu0 0.0
      %466 = vmatprep.subr.mxu0 0.0
      %467 = vmatpush1.msra.mxu0 0.0
      %468 = vmatprep.subr.mxu0 0.0
      %469 = vmatpush1.msra.mxu0 0.0
      %470 = vmatprep.subr.mxu0 0.0
      %471 = vmatpush1.msra.mxu0 0.0
      %472 = vmatprep.subr.mxu0 0.0
      %473 = vmatpush1.msra.mxu0 0.0
      %474 = vmatprep.subr.mxu0 0.0
      %475 = vmatpush1.msra.mxu0 0.0
      %476 = vmatprep.subr.mxu0 0.0
      %477 = vmatpush1.msra.mxu0 0.0
      %478 = vmatprep.subr.mxu0 0.0
      %479 = vmatpush1.msra.mxu0 0.0
      %480 = vmatprep.subr.mxu0 0.0
      %481 = vmatpush1.msra.mxu0 0.0
      %482 = vmatprep.subr.mxu0 0.0
      %483 = vmatpush1.msra.mxu0 0.0
      %484 = vmatprep.subr.mxu0 0.0
      %485 = vmatpush1.msra.mxu0 0.0
      %486 = vmatprep.subr.mxu0 0.0
      %487 = vmatpush1.msra.mxu0 0.0
      %488 = vmatprep.mubr.f32.mxu0 0.0
      %489 = vmatmul.mubr.f32.gmra.mrb[0].mxu0 %v352
      %v490 = vpop.f32.mrb[0].mxu0
      %v491 = vadd.f32 0.0, %v490
      %v492 = vpop.f32.mrb[0].mxu0
      %493 = vmatprep.mubr.f32.mxu0 0.0
      %494 = vmatmul.mubr.f32.gmra.mrb[0].mxu0 %v354
      %v495 = vpop.f32.mrb[0].mxu0
      %v496 = vadd.f32 0.0, %v495
      %v497 = vpop.f32.mrb[0].mxu0
      %498 = vmatprep.mubr.f32.mxu0 0.0
      %499 = vmatmul.mubr.f32.gmra.mrb[0].mxu0 %v356
      %v500 = vpop.f32.mrb[0].mxu0
      %v501 = vadd.f32 0.0, %v500
      %v502 = vpop.f32.mrb[0].mxu0
      %503 = vmatprep.mubr.f32.mxu0 0.0
      %504 = vmatmul.mubr.f32.gmra.mrb[0].mxu0 %v358
      %v505 = vpop.f32.mrb[0].mxu0
      %v506 = vadd.f32 0.0, %v505
      %v507 = vpop.f32.mrb[0].mxu0
      %508 = vmatprep.mubr.f32.mxu0 0.0
      %509 = vmatmul.mubr.f32.gmra.mrb[0].mxu0 %v360
      %v510 = vpop.f32.mrb[0].mxu0
      %v511 = vadd.f32 0.0, %v510
      %v512 = vpop.f32.mrb[0].mxu0
      %513 = vmatprep.mubr.f32.mxu0 0.0
      %514 = vmatmul.mubr.f32.gmra.mrb[0].mxu0 %v362
      %v515 = vpop.f32.mrb[0].mxu0
      %v516 = vadd.f32 0.0, %v515
      %v517 = vpop.f32.mrb[0].mxu0
      %518 = vmatprep.mubr.f32.mxu0 0.0
      %519 = vmatmul.mubr.f32.gmra.mrb[0].mxu0 %v364
      %v520 = vpop.f32.mrb[0].mxu0
      %v521 = vadd.f32 0.0, %v520
      %v522 = vpop.f32.mrb[0].mxu0
      %523 = vmatprep.mubr.f32.mxu0 0.0
      %524 = vmatmul.mubr.f32.gmra.mrb[0].mxu0 %v366
      %v525 = vpop.f32.mrb[0].mxu0
      %v526 = vadd.f32 0.0, %v525
      %v527 = vpop.f32.mrb[0].mxu0
      %528 = vmatprep.mubr.f32.mxu0 0.0
      %529 = vmatmul.mubr.f32.gmra.mrb[0].mxu0 %v368
      %v530 = vpop.f32.mrb[0].mxu0
      %v531 = vadd.f32 0.0, %v530
      %v532 = vpop.f32.mrb[0].mxu0
      %533 = vmatprep.mubr.f32.mxu0 0.0
      %534 = vmatmul.mubr.f32.gmra.mrb[0].mxu0 %v370
      %v535 = vpop.f32.mrb[0].mxu0
      %v536 = vadd.f32 0.0, %v535
      %v537 = vpop.f32.mrb[0].mxu0
      %538 = vmatprep.mubr.f32.mxu0 0.0
      %539 = vmatmul.mubr.f32.gmra.mrb[0].mxu0 %v372
      %v540 = vpop.f32.mrb[0].mxu0
      %v541 = vadd.f32 0.0, %v540
      %v542 = vpop.f32.mrb[0].mxu0
      %543 = vmatprep.mubr.f32.mxu0 0.0
      %544 = vmatmul.mubr.f32.gmra.mrb[0].mxu0 %v374
      %v545 = vpop.f32.mrb[0].mxu0
      %v546 = vadd.f32 0.0, %v545
      %v547 = vpop.f32.mrb[0].mxu0
      %548 = vmatprep.mubr.f32.mxu0 0.0
      %549 = vmatmul.mubr.f32.gmra.mrb[0].mxu0 %v376
      %v550 = vpop.f32.mrb[0].mxu0
      %v551 = vadd.f32 0.0, %v550
      %v552 = vpop.f32.mrb[0].mxu0
      %553 = vmatprep.mubr.f32.mxu0 0.0
      %554 = vmatmul.mubr.f32.gmra.mrb[0].mxu0 %v378
      %v555 = vpop.f32.mrb[0].mxu0
      %v556 = vadd.f32 0.0, %v555
      %v557 = vpop.f32.mrb[0].mxu0
      %558 = vmatprep.mubr.f32.mxu0 0.0
      %559 = vmatmul.mubr.f32.gmra.mrb[0].mxu0 %v380
      %v560 = vpop.f32.mrb[0].mxu0
      %v561 = vadd.f32 0.0, %v560
      %v562 = vpop.f32.mrb[0].mxu0
      %563 = vmatprep.mubr.f32.mxu0 0.0
      %564 = vmatmul.mubr.f32.gmra.mrb[0].mxu0 %v382
      %v565 = vpop.f32.mrb[0].mxu0
      %v566 = vadd.f32 0.0, %v565
      %v567 = vpop.f32.mrb[0].mxu0
      %568 = vmatprep.mubr.f32.mxu0 0.0
      %569 = vmatmul.mubr.f32.gmra.mrb[0].mxu0 %v384
      %v570 = vpop.f32.mrb[0].mxu0
      %v571 = vadd.f32 0.0, %v570
      %v572 = vpop.f32.mrb[0].mxu0
      %573 = vmatprep.mubr.f32.mxu0 0.0
      %574 = vmatmul.mubr.f32.gmra.mrb[0].mxu0 %v386
      %v575 = vpop.f32.mrb[0].mxu0
      %v576 = vadd.f32 0.0, %v575
      %v577 = vpop.f32.mrb[0].mxu0
      %578 = vmatprep.mubr.f32.mxu0 0.0
      %579 = vmatmul.mubr.f32.gmra.mrb[0].mxu0 %v388
      %v580 = vpop.f32.mrb[0].mxu0
      %v581 = vadd.f32 0.0, %v580
      %v582 = vpop.f32.mrb[0].mxu0
      %583 = vmatprep.mubr.f32.mxu0 0.0
      %584 = vmatmul.mubr.f32.gmra.mrb[0].mxu0 %v390
      %v585 = vpop.f32.mrb[0].mxu0
      %v586 = vadd.f32 0.0, %v585
      %v587 = vpop.f32.mrb[0].mxu0
      %588 = vmatprep.mubr.f32.mxu0 0.0
      %589 = vmatmul.mubr.f32.gmra.mrb[0].mxu0 %v392
      %v590 = vpop.f32.mrb[0].mxu0
      %v591 = vadd.f32 0.0, %v590
      %v592 = vpop.f32.mrb[0].mxu0
      %593 = vmatprep.mubr.f32.mxu0 0.0
      %594 = vmatmul.mubr.f32.gmra.mrb[0].mxu0 %v394
      %v595 = vpop.f32.mrb[0].mxu0
      %v596 = vadd.f32 0.0, %v595
      %v597 = vpop.f32.mrb[0].mxu0
      %598 = vmatprep.mubr.f32.mxu0 0.0
      %599 = vmatmul.mubr.f32.gmra.mrb[0].mxu0 %v396
      %v600 = vpop.f32.mrb[0].mxu0
      %v601 = vadd.f32 0.0, %v600
      %v602 = vpop.f32.mrb[0].mxu0
      %603 = vmatprep.mubr.f32.mxu0 0.0
      %604 = vmatmul.mubr.f32.gmra.mrb[0].mxu0 %v398
      %v605 = vpop.f32.mrb[0].mxu0
      %v606 = vadd.f32 0.0, %v605
      %v607 = vpop.f32.mrb[0].mxu0
      %608 = vmatprep.mubr.f32.mxu0 0.0
      %609 = vmatmul.mubr.f32.gmra.mrb[0].mxu0 %v400
      %v610 = vpop.f32.mrb[0].mxu0
      %v611 = vadd.f32 0.0, %v610
      %v612 = vpop.f32.mrb[0].mxu0
      %613 = vmatprep.mubr.f32.mxu0 0.0
      %614 = vmatmul.mubr.f32.gmra.mrb[0].mxu0 %v402
      %v615 = vpop.f32.mrb[0].mxu0
      %v616 = vadd.f32 0.0, %v615
      %v617 = vpop.f32.mrb[0].mxu0
      %618 = vmatprep.mubr.f32.mxu0 0.0
      %619 = vmatmul.mubr.f32.gmra.mrb[0].mxu0 %v404
      %v620 = vpop.f32.mrb[0].mxu0
      %v621 = vadd.f32 0.0, %v620
      %v622 = vpop.f32.mrb[0].mxu0
      %623 = vmatprep.mubr.f32.mxu0 0.0
      %624 = vmatmul.mubr.f32.gmra.mrb[0].mxu0 %v406
      %v625 = vpop.f32.mrb[0].mxu0
      %v626 = vadd.f32 0.0, %v625
      %v627 = vpop.f32.mrb[0].mxu0
      %628 = vmatprep.mubr.f32.mxu0 0.0
      %629 = vmatmul.mubr.f32.gmra.mrb[0].mxu0 %v408
      %v630 = vpop.f32.mrb[0].mxu0
      %v631 = vadd.f32 0.0, %v630
      %v632 = vpop.f32.mrb[0].mxu0
      %633 = vmatprep.mubr.f32.mxu0 0.0
      %634 = vmatmul.mubr.f32.gmra.mrb[0].mxu0 %v410
      %v635 = vpop.f32.mrb[0].mxu0
      %v636 = vadd.f32 0.0, %v635
      %v637 = vpop.f32.mrb[0].mxu0
      %638 = vmatprep.mubr.f32.mxu0 0.0
      %639 = vmatmul.mubr.f32.gmra.mrb[0].mxu0 %v412
      %v640 = vpop.f32.mrb[0].mxu0
      %v641 = vadd.f32 0.0, %v640
      %v642 = vpop.f32.mrb[0].mxu0
      %643 = vmatprep.mubr.f32.mxu0 0.0
      %644 = vmatmul.mubr.f32.gmra.mrb[0].mxu0 %v414
      %v645 = vpop.f32.mrb[0].mxu0
      %v646 = vadd.f32 0.0, %v645
      %v647 = vpop.f32.mrb[0].mxu0
      %648 = vmatprep.mubr.f32.mxu0 0.0
      %649 = vmatmul.mubr.f32.gmra.mrb[0].mxu0 %v416
      %v650 = vpop.f32.mrb[0].mxu0
      %v651 = vadd.f32 0.0, %v650
      %v652 = vpop.f32.mrb[0].mxu0
      %653 = vmatprep.mubr.f32.mxu0 0.0
      %654 = vmatmul.mubr.f32.gmra.mrb[0].mxu0 %v418
      %v655 = vpop.f32.mrb[0].mxu0
      %v656 = vadd.f32 0.0, %v655
      %v657 = vpop.f32.mrb[0].mxu0
      %658 = vmatprep.mubr.f32.mxu0 0.0
      %659 = vmatmul.mubr.f32.gmra.mrb[0].mxu0 %v420
      %v660 = vpop.f32.mrb[0].mxu0
      %v661 = vadd.f32 0.0, %v660
      %v662 = vpop.f32.mrb[0].mxu0
      %663 = vmatprep.mubr.f32.mxu0 0.0
      %664 = vmatmul.mubr.f32.gmra.mrb[0].mxu0 %v422
      %v665 = vpop.f32.mrb[0].mxu0
      %v666 = vadd.f32 0.0, %v665
      %v667 = vpop.f32.mrb[0].mxu0
      %668 = vdwg.mxu0
      %v669 = vsel %vm351, %v196, 0
      %v671 = vsel %vm351, %v197, 0
      %v673 = vsel %vm351, %v198, 0
      %v675 = vsel %vm351, %v199, 0
      %v677 = vsel %vm351, %v200, 0
      %v679 = vsel %vm351, %v201, 0
      %v681 = vsel %vm351, %v202, 0
      %v683 = vsel %vm351, %v203, 0
      %v685 = vsel %vm351, %v204, 0
      %v687 = vsel %vm351, %v205, 0
      %v689 = vsel %vm351, %v206, 0
      %v691 = vsel %vm351, %v207, 0
      %v693 = vsel %vm351, %v208, 0
      %v695 = vsel %vm351, %v209, 0
      %v697 = vsel %vm351, %v210, 0
      %v699 = vsel %vm351, %v211, 0
      %v701 = vsel %vm351, %v212, 0
      %v703 = vsel %vm351, %v213, 0
      %v705 = vsel %vm351, %v214, 0
      %v707 = vsel %vm351, %v215, 0
      %v709 = vsel %vm351, %v216, 0
      %v711 = vsel %vm351, %v217, 0
      %v713 = vsel %vm351, %v218, 0
      %v715 = vsel %vm351, %v219, 0
      %v717 = vsel %vm351, %v220, 0
      %v719 = vsel %vm351, %v221, 0
      %v721 = vsel %vm351, %v222, 0
      %v723 = vsel %vm351, %v223, 0
      %v725 = vsel %vm351, %v224, 0
      %v727 = vsel %vm351, %v225, 0
      %v729 = vsel %vm351, %v226, 0
      %v731 = vsel %vm351, %v227, 0
      %v733 = vsel %vm351, %v228, 0
      %v735 = vsel %vm351, %v229, 0
      %v737 = vsel %vm351, %v230, 0
      %v739 = vsel %vm351, %v231, 0
      %741 = vmatprep.subr.mxu0 0.0
      %742 = vmatpush1.msra.mxu0 %v237
      %743 = vmatprep.subr.mxu0 0.0
      %744 = vmatpush1.msra.mxu0 0.0
      %745 = vmatprep.subr.mxu0 0.0
      %746 = vmatpush1.msra.mxu0 0.0
      %747 = vmatprep.subr.mxu0 0.0
      %748 = vmatpush1.msra.mxu0 0.0
      %749 = vmatprep.subr.mxu0 0.0
      %750 = vmatpush1.msra.mxu0 0.0
      %751 = vmatprep.subr.mxu0 0.0
      %752 = vmatpush1.msra.mxu0 0.0
      %753 = vmatprep.subr.mxu0 0.0
      %754 = vmatpush1.msra.mxu0 0.0
      %755 = vmatprep.subr.mxu0 0.0
      %756 = vmatpush1.msra.mxu0 0.0
      %757 = vmatprep.subr.mxu0 0.0
      %758 = vmatpush1.msra.mxu0 0.0
      %759 = vmatprep.subr.mxu0 0.0
      %760 = vmatpush1.msra.mxu0 0.0
      %761 = vmatprep.subr.mxu0 0.0
      %762 = vmatpush1.msra.mxu0 0.0
      %763 = vmatprep.subr.mxu0 0.0
      %764 = vmatpush1.msra.mxu0 0.0
      %765 = vmatprep.subr.mxu0 0.0
      %766 = vmatpush1.msra.mxu0 0.0
      %767 = vmatprep.subr.mxu0 0.0
      %768 = vmatpush1.msra.mxu0 0.0
      %769 = vmatprep.subr.mxu0 0.0
      %770 = vmatpush1.msra.mxu0 0.0
      %771 = vmatprep.subr.mxu0 0.0
      %772 = vmatpush1.msra.mxu0 0.0
      %773 = vmatprep.subr.mxu0 0.0
      %774 = vmatpush1.msra.mxu0 0.0
      %775 = vmatprep.subr.mxu0 0.0
      %776 = vmatpush1.msra.mxu0 0.0
      %777 = vmatprep.subr.mxu0 0.0
      %778 = vmatpush1.msra.mxu0 0.0
      %779 = vmatprep.subr.mxu0 0.0
      %780 = vmatpush1.msra.mxu0 0.0
      %781 = vmatprep.subr.mxu0 0.0
      %782 = vmatpush1.msra.mxu0 0.0
      %783 = vmatprep.subr.mxu0 0.0
      %784 = vmatpush1.msra.mxu0 0.0
      %785 = vmatprep.subr.mxu0 0.0
      %786 = vmatpush1.msra.mxu0 0.0
      %787 = vmatprep.subr.mxu0 0.0
      %788 = vmatpush1.msra.mxu0 0.0
      %789 = vmatprep.subr.mxu0 0.0
      %790 = vmatpush1.msra.mxu0 0.0
      %791 = vmatprep.subr.mxu0 0.0
      %792 = vmatpush1.msra.mxu0 0.0
      %793 = vmatprep.subr.mxu0 0.0
      %794 = vmatpush1.msra.mxu0 0.0
      %795 = vmatprep.subr.mxu0 0.0
      %796 = vmatpush1.msra.mxu0 0.0
      %797 = vmatprep.subr.mxu0 0.0
      %798 = vmatpush1.msra.mxu0 0.0
      %799 = vmatprep.subr.mxu0 0.0
      %800 = vmatpush1.msra.mxu0 0.0
      %801 = vmatprep.subr.mxu0 0.0
      %802 = vmatpush1.msra.mxu0 0.0
      %803 = vmatprep.subr.mxu0 0.0
      %804 = vmatpush1.msra.mxu0 0.0
      %805 = vmatprep.mubr.f32.mxu0 0.0
      %806 = vmatmul.mubr.f32.gmra.mrb[0].mxu0 %v669
      %v807 = vpop.f32.mrb[0].mxu0
      %v808 = vadd.f32 %v491, %v807
      %v809 = vpop.f32.mrb[0].mxu0
      %810 = vmatprep.mubr.f32.mxu0 0.0
      %811 = vmatmul.mubr.f32.gmra.mrb[0].mxu0 %v671
      %v812 = vpop.f32.mrb[0].mxu0
      %v813 = vadd.f32 %v496, %v812
      %v814 = vpop.f32.mrb[0].mxu0
      %815 = vmatprep.mubr.f32.mxu0 0.0
      %816 = vmatmul.mubr.f32.gmra.mrb[0].mxu0 %v673
      %v817 = vpop.f32.mrb[0].mxu0
      %v818 = vadd.f32 %v501, %v817
      %v819 = vpop.f32.mrb[0].mxu0
      %820 = vmatprep.mubr.f32.mxu0 0.0
      %821 = vmatmul.mubr.f32.gmra.mrb[0].mxu0 %v675
      %v822 = vpop.f32.mrb[0].mxu0
      %v823 = vadd.f32 %v506, %v822
      %v824 = vpop.f32.mrb[0].mxu0
      %825 = vmatprep.mubr.f32.mxu0 0.0
      %826 = vmatmul.mubr.f32.gmra.mrb[0].mxu0 %v677
      %v827 = vpop.f32.mrb[0].mxu0
      %v828 = vadd.f32 %v511, %v827
      %v829 = vpop.f32.mrb[0].mxu0
      %830 = vmatprep.mubr.f32.mxu0 0.0
      %831 = vmatmul.mubr.f32.gmra.mrb[0].mxu0 %v679
      %v832 = vpop.f32.mrb[0].mxu0
      %v833 = vadd.f32 %v516, %v832
      %v834 = vpop.f32.mrb[0].mxu0
      %835 = vmatprep.mubr.f32.mxu0 0.0
      %836 = vmatmul.mubr.f32.gmra.mrb[0].mxu0 %v681
      %v837 = vpop.f32.mrb[0].mxu0
      %v838 = vadd.f32 %v521, %v837
      %v839 = vpop.f32.mrb[0].mxu0
      %840 = vmatprep.mubr.f32.mxu0 0.0
      %841 = vmatmul.mubr.f32.gmra.mrb[0].mxu0 %v683
      %v842 = vpop.f32.mrb[0].mxu0
      %v843 = vadd.f32 %v526, %v842
      %v844 = vpop.f32.mrb[0].mxu0
      %845 = vmatprep.mubr.f32.mxu0 0.0
      %846 = vmatmul.mubr.f32.gmra.mrb[0].mxu0 %v685
      %v847 = vpop.f32.mrb[0].mxu0
      %v848 = vadd.f32 %v531, %v847
      %v849 = vpop.f32.mrb[0].mxu0
      %850 = vmatprep.mubr.f32.mxu0 0.0
      %851 = vmatmul.mubr.f32.gmra.mrb[0].mxu0 %v687
      %v852 = vpop.f32.mrb[0].mxu0
      %v853 = vadd.f32 %v536, %v852
      %v854 = vpop.f32.mrb[0].mxu0
      %855 = vmatprep.mubr.f32.mxu0 0.0
      %856 = vmatmul.mubr.f32.gmra.mrb[0].mxu0 %v689
      %v857 = vpop.f32.mrb[0].mxu0
      %v858 = vadd.f32 %v541, %v857
      %v859 = vpop.f32.mrb[0].mxu0
      %860 = vmatprep.mubr.f32.mxu0 0.0
      %861 = vmatmul.mubr.f32.gmra.mrb[0].mxu0 %v691
      %v862 = vpop.f32.mrb[0].mxu0
      %v863 = vadd.f32 %v546, %v862
      %v864 = vpop.f32.mrb[0].mxu0
      %865 = vmatprep.mubr.f32.mxu0 0.0
      %866 = vmatmul.mubr.f32.gmra.mrb[0].mxu0 %v693
      %v867 = vpop.f32.mrb[0].mxu0
      %v868 = vadd.f32 %v551, %v867
      %v869 = vpop.f32.mrb[0].mxu0
      %870 = vmatprep.mubr.f32.mxu0 0.0
      %871 = vmatmul.mubr.f32.gmra.mrb[0].mxu0 %v695
      %v872 = vpop.f32.mrb[0].mxu0
      %v873 = vadd.f32 %v556, %v872
      %v874 = vpop.f32.mrb[0].mxu0
      %875 = vmatprep.mubr.f32.mxu0 0.0
      %876 = vmatmul.mubr.f32.gmra.mrb[0].mxu0 %v697
      %v877 = vpop.f32.mrb[0].mxu0
      %v878 = vadd.f32 %v561, %v877
      %v879 = vpop.f32.mrb[0].mxu0
      %880 = vmatprep.mubr.f32.mxu0 0.0
      %881 = vmatmul.mubr.f32.gmra.mrb[0].mxu0 %v699
      %v882 = vpop.f32.mrb[0].mxu0
      %v883 = vadd.f32 %v566, %v882
      %v884 = vpop.f32.mrb[0].mxu0
      %885 = vmatprep.mubr.f32.mxu0 0.0
      %886 = vmatmul.mubr.f32.gmra.mrb[0].mxu0 %v701
      %v887 = vpop.f32.mrb[0].mxu0
      %v888 = vadd.f32 %v571, %v887
      %v889 = vpop.f32.mrb[0].mxu0
      %890 = vmatprep.mubr.f32.mxu0 0.0
      %891 = vmatmul.mubr.f32.gmra.mrb[0].mxu0 %v703
      %v892 = vpop.f32.mrb[0].mxu0
      %v893 = vadd.f32 %v576, %v892
      %v894 = vpop.f32.mrb[0].mxu0
      %895 = vmatprep.mubr.f32.mxu0 0.0
      %896 = vmatmul.mubr.f32.gmra.mrb[0].mxu0 %v705
      %v897 = vpop.f32.mrb[0].mxu0
      %v898 = vadd.f32 %v581, %v897
      %v899 = vpop.f32.mrb[0].mxu0
      %900 = vmatprep.mubr.f32.mxu0 0.0
      %901 = vmatmul.mubr.f32.gmra.mrb[0].mxu0 %v707
      %v902 = vpop.f32.mrb[0].mxu0
      %v903 = vadd.f32 %v586, %v902
      %v904 = vpop.f32.mrb[0].mxu0
      %905 = vmatprep.mubr.f32.mxu0 0.0
      %906 = vmatmul.mubr.f32.gmra.mrb[0].mxu0 %v709
      %v907 = vpop.f32.mrb[0].mxu0
      %v908 = vadd.f32 %v591, %v907
      %v909 = vpop.f32.mrb[0].mxu0
      %910 = vmatprep.mubr.f32.mxu0 0.0
      %911 = vmatmul.mubr.f32.gmra.mrb[0].mxu0 %v711
      %v912 = vpop.f32.mrb[0].mxu0
      %v913 = vadd.f32 %v596, %v912
      %v914 = vpop.f32.mrb[0].mxu0
      %915 = vmatprep.mubr.f32.mxu0 0.0
      %916 = vmatmul.mubr.f32.gmra.mrb[0].mxu0 %v713
      %v917 = vpop.f32.mrb[0].mxu0
      %v918 = vadd.f32 %v601, %v917
      %v919 = vpop.f32.mrb[0].mxu0
      %920 = vmatprep.mubr.f32.mxu0 0.0
      %921 = vmatmul.mubr.f32.gmra.mrb[0].mxu0 %v715
      %v922 = vpop.f32.mrb[0].mxu0
      %v923 = vadd.f32 %v606, %v922
      %v924 = vpop.f32.mrb[0].mxu0
      %925 = vmatprep.mubr.f32.mxu0 0.0
      %926 = vmatmul.mubr.f32.gmra.mrb[0].mxu0 %v717
      %v927 = vpop.f32.mrb[0].mxu0
      %v928 = vadd.f32 %v611, %v927
      %v929 = vpop.f32.mrb[0].mxu0
      %930 = vmatprep.mubr.f32.mxu0 0.0
      %931 = vmatmul.mubr.f32.gmra.mrb[0].mxu0 %v719
      %v932 = vpop.f32.mrb[0].mxu0
      %v933 = vadd.f32 %v616, %v932
      %v934 = vpop.f32.mrb[0].mxu0
      %935 = vmatprep.mubr.f32.mxu0 0.0
      %936 = vmatmul.mubr.f32.gmra.mrb[0].mxu0 %v721
      %v937 = vpop.f32.mrb[0].mxu0
      %v938 = vadd.f32 %v621, %v937
      %v939 = vpop.f32.mrb[0].mxu0
      %940 = vmatprep.mubr.f32.mxu0 0.0
      %941 = vmatmul.mubr.f32.gmra.mrb[0].mxu0 %v723
      %v942 = vpop.f32.mrb[0].mxu0
      %v943 = vadd.f32 %v626, %v942
      %v944 = vpop.f32.mrb[0].mxu0
      %945 = vmatprep.mubr.f32.mxu0 0.0
      %946 = vmatmul.mubr.f32.gmra.mrb[0].mxu0 %v725
      %v947 = vpop.f32.mrb[0].mxu0
      %v948 = vadd.f32 %v631, %v947
      %v949 = vpop.f32.mrb[0].mxu0
      %950 = vmatprep.mubr.f32.mxu0 0.0
      %951 = vmatmul.mubr.f32.gmra.mrb[0].mxu0 %v727
      %v952 = vpop.f32.mrb[0].mxu0
      %v953 = vadd.f32 %v636, %v952
      %v954 = vpop.f32.mrb[0].mxu0
      %955 = vmatprep.mubr.f32.mxu0 0.0
      %956 = vmatmul.mubr.f32.gmra.mrb[0].mxu0 %v729
      %v957 = vpop.f32.mrb[0].mxu0
      %v958 = vadd.f32 %v641, %v957
      %v959 = vpop.f32.mrb[0].mxu0
      %960 = vmatprep.mubr.f32.mxu0 0.0
      %961 = vmatmul.mubr.f32.gmra.mrb[0].mxu0 %v731
      %v962 = vpop.f32.mrb[0].mxu0
      %v963 = vadd.f32 %v646, %v962
      %v964 = vpop.f32.mrb[0].mxu0
      %965 = vmatprep.mubr.f32.mxu0 0.0
      %966 = vmatmul.mubr.f32.gmra.mrb[0].mxu0 %v733
      %v967 = vpop.f32.mrb[0].mxu0
      %v968 = vadd.f32 %v651, %v967
      %v969 = vpop.f32.mrb[0].mxu0
      %970 = vmatprep.mubr.f32.mxu0 0.0
      %971 = vmatmul.mubr.f32.gmra.mrb[0].mxu0 %v735
      %v972 = vpop.f32.mrb[0].mxu0
      %v973 = vadd.f32 %v656, %v972
      %v974 = vpop.f32.mrb[0].mxu0
      %975 = vmatprep.mubr.f32.mxu0 0.0
      %976 = vmatmul.mubr.f32.gmra.mrb[0].mxu0 %v737
      %v977 = vpop.f32.mrb[0].mxu0
      %v978 = vadd.f32 %v661, %v977
      %v979 = vpop.f32.mrb[0].mxu0
      %980 = vmatprep.mubr.f32.mxu0 0.0
      %981 = vmatmul.mubr.f32.gmra.mrb[0].mxu0 %v739
      %v982 = vpop.f32.mrb[0].mxu0
      %v983 = vadd.f32 %v666, %v982
      %v984 = vpop.f32.mrb[0].mxu0
      %985 = vdwg.mxu0
      %s986 = scalar_lea.vmem %s1, 16
      %v987 = vld [vmem:[%s986] sm:$0xff]
      %vm988 = vcmask 1045504
      %v989 = vrot.slane %v196, 2
      %v990 = vrot.slane %v197, 2
      %v991 = vsel %vm988, %v989, %v990
      %v992 = vrot.slane %v198, 2
      %v993 = vsel %vm988, %v990, %v992
      %v994 = vrot.slane %v199, 2
      %v995 = vsel %vm988, %v992, %v994
      %v996 = vrot.slane %v200, 2
      %v997 = vsel %vm988, %v994, %v996
      %v998 = vrot.slane %v201, 2
      %v999 = vsel %vm988, %v996, %v998
      %v1000 = vrot.slane %v202, 2
      %v1001 = vsel %vm988, %v998, %v1000
      %v1002 = vrot.slane %v203, 2
      %v1003 = vsel %vm988, %v1000, %v1002
      %v1004 = vrot.slane %v204, 2
      %v1005 = vsel %vm988, %v1002, %v1004
      %v1006 = vrot.slane %v205, 2
      %v1007 = vsel %vm988, %v1004, %v1006
      %v1008 = vrot.slane %v206, 2
      %v1009 = vsel %vm988, %v1006, %v1008
      %v1010 = vrot.slane %v207, 2
      %v1011 = vsel %vm988, %v1008, %v1010
      %v1012 = vrot.slane %v208, 2
      %v1013 = vsel %vm988, %v1010, %v1012
      %v1014 = vrot.slane %v209, 2
      %v1015 = vsel %vm988, %v1012, %v1014
      %v1016 = vrot.slane %v210, 2
      %v1017 = vsel %vm988, %v1014, %v1016
      %v1018 = vrot.slane %v211, 2
      %v1019 = vsel %vm988, %v1016, %v1018
      %v1020 = vrot.slane %v212, 2
      %v1021 = vsel %vm988, %v1018, %v1020
      %v1022 = vrot.slane %v213, 2
      %v1023 = vsel %vm988, %v1020, %v1022
      %v1024 = vrot.slane %v214, 2
      %v1025 = vsel %vm988, %v1022, %v1024
      %v1026 = vrot.slane %v215, 2
      %v1027 = vsel %vm988, %v1024, %v1026
      %v1028 = vrot.slane %v216, 2
      %v1029 = vsel %vm988, %v1026, %v1028
      %v1030 = vrot.slane %v217, 2
      %v1031 = vsel %vm988, %v1028, %v1030
      %v1032 = vrot.slane %v218, 2
      %v1033 = vsel %vm988, %v1030, %v1032
      %v1034 = vrot.slane %v219, 2
      %v1035 = vsel %vm988, %v1032, %v1034
      %v1036 = vrot.slane %v220, 2
      %v1037 = vsel %vm988, %v1034, %v1036
      %v1038 = vrot.slane %v221, 2
      %v1039 = vsel %vm988, %v1036, %v1038
      %v1040 = vrot.slane %v222, 2
      %v1041 = vsel %vm988, %v1038, %v1040
      %v1042 = vrot.slane %v223, 2
      %v1043 = vsel %vm988, %v1040, %v1042
      %v1044 = vrot.slane %v224, 2
      %v1045 = vsel %vm988, %v1042, %v1044
      %v1046 = vrot.slane %v225, 2
      %v1047 = vsel %vm988, %v1044, %v1046
      %v1048 = vrot.slane %v226, 2
      %v1049 = vsel %vm988, %v1046, %v1048
      %v1050 = vrot.slane %v227, 2
      %v1051 = vsel %vm988, %v1048, %v1050
      %v1052 = vrot.slane %v228, 2
      %v1053 = vsel %vm988, %v1050, %v1052
      %v1054 = vrot.slane %v229, 2
      %v1055 = vsel %vm988, %v1052, %v1054
      %v1056 = vrot.slane %v230, 2
      %v1057 = vsel %vm988, %v1054, %v1056
      %v1058 = vrot.slane %v231, 2
      %v1059 = vsel %vm988, %v1056, %v1058
      %v1060 = vrot.slane %v232, 2
      %v1061 = vsel %vm988, %v1058, %v1060
      %v1062 = vsel %vm351, %v991, 0
      %v1064 = vsel %vm351, %v993, 0
      %v1066 = vsel %vm351, %v995, 0
      %v1068 = vsel %vm351, %v997, 0
      %v1070 = vsel %vm351, %v999, 0
      %v1072 = vsel %vm351, %v1001, 0
      %v1074 = vsel %vm351, %v1003, 0
      %v1076 = vsel %vm351, %v1005, 0
      %v1078 = vsel %vm351, %v1007, 0
      %v1080 = vsel %vm351, %v1009, 0
      %v1082 = vsel %vm351, %v1011, 0
      %v1084 = vsel %vm351, %v1013, 0
      %v1086 = vsel %vm351, %v1015, 0
      %v1088 = vsel %vm351, %v1017, 0
      %v1090 = vsel %vm351, %v1019, 0
      %v1092 = vsel %vm351, %v1021, 0
      %v1094 = vsel %vm351, %v1023, 0
      %v1096 = vsel %vm351, %v1025, 0
      %v1098 = vsel %vm351, %v1027, 0
      %v1100 = vsel %vm351, %v1029, 0
      %v1102 = vsel %vm351, %v1031, 0
      %v1104 = vsel %vm351, %v1033, 0
      %v1106 = vsel %vm351, %v1035, 0
      %v1108 = vsel %vm351, %v1037, 0
      %v1110 = vsel %vm351, %v1039, 0
      %v1112 = vsel %vm351, %v1041, 0
      %v1114 = vsel %vm351, %v1043, 0
      %v1116 = vsel %vm351, %v1045, 0
      %v1118 = vsel %vm351, %v1047, 0
      %v1120 = vsel %vm351, %v1049, 0
      %v1122 = vsel %vm351, %v1051, 0
      %v1124 = vsel %vm351, %v1053, 0
      %v1126 = vsel %vm351, %v1055, 0
      %v1128 = vsel %vm351, %v1057, 0
      %v1130 = vsel %vm351, %v1059, 0
      %v1132 = vsel %vm351, %v1061, 0
      %1134 = vmatprep.subr.mxu0 0.0
      %1135 = vmatpush1.msra.mxu0 %v987
      %1136 = vmatprep.subr.mxu0 0.0
      %1137 = vmatpush1.msra.mxu0 0.0
      %1138 = vmatprep.subr.mxu0 0.0
      %1139 = vmatpush1.msra.mxu0 0.0
      %1140 = vmatprep.subr.mxu0 0.0
      %1141 = vmatpush1.msra.mxu0 0.0
      %1142 = vmatprep.subr.mxu0 0.0
      %1143 = vmatpush1.msra.mxu0 0.0
      %1144 = vmatprep.subr.mxu0 0.0
      %1145 = vmatpush1.msra.mxu0 0.0
      %1146 = vmatprep.subr.mxu0 0.0
      %1147 = vmatpush1.msra.mxu0 0.0
      %1148 = vmatprep.subr.mxu0 0.0
      %1149 = vmatpush1.msra.mxu0 0.0
      %1150 = vmatprep.subr.mxu0 0.0
      %1151 = vmatpush1.msra.mxu0 0.0
      %1152 = vmatprep.subr.mxu0 0.0
      %1153 = vmatpush1.msra.mxu0 0.0
      %1154 = vmatprep.subr.mxu0 0.0
      %1155 = vmatpush1.msra.mxu0 0.0
      %1156 = vmatprep.subr.mxu0 0.0
      %1157 = vmatpush1.msra.mxu0 0.0
      %1158 = vmatprep.subr.mxu0 0.0
      %1159 = vmatpush1.msra.mxu0 0.0
      %1160 = vmatprep.subr.mxu0 0.0
      %1161 = vmatpush1.msra.mxu0 0.0
      %1162 = vmatprep.subr.mxu0 0.0
      %1163 = vmatpush1.msra.mxu0 0.0
      %1164 = vmatprep.subr.mxu0 0.0
      %1165 = vmatpush1.msra.mxu0 0.0
      %1166 = vmatprep.subr.mxu0 0.0
      %1167 = vmatpush1.msra.mxu0 0.0
      %1168 = vmatprep.subr.mxu0 0.0
      %1169 = vmatpush1.msra.mxu0 0.0
      %1170 = vmatprep.subr.mxu0 0.0
      %1171 = vmatpush1.msra.mxu0 0.0
      %1172 = vmatprep.subr.mxu0 0.0
      %1173 = vmatpush1.msra.mxu0 0.0
      %1174 = vmatprep.subr.mxu0 0.0
      %1175 = vmatpush1.msra.mxu0 0.0
      %1176 = vmatprep.subr.mxu0 0.0
      %1177 = vmatpush1.msra.mxu0 0.0
      %1178 = vmatprep.subr.mxu0 0.0
      %1179 = vmatpush1.msra.mxu0 0.0
      %1180 = vmatprep.subr.mxu0 0.0
      %1181 = vmatpush1.msra.mxu0 0.0
      %1182 = vmatprep.subr.mxu0 0.0
      %1183 = vmatpush1.msra.mxu0 0.0
      %1184 = vmatprep.subr.mxu0 0.0
      %1185 = vmatpush1.msra.mxu0 0.0
      %1186 = vmatprep.subr.mxu0 0.0
      %1187 = vmatpush1.msra.mxu0 0.0
      %1188 = vmatprep.subr.mxu0 0.0
      %1189 = vmatpush1.msra.mxu0 0.0
      %1190 = vmatprep.subr.mxu0 0.0
      %1191 = vmatpush1.msra.mxu0 0.0
      %1192 = vmatprep.subr.mxu0 0.0
      %1193 = vmatpush1.msra.mxu0 0.0
      %1194 = vmatprep.subr.mxu0 0.0
      %1195 = vmatpush1.msra.mxu0 0.0
      %1196 = vmatprep.subr.mxu0 0.0
      %1197 = vmatpush1.msra.mxu0 0.0
      %1198 = vmatprep.mubr.f32.mxu0 0.0
      %1199 = vmatmul.mubr.f32.gmra.mrb[0].mxu0 %v1062
      %v1200 = vpop.f32.mrb[0].mxu0
      %v1201 = vadd.f32 0.0, %v1200
      %v1202 = vpop.f32.mrb[0].mxu0
      %1203 = vmatprep.mubr.f32.mxu0 0.0
      %1204 = vmatmul.mubr.f32.gmra.mrb[0].mxu0 %v1064
      %v1205 = vpop.f32.mrb[0].mxu0
      %v1206 = vadd.f32 0.0, %v1205
      %v1207 = vpop.f32.mrb[0].mxu0
      %1208 = vmatprep.mubr.f32.mxu0 0.0
      %1209 = vmatmul.mubr.f32.gmra.mrb[0].mxu0 %v1066
      %v1210 = vpop.f32.mrb[0].mxu0
      %v1211 = vadd.f32 0.0, %v1210
      %v1212 = vpop.f32.mrb[0].mxu0
      %1213 = vmatprep.mubr.f32.mxu0 0.0
      %1214 = vmatmul.mubr.f32.gmra.mrb[0].mxu0 %v1068
      %v1215 = vpop.f32.mrb[0].mxu0
      %v1216 = vadd.f32 0.0, %v1215
      %v1217 = vpop.f32.mrb[0].mxu0
      %1218 = vmatprep.mubr.f32.mxu0 0.0
      %1219 = vmatmul.mubr.f32.gmra.mrb[0].mxu0 %v1070
      %v1220 = vpop.f32.mrb[0].mxu0
      %v1221 = vadd.f32 0.0, %v1220
      %v1222 = vpop.f32.mrb[0].mxu0
      %1223 = vmatprep.mubr.f32.mxu0 0.0
      %1224 = vmatmul.mubr.f32.gmra.mrb[0].mxu0 %v1072
      %v1225 = vpop.f32.mrb[0].mxu0
      %v1226 = vadd.f32 0.0, %v1225
      %v1227 = vpop.f32.mrb[0].mxu0
      %1228 = vmatprep.mubr.f32.mxu0 0.0
      %1229 = vmatmul.mubr.f32.gmra.mrb[0].mxu0 %v1074
      %v1230 = vpop.f32.mrb[0].mxu0
      %v1231 = vadd.f32 0.0, %v1230
      %v1232 = vpop.f32.mrb[0].mxu0
      %1233 = vmatprep.mubr.f32.mxu0 0.0
      %1234 = vmatmul.mubr.f32.gmra.mrb[0].mxu0 %v1076
      %v1235 = vpop.f32.mrb[0].mxu0
      %v1236 = vadd.f32 0.0, %v1235
      %v1237 = vpop.f32.mrb[0].mxu0
      %1238 = vmatprep.mubr.f32.mxu0 0.0
      %1239 = vmatmul.mubr.f32.gmra.mrb[0].mxu0 %v1078
      %v1240 = vpop.f32.mrb[0].mxu0
      %v1241 = vadd.f32 0.0, %v1240
      %v1242 = vpop.f32.mrb[0].mxu0
      %1243 = vmatprep.mubr.f32.mxu0 0.0
      %1244 = vmatmul.mubr.f32.gmra.mrb[0].mxu0 %v1080
      %v1245 = vpop.f32.mrb[0].mxu0
      %v1246 = vadd.f32 0.0, %v1245
      %v1247 = vpop.f32.mrb[0].mxu0
      %1248 = vmatprep.mubr.f32.mxu0 0.0
      %1249 = vmatmul.mubr.f32.gmra.mrb[0].mxu0 %v1082
      %v1250 = vpop.f32.mrb[0].mxu0
      %v1251 = vadd.f32 0.0, %v1250
      %v1252 = vpop.f32.mrb[0].mxu0
      %1253 = vmatprep.mubr.f32.mxu0 0.0
      %1254 = vmatmul.mubr.f32.gmra.mrb[0].mxu0 %v1084
      %v1255 = vpop.f32.mrb[0].mxu0
      %v1256 = vadd.f32 0.0, %v1255
      %v1257 = vpop.f32.mrb[0].mxu0
      %1258 = vmatprep.mubr.f32.mxu0 0.0
      %1259 = vmatmul.mubr.f32.gmra.mrb[0].mxu0 %v1086
      %v1260 = vpop.f32.mrb[0].mxu0
      %v1261 = vadd.f32 0.0, %v1260
      %v1262 = vpop.f32.mrb[0].mxu0
      %1263 = vmatprep.mubr.f32.mxu0 0.0
      %1264 = vmatmul.mubr.f32.gmra.mrb[0].mxu0 %v1088
      %v1265 = vpop.f32.mrb[0].mxu0
      %v1266 = vadd.f32 0.0, %v1265
      %v1267 = vpop.f32.mrb[0].mxu0
      %1268 = vmatprep.mubr.f32.mxu0 0.0
      %1269 = vmatmul.mubr.f32.gmra.mrb[0].mxu0 %v1090
      %v1270 = vpop.f32.mrb[0].mxu0
      %v1271 = vadd.f32 0.0, %v1270
      %v1272 = vpop.f32.mrb[0].mxu0
      %1273 = vmatprep.mubr.f32.mxu0 0.0
      %1274 = vmatmul.mubr.f32.gmra.mrb[0].mxu0 %v1092
      %v1275 = vpop.f32.mrb[0].mxu0
      %v1276 = vadd.f32 0.0, %v1275
      %v1277 = vpop.f32.mrb[0].mxu0
      %1278 = vmatprep.mubr.f32.mxu0 0.0
      %1279 = vmatmul.mubr.f32.gmra.mrb[0].mxu0 %v1094
      %v1280 = vpop.f32.mrb[0].mxu0
      %v1281 = vadd.f32 0.0, %v1280
      %v1282 = vpop.f32.mrb[0].mxu0
      %1283 = vmatprep.mubr.f32.mxu0 0.0
      %1284 = vmatmul.mubr.f32.gmra.mrb[0].mxu0 %v1096
      %v1285 = vpop.f32.mrb[0].mxu0
      %v1286 = vadd.f32 0.0, %v1285
      %v1287 = vpop.f32.mrb[0].mxu0
      %1288 = vmatprep.mubr.f32.mxu0 0.0
      %1289 = vmatmul.mubr.f32.gmra.mrb[0].mxu0 %v1098
      %v1290 = vpop.f32.mrb[0].mxu0
      %v1291 = vadd.f32 0.0, %v1290
      %v1292 = vpop.f32.mrb[0].mxu0
      %1293 = vmatprep.mubr.f32.mxu0 0.0
      %1294 = vmatmul.mubr.f32.gmra.mrb[0].mxu0 %v1100
      %v1295 = vpop.f32.mrb[0].mxu0
      %v1296 = vadd.f32 0.0, %v1295
      %v1297 = vpop.f32.mrb[0].mxu0
      %1298 = vmatprep.mubr.f32.mxu0 0.0
      %1299 = vmatmul.mubr.f32.gmra.mrb[0].mxu0 %v1102
      %v1300 = vpop.f32.mrb[0].mxu0
      %v1301 = vadd.f32 0.0, %v1300
      %v1302 = vpop.f32.mrb[0].mxu0
      %1303 = vmatprep.mubr.f32.mxu0 0.0
      %1304 = vmatmul.mubr.f32.gmra.mrb[0].mxu0 %v1104
      %v1305 = vpop.f32.mrb[0].mxu0
      %v1306 = vadd.f32 0.0, %v1305
      %v1307 = vpop.f32.mrb[0].mxu0
      %1308 = vmatprep.mubr.f32.mxu0 0.0
      %1309 = vmatmul.mubr.f32.gmra.mrb[0].mxu0 %v1106
      %v1310 = vpop.f32.mrb[0].mxu0
      %v1311 = vadd.f32 0.0, %v1310
      %v1312 = vpop.f32.mrb[0].mxu0
      %1313 = vmatprep.mubr.f32.mxu0 0.0
      %1314 = vmatmul.mubr.f32.gmra.mrb[0].mxu0 %v1108
      %v1315 = vpop.f32.mrb[0].mxu0
      %v1316 = vadd.f32 0.0, %v1315
      %v1317 = vpop.f32.mrb[0].mxu0
      %1318 = vmatprep.mubr.f32.mxu0 0.0
      %1319 = vmatmul.mubr.f32.gmra.mrb[0].mxu0 %v1110
      %v1320 = vpop.f32.mrb[0].mxu0
      %v1321 = vadd.f32 0.0, %v1320
      %v1322 = vpop.f32.mrb[0].mxu0
      %1323 = vmatprep.mubr.f32.mxu0 0.0
      %1324 = vmatmul.mubr.f32.gmra.mrb[0].mxu0 %v1112
      %v1325 = vpop.f32.mrb[0].mxu0
      %v1326 = vadd.f32 0.0, %v1325
      %v1327 = vpop.f32.mrb[0].mxu0
      %1328 = vmatprep.mubr.f32.mxu0 0.0
      %1329 = vmatmul.mubr.f32.gmra.mrb[0].mxu0 %v1114
      %v1330 = vpop.f32.mrb[0].mxu0
      %v1331 = vadd.f32 0.0, %v1330
      %v1332 = vpop.f32.mrb[0].mxu0
      %1333 = vmatprep.mubr.f32.mxu0 0.0
      %1334 = vmatmul.mubr.f32.gmra.mrb[0].mxu0 %v1116
      %v1335 = vpop.f32.mrb[0].mxu0
      %v1336 = vadd.f32 0.0, %v1335
      %v1337 = vpop.f32.mrb[0].mxu0
      %1338 = vmatprep.mubr.f32.mxu0 0.0
      %1339 = vmatmul.mubr.f32.gmra.mrb[0].mxu0 %v1118
      %v1340 = vpop.f32.mrb[0].mxu0
      %v1341 = vadd.f32 0.0, %v1340
      %v1342 = vpop.f32.mrb[0].mxu0
      %1343 = vmatprep.mubr.f32.mxu0 0.0
      %1344 = vmatmul.mubr.f32.gmra.mrb[0].mxu0 %v1120
      %v1345 = vpop.f32.mrb[0].mxu0
      %v1346 = vadd.f32 0.0, %v1345
      %v1347 = vpop.f32.mrb[0].mxu0
      %1348 = vmatprep.mubr.f32.mxu0 0.0
      %1349 = vmatmul.mubr.f32.gmra.mrb[0].mxu0 %v1122
      %v1350 = vpop.f32.mrb[0].mxu0
      %v1351 = vadd.f32 0.0, %v1350
      %v1352 = vpop.f32.mrb[0].mxu0
      %1353 = vmatprep.mubr.f32.mxu0 0.0
      %1354 = vmatmul.mubr.f32.gmra.mrb[0].mxu0 %v1124
      %v1355 = vpop.f32.mrb[0].mxu0
      %v1356 = vadd.f32 0.0, %v1355
      %v1357 = vpop.f32.mrb[0].mxu0
      %1358 = vmatprep.mubr.f32.mxu0 0.0
      %1359 = vmatmul.mubr.f32.gmra.mrb[0].mxu0 %v1126
      %v1360 = vpop.f32.mrb[0].mxu0
      %v1361 = vadd.f32 0.0, %v1360
      %v1362 = vpop.f32.mrb[0].mxu0
      %1363 = vmatprep.mubr.f32.mxu0 0.0
      %1364 = vmatmul.mubr.f32.gmra.mrb[0].mxu0 %v1128
      %v1365 = vpop.f32.mrb[0].mxu0
      %v1366 = vadd.f32 0.0, %v1365
      %v1367 = vpop.f32.mrb[0].mxu0
      %1368 = vmatprep.mubr.f32.mxu0 0.0
      %1369 = vmatmul.mubr.f32.gmra.mrb[0].mxu0 %v1130
      %v1370 = vpop.f32.mrb[0].mxu0
      %v1371 = vadd.f32 0.0, %v1370
      %v1372 = vpop.f32.mrb[0].mxu0
      %1373 = vmatprep.mubr.f32.mxu0 0.0
      %1374 = vmatmul.mubr.f32.gmra.mrb[0].mxu0 %v1132
      %v1375 = vpop.f32.mrb[0].mxu0
      %v1376 = vadd.f32 0.0, %v1375
      %v1377 = vpop.f32.mrb[0].mxu0
      %1378 = vdwg.mxu0
      %v1379 = vadd.f32 %v808, %v1201
      %v1380 = vadd.f32 %v813, %v1206
      %v1381 = vadd.f32 %v818, %v1211
      %v1382 = vadd.f32 %v823, %v1216
      %v1383 = vadd.f32 %v828, %v1221
      %v1384 = vadd.f32 %v833, %v1226
      %v1385 = vadd.f32 %v838, %v1231
      %v1386 = vadd.f32 %v843, %v1236
      %v1387 = vadd.f32 %v848, %v1241
      %v1388 = vadd.f32 %v853, %v1246
      %v1389 = vadd.f32 %v858, %v1251
      %v1390 = vadd.f32 %v863, %v1256
      %v1391 = vadd.f32 %v868, %v1261
      %v1392 = vadd.f32 %v873, %v1266
      %v1393 = vadd.f32 %v878, %v1271
      %v1394 = vadd.f32 %v883, %v1276
      %v1395 = vadd.f32 %v888, %v1281
      %v1396 = vadd.f32 %v893, %v1286
      %v1397 = vadd.f32 %v898, %v1291
      %v1398 = vadd.f32 %v903, %v1296
      %v1399 = vadd.f32 %v908, %v1301
      %v1400 = vadd.f32 %v913, %v1306
      %v1401 = vadd.f32 %v918, %v1311
      %v1402 = vadd.f32 %v923, %v1316
      %v1403 = vadd.f32 %v928, %v1321
      %v1404 = vadd.f32 %v933, %v1326
      %v1405 = vadd.f32 %v938, %v1331
      %v1406 = vadd.f32 %v943, %v1336
      %v1407 = vadd.f32 %v948, %v1341
      %v1408 = vadd.f32 %v953, %v1346
      %v1409 = vadd.f32 %v958, %v1351
      %v1410 = vadd.f32 %v963, %v1356
      %v1411 = vadd.f32 %v968, %v1361
      %v1412 = vadd.f32 %v973, %v1366
      %v1413 = vadd.f32 %v978, %v1371
      %v1414 = vadd.f32 %v983, %v1376
      %s1415 = scalar_lea.vmem %s1, 24
      %v1416 = vld [vmem:[%s1415] sm:$0xff]
      %v1419 = vrot.slane %v233, 2
      %v1420 = vsel %vm988, %v1060, %v1419
      %v1421 = vrot.slane %v234, 2
      %v1422 = vsel %vm988, %v1419, %v1421
      %v1423 = vsel %vm351, %v1420, 0
      %v1425 = vsel %vm351, %v1422, 0
      %1427 = vmatprep.subr.mxu0 0.0
      %1428 = vmatpush1.msra.mxu0 %v1416
      %1429 = vmatprep.subr.mxu0 0.0
      %1430 = vmatpush1.msra.mxu0 0.0
      %1431 = vmatprep.subr.mxu0 0.0
      %1432 = vmatpush1.msra.mxu0 0.0
      %1433 = vmatprep.subr.mxu0 0.0
      %1434 = vmatpush1.msra.mxu0 0.0
      %1435 = vmatprep.subr.mxu0 0.0
      %1436 = vmatpush1.msra.mxu0 0.0
      %1437 = vmatprep.subr.mxu0 0.0
      %1438 = vmatpush1.msra.mxu0 0.0
      %1439 = vmatprep.subr.mxu0 0.0
      %1440 = vmatpush1.msra.mxu0 0.0
      %1441 = vmatprep.subr.mxu0 0.0
      %1442 = vmatpush1.msra.mxu0 0.0
      %1443 = vmatprep.subr.mxu0 0.0
      %1444 = vmatpush1.msra.mxu0 0.0
      %1445 = vmatprep.subr.mxu0 0.0
      %1446 = vmatpush1.msra.mxu0 0.0
      %1447 = vmatprep.subr.mxu0 0.0
      %1448 = vmatpush1.msra.mxu0 0.0
      %1449 = vmatprep.subr.mxu0 0.0
      %1450 = vmatpush1.msra.mxu0 0.0
      %1451 = vmatprep.subr.mxu0 0.0
      %1452 = vmatpush1.msra.mxu0 0.0
      %1453 = vmatprep.subr.mxu0 0.0
      %1454 = vmatpush1.msra.mxu0 0.0
      %1455 = vmatprep.subr.mxu0 0.0
      %1456 = vmatpush1.msra.mxu0 0.0
      %1457 = vmatprep.subr.mxu0 0.0
      %1458 = vmatpush1.msra.mxu0 0.0
      %1459 = vmatprep.subr.mxu0 0.0
      %1460 = vmatpush1.msra.mxu0 0.0
      %1461 = vmatprep.subr.mxu0 0.0
      %1462 = vmatpush1.msra.mxu0 0.0
      %1463 = vmatprep.subr.mxu0 0.0
      %1464 = vmatpush1.msra.mxu0 0.0
      %1465 = vmatprep.subr.mxu0 0.0
      %1466 = vmatpush1.msra.mxu0 0.0
      %1467 = vmatprep.subr.mxu0 0.0
      %1468 = vmatpush1.msra.mxu0 0.0
      %1469 = vmatprep.subr.mxu0 0.0
      %1470 = vmatpush1.msra.mxu0 0.0
      %1471 = vmatprep.subr.mxu0 0.0
      %1472 = vmatpush1.msra.mxu0 0.0
      %1473 = vmatprep.subr.mxu0 0.0
      %1474 = vmatpush1.msra.mxu0 0.0
      %1475 = vmatprep.subr.mxu0 0.0
      %1476 = vmatpush1.msra.mxu0 0.0
      %1477 = vmatprep.subr.mxu0 0.0
      %1478 = vmatpush1.msra.mxu0 0.0
      %1479 = vmatprep.subr.mxu0 0.0
      %1480 = vmatpush1.msra.mxu0 0.0
      %1481 = vmatprep.subr.mxu0 0.0
      %1482 = vmatpush1.msra.mxu0 0.0
      %1483 = vmatprep.subr.mxu0 0.0
      %1484 = vmatpush1.msra.mxu0 0.0
      %1485 = vmatprep.subr.mxu0 0.0
      %1486 = vmatpush1.msra.mxu0 0.0
      %1487 = vmatprep.subr.mxu0 0.0
      %1488 = vmatpush1.msra.mxu0 0.0
      %1489 = vmatprep.subr.mxu0 0.0
      %1490 = vmatpush1.msra.mxu0 0.0
      %1491 = vmatprep.mubr.f32.mxu0 0.0
      %1492 = vmatmul.mubr.f32.gmra.mrb[0].mxu0 %v1066
      %v1493 = vpop.f32.mrb[0].mxu0
      %v1494 = vadd.f32 0.0, %v1493
      %v1495 = vpop.f32.mrb[0].mxu0
      %1496 = vmatprep.mubr.f32.mxu0 0.0
      %1497 = vmatmul.mubr.f32.gmra.mrb[0].mxu0 %v1068
      %v1498 = vpop.f32.mrb[0].mxu0
      %v1499 = vadd.f32 0.0, %v1498
      %v1500 = vpop.f32.mrb[0].mxu0
      %1501 = vmatprep.mubr.f32.mxu0 0.0
      %1502 = vmatmul.mubr.f32.gmra.mrb[0].mxu0 %v1070
      %v1503 = vpop.f32.mrb[0].mxu0
      %v1504 = vadd.f32 0.0, %v1503
      %v1505 = vpop.f32.mrb[0].mxu0
      %1506 = vmatprep.mubr.f32.mxu0 0.0
      %1507 = vmatmul.mubr.f32.gmra.mrb[0].mxu0 %v1072
      %v1508 = vpop.f32.mrb[0].mxu0
      %v1509 = vadd.f32 0.0, %v1508
      %v1510 = vpop.f32.mrb[0].mxu0
      %1511 = vmatprep.mubr.f32.mxu0 0.0
      %1512 = vmatmul.mubr.f32.gmra.mrb[0].mxu0 %v1074
      %v1513 = vpop.f32.mrb[0].mxu0
      %v1514 = vadd.f32 0.0, %v1513
      %v1515 = vpop.f32.mrb[0].mxu0
      %1516 = vmatprep.mubr.f32.mxu0 0.0
      %1517 = vmatmul.mubr.f32.gmra.mrb[0].mxu0 %v1076
      %v1518 = vpop.f32.mrb[0].mxu0
      %v1519 = vadd.f32 0.0, %v1518
      %v1520 = vpop.f32.mrb[0].mxu0
      %1521 = vmatprep.mubr.f32.mxu0 0.0
      %1522 = vmatmul.mubr.f32.gmra.mrb[0].mxu0 %v1078
      %v1523 = vpop.f32.mrb[0].mxu0
      %v1524 = vadd.f32 0.0, %v1523
      %v1525 = vpop.f32.mrb[0].mxu0
      %1526 = vmatprep.mubr.f32.mxu0 0.0
      %1527 = vmatmul.mubr.f32.gmra.mrb[0].mxu0 %v1080
      %v1528 = vpop.f32.mrb[0].mxu0
      %v1529 = vadd.f32 0.0, %v1528
      %v1530 = vpop.f32.mrb[0].mxu0
      %1531 = vmatprep.mubr.f32.mxu0 0.0
      %1532 = vmatmul.mubr.f32.gmra.mrb[0].mxu0 %v1082
      %v1533 = vpop.f32.mrb[0].mxu0
      %v1534 = vadd.f32 0.0, %v1533
      %v1535 = vpop.f32.mrb[0].mxu0
      %1536 = vmatprep.mubr.f32.mxu0 0.0
      %1537 = vmatmul.mubr.f32.gmra.mrb[0].mxu0 %v1084
      %v1538 = vpop.f32.mrb[0].mxu0
      %v1539 = vadd.f32 0.0, %v1538
      %v1540 = vpop.f32.mrb[0].mxu0
      %1541 = vmatprep.mubr.f32.mxu0 0.0
      %1542 = vmatmul.mubr.f32.gmra.mrb[0].mxu0 %v1086
      %v1543 = vpop.f32.mrb[0].mxu0
      %v1544 = vadd.f32 0.0, %v1543
      %v1545 = vpop.f32.mrb[0].mxu0
      %1546 = vmatprep.mubr.f32.mxu0 0.0
      %1547 = vmatmul.mubr.f32.gmra.mrb[0].mxu0 %v1088
      %v1548 = vpop.f32.mrb[0].mxu0
      %v1549 = vadd.f32 0.0, %v1548
      %v1550 = vpop.f32.mrb[0].mxu0
      %1551 = vmatprep.mubr.f32.mxu0 0.0
      %1552 = vmatmul.mubr.f32.gmra.mrb[0].mxu0 %v1090
      %v1553 = vpop.f32.mrb[0].mxu0
      %v1554 = vadd.f32 0.0, %v1553
      %v1555 = vpop.f32.mrb[0].mxu0
      %1556 = vmatprep.mubr.f32.mxu0 0.0
      %1557 = vmatmul.mubr.f32.gmra.mrb[0].mxu0 %v1092
      %v1558 = vpop.f32.mrb[0].mxu0
      %v1559 = vadd.f32 0.0, %v1558
      %v1560 = vpop.f32.mrb[0].mxu0
      %1561 = vmatprep.mubr.f32.mxu0 0.0
      %1562 = vmatmul.mubr.f32.gmra.mrb[0].mxu0 %v1094
      %v1563 = vpop.f32.mrb[0].mxu0
      %v1564 = vadd.f32 0.0, %v1563
      %v1565 = vpop.f32.mrb[0].mxu0
      %1566 = vmatprep.mubr.f32.mxu0 0.0
      %1567 = vmatmul.mubr.f32.gmra.mrb[0].mxu0 %v1096
      %v1568 = vpop.f32.mrb[0].mxu0
      %v1569 = vadd.f32 0.0, %v1568
      %v1570 = vpop.f32.mrb[0].mxu0
      %1571 = vmatprep.mubr.f32.mxu0 0.0
      %1572 = vmatmul.mubr.f32.gmra.mrb[0].mxu0 %v1098
      %v1573 = vpop.f32.mrb[0].mxu0
      %v1574 = vadd.f32 0.0, %v1573
      %v1575 = vpop.f32.mrb[0].mxu0
      %1576 = vmatprep.mubr.f32.mxu0 0.0
      %1577 = vmatmul.mubr.f32.gmra.mrb[0].mxu0 %v1100
      %v1578 = vpop.f32.mrb[0].mxu0
      %v1579 = vadd.f32 0.0, %v1578
      %v1580 = vpop.f32.mrb[0].mxu0
      %1581 = vmatprep.mubr.f32.mxu0 0.0
      %1582 = vmatmul.mubr.f32.gmra.mrb[0].mxu0 %v1102
      %v1583 = vpop.f32.mrb[0].mxu0
      %v1584 = vadd.f32 0.0, %v1583
      %v1585 = vpop.f32.mrb[0].mxu0
      %1586 = vmatprep.mubr.f32.mxu0 0.0
      %1587 = vmatmul.mubr.f32.gmra.mrb[0].mxu0 %v1104
      %v1588 = vpop.f32.mrb[0].mxu0
      %v1589 = vadd.f32 0.0, %v1588
      %v1590 = vpop.f32.mrb[0].mxu0
      %1591 = vmatprep.mubr.f32.mxu0 0.0
      %1592 = vmatmul.mubr.f32.gmra.mrb[0].mxu0 %v1106
      %v1593 = vpop.f32.mrb[0].mxu0
      %v1594 = vadd.f32 0.0, %v1593
      %v1595 = vpop.f32.mrb[0].mxu0
      %1596 = vmatprep.mubr.f32.mxu0 0.0
      %1597 = vmatmul.mubr.f32.gmra.mrb[0].mxu0 %v1108
      %v1598 = vpop.f32.mrb[0].mxu0
      %v1599 = vadd.f32 0.0, %v1598
      %v1600 = vpop.f32.mrb[0].mxu0
      %1601 = vmatprep.mubr.f32.mxu0 0.0
      %1602 = vmatmul.mubr.f32.gmra.mrb[0].mxu0 %v1110
      %v1603 = vpop.f32.mrb[0].mxu0
      %v1604 = vadd.f32 0.0, %v1603
      %v1605 = vpop.f32.mrb[0].mxu0
      %1606 = vmatprep.mubr.f32.mxu0 0.0
      %1607 = vmatmul.mubr.f32.gmra.mrb[0].mxu0 %v1112
      %v1608 = vpop.f32.mrb[0].mxu0
      %v1609 = vadd.f32 0.0, %v1608
      %v1610 = vpop.f32.mrb[0].mxu0
      %1611 = vmatprep.mubr.f32.mxu0 0.0
      %1612 = vmatmul.mubr.f32.gmra.mrb[0].mxu0 %v1114
      %v1613 = vpop.f32.mrb[0].mxu0
      %v1614 = vadd.f32 0.0, %v1613
      %v1615 = vpop.f32.mrb[0].mxu0
      %1616 = vmatprep.mubr.f32.mxu0 0.0
      %1617 = vmatmul.mubr.f32.gmra.mrb[0].mxu0 %v1116
      %v1618 = vpop.f32.mrb[0].mxu0
      %v1619 = vadd.f32 0.0, %v1618
      %v1620 = vpop.f32.mrb[0].mxu0
      %1621 = vmatprep.mubr.f32.mxu0 0.0
      %1622 = vmatmul.mubr.f32.gmra.mrb[0].mxu0 %v1118
      %v1623 = vpop.f32.mrb[0].mxu0
      %v1624 = vadd.f32 0.0, %v1623
      %v1625 = vpop.f32.mrb[0].mxu0
      %1626 = vmatprep.mubr.f32.mxu0 0.0
      %1627 = vmatmul.mubr.f32.gmra.mrb[0].mxu0 %v1120
      %v1628 = vpop.f32.mrb[0].mxu0
      %v1629 = vadd.f32 0.0, %v1628
      %v1630 = vpop.f32.mrb[0].mxu0
      %1631 = vmatprep.mubr.f32.mxu0 0.0
      %1632 = vmatmul.mubr.f32.gmra.mrb[0].mxu0 %v1122
      %v1633 = vpop.f32.mrb[0].mxu0
      %v1634 = vadd.f32 0.0, %v1633
      %v1635 = vpop.f32.mrb[0].mxu0
      %1636 = vmatprep.mubr.f32.mxu0 0.0
      %1637 = vmatmul.mubr.f32.gmra.mrb[0].mxu0 %v1124
      %v1638 = vpop.f32.mrb[0].mxu0
      %v1639 = vadd.f32 0.0, %v1638
      %v1640 = vpop.f32.mrb[0].mxu0
      %1641 = vmatprep.mubr.f32.mxu0 0.0
      %1642 = vmatmul.mubr.f32.gmra.mrb[0].mxu0 %v1126
      %v1643 = vpop.f32.mrb[0].mxu0
      %v1644 = vadd.f32 0.0, %v1643
      %v1645 = vpop.f32.mrb[0].mxu0
      %1646 = vmatprep.mubr.f32.mxu0 0.0
      %1647 = vmatmul.mubr.f32.gmra.mrb[0].mxu0 %v1128
      %v1648 = vpop.f32.mrb[0].mxu0
      %v1649 = vadd.f32 0.0, %v1648
      %v1650 = vpop.f32.mrb[0].mxu0
      %1651 = vmatprep.mubr.f32.mxu0 0.0
      %1652 = vmatmul.mubr.f32.gmra.mrb[0].mxu0 %v1130
      %v1653 = vpop.f32.mrb[0].mxu0
      %v1654 = vadd.f32 0.0, %v1653
      %v1655 = vpop.f32.mrb[0].mxu0
      %1656 = vmatprep.mubr.f32.mxu0 0.0
      %1657 = vmatmul.mubr.f32.gmra.mrb[0].mxu0 %v1132
      %v1658 = vpop.f32.mrb[0].mxu0
      %v1659 = vadd.f32 0.0, %v1658
      %v1660 = vpop.f32.mrb[0].mxu0
      %1661 = vmatprep.mubr.f32.mxu0 0.0
      %1662 = vmatmul.mubr.f32.gmra.mrb[0].mxu0 %v1423
      %v1663 = vpop.f32.mrb[0].mxu0
      %v1664 = vadd.f32 0.0, %v1663
      %v1665 = vpop.f32.mrb[0].mxu0
      %1666 = vmatprep.mubr.f32.mxu0 0.0
      %1667 = vmatmul.mubr.f32.gmra.mrb[0].mxu0 %v1425
      %v1668 = vpop.f32.mrb[0].mxu0
      %v1669 = vadd.f32 0.0, %v1668
      %v1670 = vpop.f32.mrb[0].mxu0
      %1671 = vdwg.mxu0
      %v1672 = vadd.f32 %v1379, %v1494
      %v1673 = vadd.f32 %v1380, %v1499
      %v1674 = vadd.f32 %v1381, %v1504
      %v1675 = vadd.f32 %v1382, %v1509
      %v1676 = vadd.f32 %v1383, %v1514
      %v1677 = vadd.f32 %v1384, %v1519
      %v1678 = vadd.f32 %v1385, %v1524
      %v1679 = vadd.f32 %v1386, %v1529
      %v1680 = vadd.f32 %v1387, %v1534
      %v1681 = vadd.f32 %v1388, %v1539
      %v1682 = vadd.f32 %v1389, %v1544
      %v1683 = vadd.f32 %v1390, %v1549
      %v1684 = vadd.f32 %v1391, %v1554
      %v1685 = vadd.f32 %v1392, %v1559
      %v1686 = vadd.f32 %v1393, %v1564
      %v1687 = vadd.f32 %v1394, %v1569
      %v1688 = vadd.f32 %v1395, %v1574
      %v1689 = vadd.f32 %v1396, %v1579
      %v1690 = vadd.f32 %v1397, %v1584
      %v1691 = vadd.f32 %v1398, %v1589
      %v1692 = vadd.f32 %v1399, %v1594
      %v1693 = vadd.f32 %v1400, %v1599
      %v1694 = vadd.f32 %v1401, %v1604
      %v1695 = vadd.f32 %v1402, %v1609
      %v1696 = vadd.f32 %v1403, %v1614
      %v1697 = vadd.f32 %v1404, %v1619
      %v1698 = vadd.f32 %v1405, %v1624
      %v1699 = vadd.f32 %v1406, %v1629
      %v1700 = vadd.f32 %v1407, %v1634
      %v1701 = vadd.f32 %v1408, %v1639
      %v1702 = vadd.f32 %v1409, %v1644
      %v1703 = vadd.f32 %v1410, %v1649
      %v1704 = vadd.f32 %v1411, %v1654
      %v1705 = vadd.f32 %v1412, %v1659
      %v1706 = vadd.f32 %v1413, %v1664
      %v1707 = vadd.f32 %v1414, %v1669
      %s1708 = scalar_lea.vmem %s1, 32
      %v1709 = vld [vmem:[%s1708] sm:$0xff]
      %vm1710 = vcmask 1044480
      %v1711 = vrot.slane %v198, 3
      %v1712 = vrot.slane %v199, 3
      %v1713 = vsel %vm1710, %v1711, %v1712
      %v1714 = vrot.slane %v200, 3
      %v1715 = vsel %vm1710, %v1712, %v1714
      %v1716 = vrot.slane %v201, 3
      %v1717 = vsel %vm1710, %v1714, %v1716
      %v1718 = vrot.slane %v202, 3
      %v1719 = vsel %vm1710, %v1716, %v1718
      %v1720 = vrot.slane %v203, 3
      %v1721 = vsel %vm1710, %v1718, %v1720
      %v1722 = vrot.slane %v204, 3
      %v1723 = vsel %vm1710, %v1720, %v1722
      %v1724 = vrot.slane %v205, 3
      %v1725 = vsel %vm1710, %v1722, %v1724
      %v1726 = vrot.slane %v206, 3
      %v1727 = vsel %vm1710, %v1724, %v1726
      %v1728 = vrot.slane %v207, 3
      %v1729 = vsel %vm1710, %v1726, %v1728
      %v1730 = vrot.slane %v208, 3
      %v1731 = vsel %vm1710, %v1728, %v1730
      %v1732 = vrot.slane %v209, 3
      %v1733 = vsel %vm1710, %v1730, %v1732
      %v1734 = vrot.slane %v210, 3
      %v1735 = vsel %vm1710, %v1732, %v1734
      %v1736 = vrot.slane %v211, 3
      %v1737 = vsel %vm1710, %v1734, %v1736
      %v1738 = vrot.slane %v212, 3
      %v1739 = vsel %vm1710, %v1736, %v1738
      %v1740 = vrot.slane %v213, 3
      %v1741 = vsel %vm1710, %v1738, %v1740
      %v1742 = vrot.slane %v214, 3
      %v1743 = vsel %vm1710, %v1740, %v1742
      %v1744 = vrot.slane %v215, 3
      %v1745 = vsel %vm1710, %v1742, %v1744
      %v1746 = vrot.slane %v216, 3
      %v1747 = vsel %vm1710, %v1744, %v1746
      %v1748 = vrot.slane %v217, 3
      %v1749 = vsel %vm1710, %v1746, %v1748
      %v1750 = vrot.slane %v218, 3
      %v1751 = vsel %vm1710, %v1748, %v1750
      %v1752 = vrot.slane %v219, 3
      %v1753 = vsel %vm1710, %v1750, %v1752
      %v1754 = vrot.slane %v220, 3
      %v1755 = vsel %vm1710, %v1752, %v1754
      %v1756 = vrot.slane %v221, 3
      %v1757 = vsel %vm1710, %v1754, %v1756
      %v1758 = vrot.slane %v222, 3
      %v1759 = vsel %vm1710, %v1756, %v1758
      %v1760 = vrot.slane %v223, 3
      %v1761 = vsel %vm1710, %v1758, %v1760
      %v1762 = vrot.slane %v224, 3
      %v1763 = vsel %vm1710, %v1760, %v1762
      %v1764 = vrot.slane %v225, 3
      %v1765 = vsel %vm1710, %v1762, %v1764
      %v1766 = vrot.slane %v226, 3
      %v1767 = vsel %vm1710, %v1764, %v1766
      %v1768 = vrot.slane %v227, 3
      %v1769 = vsel %vm1710, %v1766, %v1768
      %v1770 = vrot.slane %v228, 3
      %v1771 = vsel %vm1710, %v1768, %v1770
      %v1772 = vrot.slane %v229, 3
      %v1773 = vsel %vm1710, %v1770, %v1772
      %v1774 = vrot.slane %v230, 3
      %v1775 = vsel %vm1710, %v1772, %v1774
      %v1776 = vrot.slane %v231, 3
      %v1777 = vsel %vm1710, %v1774, %v1776
      %v1778 = vrot.slane %v232, 3
      %v1779 = vsel %vm1710, %v1776, %v1778
      %v1780 = vrot.slane %v233, 3
      %v1781 = vsel %vm1710, %v1778, %v1780
      %v1782 = vrot.slane %v234, 3
      %v1783 = vsel %vm1710, %v1780, %v1782
      %v1784 = vsel %vm351, %v1713, 0
      %v1786 = vsel %vm351, %v1715, 0
      %v1788 = vsel %vm351, %v1717, 0
      %v1790 = vsel %vm351, %v1719, 0
      %v1792 = vsel %vm351, %v1721, 0
      %v1794 = vsel %vm351, %v1723, 0
      %v1796 = vsel %vm351, %v1725, 0
      %v1798 = vsel %vm351, %v1727, 0
      %v1800 = vsel %vm351, %v1729, 0
      %v1802 = vsel %vm351, %v1731, 0
      %v1804 = vsel %vm351, %v1733, 0
      %v1806 = vsel %vm351, %v1735, 0
      %v1808 = vsel %vm351, %v1737, 0
      %v1810 = vsel %vm351, %v1739, 0
      %v1812 = vsel %vm351, %v1741, 0
      %v1814 = vsel %vm351, %v1743, 0
      %v1816 = vsel %vm351, %v1745, 0
      %v1818 = vsel %vm351, %v1747, 0
      %v1820 = vsel %vm351, %v1749, 0
      %v1822 = vsel %vm351, %v1751, 0
      %v1824 = vsel %vm351, %v1753, 0
      %v1826 = vsel %vm351, %v1755, 0
      %v1828 = vsel %vm351, %v1757, 0
      %v1830 = vsel %vm351, %v1759, 0
      %v1832 = vsel %vm351, %v1761, 0
      %v1834 = vsel %vm351, %v1763, 0
      %v1836 = vsel %vm351, %v1765, 0
      %v1838 = vsel %vm351, %v1767, 0
      %v1840 = vsel %vm351, %v1769, 0
      %v1842 = vsel %vm351, %v1771, 0
      %v1844 = vsel %vm351, %v1773, 0
      %v1846 = vsel %vm351, %v1775, 0
      %v1848 = vsel %vm351, %v1777, 0
      %v1850 = vsel %vm351, %v1779, 0
      %v1852 = vsel %vm351, %v1781, 0
      %v1854 = vsel %vm351, %v1783, 0
      %1856 = vmatprep.subr.mxu0 0.0
      %1857 = vmatpush1.msra.mxu0 %v1709
      %1858 = vmatprep.subr.mxu0 0.0
      %1859 = vmatpush1.msra.mxu0 0.0
      %1860 = vmatprep.subr.mxu0 0.0
      %1861 = vmatpush1.msra.mxu0 0.0
      %1862 = vmatprep.subr.mxu0 0.0
      %1863 = vmatpush1.msra.mxu0 0.0
      %1864 = vmatprep.subr.mxu0 0.0
      %1865 = vmatpush1.msra.mxu0 0.0
      %1866 = vmatprep.subr.mxu0 0.0
      %1867 = vmatpush1.msra.mxu0 0.0
      %1868 = vmatprep.subr.mxu0 0.0
      %1869 = vmatpush1.msra.mxu0 0.0
      %1870 = vmatprep.subr.mxu0 0.0
      %1871 = vmatpush1.msra.mxu0 0.0
      %1872 = vmatprep.subr.mxu0 0.0
      %1873 = vmatpush1.msra.mxu0 0.0
      %1874 = vmatprep.subr.mxu0 0.0
      %1875 = vmatpush1.msra.mxu0 0.0
      %1876 = vmatprep.subr.mxu0 0.0
      %1877 = vmatpush1.msra.mxu0 0.0
      %1878 = vmatprep.subr.mxu0 0.0
      %1879 = vmatpush1.msra.mxu0 0.0
      %1880 = vmatprep.subr.mxu0 0.0
      %1881 = vmatpush1.msra.mxu0 0.0
      %1882 = vmatprep.subr.mxu0 0.0
      %1883 = vmatpush1.msra.mxu0 0.0
      %1884 = vmatprep.subr.mxu0 0.0
      %1885 = vmatpush1.msra.mxu0 0.0
      %1886 = vmatprep.subr.mxu0 0.0
      %1887 = vmatpush1.msra.mxu0 0.0
      %1888 = vmatprep.subr.mxu0 0.0
      %1889 = vmatpush1.msra.mxu0 0.0
      %1890 = vmatprep.subr.mxu0 0.0
      %1891 = vmatpush1.msra.mxu0 0.0
      %1892 = vmatprep.subr.mxu0 0.0
      %1893 = vmatpush1.msra.mxu0 0.0
      %1894 = vmatprep.subr.mxu0 0.0
      %1895 = vmatpush1.msra.mxu0 0.0
      %1896 = vmatprep.subr.mxu0 0.0
      %1897 = vmatpush1.msra.mxu0 0.0
      %1898 = vmatprep.subr.mxu0 0.0
      %1899 = vmatpush1.msra.mxu0 0.0
      %1900 = vmatprep.subr.mxu0 0.0
      %1901 = vmatpush1.msra.mxu0 0.0
      %1902 = vmatprep.subr.mxu0 0.0
      %1903 = vmatpush1.msra.mxu0 0.0
      %1904 = vmatprep.subr.mxu0 0.0
      %1905 = vmatpush1.msra.mxu0 0.0
      %1906 = vmatprep.subr.mxu0 0.0
      %1907 = vmatpush1.msra.mxu0 0.0
      %1908 = vmatprep.subr.mxu0 0.0
      %1909 = vmatpush1.msra.mxu0 0.0
      %1910 = vmatprep.subr.mxu0 0.0
      %1911 = vmatpush1.msra.mxu0 0.0
      %1912 = vmatprep.subr.mxu0 0.0
      %1913 = vmatpush1.msra.mxu0 0.0
      %1914 = vmatprep.subr.mxu0 0.0
      %1915 = vmatpush1.msra.mxu0 0.0
      %1916 = vmatprep.subr.mxu0 0.0
      %1917 = vmatpush1.msra.mxu0 0.0
      %1918 = vmatprep.subr.mxu0 0.0
      %1919 = vmatpush1.msra.mxu0 0.0
      %1920 = vmatprep.mubr.f32.mxu0 0.0
      %1921 = vmatmul.mubr.f32.gmra.mrb[0].mxu0 %v1784
      %v1922 = vpop.f32.mrb[0].mxu0
      %v1923 = vadd.f32 0.0, %v1922
      %v1924 = vpop.f32.mrb[0].mxu0
      %1925 = vmatprep.mubr.f32.mxu0 0.0
      %1926 = vmatmul.mubr.f32.gmra.mrb[0].mxu0 %v1786
      %v1927 = vpop.f32.mrb[0].mxu0
      %v1928 = vadd.f32 0.0, %v1927
      %v1929 = vpop.f32.mrb[0].mxu0
      %1930 = vmatprep.mubr.f32.mxu0 0.0
      %1931 = vmatmul.mubr.f32.gmra.mrb[0].mxu0 %v1788
      %v1932 = vpop.f32.mrb[0].mxu0
      %v1933 = vadd.f32 0.0, %v1932
      %v1934 = vpop.f32.mrb[0].mxu0
      %1935 = vmatprep.mubr.f32.mxu0 0.0
      %1936 = vmatmul.mubr.f32.gmra.mrb[0].mxu0 %v1790
      %v1937 = vpop.f32.mrb[0].mxu0
      %v1938 = vadd.f32 0.0, %v1937
      %v1939 = vpop.f32.mrb[0].mxu0
      %1940 = vmatprep.mubr.f32.mxu0 0.0
      %1941 = vmatmul.mubr.f32.gmra.mrb[0].mxu0 %v1792
      %v1942 = vpop.f32.mrb[0].mxu0
      %v1943 = vadd.f32 0.0, %v1942
      %v1944 = vpop.f32.mrb[0].mxu0
      %1945 = vmatprep.mubr.f32.mxu0 0.0
      %1946 = vmatmul.mubr.f32.gmra.mrb[0].mxu0 %v1794
      %v1947 = vpop.f32.mrb[0].mxu0
      %v1948 = vadd.f32 0.0, %v1947
      %v1949 = vpop.f32.mrb[0].mxu0
      %1950 = vmatprep.mubr.f32.mxu0 0.0
      %1951 = vmatmul.mubr.f32.gmra.mrb[0].mxu0 %v1796
      %v1952 = vpop.f32.mrb[0].mxu0
      %v1953 = vadd.f32 0.0, %v1952
      %v1954 = vpop.f32.mrb[0].mxu0
      %1955 = vmatprep.mubr.f32.mxu0 0.0
      %1956 = vmatmul.mubr.f32.gmra.mrb[0].mxu0 %v1798
      %v1957 = vpop.f32.mrb[0].mxu0
      %v1958 = vadd.f32 0.0, %v1957
      %v1959 = vpop.f32.mrb[0].mxu0
      %1960 = vmatprep.mubr.f32.mxu0 0.0
      %1961 = vmatmul.mubr.f32.gmra.mrb[0].mxu0 %v1800
      %v1962 = vpop.f32.mrb[0].mxu0
      %v1963 = vadd.f32 0.0, %v1962
      %v1964 = vpop.f32.mrb[0].mxu0
      %1965 = vmatprep.mubr.f32.mxu0 0.0
      %1966 = vmatmul.mubr.f32.gmra.mrb[0].mxu0 %v1802
      %v1967 = vpop.f32.mrb[0].mxu0
      %v1968 = vadd.f32 0.0, %v1967
      %v1969 = vpop.f32.mrb[0].mxu0
      %1970 = vmatprep.mubr.f32.mxu0 0.0
      %1971 = vmatmul.mubr.f32.gmra.mrb[0].mxu0 %v1804
      %v1972 = vpop.f32.mrb[0].mxu0
      %v1973 = vadd.f32 0.0, %v1972
      %v1974 = vpop.f32.mrb[0].mxu0
      %1975 = vmatprep.mubr.f32.mxu0 0.0
      %1976 = vmatmul.mubr.f32.gmra.mrb[0].mxu0 %v1806
      %v1977 = vpop.f32.mrb[0].mxu0
      %v1978 = vadd.f32 0.0, %v1977
      %v1979 = vpop.f32.mrb[0].mxu0
      %1980 = vmatprep.mubr.f32.mxu0 0.0
      %1981 = vmatmul.mubr.f32.gmra.mrb[0].mxu0 %v1808
      %v1982 = vpop.f32.mrb[0].mxu0
      %v1983 = vadd.f32 0.0, %v1982
      %v1984 = vpop.f32.mrb[0].mxu0
      %1985 = vmatprep.mubr.f32.mxu0 0.0
      %1986 = vmatmul.mubr.f32.gmra.mrb[0].mxu0 %v1810
      %v1987 = vpop.f32.mrb[0].mxu0
      %v1988 = vadd.f32 0.0, %v1987
      %v1989 = vpop.f32.mrb[0].mxu0
      %1990 = vmatprep.mubr.f32.mxu0 0.0
      %1991 = vmatmul.mubr.f32.gmra.mrb[0].mxu0 %v1812
      %v1992 = vpop.f32.mrb[0].mxu0
      %v1993 = vadd.f32 0.0, %v1992
      %v1994 = vpop.f32.mrb[0].mxu0
      %1995 = vmatprep.mubr.f32.mxu0 0.0
      %1996 = vmatmul.mubr.f32.gmra.mrb[0].mxu0 %v1814
      %v1997 = vpop.f32.mrb[0].mxu0
      %v1998 = vadd.f32 0.0, %v1997
      %v1999 = vpop.f32.mrb[0].mxu0
      %2000 = vmatprep.mubr.f32.mxu0 0.0
      %2001 = vmatmul.mubr.f32.gmra.mrb[0].mxu0 %v1816
      %v2002 = vpop.f32.mrb[0].mxu0
      %v2003 = vadd.f32 0.0, %v2002
      %v2004 = vpop.f32.mrb[0].mxu0
      %2005 = vmatprep.mubr.f32.mxu0 0.0
      %2006 = vmatmul.mubr.f32.gmra.mrb[0].mxu0 %v1818
      %v2007 = vpop.f32.mrb[0].mxu0
      %v2008 = vadd.f32 0.0, %v2007
      %v2009 = vpop.f32.mrb[0].mxu0
      %2010 = vmatprep.mubr.f32.mxu0 0.0
      %2011 = vmatmul.mubr.f32.gmra.mrb[0].mxu0 %v1820
      %v2012 = vpop.f32.mrb[0].mxu0
      %v2013 = vadd.f32 0.0, %v2012
      %v2014 = vpop.f32.mrb[0].mxu0
      %2015 = vmatprep.mubr.f32.mxu0 0.0
      %2016 = vmatmul.mubr.f32.gmra.mrb[0].mxu0 %v1822
      %v2017 = vpop.f32.mrb[0].mxu0
      %v2018 = vadd.f32 0.0, %v2017
      %v2019 = vpop.f32.mrb[0].mxu0
      %2020 = vmatprep.mubr.f32.mxu0 0.0
      %2021 = vmatmul.mubr.f32.gmra.mrb[0].mxu0 %v1824
      %v2022 = vpop.f32.mrb[0].mxu0
      %v2023 = vadd.f32 0.0, %v2022
      %v2024 = vpop.f32.mrb[0].mxu0
      %2025 = vmatprep.mubr.f32.mxu0 0.0
      %2026 = vmatmul.mubr.f32.gmra.mrb[0].mxu0 %v1826
      %v2027 = vpop.f32.mrb[0].mxu0
      %v2028 = vadd.f32 0.0, %v2027
      %v2029 = vpop.f32.mrb[0].mxu0
      %2030 = vmatprep.mubr.f32.mxu0 0.0
      %2031 = vmatmul.mubr.f32.gmra.mrb[0].mxu0 %v1828
      %v2032 = vpop.f32.mrb[0].mxu0
      %v2033 = vadd.f32 0.0, %v2032
      %v2034 = vpop.f32.mrb[0].mxu0
      %2035 = vmatprep.mubr.f32.mxu0 0.0
      %2036 = vmatmul.mubr.f32.gmra.mrb[0].mxu0 %v1830
      %v2037 = vpop.f32.mrb[0].mxu0
      %v2038 = vadd.f32 0.0, %v2037
      %v2039 = vpop.f32.mrb[0].mxu0
      %2040 = vmatprep.mubr.f32.mxu0 0.0
      %2041 = vmatmul.mubr.f32.gmra.mrb[0].mxu0 %v1832
      %v2042 = vpop.f32.mrb[0].mxu0
      %v2043 = vadd.f32 0.0, %v2042
      %v2044 = vpop.f32.mrb[0].mxu0
      %2045 = vmatprep.mubr.f32.mxu0 0.0
      %2046 = vmatmul.mubr.f32.gmra.mrb[0].mxu0 %v1834
      %v2047 = vpop.f32.mrb[0].mxu0
      %v2048 = vadd.f32 0.0, %v2047
      %v2049 = vpop.f32.mrb[0].mxu0
      %2050 = vmatprep.mubr.f32.mxu0 0.0
      %2051 = vmatmul.mubr.f32.gmra.mrb[0].mxu0 %v1836
      %v2052 = vpop.f32.mrb[0].mxu0
      %v2053 = vadd.f32 0.0, %v2052
      %v2054 = vpop.f32.mrb[0].mxu0
      %2055 = vmatprep.mubr.f32.mxu0 0.0
      %2056 = vmatmul.mubr.f32.gmra.mrb[0].mxu0 %v1838
      %v2057 = vpop.f32.mrb[0].mxu0
      %v2058 = vadd.f32 0.0, %v2057
      %v2059 = vpop.f32.mrb[0].mxu0
      %2060 = vmatprep.mubr.f32.mxu0 0.0
      %2061 = vmatmul.mubr.f32.gmra.mrb[0].mxu0 %v1840
      %v2062 = vpop.f32.mrb[0].mxu0
      %v2063 = vadd.f32 0.0, %v2062
      %v2064 = vpop.f32.mrb[0].mxu0
      %2065 = vmatprep.mubr.f32.mxu0 0.0
      %2066 = vmatmul.mubr.f32.gmra.mrb[0].mxu0 %v1842
      %v2067 = vpop.f32.mrb[0].mxu0
      %v2068 = vadd.f32 0.0, %v2067
      %v2069 = vpop.f32.mrb[0].mxu0
      %2070 = vmatprep.mubr.f32.mxu0 0.0
      %2071 = vmatmul.mubr.f32.gmra.mrb[0].mxu0 %v1844
      %v2072 = vpop.f32.mrb[0].mxu0
      %v2073 = vadd.f32 0.0, %v2072
      %v2074 = vpop.f32.mrb[0].mxu0
      %2075 = vmatprep.mubr.f32.mxu0 0.0
      %2076 = vmatmul.mubr.f32.gmra.mrb[0].mxu0 %v1846
      %v2077 = vpop.f32.mrb[0].mxu0
      %v2078 = vadd.f32 0.0, %v2077
      %v2079 = vpop.f32.mrb[0].mxu0
      %2080 = vmatprep.mubr.f32.mxu0 0.0
      %2081 = vmatmul.mubr.f32.gmra.mrb[0].mxu0 %v1848
      %v2082 = vpop.f32.mrb[0].mxu0
      %v2083 = vadd.f32 0.0, %v2082
      %v2084 = vpop.f32.mrb[0].mxu0
      %2085 = vmatprep.mubr.f32.mxu0 0.0
      %2086 = vmatmul.mubr.f32.gmra.mrb[0].mxu0 %v1850
      %v2087 = vpop.f32.mrb[0].mxu0
      %v2088 = vadd.f32 0.0, %v2087
      %v2089 = vpop.f32.mrb[0].mxu0
      %2090 = vmatprep.mubr.f32.mxu0 0.0
      %2091 = vmatmul.mubr.f32.gmra.mrb[0].mxu0 %v1852
      %v2092 = vpop.f32.mrb[0].mxu0
      %v2093 = vadd.f32 0.0, %v2092
      %v2094 = vpop.f32.mrb[0].mxu0
      %2095 = vmatprep.mubr.f32.mxu0 0.0
      %2096 = vmatmul.mubr.f32.gmra.mrb[0].mxu0 %v1854
      %v2097 = vpop.f32.mrb[0].mxu0
      %v2098 = vadd.f32 0.0, %v2097
      %v2099 = vpop.f32.mrb[0].mxu0
      %2100 = vdwg.mxu0
      %v2101 = vadd.f32 %v1672, %v1923
      %v2102 = vadd.f32 %v1673, %v1928
      %v2103 = vadd.f32 %v1674, %v1933
      %v2104 = vadd.f32 %v1675, %v1938
      %v2105 = vadd.f32 %v1676, %v1943
      %v2106 = vadd.f32 %v1677, %v1948
      %v2107 = vadd.f32 %v1678, %v1953
      %v2108 = vadd.f32 %v1679, %v1958
      %v2109 = vadd.f32 %v1680, %v1963
      %v2110 = vadd.f32 %v1681, %v1968
      %v2111 = vadd.f32 %v1682, %v1973
      %v2112 = vadd.f32 %v1683, %v1978
      %v2113 = vadd.f32 %v1684, %v1983
      %v2114 = vadd.f32 %v1685, %v1988
      %v2115 = vadd.f32 %v1686, %v1993
      %v2116 = vadd.f32 %v1687, %v1998
      %v2117 = vadd.f32 %v1688, %v2003
      %v2118 = vadd.f32 %v1689, %v2008
      %v2119 = vadd.f32 %v1690, %v2013
      %v2120 = vadd.f32 %v1691, %v2018
      %v2121 = vadd.f32 %v1692, %v2023
      %v2122 = vadd.f32 %v1693, %v2028
      %v2123 = vadd.f32 %v1694, %v2033
      %v2124 = vadd.f32 %v1695, %v2038
      %v2125 = vadd.f32 %v1696, %v2043
      %v2126 = vadd.f32 %v1697, %v2048
      %v2127 = vadd.f32 %v1698, %v2053
      %v2128 = vadd.f32 %v1699, %v2058
      %v2129 = vadd.f32 %v1700, %v2063
      %v2130 = vadd.f32 %v1701, %v2068
      %v2131 = vadd.f32 %v1702, %v2073
      %v2132 = vadd.f32 %v1703, %v2078
      %v2133 = vadd.f32 %v1704, %v2083
      %v2134 = vadd.f32 %v1705, %v2088
      %v2135 = vadd.f32 %v1706, %v2093
      %v2136 = vadd.f32 %v1707, %v2098
      %s2137 = scalar_lea.vmem %s1, 40
      %v2138 = vld [vmem:[%s2137] sm:$0xff]
      %vm2139 = vcmask 1043456
      %v2140 = vrot.slane %v198, 4
      %v2141 = vrot.slane %v199, 4
      %v2142 = vsel %vm2139, %v2140, %v2141
      %v2143 = vrot.slane %v200, 4
      %v2144 = vsel %vm2139, %v2141, %v2143
      %v2145 = vrot.slane %v201, 4
      %v2146 = vsel %vm2139, %v2143, %v2145
      %v2147 = vrot.slane %v202, 4
      %v2148 = vsel %vm2139, %v2145, %v2147
      %v2149 = vrot.slane %v203, 4
      %v2150 = vsel %vm2139, %v2147, %v2149
      %v2151 = vrot.slane %v204, 4
      %v2152 = vsel %vm2139, %v2149, %v2151
      %v2153 = vrot.slane %v205, 4
      %v2154 = vsel %vm2139, %v2151, %v2153
      %v2155 = vrot.slane %v206, 4
      %v2156 = vsel %vm2139, %v2153, %v2155
      %v2157 = vrot.slane %v207, 4
      %v2158 = vsel %vm2139, %v2155, %v2157
      %v2159 = vrot.slane %v208, 4
      %v2160 = vsel %vm2139, %v2157, %v2159
      %v2161 = vrot.slane %v209, 4
      %v2162 = vsel %vm2139, %v2159, %v2161
      %v2163 = vrot.slane %v210, 4
      %v2164 = vsel %vm2139, %v2161, %v2163
      %v2165 = vrot.slane %v211, 4
      %v2166 = vsel %vm2139, %v2163, %v2165
      %v2167 = vrot.slane %v212, 4
      %v2168 = vsel %vm2139, %v2165, %v2167
      %v2169 = vrot.slane %v213, 4
      %v2170 = vsel %vm2139, %v2167, %v2169
      %v2171 = vrot.slane %v214, 4
      %v2172 = vsel %vm2139, %v2169, %v2171
      %v2173 = vrot.slane %v215, 4
      %v2174 = vsel %vm2139, %v2171, %v2173
      %v2175 = vrot.slane %v216, 4
      %v2176 = vsel %vm2139, %v2173, %v2175
      %v2177 = vrot.slane %v217, 4
      %v2178 = vsel %vm2139, %v2175, %v2177
      %v2179 = vrot.slane %v218, 4
      %v2180 = vsel %vm2139, %v2177, %v2179
      %v2181 = vrot.slane %v219, 4
      %v2182 = vsel %vm2139, %v2179, %v2181
      %v2183 = vrot.slane %v220, 4
      %v2184 = vsel %vm2139, %v2181, %v2183
      %v2185 = vrot.slane %v221, 4
      %v2186 = vsel %vm2139, %v2183, %v2185
      %v2187 = vrot.slane %v222, 4
      %v2188 = vsel %vm2139, %v2185, %v2187
      %v2189 = vrot.slane %v223, 4
      %v2190 = vsel %vm2139, %v2187, %v2189
      %v2191 = vrot.slane %v224, 4
      %v2192 = vsel %vm2139, %v2189, %v2191
      %v2193 = vrot.slane %v225, 4
      %v2194 = vsel %vm2139, %v2191, %v2193
      %v2195 = vrot.slane %v226, 4
      %v2196 = vsel %vm2139, %v2193, %v2195
      %v2197 = vrot.slane %v227, 4
      %v2198 = vsel %vm2139, %v2195, %v2197
      %v2199 = vrot.slane %v228, 4
      %v2200 = vsel %vm2139, %v2197, %v2199
      %v2201 = vrot.slane %v229, 4
      %v2202 = vsel %vm2139, %v2199, %v2201
      %v2203 = vrot.slane %v230, 4
      %v2204 = vsel %vm2139, %v2201, %v2203
      %v2205 = vrot.slane %v231, 4
      %v2206 = vsel %vm2139, %v2203, %v2205
      %v2207 = vrot.slane %v232, 4
      %v2208 = vsel %vm2139, %v2205, %v2207
      %v2209 = vrot.slane %v233, 4
      %v2210 = vsel %vm2139, %v2207, %v2209
      %v2211 = vrot.slane %v234, 4
      %v2212 = vsel %vm2139, %v2209, %v2211
      %v2213 = vsel %vm351, %v2142, 0
      %v2215 = vsel %vm351, %v2144, 0
      %v2217 = vsel %vm351, %v2146, 0
      %v2219 = vsel %vm351, %v2148, 0
      %v2221 = vsel %vm351, %v2150, 0
      %v2223 = vsel %vm351, %v2152, 0
      %v2225 = vsel %vm351, %v2154, 0
      %v2227 = vsel %vm351, %v2156, 0
      %v2229 = vsel %vm351, %v2158, 0
      %v2231 = vsel %vm351, %v2160, 0
      %v2233 = vsel %vm351, %v2162, 0
      %v2235 = vsel %vm351, %v2164, 0
      %v2237 = vsel %vm351, %v2166, 0
      %v2239 = vsel %vm351, %v2168, 0
      %v2241 = vsel %vm351, %v2170, 0
      %v2243 = vsel %vm351, %v2172, 0
      %v2245 = vsel %vm351, %v2174, 0
      %v2247 = vsel %vm351, %v2176, 0
      %v2249 = vsel %vm351, %v2178, 0
      %v2251 = vsel %vm351, %v2180, 0
      %v2253 = vsel %vm351, %v2182, 0
      %v2255 = vsel %vm351, %v2184, 0
      %v2257 = vsel %vm351, %v2186, 0
      %v2259 = vsel %vm351, %v2188, 0
      %v2261 = vsel %vm351, %v2190, 0
      %v2263 = vsel %vm351, %v2192, 0
      %v2265 = vsel %vm351, %v2194, 0
      %v2267 = vsel %vm351, %v2196, 0
      %v2269 = vsel %vm351, %v2198, 0
      %v2271 = vsel %vm351, %v2200, 0
      %v2273 = vsel %vm351, %v2202, 0
      %v2275 = vsel %vm351, %v2204, 0
      %v2277 = vsel %vm351, %v2206, 0
      %v2279 = vsel %vm351, %v2208, 0
      %v2281 = vsel %vm351, %v2210, 0
      %v2283 = vsel %vm351, %v2212, 0
      %2285 = vmatprep.subr.mxu0 0.0
      %2286 = vmatpush1.msra.mxu0 %v2138
      %2287 = vmatprep.subr.mxu0 0.0
      %2288 = vmatpush1.msra.mxu0 0.0
      %2289 = vmatprep.subr.mxu0 0.0
      %2290 = vmatpush1.msra.mxu0 0.0
      %2291 = vmatprep.subr.mxu0 0.0
      %2292 = vmatpush1.msra.mxu0 0.0
      %2293 = vmatprep.subr.mxu0 0.0
      %2294 = vmatpush1.msra.mxu0 0.0
      %2295 = vmatprep.subr.mxu0 0.0
      %2296 = vmatpush1.msra.mxu0 0.0
      %2297 = vmatprep.subr.mxu0 0.0
      %2298 = vmatpush1.msra.mxu0 0.0
      %2299 = vmatprep.subr.mxu0 0.0
      %2300 = vmatpush1.msra.mxu0 0.0
      %2301 = vmatprep.subr.mxu0 0.0
      %2302 = vmatpush1.msra.mxu0 0.0
      %2303 = vmatprep.subr.mxu0 0.0
      %2304 = vmatpush1.msra.mxu0 0.0
      %2305 = vmatprep.subr.mxu0 0.0
      %2306 = vmatpush1.msra.mxu0 0.0
      %2307 = vmatprep.subr.mxu0 0.0
      %2308 = vmatpush1.msra.mxu0 0.0
      %2309 = vmatprep.subr.mxu0 0.0
      %2310 = vmatpush1.msra.mxu0 0.0
      %2311 = vmatprep.subr.mxu0 0.0
      %2312 = vmatpush1.msra.mxu0 0.0
      %2313 = vmatprep.subr.mxu0 0.0
      %2314 = vmatpush1.msra.mxu0 0.0
      %2315 = vmatprep.subr.mxu0 0.0
      %2316 = vmatpush1.msra.mxu0 0.0
      %2317 = vmatprep.subr.mxu0 0.0
      %2318 = vmatpush1.msra.mxu0 0.0
      %2319 = vmatprep.subr.mxu0 0.0
      %2320 = vmatpush1.msra.mxu0 0.0
      %2321 = vmatprep.subr.mxu0 0.0
      %2322 = vmatpush1.msra.mxu0 0.0
      %2323 = vmatprep.subr.mxu0 0.0
      %2324 = vmatpush1.msra.mxu0 0.0
      %2325 = vmatprep.subr.mxu0 0.0
      %2326 = vmatpush1.msra.mxu0 0.0
      %2327 = vmatprep.subr.mxu0 0.0
      %2328 = vmatpush1.msra.mxu0 0.0
      %2329 = vmatprep.subr.mxu0 0.0
      %2330 = vmatpush1.msra.mxu0 0.0
      %2331 = vmatprep.subr.mxu0 0.0
      %2332 = vmatpush1.msra.mxu0 0.0
      %2333 = vmatprep.subr.mxu0 0.0
      %2334 = vmatpush1.msra.mxu0 0.0
      %2335 = vmatprep.subr.mxu0 0.0
      %2336 = vmatpush1.msra.mxu0 0.0
      %2337 = vmatprep.subr.mxu0 0.0
      %2338 = vmatpush1.msra.mxu0 0.0
      %2339 = vmatprep.subr.mxu0 0.0
      %2340 = vmatpush1.msra.mxu0 0.0
      %2341 = vmatprep.subr.mxu0 0.0
      %2342 = vmatpush1.msra.mxu0 0.0
      %2343 = vmatprep.subr.mxu0 0.0
      %2344 = vmatpush1.msra.mxu0 0.0
      %2345 = vmatprep.subr.mxu0 0.0
      %2346 = vmatpush1.msra.mxu0 0.0
      %2347 = vmatprep.subr.mxu0 0.0
      %2348 = vmatpush1.msra.mxu0 0.0
      %2349 = vmatprep.mubr.f32.mxu0 0.0
      %2350 = vmatmul.mubr.f32.gmra.mrb[0].mxu0 %v2213
      %v2351 = vpop.f32.mrb[0].mxu0
      %v2352 = vadd.f32 0.0, %v2351
      %v2353 = vpop.f32.mrb[0].mxu0
      %2354 = vmatprep.mubr.f32.mxu0 0.0
      %2355 = vmatmul.mubr.f32.gmra.mrb[0].mxu0 %v2215
      %v2356 = vpop.f32.mrb[0].mxu0
      %v2357 = vadd.f32 0.0, %v2356
      %v2358 = vpop.f32.mrb[0].mxu0
      %2359 = vmatprep.mubr.f32.mxu0 0.0
      %2360 = vmatmul.mubr.f32.gmra.mrb[0].mxu0 %v2217
      %v2361 = vpop.f32.mrb[0].mxu0
      %v2362 = vadd.f32 0.0, %v2361
      %v2363 = vpop.f32.mrb[0].mxu0
      %2364 = vmatprep.mubr.f32.mxu0 0.0
      %2365 = vmatmul.mubr.f32.gmra.mrb[0].mxu0 %v2219
      %v2366 = vpop.f32.mrb[0].mxu0
      %v2367 = vadd.f32 0.0, %v2366
      %v2368 = vpop.f32.mrb[0].mxu0
      %2369 = vmatprep.mubr.f32.mxu0 0.0
      %2370 = vmatmul.mubr.f32.gmra.mrb[0].mxu0 %v2221
      %v2371 = vpop.f32.mrb[0].mxu0
      %v2372 = vadd.f32 0.0, %v2371
      %v2373 = vpop.f32.mrb[0].mxu0
      %2374 = vmatprep.mubr.f32.mxu0 0.0
      %2375 = vmatmul.mubr.f32.gmra.mrb[0].mxu0 %v2223
      %v2376 = vpop.f32.mrb[0].mxu0
      %v2377 = vadd.f32 0.0, %v2376
      %v2378 = vpop.f32.mrb[0].mxu0
      %2379 = vmatprep.mubr.f32.mxu0 0.0
      %2380 = vmatmul.mubr.f32.gmra.mrb[0].mxu0 %v2225
      %v2381 = vpop.f32.mrb[0].mxu0
      %v2382 = vadd.f32 0.0, %v2381
      %v2383 = vpop.f32.mrb[0].mxu0
      %2384 = vmatprep.mubr.f32.mxu0 0.0
      %2385 = vmatmul.mubr.f32.gmra.mrb[0].mxu0 %v2227
      %v2386 = vpop.f32.mrb[0].mxu0
      %v2387 = vadd.f32 0.0, %v2386
      %v2388 = vpop.f32.mrb[0].mxu0
      %2389 = vmatprep.mubr.f32.mxu0 0.0
      %2390 = vmatmul.mubr.f32.gmra.mrb[0].mxu0 %v2229
      %v2391 = vpop.f32.mrb[0].mxu0
      %v2392 = vadd.f32 0.0, %v2391
      %v2393 = vpop.f32.mrb[0].mxu0
      %2394 = vmatprep.mubr.f32.mxu0 0.0
      %2395 = vmatmul.mubr.f32.gmra.mrb[0].mxu0 %v2231
      %v2396 = vpop.f32.mrb[0].mxu0
      %v2397 = vadd.f32 0.0, %v2396
      %v2398 = vpop.f32.mrb[0].mxu0
      %2399 = vmatprep.mubr.f32.mxu0 0.0
      %2400 = vmatmul.mubr.f32.gmra.mrb[0].mxu0 %v2233
      %v2401 = vpop.f32.mrb[0].mxu0
      %v2402 = vadd.f32 0.0, %v2401
      %v2403 = vpop.f32.mrb[0].mxu0
      %2404 = vmatprep.mubr.f32.mxu0 0.0
      %2405 = vmatmul.mubr.f32.gmra.mrb[0].mxu0 %v2235
      %v2406 = vpop.f32.mrb[0].mxu0
      %v2407 = vadd.f32 0.0, %v2406
      %v2408 = vpop.f32.mrb[0].mxu0
      %2409 = vmatprep.mubr.f32.mxu0 0.0
      %2410 = vmatmul.mubr.f32.gmra.mrb[0].mxu0 %v2237
      %v2411 = vpop.f32.mrb[0].mxu0
      %v2412 = vadd.f32 0.0, %v2411
      %v2413 = vpop.f32.mrb[0].mxu0
      %2414 = vmatprep.mubr.f32.mxu0 0.0
      %2415 = vmatmul.mubr.f32.gmra.mrb[0].mxu0 %v2239
      %v2416 = vpop.f32.mrb[0].mxu0
      %v2417 = vadd.f32 0.0, %v2416
      %v2418 = vpop.f32.mrb[0].mxu0
      %2419 = vmatprep.mubr.f32.mxu0 0.0
      %2420 = vmatmul.mubr.f32.gmra.mrb[0].mxu0 %v2241
      %v2421 = vpop.f32.mrb[0].mxu0
      %v2422 = vadd.f32 0.0, %v2421
      %v2423 = vpop.f32.mrb[0].mxu0
      %2424 = vmatprep.mubr.f32.mxu0 0.0
      %2425 = vmatmul.mubr.f32.gmra.mrb[0].mxu0 %v2243
      %v2426 = vpop.f32.mrb[0].mxu0
      %v2427 = vadd.f32 0.0, %v2426
      %v2428 = vpop.f32.mrb[0].mxu0
      %2429 = vmatprep.mubr.f32.mxu0 0.0
      %2430 = vmatmul.mubr.f32.gmra.mrb[0].mxu0 %v2245
      %v2431 = vpop.f32.mrb[0].mxu0
      %v2432 = vadd.f32 0.0, %v2431
      %v2433 = vpop.f32.mrb[0].mxu0
      %2434 = vmatprep.mubr.f32.mxu0 0.0
      %2435 = vmatmul.mubr.f32.gmra.mrb[0].mxu0 %v2247
      %v2436 = vpop.f32.mrb[0].mxu0
      %v2437 = vadd.f32 0.0, %v2436
      %v2438 = vpop.f32.mrb[0].mxu0
      %2439 = vmatprep.mubr.f32.mxu0 0.0
      %2440 = vmatmul.mubr.f32.gmra.mrb[0].mxu0 %v2249
      %v2441 = vpop.f32.mrb[0].mxu0
      %v2442 = vadd.f32 0.0, %v2441
      %v2443 = vpop.f32.mrb[0].mxu0
      %2444 = vmatprep.mubr.f32.mxu0 0.0
      %2445 = vmatmul.mubr.f32.gmra.mrb[0].mxu0 %v2251
      %v2446 = vpop.f32.mrb[0].mxu0
      %v2447 = vadd.f32 0.0, %v2446
      %v2448 = vpop.f32.mrb[0].mxu0
      %2449 = vmatprep.mubr.f32.mxu0 0.0
      %2450 = vmatmul.mubr.f32.gmra.mrb[0].mxu0 %v2253
      %v2451 = vpop.f32.mrb[0].mxu0
      %v2452 = vadd.f32 0.0, %v2451
      %v2453 = vpop.f32.mrb[0].mxu0
      %2454 = vmatprep.mubr.f32.mxu0 0.0
      %2455 = vmatmul.mubr.f32.gmra.mrb[0].mxu0 %v2255
      %v2456 = vpop.f32.mrb[0].mxu0
      %v2457 = vadd.f32 0.0, %v2456
      %v2458 = vpop.f32.mrb[0].mxu0
      %2459 = vmatprep.mubr.f32.mxu0 0.0
      %2460 = vmatmul.mubr.f32.gmra.mrb[0].mxu0 %v2257
      %v2461 = vpop.f32.mrb[0].mxu0
      %v2462 = vadd.f32 0.0, %v2461
      %v2463 = vpop.f32.mrb[0].mxu0
      %2464 = vmatprep.mubr.f32.mxu0 0.0
      %2465 = vmatmul.mubr.f32.gmra.mrb[0].mxu0 %v2259
      %v2466 = vpop.f32.mrb[0].mxu0
      %v2467 = vadd.f32 0.0, %v2466
      %v2468 = vpop.f32.mrb[0].mxu0
      %2469 = vmatprep.mubr.f32.mxu0 0.0
      %2470 = vmatmul.mubr.f32.gmra.mrb[0].mxu0 %v2261
      %v2471 = vpop.f32.mrb[0].mxu0
      %v2472 = vadd.f32 0.0, %v2471
      %v2473 = vpop.f32.mrb[0].mxu0
      %2474 = vmatprep.mubr.f32.mxu0 0.0
      %2475 = vmatmul.mubr.f32.gmra.mrb[0].mxu0 %v2263
      %v2476 = vpop.f32.mrb[0].mxu0
      %v2477 = vadd.f32 0.0, %v2476
      %v2478 = vpop.f32.mrb[0].mxu0
      %2479 = vmatprep.mubr.f32.mxu0 0.0
      %2480 = vmatmul.mubr.f32.gmra.mrb[0].mxu0 %v2265
      %v2481 = vpop.f32.mrb[0].mxu0
      %v2482 = vadd.f32 0.0, %v2481
      %v2483 = vpop.f32.mrb[0].mxu0
      %2484 = vmatprep.mubr.f32.mxu0 0.0
      %2485 = vmatmul.mubr.f32.gmra.mrb[0].mxu0 %v2267
      %v2486 = vpop.f32.mrb[0].mxu0
      %v2487 = vadd.f32 0.0, %v2486
      %v2488 = vpop.f32.mrb[0].mxu0
      %2489 = vmatprep.mubr.f32.mxu0 0.0
      %2490 = vmatmul.mubr.f32.gmra.mrb[0].mxu0 %v2269
      %v2491 = vpop.f32.mrb[0].mxu0
      %v2492 = vadd.f32 0.0, %v2491
      %v2493 = vpop.f32.mrb[0].mxu0
      %2494 = vmatprep.mubr.f32.mxu0 0.0
      %2495 = vmatmul.mubr.f32.gmra.mrb[0].mxu0 %v2271
      %v2496 = vpop.f32.mrb[0].mxu0
      %v2497 = vadd.f32 0.0, %v2496
      %v2498 = vpop.f32.mrb[0].mxu0
      %2499 = vmatprep.mubr.f32.mxu0 0.0
      %2500 = vmatmul.mubr.f32.gmra.mrb[0].mxu0 %v2273
      %v2501 = vpop.f32.mrb[0].mxu0
      %v2502 = vadd.f32 0.0, %v2501
      %v2503 = vpop.f32.mrb[0].mxu0
      %2504 = vmatprep.mubr.f32.mxu0 0.0
      %2505 = vmatmul.mubr.f32.gmra.mrb[0].mxu0 %v2275
      %v2506 = vpop.f32.mrb[0].mxu0
      %v2507 = vadd.f32 0.0, %v2506
      %v2508 = vpop.f32.mrb[0].mxu0
      %2509 = vmatprep.mubr.f32.mxu0 0.0
      %2510 = vmatmul.mubr.f32.gmra.mrb[0].mxu0 %v2277
      %v2511 = vpop.f32.mrb[0].mxu0
      %v2512 = vadd.f32 0.0, %v2511
      %v2513 = vpop.f32.mrb[0].mxu0
      %2514 = vmatprep.mubr.f32.mxu0 0.0
      %2515 = vmatmul.mubr.f32.gmra.mrb[0].mxu0 %v2279
      %v2516 = vpop.f32.mrb[0].mxu0
      %v2517 = vadd.f32 0.0, %v2516
      %v2518 = vpop.f32.mrb[0].mxu0
      %2519 = vmatprep.mubr.f32.mxu0 0.0
      %2520 = vmatmul.mubr.f32.gmra.mrb[0].mxu0 %v2281
      %v2521 = vpop.f32.mrb[0].mxu0
      %v2522 = vadd.f32 0.0, %v2521
      %v2523 = vpop.f32.mrb[0].mxu0
      %2524 = vmatprep.mubr.f32.mxu0 0.0
      %2525 = vmatmul.mubr.f32.gmra.mrb[0].mxu0 %v2283
      %v2526 = vpop.f32.mrb[0].mxu0
      %v2527 = vadd.f32 0.0, %v2526
      %v2528 = vpop.f32.mrb[0].mxu0
      %2529 = vdwg.mxu0
      %v2530 = vadd.f32 %v2101, %v2352
      %v2531 = vadd.f32 %v2102, %v2357
      %v2532 = vadd.f32 %v2103, %v2362
      %v2533 = vadd.f32 %v2104, %v2367
      %v2534 = vadd.f32 %v2105, %v2372
      %v2535 = vadd.f32 %v2106, %v2377
      %v2536 = vadd.f32 %v2107, %v2382
      %v2537 = vadd.f32 %v2108, %v2387
      %v2538 = vadd.f32 %v2109, %v2392
      %v2539 = vadd.f32 %v2110, %v2397
      %v2540 = vadd.f32 %v2111, %v2402
      %v2541 = vadd.f32 %v2112, %v2407
      %v2542 = vadd.f32 %v2113, %v2412
      %v2543 = vadd.f32 %v2114, %v2417
      %v2544 = vadd.f32 %v2115, %v2422
      %v2545 = vadd.f32 %v2116, %v2427
      %v2546 = vadd.f32 %v2117, %v2432
      %v2547 = vadd.f32 %v2118, %v2437
      %v2548 = vadd.f32 %v2119, %v2442
      %v2549 = vadd.f32 %v2120, %v2447
      %v2550 = vadd.f32 %v2121, %v2452
      %v2551 = vadd.f32 %v2122, %v2457
      %v2552 = vadd.f32 %v2123, %v2462
      %v2553 = vadd.f32 %v2124, %v2467
      %v2554 = vadd.f32 %v2125, %v2472
      %v2555 = vadd.f32 %v2126, %v2477
      %v2556 = vadd.f32 %v2127, %v2482
      %v2557 = vadd.f32 %v2128, %v2487
      %v2558 = vadd.f32 %v2129, %v2492
      %v2559 = vadd.f32 %v2130, %v2497
      %v2560 = vadd.f32 %v2131, %v2502
      %v2561 = vadd.f32 %v2132, %v2507
      %v2562 = vadd.f32 %v2133, %v2512
      %v2563 = vadd.f32 %v2134, %v2517
      %v2564 = vadd.f32 %v2135, %v2522
      %v2565 = vadd.f32 %v2136, %v2527
      %s2566 = scalar_lea.vmem %s1, 48
      %v2567 = vld [vmem:[%s2566] sm:$0xff]
      %v2570 = vrot.slane %v235, 4
      %v2571 = vsel %vm2139, %v2211, %v2570
      %v2572 = vrot.slane %v236, 4
      %v2573 = vsel %vm2139, %v2570, %v2572
      %v2574 = vsel %vm351, %v2571, 0
      %v2576 = vsel %vm351, %v2573, 0
      %2578 = vmatprep.subr.mxu0 0.0
      %2579 = vmatpush1.msra.mxu0 %v2567
      %2580 = vmatprep.subr.mxu0 0.0
      %2581 = vmatpush1.msra.mxu0 0.0
      %2582 = vmatprep.subr.mxu0 0.0
      %2583 = vmatpush1.msra.mxu0 0.0
      %2584 = vmatprep.subr.mxu0 0.0
      %2585 = vmatpush1.msra.mxu0 0.0
      %2586 = vmatprep.subr.mxu0 0.0
      %2587 = vmatpush1.msra.mxu0 0.0
      %2588 = vmatprep.subr.mxu0 0.0
      %2589 = vmatpush1.msra.mxu0 0.0
      %2590 = vmatprep.subr.mxu0 0.0
      %2591 = vmatpush1.msra.mxu0 0.0
      %2592 = vmatprep.subr.mxu0 0.0
      %2593 = vmatpush1.msra.mxu0 0.0
      %2594 = vmatprep.subr.mxu0 0.0
      %2595 = vmatpush1.msra.mxu0 0.0
      %2596 = vmatprep.subr.mxu0 0.0
      %2597 = vmatpush1.msra.mxu0 0.0
      %2598 = vmatprep.subr.mxu0 0.0
      %2599 = vmatpush1.msra.mxu0 0.0
      %2600 = vmatprep.subr.mxu0 0.0
      %2601 = vmatpush1.msra.mxu0 0.0
      %2602 = vmatprep.subr.mxu0 0.0
      %2603 = vmatpush1.msra.mxu0 0.0
      %2604 = vmatprep.subr.mxu0 0.0
      %2605 = vmatpush1.msra.mxu0 0.0
      %2606 = vmatprep.subr.mxu0 0.0
      %2607 = vmatpush1.msra.mxu0 0.0
      %2608 = vmatprep.subr.mxu0 0.0
      %2609 = vmatpush1.msra.mxu0 0.0
      %2610 = vmatprep.subr.mxu0 0.0
      %2611 = vmatpush1.msra.mxu0 0.0
      %2612 = vmatprep.subr.mxu0 0.0
      %2613 = vmatpush1.msra.mxu0 0.0
      %2614 = vmatprep.subr.mxu0 0.0
      %2615 = vmatpush1.msra.mxu0 0.0
      %2616 = vmatprep.subr.mxu0 0.0
      %2617 = vmatpush1.msra.mxu0 0.0
      %2618 = vmatprep.subr.mxu0 0.0
      %2619 = vmatpush1.msra.mxu0 0.0
      %2620 = vmatprep.subr.mxu0 0.0
      %2621 = vmatpush1.msra.mxu0 0.0
      %2622 = vmatprep.subr.mxu0 0.0
      %2623 = vmatpush1.msra.mxu0 0.0
      %2624 = vmatprep.subr.mxu0 0.0
      %2625 = vmatpush1.msra.mxu0 0.0
      %2626 = vmatprep.subr.mxu0 0.0
      %2627 = vmatpush1.msra.mxu0 0.0
      %2628 = vmatprep.subr.mxu0 0.0
      %2629 = vmatpush1.msra.mxu0 0.0
      %2630 = vmatprep.subr.mxu0 0.0
      %2631 = vmatpush1.msra.mxu0 0.0
      %2632 = vmatprep.subr.mxu0 0.0
      %2633 = vmatpush1.msra.mxu0 0.0
      %2634 = vmatprep.subr.mxu0 0.0
      %2635 = vmatpush1.msra.mxu0 0.0
      %2636 = vmatprep.subr.mxu0 0.0
      %2637 = vmatpush1.msra.mxu0 0.0
      %2638 = vmatprep.subr.mxu0 0.0
      %2639 = vmatpush1.msra.mxu0 0.0
      %2640 = vmatprep.subr.mxu0 0.0
      %2641 = vmatpush1.msra.mxu0 0.0
      %2642 = vmatprep.mubr.f32.mxu0 0.0
      %2643 = vmatmul.mubr.f32.gmra.mrb[0].mxu0 %v2217
      %v2644 = vpop.f32.mrb[0].mxu0
      %v2645 = vadd.f32 0.0, %v2644
      %v2646 = vpop.f32.mrb[0].mxu0
      %2647 = vmatprep.mubr.f32.mxu0 0.0
      %2648 = vmatmul.mubr.f32.gmra.mrb[0].mxu0 %v2219
      %v2649 = vpop.f32.mrb[0].mxu0
      %v2650 = vadd.f32 0.0, %v2649
      %v2651 = vpop.f32.mrb[0].mxu0
      %2652 = vmatprep.mubr.f32.mxu0 0.0
      %2653 = vmatmul.mubr.f32.gmra.mrb[0].mxu0 %v2221
      %v2654 = vpop.f32.mrb[0].mxu0
      %v2655 = vadd.f32 0.0, %v2654
      %v2656 = vpop.f32.mrb[0].mxu0
      %2657 = vmatprep.mubr.f32.mxu0 0.0
      %2658 = vmatmul.mubr.f32.gmra.mrb[0].mxu0 %v2223
      %v2659 = vpop.f32.mrb[0].mxu0
      %v2660 = vadd.f32 0.0, %v2659
      %v2661 = vpop.f32.mrb[0].mxu0
      %2662 = vmatprep.mubr.f32.mxu0 0.0
      %2663 = vmatmul.mubr.f32.gmra.mrb[0].mxu0 %v2225
      %v2664 = vpop.f32.mrb[0].mxu0
      %v2665 = vadd.f32 0.0, %v2664
      %v2666 = vpop.f32.mrb[0].mxu0
      %2667 = vmatprep.mubr.f32.mxu0 0.0
      %2668 = vmatmul.mubr.f32.gmra.mrb[0].mxu0 %v2227
      %v2669 = vpop.f32.mrb[0].mxu0
      %v2670 = vadd.f32 0.0, %v2669
      %v2671 = vpop.f32.mrb[0].mxu0
      %2672 = vmatprep.mubr.f32.mxu0 0.0
      %2673 = vmatmul.mubr.f32.gmra.mrb[0].mxu0 %v2229
      %v2674 = vpop.f32.mrb[0].mxu0
      %v2675 = vadd.f32 0.0, %v2674
      %v2676 = vpop.f32.mrb[0].mxu0
      %2677 = vmatprep.mubr.f32.mxu0 0.0
      %2678 = vmatmul.mubr.f32.gmra.mrb[0].mxu0 %v2231
      %v2679 = vpop.f32.mrb[0].mxu0
      %v2680 = vadd.f32 0.0, %v2679
      %v2681 = vpop.f32.mrb[0].mxu0
      %2682 = vmatprep.mubr.f32.mxu0 0.0
      %2683 = vmatmul.mubr.f32.gmra.mrb[0].mxu0 %v2233
      %v2684 = vpop.f32.mrb[0].mxu0
      %v2685 = vadd.f32 0.0, %v2684
      %v2686 = vpop.f32.mrb[0].mxu0
      %2687 = vmatprep.mubr.f32.mxu0 0.0
      %2688 = vmatmul.mubr.f32.gmra.mrb[0].mxu0 %v2235
      %v2689 = vpop.f32.mrb[0].mxu0
      %v2690 = vadd.f32 0.0, %v2689
      %v2691 = vpop.f32.mrb[0].mxu0
      %2692 = vmatprep.mubr.f32.mxu0 0.0
      %2693 = vmatmul.mubr.f32.gmra.mrb[0].mxu0 %v2237
      %v2694 = vpop.f32.mrb[0].mxu0
      %v2695 = vadd.f32 0.0, %v2694
      %v2696 = vpop.f32.mrb[0].mxu0
      %2697 = vmatprep.mubr.f32.mxu0 0.0
      %2698 = vmatmul.mubr.f32.gmra.mrb[0].mxu0 %v2239
      %v2699 = vpop.f32.mrb[0].mxu0
      %v2700 = vadd.f32 0.0, %v2699
      %v2701 = vpop.f32.mrb[0].mxu0
      %2702 = vmatprep.mubr.f32.mxu0 0.0
      %2703 = vmatmul.mubr.f32.gmra.mrb[0].mxu0 %v2241
      %v2704 = vpop.f32.mrb[0].mxu0
      %v2705 = vadd.f32 0.0, %v2704
      %v2706 = vpop.f32.mrb[0].mxu0
      %2707 = vmatprep.mubr.f32.mxu0 0.0
      %2708 = vmatmul.mubr.f32.gmra.mrb[0].mxu0 %v2243
      %v2709 = vpop.f32.mrb[0].mxu0
      %v2710 = vadd.f32 0.0, %v2709
      %v2711 = vpop.f32.mrb[0].mxu0
      %2712 = vmatprep.mubr.f32.mxu0 0.0
      %2713 = vmatmul.mubr.f32.gmra.mrb[0].mxu0 %v2245
      %v2714 = vpop.f32.mrb[0].mxu0
      %v2715 = vadd.f32 0.0, %v2714
      %v2716 = vpop.f32.mrb[0].mxu0
      %2717 = vmatprep.mubr.f32.mxu0 0.0
      %2718 = vmatmul.mubr.f32.gmra.mrb[0].mxu0 %v2247
      %v2719 = vpop.f32.mrb[0].mxu0
      %v2720 = vadd.f32 0.0, %v2719
      %v2721 = vpop.f32.mrb[0].mxu0
      %2722 = vmatprep.mubr.f32.mxu0 0.0
      %2723 = vmatmul.mubr.f32.gmra.mrb[0].mxu0 %v2249
      %v2724 = vpop.f32.mrb[0].mxu0
      %v2725 = vadd.f32 0.0, %v2724
      %v2726 = vpop.f32.mrb[0].mxu0
      %2727 = vmatprep.mubr.f32.mxu0 0.0
      %2728 = vmatmul.mubr.f32.gmra.mrb[0].mxu0 %v2251
      %v2729 = vpop.f32.mrb[0].mxu0
      %v2730 = vadd.f32 0.0, %v2729
      %v2731 = vpop.f32.mrb[0].mxu0
      %2732 = vmatprep.mubr.f32.mxu0 0.0
      %2733 = vmatmul.mubr.f32.gmra.mrb[0].mxu0 %v2253
      %v2734 = vpop.f32.mrb[0].mxu0
      %v2735 = vadd.f32 0.0, %v2734
      %v2736 = vpop.f32.mrb[0].mxu0
      %2737 = vmatprep.mubr.f32.mxu0 0.0
      %2738 = vmatmul.mubr.f32.gmra.mrb[0].mxu0 %v2255
      %v2739 = vpop.f32.mrb[0].mxu0
      %v2740 = vadd.f32 0.0, %v2739
      %v2741 = vpop.f32.mrb[0].mxu0
      %2742 = vmatprep.mubr.f32.mxu0 0.0
      %2743 = vmatmul.mubr.f32.gmra.mrb[0].mxu0 %v2257
      %v2744 = vpop.f32.mrb[0].mxu0
      %v2745 = vadd.f32 0.0, %v2744
      %v2746 = vpop.f32.mrb[0].mxu0
      %2747 = vmatprep.mubr.f32.mxu0 0.0
      %2748 = vmatmul.mubr.f32.gmra.mrb[0].mxu0 %v2259
      %v2749 = vpop.f32.mrb[0].mxu0
      %v2750 = vadd.f32 0.0, %v2749
      %v2751 = vpop.f32.mrb[0].mxu0
      %2752 = vmatprep.mubr.f32.mxu0 0.0
      %2753 = vmatmul.mubr.f32.gmra.mrb[0].mxu0 %v2261
      %v2754 = vpop.f32.mrb[0].mxu0
      %v2755 = vadd.f32 0.0, %v2754
      %v2756 = vpop.f32.mrb[0].mxu0
      %2757 = vmatprep.mubr.f32.mxu0 0.0
      %2758 = vmatmul.mubr.f32.gmra.mrb[0].mxu0 %v2263
      %v2759 = vpop.f32.mrb[0].mxu0
      %v2760 = vadd.f32 0.0, %v2759
      %v2761 = vpop.f32.mrb[0].mxu0
      %2762 = vmatprep.mubr.f32.mxu0 0.0
      %2763 = vmatmul.mubr.f32.gmra.mrb[0].mxu0 %v2265
      %v2764 = vpop.f32.mrb[0].mxu0
      %v2765 = vadd.f32 0.0, %v2764
      %v2766 = vpop.f32.mrb[0].mxu0
      %2767 = vmatprep.mubr.f32.mxu0 0.0
      %2768 = vmatmul.mubr.f32.gmra.mrb[0].mxu0 %v2267
      %v2769 = vpop.f32.mrb[0].mxu0
      %v2770 = vadd.f32 0.0, %v2769
      %v2771 = vpop.f32.mrb[0].mxu0
      %2772 = vmatprep.mubr.f32.mxu0 0.0
      %2773 = vmatmul.mubr.f32.gmra.mrb[0].mxu0 %v2269
      %v2774 = vpop.f32.mrb[0].mxu0
      %v2775 = vadd.f32 0.0, %v2774
      %v2776 = vpop.f32.mrb[0].mxu0
      %2777 = vmatprep.mubr.f32.mxu0 0.0
      %2778 = vmatmul.mubr.f32.gmra.mrb[0].mxu0 %v2271
      %v2779 = vpop.f32.mrb[0].mxu0
      %v2780 = vadd.f32 0.0, %v2779
      %v2781 = vpop.f32.mrb[0].mxu0
      %2782 = vmatprep.mubr.f32.mxu0 0.0
      %2783 = vmatmul.mubr.f32.gmra.mrb[0].mxu0 %v2273
      %v2784 = vpop.f32.mrb[0].mxu0
      %v2785 = vadd.f32 0.0, %v2784
      %v2786 = vpop.f32.mrb[0].mxu0
      %2787 = vmatprep.mubr.f32.mxu0 0.0
      %2788 = vmatmul.mubr.f32.gmra.mrb[0].mxu0 %v2275
      %v2789 = vpop.f32.mrb[0].mxu0
      %v2790 = vadd.f32 0.0, %v2789
      %v2791 = vpop.f32.mrb[0].mxu0
      %2792 = vmatprep.mubr.f32.mxu0 0.0
      %2793 = vmatmul.mubr.f32.gmra.mrb[0].mxu0 %v2277
      %v2794 = vpop.f32.mrb[0].mxu0
      %v2795 = vadd.f32 0.0, %v2794
      %v2796 = vpop.f32.mrb[0].mxu0
      %2797 = vmatprep.mubr.f32.mxu0 0.0
      %2798 = vmatmul.mubr.f32.gmra.mrb[0].mxu0 %v2279
      %v2799 = vpop.f32.mrb[0].mxu0
      %v2800 = vadd.f32 0.0, %v2799
      %v2801 = vpop.f32.mrb[0].mxu0
      %2802 = vmatprep.mubr.f32.mxu0 0.0
      %2803 = vmatmul.mubr.f32.gmra.mrb[0].mxu0 %v2281
      %v2804 = vpop.f32.mrb[0].mxu0
      %v2805 = vadd.f32 0.0, %v2804
      %v2806 = vpop.f32.mrb[0].mxu0
      %2807 = vmatprep.mubr.f32.mxu0 0.0
      %2808 = vmatmul.mubr.f32.gmra.mrb[0].mxu0 %v2283
      %v2809 = vpop.f32.mrb[0].mxu0
      %v2810 = vadd.f32 0.0, %v2809
      %v2811 = vpop.f32.mrb[0].mxu0
      %2812 = vmatprep.mubr.f32.mxu0 0.0
      %2813 = vmatmul.mubr.f32.gmra.mrb[0].mxu0 %v2574
      %v2814 = vpop.f32.mrb[0].mxu0
      %v2815 = vadd.f32 0.0, %v2814
      %v2816 = vpop.f32.mrb[0].mxu0
      %2817 = vmatprep.mubr.f32.mxu0 0.0
      %2818 = vmatmul.mubr.f32.gmra.mrb[0].mxu0 %v2576
      %v2819 = vpop.f32.mrb[0].mxu0
      %v2820 = vadd.f32 0.0, %v2819
      %v2821 = vpop.f32.mrb[0].mxu0
      %2822 = vdwg.mxu0
      %v2823 = vadd.f32 %v2530, %v2645
      %v2824 = vadd.f32 %v2531, %v2650
      %v2825 = vadd.f32 %v2532, %v2655
      %v2826 = vadd.f32 %v2533, %v2660
      %v2827 = vadd.f32 %v2534, %v2665
      %v2828 = vadd.f32 %v2535, %v2670
      %v2829 = vadd.f32 %v2536, %v2675
      %v2830 = vadd.f32 %v2537, %v2680
      %v2831 = vadd.f32 %v2538, %v2685
      %v2832 = vadd.f32 %v2539, %v2690
      %v2833 = vadd.f32 %v2540, %v2695
      %v2834 = vadd.f32 %v2541, %v2700
      %v2835 = vadd.f32 %v2542, %v2705
      %v2836 = vadd.f32 %v2543, %v2710
      %v2837 = vadd.f32 %v2544, %v2715
      %v2838 = vadd.f32 %v2545, %v2720
      %v2839 = vadd.f32 %v2546, %v2725
      %v2840 = vadd.f32 %v2547, %v2730
      %v2841 = vadd.f32 %v2548, %v2735
      %v2842 = vadd.f32 %v2549, %v2740
      %v2843 = vadd.f32 %v2550, %v2745
      %v2844 = vadd.f32 %v2551, %v2750
      %v2845 = vadd.f32 %v2552, %v2755
      %v2846 = vadd.f32 %v2553, %v2760
      %v2847 = vadd.f32 %v2554, %v2765
      %v2848 = vadd.f32 %v2555, %v2770
      %v2849 = vadd.f32 %v2556, %v2775
      %v2850 = vadd.f32 %v2557, %v2780
      %v2851 = vadd.f32 %v2558, %v2785
      %v2852 = vadd.f32 %v2559, %v2790
      %v2853 = vadd.f32 %v2560, %v2795
      %v2854 = vadd.f32 %v2561, %v2800
      %v2855 = vadd.f32 %v2562, %v2805
      %v2856 = vadd.f32 %v2563, %v2810
      %v2857 = vadd.f32 %v2564, %v2815
      %v2858 = vadd.f32 %v2565, %v2820
      %s2859 = scalar_lea.vmem %s1, 56
      %v2860 = vld [vmem:[%s2859] sm:$0xff]
      %vm2861 = vcmask 1042432
      %v2862 = vrot.slane %v200, 5
      %v2863 = vrot.slane %v201, 5
      %v2864 = vsel %vm2861, %v2862, %v2863
      %v2865 = vrot.slane %v202, 5
      %v2866 = vsel %vm2861, %v2863, %v2865
      %v2867 = vrot.slane %v203, 5
      %v2868 = vsel %vm2861, %v2865, %v2867
      %v2869 = vrot.slane %v204, 5
      %v2870 = vsel %vm2861, %v2867, %v2869
      %v2871 = vrot.slane %v205, 5
      %v2872 = vsel %vm2861, %v2869, %v2871
      %v2873 = vrot.slane %v206, 5
      %v2874 = vsel %vm2861, %v2871, %v2873
      %v2875 = vrot.slane %v207, 5
      %v2876 = vsel %vm2861, %v2873, %v2875
      %v2877 = vrot.slane %v208, 5
      %v2878 = vsel %vm2861, %v2875, %v2877
      %v2879 = vrot.slane %v209, 5
      %v2880 = vsel %vm2861, %v2877, %v2879
      %v2881 = vrot.slane %v210, 5
      %v2882 = vsel %vm2861, %v2879, %v2881
      %v2883 = vrot.slane %v211, 5
      %v2884 = vsel %vm2861, %v2881, %v2883
      %v2885 = vrot.slane %v212, 5
      %v2886 = vsel %vm2861, %v2883, %v2885
      %v2887 = vrot.slane %v213, 5
      %v2888 = vsel %vm2861, %v2885, %v2887
      %v2889 = vrot.slane %v214, 5
      %v2890 = vsel %vm2861, %v2887, %v2889
      %v2891 = vrot.slane %v215, 5
      %v2892 = vsel %vm2861, %v2889, %v2891
      %v2893 = vrot.slane %v216, 5
      %v2894 = vsel %vm2861, %v2891, %v2893
      %v2895 = vrot.slane %v217, 5
      %v2896 = vsel %vm2861, %v2893, %v2895
      %v2897 = vrot.slane %v218, 5
      %v2898 = vsel %vm2861, %v2895, %v2897
      %v2899 = vrot.slane %v219, 5
      %v2900 = vsel %vm2861, %v2897, %v2899
      %v2901 = vrot.slane %v220, 5
      %v2902 = vsel %vm2861, %v2899, %v2901
      %v2903 = vrot.slane %v221, 5
      %v2904 = vsel %vm2861, %v2901, %v2903
      %v2905 = vrot.slane %v222, 5
      %v2906 = vsel %vm2861, %v2903, %v2905
      %v2907 = vrot.slane %v223, 5
      %v2908 = vsel %vm2861, %v2905, %v2907
      %v2909 = vrot.slane %v224, 5
      %v2910 = vsel %vm2861, %v2907, %v2909
      %v2911 = vrot.slane %v225, 5
      %v2912 = vsel %vm2861, %v2909, %v2911
      %v2913 = vrot.slane %v226, 5
      %v2914 = vsel %vm2861, %v2911, %v2913
      %v2915 = vrot.slane %v227, 5
      %v2916 = vsel %vm2861, %v2913, %v2915
      %v2917 = vrot.slane %v228, 5
      %v2918 = vsel %vm2861, %v2915, %v2917
      %v2919 = vrot.slane %v229, 5
      %v2920 = vsel %vm2861, %v2917, %v2919
      %v2921 = vrot.slane %v230, 5
      %v2922 = vsel %vm2861, %v2919, %v2921
      %v2923 = vrot.slane %v231, 5
      %v2924 = vsel %vm2861, %v2921, %v2923
      %v2925 = vrot.slane %v232, 5
      %v2926 = vsel %vm2861, %v2923, %v2925
      %v2927 = vrot.slane %v233, 5
      %v2928 = vsel %vm2861, %v2925, %v2927
      %v2929 = vrot.slane %v234, 5
      %v2930 = vsel %vm2861, %v2927, %v2929
      %v2931 = vrot.slane %v235, 5
      %v2932 = vsel %vm2861, %v2929, %v2931
      %v2933 = vrot.slane %v236, 5
      %v2934 = vsel %vm2861, %v2931, %v2933
      %v2935 = vsel %vm351, %v2864, 0
      %v2937 = vsel %vm351, %v2866, 0
      %v2939 = vsel %vm351, %v2868, 0
      %v2941 = vsel %vm351, %v2870, 0
      %v2943 = vsel %vm351, %v2872, 0
      %v2945 = vsel %vm351, %v2874, 0
      %v2947 = vsel %vm351, %v2876, 0
      %v2949 = vsel %vm351, %v2878, 0
      %v2951 = vsel %vm351, %v2880, 0
      %v2953 = vsel %vm351, %v2882, 0
      %v2955 = vsel %vm351, %v2884, 0
      %v2957 = vsel %vm351, %v2886, 0
      %v2959 = vsel %vm351, %v2888, 0
      %v2961 = vsel %vm351, %v2890, 0
      %v2963 = vsel %vm351, %v2892, 0
      %v2965 = vsel %vm351, %v2894, 0
      %v2967 = vsel %vm351, %v2896, 0
      %v2969 = vsel %vm351, %v2898, 0
      %v2971 = vsel %vm351, %v2900, 0
      %v2973 = vsel %vm351, %v2902, 0
      %v2975 = vsel %vm351, %v2904, 0
      %v2977 = vsel %vm351, %v2906, 0
      %v2979 = vsel %vm351, %v2908, 0
      %v2981 = vsel %vm351, %v2910, 0
      %v2983 = vsel %vm351, %v2912, 0
      %v2985 = vsel %vm351, %v2914, 0
      %v2987 = vsel %vm351, %v2916, 0
      %v2989 = vsel %vm351, %v2918, 0
      %v2991 = vsel %vm351, %v2920, 0
      %v2993 = vsel %vm351, %v2922, 0
      %v2995 = vsel %vm351, %v2924, 0
      %v2997 = vsel %vm351, %v2926, 0
      %v2999 = vsel %vm351, %v2928, 0
      %v3001 = vsel %vm351, %v2930, 0
      %v3003 = vsel %vm351, %v2932, 0
      %v3005 = vsel %vm351, %v2934, 0
      %3007 = vmatprep.subr.mxu0 0.0
      %3008 = vmatpush1.msra.mxu0 %v2860
      %3009 = vmatprep.subr.mxu0 0.0
      %3010 = vmatpush1.msra.mxu0 0.0
      %3011 = vmatprep.subr.mxu0 0.0
      %3012 = vmatpush1.msra.mxu0 0.0
      %3013 = vmatprep.subr.mxu0 0.0
      %3014 = vmatpush1.msra.mxu0 0.0
      %3015 = vmatprep.subr.mxu0 0.0
      %3016 = vmatpush1.msra.mxu0 0.0
      %3017 = vmatprep.subr.mxu0 0.0
      %3018 = vmatpush1.msra.mxu0 0.0
      %3019 = vmatprep.subr.mxu0 0.0
      %3020 = vmatpush1.msra.mxu0 0.0
      %3021 = vmatprep.subr.mxu0 0.0
      %3022 = vmatpush1.msra.mxu0 0.0
      %3023 = vmatprep.subr.mxu0 0.0
      %3024 = vmatpush1.msra.mxu0 0.0
      %3025 = vmatprep.subr.mxu0 0.0
      %3026 = vmatpush1.msra.mxu0 0.0
      %3027 = vmatprep.subr.mxu0 0.0
      %3028 = vmatpush1.msra.mxu0 0.0
      %3029 = vmatprep.subr.mxu0 0.0
      %3030 = vmatpush1.msra.mxu0 0.0
      %3031 = vmatprep.subr.mxu0 0.0
      %3032 = vmatpush1.msra.mxu0 0.0
      %3033 = vmatprep.subr.mxu0 0.0
      %3034 = vmatpush1.msra.mxu0 0.0
      %3035 = vmatprep.subr.mxu0 0.0
      %3036 = vmatpush1.msra.mxu0 0.0
      %3037 = vmatprep.subr.mxu0 0.0
      %3038 = vmatpush1.msra.mxu0 0.0
      %3039 = vmatprep.subr.mxu0 0.0
      %3040 = vmatpush1.msra.mxu0 0.0
      %3041 = vmatprep.subr.mxu0 0.0
      %3042 = vmatpush1.msra.mxu0 0.0
      %3043 = vmatprep.subr.mxu0 0.0
      %3044 = vmatpush1.msra.mxu0 0.0
      %3045 = vmatprep.subr.mxu0 0.0
      %3046 = vmatpush1.msra.mxu0 0.0
      %3047 = vmatprep.subr.mxu0 0.0
      %3048 = vmatpush1.msra.mxu0 0.0
      %3049 = vmatprep.subr.mxu0 0.0
      %3050 = vmatpush1.msra.mxu0 0.0
      %3051 = vmatprep.subr.mxu0 0.0
      %3052 = vmatpush1.msra.mxu0 0.0
      %3053 = vmatprep.subr.mxu0 0.0
      %3054 = vmatpush1.msra.mxu0 0.0
      %3055 = vmatprep.subr.mxu0 0.0
      %3056 = vmatpush1.msra.mxu0 0.0
      %3057 = vmatprep.subr.mxu0 0.0
      %3058 = vmatpush1.msra.mxu0 0.0
      %3059 = vmatprep.subr.mxu0 0.0
      %3060 = vmatpush1.msra.mxu0 0.0
      %3061 = vmatprep.subr.mxu0 0.0
      %3062 = vmatpush1.msra.mxu0 0.0
      %3063 = vmatprep.subr.mxu0 0.0
      %3064 = vmatpush1.msra.mxu0 0.0
      %3065 = vmatprep.subr.mxu0 0.0
      %3066 = vmatpush1.msra.mxu0 0.0
      %3067 = vmatprep.subr.mxu0 0.0
      %3068 = vmatpush1.msra.mxu0 0.0
      %3069 = vmatprep.subr.mxu0 0.0
      %3070 = vmatpush1.msra.mxu0 0.0
      %3071 = vmatprep.mubr.f32.mxu0 0.0
      %3072 = vmatmul.mubr.f32.gmra.mrb[0].mxu0 %v2935
      %v3073 = vpop.f32.mrb[0].mxu0
      %v3074 = vadd.f32 0.0, %v3073
      %v3075 = vpop.f32.mrb[0].mxu0
      %3076 = vmatprep.mubr.f32.mxu0 0.0
      %3077 = vmatmul.mubr.f32.gmra.mrb[0].mxu0 %v2937
      %v3078 = vpop.f32.mrb[0].mxu0
      %v3079 = vadd.f32 0.0, %v3078
      %v3080 = vpop.f32.mrb[0].mxu0
      %3081 = vmatprep.mubr.f32.mxu0 0.0
      %3082 = vmatmul.mubr.f32.gmra.mrb[0].mxu0 %v2939
      %v3083 = vpop.f32.mrb[0].mxu0
      %v3084 = vadd.f32 0.0, %v3083
      %v3085 = vpop.f32.mrb[0].mxu0
      %3086 = vmatprep.mubr.f32.mxu0 0.0
      %3087 = vmatmul.mubr.f32.gmra.mrb[0].mxu0 %v2941
      %v3088 = vpop.f32.mrb[0].mxu0
      %v3089 = vadd.f32 0.0, %v3088
      %v3090 = vpop.f32.mrb[0].mxu0
      %3091 = vmatprep.mubr.f32.mxu0 0.0
      %3092 = vmatmul.mubr.f32.gmra.mrb[0].mxu0 %v2943
      %v3093 = vpop.f32.mrb[0].mxu0
      %v3094 = vadd.f32 0.0, %v3093
      %v3095 = vpop.f32.mrb[0].mxu0
      %3096 = vmatprep.mubr.f32.mxu0 0.0
      %3097 = vmatmul.mubr.f32.gmra.mrb[0].mxu0 %v2945
      %v3098 = vpop.f32.mrb[0].mxu0
      %v3099 = vadd.f32 0.0, %v3098
      %v3100 = vpop.f32.mrb[0].mxu0
      %3101 = vmatprep.mubr.f32.mxu0 0.0
      %3102 = vmatmul.mubr.f32.gmra.mrb[0].mxu0 %v2947
      %v3103 = vpop.f32.mrb[0].mxu0
      %v3104 = vadd.f32 0.0, %v3103
      %v3105 = vpop.f32.mrb[0].mxu0
      %3106 = vmatprep.mubr.f32.mxu0 0.0
      %3107 = vmatmul.mubr.f32.gmra.mrb[0].mxu0 %v2949
      %v3108 = vpop.f32.mrb[0].mxu0
      %v3109 = vadd.f32 0.0, %v3108
      %v3110 = vpop.f32.mrb[0].mxu0
      %3111 = vmatprep.mubr.f32.mxu0 0.0
      %3112 = vmatmul.mubr.f32.gmra.mrb[0].mxu0 %v2951
      %v3113 = vpop.f32.mrb[0].mxu0
      %v3114 = vadd.f32 0.0, %v3113
      %v3115 = vpop.f32.mrb[0].mxu0
      %3116 = vmatprep.mubr.f32.mxu0 0.0
      %3117 = vmatmul.mubr.f32.gmra.mrb[0].mxu0 %v2953
      %v3118 = vpop.f32.mrb[0].mxu0
      %v3119 = vadd.f32 0.0, %v3118
      %v3120 = vpop.f32.mrb[0].mxu0
      %3121 = vmatprep.mubr.f32.mxu0 0.0
      %3122 = vmatmul.mubr.f32.gmra.mrb[0].mxu0 %v2955
      %v3123 = vpop.f32.mrb[0].mxu0
      %v3124 = vadd.f32 0.0, %v3123
      %v3125 = vpop.f32.mrb[0].mxu0
      %3126 = vmatprep.mubr.f32.mxu0 0.0
      %3127 = vmatmul.mubr.f32.gmra.mrb[0].mxu0 %v2957
      %v3128 = vpop.f32.mrb[0].mxu0
      %v3129 = vadd.f32 0.0, %v3128
      %v3130 = vpop.f32.mrb[0].mxu0
      %3131 = vmatprep.mubr.f32.mxu0 0.0
      %3132 = vmatmul.mubr.f32.gmra.mrb[0].mxu0 %v2959
      %v3133 = vpop.f32.mrb[0].mxu0
      %v3134 = vadd.f32 0.0, %v3133
      %v3135 = vpop.f32.mrb[0].mxu0
      %3136 = vmatprep.mubr.f32.mxu0 0.0
      %3137 = vmatmul.mubr.f32.gmra.mrb[0].mxu0 %v2961
      %v3138 = vpop.f32.mrb[0].mxu0
      %v3139 = vadd.f32 0.0, %v3138
      %v3140 = vpop.f32.mrb[0].mxu0
      %3141 = vmatprep.mubr.f32.mxu0 0.0
      %3142 = vmatmul.mubr.f32.gmra.mrb[0].mxu0 %v2963
      %v3143 = vpop.f32.mrb[0].mxu0
      %v3144 = vadd.f32 0.0, %v3143
      %v3145 = vpop.f32.mrb[0].mxu0
      %3146 = vmatprep.mubr.f32.mxu0 0.0
      %3147 = vmatmul.mubr.f32.gmra.mrb[0].mxu0 %v2965
      %v3148 = vpop.f32.mrb[0].mxu0
      %v3149 = vadd.f32 0.0, %v3148
      %v3150 = vpop.f32.mrb[0].mxu0
      %3151 = vmatprep.mubr.f32.mxu0 0.0
      %3152 = vmatmul.mubr.f32.gmra.mrb[0].mxu0 %v2967
      %v3153 = vpop.f32.mrb[0].mxu0
      %v3154 = vadd.f32 0.0, %v3153
      %v3155 = vpop.f32.mrb[0].mxu0
      %3156 = vmatprep.mubr.f32.mxu0 0.0
      %3157 = vmatmul.mubr.f32.gmra.mrb[0].mxu0 %v2969
      %v3158 = vpop.f32.mrb[0].mxu0
      %v3159 = vadd.f32 0.0, %v3158
      %v3160 = vpop.f32.mrb[0].mxu0
      %3161 = vmatprep.mubr.f32.mxu0 0.0
      %3162 = vmatmul.mubr.f32.gmra.mrb[0].mxu0 %v2971
      %v3163 = vpop.f32.mrb[0].mxu0
      %v3164 = vadd.f32 0.0, %v3163
      %v3165 = vpop.f32.mrb[0].mxu0
      %3166 = vmatprep.mubr.f32.mxu0 0.0
      %3167 = vmatmul.mubr.f32.gmra.mrb[0].mxu0 %v2973
      %v3168 = vpop.f32.mrb[0].mxu0
      %v3169 = vadd.f32 0.0, %v3168
      %v3170 = vpop.f32.mrb[0].mxu0
      %3171 = vmatprep.mubr.f32.mxu0 0.0
      %3172 = vmatmul.mubr.f32.gmra.mrb[0].mxu0 %v2975
      %v3173 = vpop.f32.mrb[0].mxu0
      %v3174 = vadd.f32 0.0, %v3173
      %v3175 = vpop.f32.mrb[0].mxu0
      %3176 = vmatprep.mubr.f32.mxu0 0.0
      %3177 = vmatmul.mubr.f32.gmra.mrb[0].mxu0 %v2977
      %v3178 = vpop.f32.mrb[0].mxu0
      %v3179 = vadd.f32 0.0, %v3178
      %v3180 = vpop.f32.mrb[0].mxu0
      %3181 = vmatprep.mubr.f32.mxu0 0.0
      %3182 = vmatmul.mubr.f32.gmra.mrb[0].mxu0 %v2979
      %v3183 = vpop.f32.mrb[0].mxu0
      %v3184 = vadd.f32 0.0, %v3183
      %v3185 = vpop.f32.mrb[0].mxu0
      %3186 = vmatprep.mubr.f32.mxu0 0.0
      %3187 = vmatmul.mubr.f32.gmra.mrb[0].mxu0 %v2981
      %v3188 = vpop.f32.mrb[0].mxu0
      %v3189 = vadd.f32 0.0, %v3188
      %v3190 = vpop.f32.mrb[0].mxu0
      %3191 = vmatprep.mubr.f32.mxu0 0.0
      %3192 = vmatmul.mubr.f32.gmra.mrb[0].mxu0 %v2983
      %v3193 = vpop.f32.mrb[0].mxu0
      %v3194 = vadd.f32 0.0, %v3193
      %v3195 = vpop.f32.mrb[0].mxu0
      %3196 = vmatprep.mubr.f32.mxu0 0.0
      %3197 = vmatmul.mubr.f32.gmra.mrb[0].mxu0 %v2985
      %v3198 = vpop.f32.mrb[0].mxu0
      %v3199 = vadd.f32 0.0, %v3198
      %v3200 = vpop.f32.mrb[0].mxu0
      %3201 = vmatprep.mubr.f32.mxu0 0.0
      %3202 = vmatmul.mubr.f32.gmra.mrb[0].mxu0 %v2987
      %v3203 = vpop.f32.mrb[0].mxu0
      %v3204 = vadd.f32 0.0, %v3203
      %v3205 = vpop.f32.mrb[0].mxu0
      %3206 = vmatprep.mubr.f32.mxu0 0.0
      %3207 = vmatmul.mubr.f32.gmra.mrb[0].mxu0 %v2989
      %v3208 = vpop.f32.mrb[0].mxu0
      %v3209 = vadd.f32 0.0, %v3208
      %v3210 = vpop.f32.mrb[0].mxu0
      %3211 = vmatprep.mubr.f32.mxu0 0.0
      %3212 = vmatmul.mubr.f32.gmra.mrb[0].mxu0 %v2991
      %v3213 = vpop.f32.mrb[0].mxu0
      %v3214 = vadd.f32 0.0, %v3213
      %v3215 = vpop.f32.mrb[0].mxu0
      %3216 = vmatprep.mubr.f32.mxu0 0.0
      %3217 = vmatmul.mubr.f32.gmra.mrb[0].mxu0 %v2993
      %v3218 = vpop.f32.mrb[0].mxu0
      %v3219 = vadd.f32 0.0, %v3218
      %v3220 = vpop.f32.mrb[0].mxu0
      %3221 = vmatprep.mubr.f32.mxu0 0.0
      %3222 = vmatmul.mubr.f32.gmra.mrb[0].mxu0 %v2995
      %v3223 = vpop.f32.mrb[0].mxu0
      %v3224 = vadd.f32 0.0, %v3223
      %v3225 = vpop.f32.mrb[0].mxu0
      %3226 = vmatprep.mubr.f32.mxu0 0.0
      %3227 = vmatmul.mubr.f32.gmra.mrb[0].mxu0 %v2997
      %v3228 = vpop.f32.mrb[0].mxu0
      %v3229 = vadd.f32 0.0, %v3228
      %v3230 = vpop.f32.mrb[0].mxu0
      %3231 = vmatprep.mubr.f32.mxu0 0.0
      %3232 = vmatmul.mubr.f32.gmra.mrb[0].mxu0 %v2999
      %v3233 = vpop.f32.mrb[0].mxu0
      %v3234 = vadd.f32 0.0, %v3233
      %v3235 = vpop.f32.mrb[0].mxu0
      %3236 = vmatprep.mubr.f32.mxu0 0.0
      %3237 = vmatmul.mubr.f32.gmra.mrb[0].mxu0 %v3001
      %v3238 = vpop.f32.mrb[0].mxu0
      %v3239 = vadd.f32 0.0, %v3238
      %v3240 = vpop.f32.mrb[0].mxu0
      %3241 = vmatprep.mubr.f32.mxu0 0.0
      %3242 = vmatmul.mubr.f32.gmra.mrb[0].mxu0 %v3003
      %v3243 = vpop.f32.mrb[0].mxu0
      %v3244 = vadd.f32 0.0, %v3243
      %v3245 = vpop.f32.mrb[0].mxu0
      %3246 = vmatprep.mubr.f32.mxu0 0.0
      %3247 = vmatmul.mubr.f32.gmra.mrb[0].mxu0 %v3005
      %v3248 = vpop.f32.mrb[0].mxu0
      %v3249 = vadd.f32 0.0, %v3248
      %v3250 = vpop.f32.mrb[0].mxu0
      %3251 = vdwg.mxu0
      %v3252 = vadd.f32 %v2823, %v3074
      %v3253 = vadd.f32 %v2824, %v3079
      %v3254 = vadd.f32 %v2825, %v3084
      %v3255 = vadd.f32 %v2826, %v3089
      %v3256 = vadd.f32 %v2827, %v3094
      %v3257 = vadd.f32 %v2828, %v3099
      %v3258 = vadd.f32 %v2829, %v3104
      %v3259 = vadd.f32 %v2830, %v3109
      %v3260 = vadd.f32 %v2831, %v3114
      %v3261 = vadd.f32 %v2832, %v3119
      %v3262 = vadd.f32 %v2833, %v3124
      %v3263 = vadd.f32 %v2834, %v3129
      %v3264 = vadd.f32 %v2835, %v3134
      %v3265 = vadd.f32 %v2836, %v3139
      %v3266 = vadd.f32 %v2837, %v3144
      %v3267 = vadd.f32 %v2838, %v3149
      %v3268 = vadd.f32 %v2839, %v3154
      %v3269 = vadd.f32 %v2840, %v3159
      %v3270 = vadd.f32 %v2841, %v3164
      %v3271 = vadd.f32 %v2842, %v3169
      %v3272 = vadd.f32 %v2843, %v3174
      %v3273 = vadd.f32 %v2844, %v3179
      %v3274 = vadd.f32 %v2845, %v3184
      %v3275 = vadd.f32 %v2846, %v3189
      %v3276 = vadd.f32 %v2847, %v3194
      %v3277 = vadd.f32 %v2848, %v3199
      %v3278 = vadd.f32 %v2849, %v3204
      %v3279 = vadd.f32 %v2850, %v3209
      %v3280 = vadd.f32 %v2851, %v3214
      %v3281 = vadd.f32 %v2852, %v3219
      %v3282 = vadd.f32 %v2853, %v3224
      %v3283 = vadd.f32 %v2854, %v3229
      %v3284 = vadd.f32 %v2855, %v3234
      %v3285 = vadd.f32 %v2856, %v3239
      %v3286 = vadd.f32 %v2857, %v3244
      %v3287 = vadd.f32 %v2858, %v3249
      %s3288 = scalar_lea.vmem %s1, 64
      %v3289 = vld [vmem:[%s3288] sm:$0xff]
      %vm3290 = vcmask 1041408
      %v3291 = vrot.slane %v200, 6
      %v3292 = vrot.slane %v201, 6
      %v3293 = vsel %vm3290, %v3291, %v3292
      %v3294 = vrot.slane %v202, 6
      %v3295 = vsel %vm3290, %v3292, %v3294
      %v3296 = vrot.slane %v203, 6
      %v3297 = vsel %vm3290, %v3294, %v3296
      %v3298 = vrot.slane %v204, 6
      %v3299 = vsel %vm3290, %v3296, %v3298
      %v3300 = vrot.slane %v205, 6
      %v3301 = vsel %vm3290, %v3298, %v3300
      %v3302 = vrot.slane %v206, 6
      %v3303 = vsel %vm3290, %v3300, %v3302
      %v3304 = vrot.slane %v207, 6
      %v3305 = vsel %vm3290, %v3302, %v3304
      %v3306 = vrot.slane %v208, 6
      %v3307 = vsel %vm3290, %v3304, %v3306
      %v3308 = vrot.slane %v209, 6
      %v3309 = vsel %vm3290, %v3306, %v3308
      %v3310 = vrot.slane %v210, 6
      %v3311 = vsel %vm3290, %v3308, %v3310
      %v3312 = vrot.slane %v211, 6
      %v3313 = vsel %vm3290, %v3310, %v3312
      %v3314 = vrot.slane %v212, 6
      %v3315 = vsel %vm3290, %v3312, %v3314
      %v3316 = vrot.slane %v213, 6
      %v3317 = vsel %vm3290, %v3314, %v3316
      %v3318 = vrot.slane %v214, 6
      %v3319 = vsel %vm3290, %v3316, %v3318
      %v3320 = vrot.slane %v215, 6
      %v3321 = vsel %vm3290, %v3318, %v3320
      %v3322 = vrot.slane %v216, 6
      %v3323 = vsel %vm3290, %v3320, %v3322
      %v3324 = vrot.slane %v217, 6
      %v3325 = vsel %vm3290, %v3322, %v3324
      %v3326 = vrot.slane %v218, 6
      %v3327 = vsel %vm3290, %v3324, %v3326
      %v3328 = vrot.slane %v219, 6
      %v3329 = vsel %vm3290, %v3326, %v3328
      %v3330 = vrot.slane %v220, 6
      %v3331 = vsel %vm3290, %v3328, %v3330
      %v3332 = vrot.slane %v221, 6
      %v3333 = vsel %vm3290, %v3330, %v3332
      %v3334 = vrot.slane %v222, 6
      %v3335 = vsel %vm3290, %v3332, %v3334
      %v3336 = vrot.slane %v223, 6
      %v3337 = vsel %vm3290, %v3334, %v3336
      %v3338 = vrot.slane %v224, 6
      %v3339 = vsel %vm3290, %v3336, %v3338
      %v3340 = vrot.slane %v225, 6
      %v3341 = vsel %vm3290, %v3338, %v3340
      %v3342 = vrot.slane %v226, 6
      %v3343 = vsel %vm3290, %v3340, %v3342
      %v3344 = vrot.slane %v227, 6
      %v3345 = vsel %vm3290, %v3342, %v3344
      %v3346 = vrot.slane %v228, 6
      %v3347 = vsel %vm3290, %v3344, %v3346
      %v3348 = vrot.slane %v229, 6
      %v3349 = vsel %vm3290, %v3346, %v3348
      %v3350 = vrot.slane %v230, 6
      %v3351 = vsel %vm3290, %v3348, %v3350
      %v3352 = vrot.slane %v231, 6
      %v3353 = vsel %vm3290, %v3350, %v3352
      %v3354 = vrot.slane %v232, 6
      %v3355 = vsel %vm3290, %v3352, %v3354
      %v3356 = vrot.slane %v233, 6
      %v3357 = vsel %vm3290, %v3354, %v3356
      %v3358 = vrot.slane %v234, 6
      %v3359 = vsel %vm3290, %v3356, %v3358
      %v3360 = vrot.slane %v235, 6
      %v3361 = vsel %vm3290, %v3358, %v3360
      %v3362 = vrot.slane %v236, 6
      %v3363 = vsel %vm3290, %v3360, %v3362
      %v3364 = vsel %vm351, %v3293, 0
      %v3366 = vsel %vm351, %v3295, 0
      %v3368 = vsel %vm351, %v3297, 0
      %v3370 = vsel %vm351, %v3299, 0
      %v3372 = vsel %vm351, %v3301, 0
      %v3374 = vsel %vm351, %v3303, 0
      %v3376 = vsel %vm351, %v3305, 0
      %v3378 = vsel %vm351, %v3307, 0
      %v3380 = vsel %vm351, %v3309, 0
      %v3382 = vsel %vm351, %v3311, 0
      %v3384 = vsel %vm351, %v3313, 0
      %v3386 = vsel %vm351, %v3315, 0
      %v3388 = vsel %vm351, %v3317, 0
      %v3390 = vsel %vm351, %v3319, 0
      %v3392 = vsel %vm351, %v3321, 0
      %v3394 = vsel %vm351, %v3323, 0
      %v3396 = vsel %vm351, %v3325, 0
      %v3398 = vsel %vm351, %v3327, 0
      %v3400 = vsel %vm351, %v3329, 0
      %v3402 = vsel %vm351, %v3331, 0
      %v3404 = vsel %vm351, %v3333, 0
      %v3406 = vsel %vm351, %v3335, 0
      %v3408 = vsel %vm351, %v3337, 0
      %v3410 = vsel %vm351, %v3339, 0
      %v3412 = vsel %vm351, %v3341, 0
      %v3414 = vsel %vm351, %v3343, 0
      %v3416 = vsel %vm351, %v3345, 0
      %v3418 = vsel %vm351, %v3347, 0
      %v3420 = vsel %vm351, %v3349, 0
      %v3422 = vsel %vm351, %v3351, 0
      %v3424 = vsel %vm351, %v3353, 0
      %v3426 = vsel %vm351, %v3355, 0
      %v3428 = vsel %vm351, %v3357, 0
      %v3430 = vsel %vm351, %v3359, 0
      %v3432 = vsel %vm351, %v3361, 0
      %v3434 = vsel %vm351, %v3363, 0
      %3436 = vmatprep.subr.mxu0 0.0
      %3437 = vmatpush1.msra.mxu0 %v3289
      %3438 = vmatprep.subr.mxu0 0.0
      %3439 = vmatpush1.msra.mxu0 0.0
      %3440 = vmatprep.subr.mxu0 0.0
      %3441 = vmatpush1.msra.mxu0 0.0
      %3442 = vmatprep.subr.mxu0 0.0
      %3443 = vmatpush1.msra.mxu0 0.0
      %3444 = vmatprep.subr.mxu0 0.0
      %3445 = vmatpush1.msra.mxu0 0.0
      %3446 = vmatprep.subr.mxu0 0.0
      %3447 = vmatpush1.msra.mxu0 0.0
      %3448 = vmatprep.subr.mxu0 0.0
      %3449 = vmatpush1.msra.mxu0 0.0
      %3450 = vmatprep.subr.mxu0 0.0
      %3451 = vmatpush1.msra.mxu0 0.0
      %3452 = vmatprep.subr.mxu0 0.0
      %3453 = vmatpush1.msra.mxu0 0.0
      %3454 = vmatprep.subr.mxu0 0.0
      %3455 = vmatpush1.msra.mxu0 0.0
      %3456 = vmatprep.subr.mxu0 0.0
      %3457 = vmatpush1.msra.mxu0 0.0
      %3458 = vmatprep.subr.mxu0 0.0
      %3459 = vmatpush1.msra.mxu0 0.0
      %3460 = vmatprep.subr.mxu0 0.0
      %3461 = vmatpush1.msra.mxu0 0.0
      %3462 = vmatprep.subr.mxu0 0.0
      %3463 = vmatpush1.msra.mxu0 0.0
      %3464 = vmatprep.subr.mxu0 0.0
      %3465 = vmatpush1.msra.mxu0 0.0
      %3466 = vmatprep.subr.mxu0 0.0
      %3467 = vmatpush1.msra.mxu0 0.0
      %3468 = vmatprep.subr.mxu0 0.0
      %3469 = vmatpush1.msra.mxu0 0.0
      %3470 = vmatprep.subr.mxu0 0.0
      %3471 = vmatpush1.msra.mxu0 0.0
      %3472 = vmatprep.subr.mxu0 0.0
      %3473 = vmatpush1.msra.mxu0 0.0
      %3474 = vmatprep.subr.mxu0 0.0
      %3475 = vmatpush1.msra.mxu0 0.0
      %3476 = vmatprep.subr.mxu0 0.0
      %3477 = vmatpush1.msra.mxu0 0.0
      %3478 = vmatprep.subr.mxu0 0.0
      %3479 = vmatpush1.msra.mxu0 0.0
      %3480 = vmatprep.subr.mxu0 0.0
      %3481 = vmatpush1.msra.mxu0 0.0
      %3482 = vmatprep.subr.mxu0 0.0
      %3483 = vmatpush1.msra.mxu0 0.0
      %3484 = vmatprep.subr.mxu0 0.0
      %3485 = vmatpush1.msra.mxu0 0.0
      %3486 = vmatprep.subr.mxu0 0.0
      %3487 = vmatpush1.msra.mxu0 0.0
      %3488 = vmatprep.subr.mxu0 0.0
      %3489 = vmatpush1.msra.mxu0 0.0
      %3490 = vmatprep.subr.mxu0 0.0
      %3491 = vmatpush1.msra.mxu0 0.0
      %3492 = vmatprep.subr.mxu0 0.0
      %3493 = vmatpush1.msra.mxu0 0.0
      %3494 = vmatprep.subr.mxu0 0.0
      %3495 = vmatpush1.msra.mxu0 0.0
      %3496 = vmatprep.subr.mxu0 0.0
      %3497 = vmatpush1.msra.mxu0 0.0
      %3498 = vmatprep.subr.mxu0 0.0
      %3499 = vmatpush1.msra.mxu0 0.0
      %3500 = vmatprep.mubr.f32.mxu0 0.0
      %3501 = vmatmul.mubr.f32.gmra.mrb[0].mxu0 %v3364
      %v3502 = vpop.f32.mrb[0].mxu0
      %v3503 = vadd.f32 0.0, %v3502
      %v3504 = vpop.f32.mrb[0].mxu0
      %3505 = vmatprep.mubr.f32.mxu0 0.0
      %3506 = vmatmul.mubr.f32.gmra.mrb[0].mxu0 %v3366
      %v3507 = vpop.f32.mrb[0].mxu0
      %v3508 = vadd.f32 0.0, %v3507
      %v3509 = vpop.f32.mrb[0].mxu0
      %3510 = vmatprep.mubr.f32.mxu0 0.0
      %3511 = vmatmul.mubr.f32.gmra.mrb[0].mxu0 %v3368
      %v3512 = vpop.f32.mrb[0].mxu0
      %v3513 = vadd.f32 0.0, %v3512
      %v3514 = vpop.f32.mrb[0].mxu0
      %3515 = vmatprep.mubr.f32.mxu0 0.0
      %3516 = vmatmul.mubr.f32.gmra.mrb[0].mxu0 %v3370
      %v3517 = vpop.f32.mrb[0].mxu0
      %v3518 = vadd.f32 0.0, %v3517
      %v3519 = vpop.f32.mrb[0].mxu0
      %3520 = vmatprep.mubr.f32.mxu0 0.0
      %3521 = vmatmul.mubr.f32.gmra.mrb[0].mxu0 %v3372
      %v3522 = vpop.f32.mrb[0].mxu0
      %v3523 = vadd.f32 0.0, %v3522
      %v3524 = vpop.f32.mrb[0].mxu0
      %3525 = vmatprep.mubr.f32.mxu0 0.0
      %3526 = vmatmul.mubr.f32.gmra.mrb[0].mxu0 %v3374
      %v3527 = vpop.f32.mrb[0].mxu0
      %v3528 = vadd.f32 0.0, %v3527
      %v3529 = vpop.f32.mrb[0].mxu0
      %3530 = vmatprep.mubr.f32.mxu0 0.0
      %3531 = vmatmul.mubr.f32.gmra.mrb[0].mxu0 %v3376
      %v3532 = vpop.f32.mrb[0].mxu0
      %v3533 = vadd.f32 0.0, %v3532
      %v3534 = vpop.f32.mrb[0].mxu0
      %3535 = vmatprep.mubr.f32.mxu0 0.0
      %3536 = vmatmul.mubr.f32.gmra.mrb[0].mxu0 %v3378
      %v3537 = vpop.f32.mrb[0].mxu0
      %v3538 = vadd.f32 0.0, %v3537
      %v3539 = vpop.f32.mrb[0].mxu0
      %3540 = vmatprep.mubr.f32.mxu0 0.0
      %3541 = vmatmul.mubr.f32.gmra.mrb[0].mxu0 %v3380
      %v3542 = vpop.f32.mrb[0].mxu0
      %v3543 = vadd.f32 0.0, %v3542
      %v3544 = vpop.f32.mrb[0].mxu0
      %3545 = vmatprep.mubr.f32.mxu0 0.0
      %3546 = vmatmul.mubr.f32.gmra.mrb[0].mxu0 %v3382
      %v3547 = vpop.f32.mrb[0].mxu0
      %v3548 = vadd.f32 0.0, %v3547
      %v3549 = vpop.f32.mrb[0].mxu0
      %3550 = vmatprep.mubr.f32.mxu0 0.0
      %3551 = vmatmul.mubr.f32.gmra.mrb[0].mxu0 %v3384
      %v3552 = vpop.f32.mrb[0].mxu0
      %v3553 = vadd.f32 0.0, %v3552
      %v3554 = vpop.f32.mrb[0].mxu0
      %3555 = vmatprep.mubr.f32.mxu0 0.0
      %3556 = vmatmul.mubr.f32.gmra.mrb[0].mxu0 %v3386
      %v3557 = vpop.f32.mrb[0].mxu0
      %v3558 = vadd.f32 0.0, %v3557
      %v3559 = vpop.f32.mrb[0].mxu0
      %3560 = vmatprep.mubr.f32.mxu0 0.0
      %3561 = vmatmul.mubr.f32.gmra.mrb[0].mxu0 %v3388
      %v3562 = vpop.f32.mrb[0].mxu0
      %v3563 = vadd.f32 0.0, %v3562
      %v3564 = vpop.f32.mrb[0].mxu0
      %3565 = vmatprep.mubr.f32.mxu0 0.0
      %3566 = vmatmul.mubr.f32.gmra.mrb[0].mxu0 %v3390
      %v3567 = vpop.f32.mrb[0].mxu0
      %v3568 = vadd.f32 0.0, %v3567
      %v3569 = vpop.f32.mrb[0].mxu0
      %3570 = vmatprep.mubr.f32.mxu0 0.0
      %3571 = vmatmul.mubr.f32.gmra.mrb[0].mxu0 %v3392
      %v3572 = vpop.f32.mrb[0].mxu0
      %v3573 = vadd.f32 0.0, %v3572
      %v3574 = vpop.f32.mrb[0].mxu0
      %3575 = vmatprep.mubr.f32.mxu0 0.0
      %3576 = vmatmul.mubr.f32.gmra.mrb[0].mxu0 %v3394
      %v3577 = vpop.f32.mrb[0].mxu0
      %v3578 = vadd.f32 0.0, %v3577
      %v3579 = vpop.f32.mrb[0].mxu0
      %3580 = vmatprep.mubr.f32.mxu0 0.0
      %3581 = vmatmul.mubr.f32.gmra.mrb[0].mxu0 %v3396
      %v3582 = vpop.f32.mrb[0].mxu0
      %v3583 = vadd.f32 0.0, %v3582
      %v3584 = vpop.f32.mrb[0].mxu0
      %3585 = vmatprep.mubr.f32.mxu0 0.0
      %3586 = vmatmul.mubr.f32.gmra.mrb[0].mxu0 %v3398
      %v3587 = vpop.f32.mrb[0].mxu0
      %v3588 = vadd.f32 0.0, %v3587
      %v3589 = vpop.f32.mrb[0].mxu0
      %3590 = vmatprep.mubr.f32.mxu0 0.0
      %3591 = vmatmul.mubr.f32.gmra.mrb[0].mxu0 %v3400
      %v3592 = vpop.f32.mrb[0].mxu0
      %v3593 = vadd.f32 0.0, %v3592
      %v3594 = vpop.f32.mrb[0].mxu0
      %3595 = vmatprep.mubr.f32.mxu0 0.0
      %3596 = vmatmul.mubr.f32.gmra.mrb[0].mxu0 %v3402
      %v3597 = vpop.f32.mrb[0].mxu0
      %v3598 = vadd.f32 0.0, %v3597
      %v3599 = vpop.f32.mrb[0].mxu0
      %3600 = vmatprep.mubr.f32.mxu0 0.0
      %3601 = vmatmul.mubr.f32.gmra.mrb[0].mxu0 %v3404
      %v3602 = vpop.f32.mrb[0].mxu0
      %v3603 = vadd.f32 0.0, %v3602
      %v3604 = vpop.f32.mrb[0].mxu0
      %3605 = vmatprep.mubr.f32.mxu0 0.0
      %3606 = vmatmul.mubr.f32.gmra.mrb[0].mxu0 %v3406
      %v3607 = vpop.f32.mrb[0].mxu0
      %v3608 = vadd.f32 0.0, %v3607
      %v3609 = vpop.f32.mrb[0].mxu0
      %3610 = vmatprep.mubr.f32.mxu0 0.0
      %3611 = vmatmul.mubr.f32.gmra.mrb[0].mxu0 %v3408
      %v3612 = vpop.f32.mrb[0].mxu0
      %v3613 = vadd.f32 0.0, %v3612
      %v3614 = vpop.f32.mrb[0].mxu0
      %3615 = vmatprep.mubr.f32.mxu0 0.0
      %3616 = vmatmul.mubr.f32.gmra.mrb[0].mxu0 %v3410
      %v3617 = vpop.f32.mrb[0].mxu0
      %v3618 = vadd.f32 0.0, %v3617
      %v3619 = vpop.f32.mrb[0].mxu0
      %3620 = vmatprep.mubr.f32.mxu0 0.0
      %3621 = vmatmul.mubr.f32.gmra.mrb[0].mxu0 %v3412
      %v3622 = vpop.f32.mrb[0].mxu0
      %v3623 = vadd.f32 0.0, %v3622
      %v3624 = vpop.f32.mrb[0].mxu0
      %3625 = vmatprep.mubr.f32.mxu0 0.0
      %3626 = vmatmul.mubr.f32.gmra.mrb[0].mxu0 %v3414
      %v3627 = vpop.f32.mrb[0].mxu0
      %v3628 = vadd.f32 0.0, %v3627
      %v3629 = vpop.f32.mrb[0].mxu0
      %3630 = vmatprep.mubr.f32.mxu0 0.0
      %3631 = vmatmul.mubr.f32.gmra.mrb[0].mxu0 %v3416
      %v3632 = vpop.f32.mrb[0].mxu0
      %v3633 = vadd.f32 0.0, %v3632
      %v3634 = vpop.f32.mrb[0].mxu0
      %3635 = vmatprep.mubr.f32.mxu0 0.0
      %3636 = vmatmul.mubr.f32.gmra.mrb[0].mxu0 %v3418
      %v3637 = vpop.f32.mrb[0].mxu0
      %v3638 = vadd.f32 0.0, %v3637
      %v3639 = vpop.f32.mrb[0].mxu0
      %3640 = vmatprep.mubr.f32.mxu0 0.0
      %3641 = vmatmul.mubr.f32.gmra.mrb[0].mxu0 %v3420
      %v3642 = vpop.f32.mrb[0].mxu0
      %v3643 = vadd.f32 0.0, %v3642
      %v3644 = vpop.f32.mrb[0].mxu0
      %3645 = vmatprep.mubr.f32.mxu0 0.0
      %3646 = vmatmul.mubr.f32.gmra.mrb[0].mxu0 %v3422
      %v3647 = vpop.f32.mrb[0].mxu0
      %v3648 = vadd.f32 0.0, %v3647
      %v3649 = vpop.f32.mrb[0].mxu0
      %3650 = vmatprep.mubr.f32.mxu0 0.0
      %3651 = vmatmul.mubr.f32.gmra.mrb[0].mxu0 %v3424
      %v3652 = vpop.f32.mrb[0].mxu0
      %v3653 = vadd.f32 0.0, %v3652
      %v3654 = vpop.f32.mrb[0].mxu0
      %3655 = vmatprep.mubr.f32.mxu0 0.0
      %3656 = vmatmul.mubr.f32.gmra.mrb[0].mxu0 %v3426
      %v3657 = vpop.f32.mrb[0].mxu0
      %v3658 = vadd.f32 0.0, %v3657
      %v3659 = vpop.f32.mrb[0].mxu0
      %3660 = vmatprep.mubr.f32.mxu0 0.0
      %3661 = vmatmul.mubr.f32.gmra.mrb[0].mxu0 %v3428
      %v3662 = vpop.f32.mrb[0].mxu0
      %v3663 = vadd.f32 0.0, %v3662
      %v3664 = vpop.f32.mrb[0].mxu0
      %3665 = vmatprep.mubr.f32.mxu0 0.0
      %3666 = vmatmul.mubr.f32.gmra.mrb[0].mxu0 %v3430
      %v3667 = vpop.f32.mrb[0].mxu0
      %v3668 = vadd.f32 0.0, %v3667
      %v3669 = vpop.f32.mrb[0].mxu0
      %3670 = vmatprep.mubr.f32.mxu0 0.0
      %3671 = vmatmul.mubr.f32.gmra.mrb[0].mxu0 %v3432
      %v3672 = vpop.f32.mrb[0].mxu0
      %v3673 = vadd.f32 0.0, %v3672
      %v3674 = vpop.f32.mrb[0].mxu0
      %3675 = vmatprep.mubr.f32.mxu0 0.0
      %3676 = vmatmul.mubr.f32.gmra.mrb[0].mxu0 %v3434
      %v3677 = vpop.f32.mrb[0].mxu0
      %v3678 = vadd.f32 0.0, %v3677
      %v3679 = vpop.f32.mrb[0].mxu0
      %3680 = vdwg.mxu0
      %v3681 = vadd.f32 %v3252, %v3503
      %v3682 = vadd.f32 %v3253, %v3508
      %v3683 = vadd.f32 %v3254, %v3513
      %v3684 = vadd.f32 %v3255, %v3518
      %v3685 = vadd.f32 %v3256, %v3523
      %v3686 = vadd.f32 %v3257, %v3528
      %v3687 = vadd.f32 %v3258, %v3533
      %v3688 = vadd.f32 %v3259, %v3538
      %v3689 = vadd.f32 %v3260, %v3543
      %v3690 = vadd.f32 %v3261, %v3548
      %v3691 = vadd.f32 %v3262, %v3553
      %v3692 = vadd.f32 %v3263, %v3558
      %v3693 = vadd.f32 %v3264, %v3563
      %v3694 = vadd.f32 %v3265, %v3568
      %v3695 = vadd.f32 %v3266, %v3573
      %v3696 = vadd.f32 %v3267, %v3578
      %v3697 = vadd.f32 %v3268, %v3583
      %v3698 = vadd.f32 %v3269, %v3588
      %v3699 = vadd.f32 %v3270, %v3593
      %v3700 = vadd.f32 %v3271, %v3598
      %v3701 = vadd.f32 %v3272, %v3603
      %v3702 = vadd.f32 %v3273, %v3608
      %v3703 = vadd.f32 %v3274, %v3613
      %v3704 = vadd.f32 %v3275, %v3618
      %v3705 = vadd.f32 %v3276, %v3623
      %v3706 = vadd.f32 %v3277, %v3628
      %v3707 = vadd.f32 %v3278, %v3633
      %v3708 = vadd.f32 %v3279, %v3638
      %v3709 = vadd.f32 %v3280, %v3643
      %v3710 = vadd.f32 %v3281, %v3648
      %v3711 = vadd.f32 %v3282, %v3653
      %v3712 = vadd.f32 %v3283, %v3658
      %v3713 = vadd.f32 %v3284, %v3663
      %v3714 = vadd.f32 %v3285, %v3668
      %v3715 = vadd.f32 %v3286, %v3673
      %v3716 = vadd.f32 %v3287, %v3678
      %v3717 = vld [vmem:[%s2] sm:$0x1]
      %v3719 = vlaneseq
      %v3720 = vshrl.u32 %v3719, 7
      %v3721 = vsub.s32 0, %v3720
      %v3722 = vrot.slane %v3717, %v3721
      %v3724 = vadd.f32 %v3681, %v3722
      %v3725 = vadd.f32 %v3682, %v3722
      %v3726 = vadd.f32 %v3683, %v3722
      %v3727 = vadd.f32 %v3684, %v3722
      %v3728 = vadd.f32 %v3685, %v3722
      %v3729 = vadd.f32 %v3686, %v3722
      %v3730 = vadd.f32 %v3687, %v3722
      %v3731 = vadd.f32 %v3688, %v3722
      %v3732 = vadd.f32 %v3689, %v3722
      %v3733 = vadd.f32 %v3690, %v3722
      %v3734 = vadd.f32 %v3691, %v3722
      %v3735 = vadd.f32 %v3692, %v3722
      %v3736 = vadd.f32 %v3693, %v3722
      %v3737 = vadd.f32 %v3694, %v3722
      %v3738 = vadd.f32 %v3695, %v3722
      %v3739 = vadd.f32 %v3696, %v3722
      %v3740 = vadd.f32 %v3697, %v3722
      %v3741 = vadd.f32 %v3698, %v3722
      %v3742 = vadd.f32 %v3699, %v3722
      %v3743 = vadd.f32 %v3700, %v3722
      %v3744 = vadd.f32 %v3701, %v3722
      %v3745 = vadd.f32 %v3702, %v3722
      %v3746 = vadd.f32 %v3703, %v3722
      %v3747 = vadd.f32 %v3704, %v3722
      %v3748 = vadd.f32 %v3705, %v3722
      %v3749 = vadd.f32 %v3706, %v3722
      %v3750 = vadd.f32 %v3707, %v3722
      %v3751 = vadd.f32 %v3708, %v3722
      %v3752 = vadd.f32 %v3709, %v3722
      %v3753 = vadd.f32 %v3710, %v3722
      %v3754 = vadd.f32 %v3711, %v3722
      %v3755 = vadd.f32 %v3712, %v3722
      %v3756 = vadd.f32 %v3713, %v3722
      %v3757 = vadd.f32 %v3714, %v3722
      %v3758 = vadd.f32 %v3715, %v3722
      %v3759 = vadd.f32 %v3716, %v3722
      %3760 = vst [vmem:[%s192] sm:$0xff] %v3724
      %3761 = vst [vmem:[%s192 + $0x8] sm:$0xff] %v3725
      %3762 = vst [vmem:[%s192 + $0x10] sm:$0xff] %v3726
      %3763 = vst [vmem:[%s192 + $0x18] sm:$0xff] %v3727
      %3764 = vst [vmem:[%s192 + $0x20] sm:$0xff] %v3728
      %3765 = vst [vmem:[%s192 + $0x28] sm:$0xff] %v3729
      %3766 = vst [vmem:[%s192 + $0x30] sm:$0xff] %v3730
      %3767 = vst [vmem:[%s192 + $0x38] sm:$0xff] %v3731
      %3768 = vst [vmem:[%s192 + $0x40] sm:$0xff] %v3732
      %3769 = vst [vmem:[%s192 + $0x48] sm:$0xff] %v3733
      %3770 = vst [vmem:[%s192 + $0x50] sm:$0xff] %v3734
      %3771 = vst [vmem:[%s192 + $0x58] sm:$0xff] %v3735
      %3772 = vst [vmem:[%s192 + $0x60] sm:$0xff] %v3736
      %3773 = vst [vmem:[%s192 + $0x68] sm:$0xff] %v3737
      %3774 = vst [vmem:[%s192 + $0x70] sm:$0xff] %v3738
      %3775 = vst [vmem:[%s192 + $0x78] sm:$0xff] %v3739
      %3776 = vst [vmem:[%s192 + $0x80] sm:$0xff] %v3740
      %3777 = vst [vmem:[%s192 + $0x88] sm:$0xff] %v3741
      %3778 = vst [vmem:[%s192 + $0x90] sm:$0xff] %v3742
      %3779 = vst [vmem:[%s192 + $0x98] sm:$0xff] %v3743
      %3780 = vst [vmem:[%s192 + $0xa0] sm:$0xff] %v3744
      %3781 = vst [vmem:[%s192 + $0xa8] sm:$0xff] %v3745
      %3782 = vst [vmem:[%s192 + $0xb0] sm:$0xff] %v3746
      %3783 = vst [vmem:[%s192 + $0xb8] sm:$0xff] %v3747
      %3784 = vst [vmem:[%s192 + $0xc0] sm:$0xff] %v3748
      %3785 = vst [vmem:[%s192 + $0xc8] sm:$0xff] %v3749
      %3786 = vst [vmem:[%s192 + $0xd0] sm:$0xff] %v3750
      %3787 = vst [vmem:[%s192 + $0xd8] sm:$0xff] %v3751
      %3788 = vst [vmem:[%s192 + $0xe0] sm:$0xff] %v3752
      %3789 = vst [vmem:[%s192 + $0xe8] sm:$0xff] %v3753
      %3790 = vst [vmem:[%s192 + $0xf0] sm:$0xff] %v3754
      %3791 = vst [vmem:[%s192 + $0xf8] sm:$0xff] %v3755
      %3792 = vst [vmem:[%s192 + $0x100] sm:$0xff] %v3756
      %3793 = vst [vmem:[%s192 + $0x108] sm:$0xff] %v3757
      %3794 = vst [vmem:[%s192 + $0x110] sm:$0xff] %v3758
      %3795 = vst [vmem:[%s192 + $0x118] sm:$0xff] %v3759
      %s3796 = smul.u32 36, %s19
      %p3797 = scmp.lt.s32.totalorder %s18, 1
      %s3798 = scalar_select %p3797, %s18, 1
      %p3799 = scmp.lt.s32.totalorder %s3796, 35
      %s3800 = scalar_select %p3799, %s3796, 35
      %s3801 = smul.addr %s3798, 36
      %s3802 = sadd.s32 %s3800, %s3801
      %s3803 = smul.addr %s3802, 8
      %s3804 = scalar_lea.vmem %s3, %s3803
      // Predicated region
      $region33: #{up_forward.1} parent=31 // pred_check
        %p3805 = pneg %p114
      $region34: #{up_forward.1} parent=31 // pred_check_branch
        %3807 = sbr.rel (%p3805) target = $region36
      $region35: #{up_forward.1} parent=31 // pred_region
        %s3808 = smul.u32 36, %s19
      $region36: #{up_forward.1} parent=31 // pred_fallthru
        _
    $region32: #{up_forward.1} parent=5 // pred_fallthru
      _
    %p3809 = scmp.le.s32.totalorder 2, %s9
    // Predicated region
    $region37: #{up_forward.1} parent=5 // pred_check
      %p3810 = pneg %p3809
    $region38: #{up_forward.1} parent=5 // pred_check_branch
      %3812 = sbr.rel (%p3810) target = $region40
    $region39: #{up_forward.1} parent=5 // pred_region
      %s3813 = ssub.s32 %s9, 2
      // Predicated region
      $region41: #{up_forward.1} parent=39 // pred_check
        %p3814 = pneg %p120
      $region42: #{up_forward.1} parent=39 // pred_check_branch
        %3816 = sbr.rel (%p3814) target = $region44
      $region43: #{up_forward.1} parent=39 // pred_region
        %s3817 = smul.u32 36, %s21
        %p3818 = scmp.lt.s32.totalorder %s20, 1
        %s3819 = scalar_select %p3818, %s20, 1
        %p3820 = scmp.lt.s32.totalorder %s3817, 35
        %s3821 = scalar_select %p3820, %s3817, 35
        %s3822 = smul.addr %s3819, 36
        %s3823 = sadd.s32 %s3821, %s3822
        %s3824 = smul.addr %s3823, 8
        %s3825 = scalar_lea.vmem %s3, %s3824
      $region44: #{up_forward.1} parent=39 // pred_fallthru
        _
    $region40: #{up_forward.1} parent=5 // pred_fallthru
      _
  $region6: #{up_forward.1} parent=0 // loop_footer
    %s13 = sadd.s32 1, %s9
  $region7: #{up_forward.1} parent=0 // loop_footer_branch
    %8 = sbr.rel target = $region3
  $region8: #{up_forward.1} parent=0 // loop_exit
    _

// kernel: up_forward.1
$region0: #{up_forward.1}
  #allocation0 [shape = 'u32[]', space=smem, size = 0x4, offset = 0x4, fixed_abs, tag = 'smem constant byte address 0x4 - core index']
  #allocation1 [shape = 'u32[144,128]{1,0:T(1,128)}', space=vmem, size = 0x12000, scoped, tag = 'internal scratch']
  %s0 = inlined_call_operand.vmem [shape: f32[2,328,8], index: 0, kind: input, shape index: {}]
  %s1 = inlined_call_operand.vmem [shape: f32[9,8,128], index: 1, kind: input, shape index: {}]
  %s2 = inlined_call_operand.vmem [shape: f32[1,128], index: 2, kind: input, shape index: {}]
  %s3 = inlined_call_operand.vmem [shape: f32[2,288,128], index: 3, kind: output, shape index: {}]
  %s4 = sld [smem:[#allocation0]]
  $region45: #{up_forward.1} parent=0
    _
  %s6 = ssub.s32 1, %s4
  %s7 = scalar_select 0, %s6, %s4
  loop: start=0, step=1, limit=4
  $region2: #{up_forward.1} parent=0 // loop_pre_header
    _
  $region3: #{up_forward.1} parent=0 // loop_header
    %s9 = sphi 0, %s13
    %p10 = scmp.ge.s32.totalorder %s9, 4
    %s16 = sphi 0, %s28
    %s17 = sphi 0, %s24
    %s18 = sphi 0, %s16
    %s19 = sphi 0, %s17
    %s20 = sphi 0, %s18
    %s21 = sphi 0, %s19
    %s31 = sphi 0, %s33
    %s34 = sphi 0, %s31
    %s35 = sphi 0, %s34
    %s51 = sphi 0, %s35
    %s55 = sphi 0, %s55
    %s57 = sphi 0, %s55
    %s58 = sphi 0, %s57
    %s72 = sphi 0, %s58
    %s76 = sphi 0, %s76
    %s78 = sphi 0, %s76
    %s79 = sphi 0, %s78
    %s93 = sphi 0, %s79
    %s101 = sphi 0, %s103
    %s104 = sphi 0, %s101
    %s105 = sphi 0, %s104
    %s121 = sphi 0, %s105
  $region4: #{up_forward.1} parent=0 // loop_header_branch
    %12 = sbr.rel (%p10) target = $region8
  $region5: #{up_forward.1} parent=0 // loop_body
    %s14 = ssub.s32 %s9, 1
    %s15 = ssub.s32 %s9, 2
    %s22 = sadd.s32 1, %s17
    %p23 = scmp.ge.s32.totalorder %s22, 1
    %s24 = scalar_select %p23, 0, %s22
    %s25 = sadd.s32 1, %s16
    %s26 = scalar_select %p23, %s25, %s16
    %p27 = scmp.ge.s32.totalorder %s26, 2
    %s28 = scalar_select %p27, 0, %s26
    %s29 = ssub.s32 %s16, %s28
    %p30 = scmp.eq.s32.totalorder %s29, 0
    %s32 = sadd.s32 %s31, 1
    %s33 = scalar_select %p30, %s31, %s32
    %p36 = pneg %p30
    %p37 = scmp.eq.s32.totalorder %s9, 1
    %p38 = por %p36, %p37
    %p39 = scmp.ne.s32.totalorder %s31, %s34
    %p40 = scmp.eq.s32.totalorder %s9, 0
    %p41 = por %p39, %p40
    %p42 = scmp.ne.s32.totalorder %s31, %s34
    %p43 = scmp.eq.s32.totalorder %s14, 1
    %p44 = por %p42, %p43
    %p45 = scmp.ne.s32.totalorder %s34, %s35
    %p46 = scmp.eq.s32.totalorder %s14, 0
    %p47 = por %p45, %p46
    %p48 = scmp.ne.s32.totalorder %s34, %s35
    %p49 = scmp.eq.s32.totalorder %s15, 1
    %p50 = por %p48, %p49
    %p52 = scmp.ne.s32.totalorder %s35, %s51
    %p53 = scmp.eq.s32.totalorder %s15, 0
    %p54 = por %p52, %p53
    %s56 = sadd.s32 %s55, 1
    %p59 = scmp.eq.s32.totalorder %s9, 1
    %p60 = scmp.ne.s32.totalorder %s55, %s57
    %p61 = scmp.eq.s32.totalorder %s9, 0
    %p62 = por %p60, %p61
    %p63 = scmp.ne.s32.totalorder %s55, %s57
    %p64 = scmp.eq.s32.totalorder %s14, 1
    %p65 = por %p63, %p64
    %p66 = scmp.ne.s32.totalorder %s57, %s58
    %p67 = scmp.eq.s32.totalorder %s14, 0
    %p68 = por %p66, %p67
    %p69 = scmp.ne.s32.totalorder %s57, %s58
    %p70 = scmp.eq.s32.totalorder %s15, 1
    %p71 = por %p69, %p70
    %p73 = scmp.ne.s32.totalorder %s58, %s72
    %p74 = scmp.eq.s32.totalorder %s15, 0
    %p75 = por %p73, %p74
    %s77 = sadd.s32 %s76, 1
    %p80 = scmp.eq.s32.totalorder %s9, 1
    %p81 = scmp.ne.s32.totalorder %s76, %s78
    %p82 = scmp.eq.s32.totalorder %s9, 0
    %p83 = por %p81, %p82
    %p84 = scmp.ne.s32.totalorder %s76, %s78
    %p85 = scmp.eq.s32.totalorder %s14, 1
    %p86 = por %p84, %p85
    %p87 = scmp.ne.s32.totalorder %s78, %s79
    %p88 = scmp.eq.s32.totalorder %s14, 0
    %p89 = por %p87, %p88
    %p90 = scmp.ne.s32.totalorder %s78, %s79
    %p91 = scmp.eq.s32.totalorder %s15, 1
    %p92 = por %p90, %p91
    %p94 = scmp.ne.s32.totalorder %s79, %s93
    %p95 = scmp.eq.s32.totalorder %s15, 0
    %p96 = por %p94, %p95
    %s97 = ssub.s32 %s16, %s28
    %s98 = ssub.s32 %s17, %s24
    %s99 = sor.u32 %s97, %s98
    %p100 = scmp.eq.s32.totalorder %s99, 0
    %s102 = sadd.s32 %s101, 1
    %s103 = scalar_select %p100, %s101, %s102
    %p106 = pneg %p100
    %p107 = scmp.eq.s32.totalorder %s9, 1
    %p108 = por %p106, %p107
    %p109 = scmp.ne.s32.totalorder %s101, %s104
    %p110 = scmp.eq.s32.totalorder %s9, 0
    %p111 = por %p109, %p110
    %p112 = scmp.ne.s32.totalorder %s101, %s104
    %p113 = scmp.eq.s32.totalorder %s14, 1
    %p114 = por %p112, %p113
    %p115 = scmp.ne.s32.totalorder %s104, %s105
    %p116 = scmp.eq.s32.totalorder %s14, 0
    %p117 = por %p115, %p116
    %p118 = scmp.ne.s32.totalorder %s104, %s105
    %p119 = scmp.eq.s32.totalorder %s15, 1
    %p120 = por %p118, %p119
    %p122 = scmp.ne.s32.totalorder %s105, %s121
    %p123 = scmp.eq.s32.totalorder %s15, 0
    %p124 = por %p122, %p123
    %p125 = scmp.le.s32.totalorder 1, %s9
    %p126 = scmp.lt.s32.totalorder %s9, 3
    %p127 = pnand %p125, %p126
    %p128 = pneg %p127
    // Predicated region
    $region9: #{up_forward.1} parent=5 // pred_check
      _
    $region10: #{up_forward.1} parent=5 // pred_check_branch
      %130 = sbr.rel (%p127) target = $region12
    $region11: #{up_forward.1} parent=5 // pred_region
      %s131 = ssub.s32 %s9, 1
      // Predicated region
      $region13: #{up_forward.1} parent=11 // pred_check
        %p132 = pneg %p68
      $region14: #{up_forward.1} parent=11 // pred_check_branch
        %134 = sbr.rel (%p132) target = $region16
      $region15: #{up_forward.1} parent=11 // pred_region
        _
      $region16: #{up_forward.1} parent=11 // pred_fallthru
        _
      // Predicated region
      $region17: #{up_forward.1} parent=11 // pred_check
        %p135 = pneg %p89
      $region18: #{up_forward.1} parent=11 // pred_check_branch
        %137 = sbr.rel (%p135) target = $region20
      $region19: #{up_forward.1} parent=11 // pred_region
        _
      $region20: #{up_forward.1} parent=11 // pred_fallthru
        _
    $region12: #{up_forward.1} parent=5 // pred_fallthru
      _
    %p138 = scmp.lt.s32.totalorder %s9, 2
    // Predicated region
    $region21: #{up_forward.1} parent=5 // pred_check
      %p139 = pneg %p138
    $region22: #{up_forward.1} parent=5 // pred_check_branch
      %141 = sbr.rel (%p139) target = $region24
    $region23: #{up_forward.1} parent=5 // pred_region
      // Predicated region
      $region25: #{up_forward.1} parent=23 // pred_check
        %p142 = pneg %p41
      $region26: #{up_forward.1} parent=23 // pred_check_branch
        %144 = sbr.rel (%p142) target = $region28
      $region27: #{up_forward.1} parent=23 // pred_region
        %p145 = scmp.lt.s32.totalorder %s16, 1
        %s146 = scalar_select %p145, %s16, 1
        %s147 = smul.addr %s146, 41
        %s148 = smul.addr %s147, 8
        %s149 = scalar_lea.vmem %s0, %s148
      $region28: #{up_forward.1} parent=23 // pred_fallthru
        _
    $region24: #{up_forward.1} parent=5 // pred_fallthru
      _
    %p150 = scmp.le.s32.totalorder 1, %s9
    %p151 = scmp.lt.s32.totalorder %s9, 3
    %p152 = pnand %p150, %p151
    %p153 = pneg %p152
    // Predicated region
    $region29: #{up_forward.1} parent=5 // pred_check
      _
    $region30: #{up_forward.1} parent=5 // pred_check_branch
      %155 = sbr.rel (%p152) target = $region32
    $region31: #{up_forward.1} parent=5 // pred_region
      %s156 = ssub.s32 %s9, 1
      %p157 = scmp.lt.s32.totalorder %s18, 1
      %s158 = scalar_select %p157, %s18, 1
      %s159 = smul.addr %s158, 41
      %s160 = smul.addr %s159, 8
      %s161 = scalar_lea.vmem %s0, %s160
      %p162 = pneg %p47
      %p163 = pneg %p44
      %p164 = pneg %p68
      %p165 = pneg %p65
      %p166 = pneg %p89
      %p167 = pneg %p86
      %p168 = pneg %p117
      %p169 = pneg %p114
      %s170 = smul.u32 36, %s19
      %p171 = scmp.lt.s32.totalorder %s18, 1
      %s172 = scalar_select %p171, %s18, 1
      %p173 = scmp.lt.s32.totalorder %s170, 35
      %s174 = scalar_select %p173, %s170, 35
      %s175 = smul.addr %s172, 36
      %s176 = sadd.s32 %s174, %s175
      %s177 = smul.addr %s176, 8
      %s178 = scalar_lea.vmem %s3, %s177
      %p179 = scmp.lt.s32.totalorder %s18, 1
      %s180 = scalar_select %p179, %s18, 1
      %s181 = smul.addr %s180, 41
      %s182 = smul.addr %s181, 8
      %s183 = scalar_lea.vmem %s0, %s182
      %s184 = smul.u32 36, %s19
      %p185 = scmp.lt.s32.totalorder %s18, 1
      %s186 = scalar_select %p185, %s18, 1
      %p187 = scmp.lt.s32.totalorder %s184, 35
      %s188 = scalar_select %p187, %s184, 35
      %s189 = smul.addr %s186, 36
      %s190 = sadd.s32 %s188, %s189
      %s191 = smul.addr %s190, 8
      %s192 = scalar_lea.vmem %s3, %s191
      %s193 = smul.u32 36, %s19
      %s194 = smul.u32 %s19, 288
      %s195 = scalar_lea.vmem %s183, %s194
      %v196 = vld [vmem:[%s195] sm:$0xff]
      %v197 = vld [vmem:[%s195 + $0x8] sm:$0xff]
      %v198 = vld [vmem:[%s195 + $0x10] sm:$0xff]
      %v199 = vld [vmem:[%s195 + $0x18] sm:$0xff]
      %v200 = vld [vmem:[%s195 + $0x20] sm:$0xff]
      %v201 = vld [vmem:[%s195 + $0x28] sm:$0xff]
      %v202 = vld [vmem:[%s195 + $0x30] sm:$0xff]
      %v203 = vld [vmem:[%s195 + $0x38] sm:$0xff]
      %v204 = vld [vmem:[%s195 + $0x40] sm:$0xff]
      %v205 = vld [vmem:[%s195 + $0x48] sm:$0xff]
      %v206 = vld [vmem:[%s195 + $0x50] sm:$0xff]
      %v207 = vld [vmem:[%s195 + $0x58] sm:$0xff]
      %v208 = vld [vmem:[%s195 + $0x60] sm:$0xff]
      %v209 = vld [vmem:[%s195 + $0x68] sm:$0xff]
      %v210 = vld [vmem:[%s195 + $0x70] sm:$0xff]
      %v211 = vld [vmem:[%s195 + $0x78] sm:$0xff]
      %v212 = vld [vmem:[%s195 + $0x80] sm:$0xff]
      %v213 = vld [vmem:[%s195 + $0x88] sm:$0xff]
      %v214 = vld [vmem:[%s195 + $0x90] sm:$0xff]
      %v215 = vld [vmem:[%s195 + $0x98] sm:$0xff]
      %v216 = vld [vmem:[%s195 + $0xa0] sm:$0xff]
      %v217 = vld [vmem:[%s195 + $0xa8] sm:$0xff]
      %v218 = vld [vmem:[%s195 + $0xb0] sm:$0xff]
      %v219 = vld [vmem:[%s195 + $0xb8] sm:$0xff]
      %v220 = vld [vmem:[%s195 + $0xc0] sm:$0xff]
      %v221 = vld [vmem:[%s195 + $0xc8] sm:$0xff]
      %v222 = vld [vmem:[%s195 + $0xd0] sm:$0xff]
      %v223 = vld [vmem:[%s195 + $0xd8] sm:$0xff]
      %v224 = vld [vmem:[%s195 + $0xe0] sm:$0xff]
      %v225 = vld [vmem:[%s195 + $0xe8] sm:$0xff]
      %v226 = vld [vmem:[%s195 + $0xf0] sm:$0xff]
      %v227 = vld [vmem:[%s195 + $0xf8] sm:$0xff]
      %v228 = vld [vmem:[%s195 + $0x100] sm:$0xff]
      %v229 = vld [vmem:[%s195 + $0x108] sm:$0xff]
      %v230 = vld [vmem:[%s195 + $0x110] sm:$0xff]
      %v231 = vld [vmem:[%s195 + $0x118] sm:$0xff]
      %v232 = vld [vmem:[%s195 + $0x120] sm:$0xff]
      %v233 = vld [vmem:[%s195 + $0x128] sm:$0xff]
      %v234 = vld [vmem:[%s195 + $0x130] sm:$0xff]
      %v235 = vld [vmem:[%s195 + $0x138] sm:$0xff]
      %v236 = vld [vmem:[%s195 + $0x140] sm:$0xff]
      %v237 = vld [vmem:[%s1] sm:$0xff]
      %s238 = scalar_lea.vmem %s1, 8
      %v239 = vld [vmem:[%s238] sm:$0xff]
      %vm277 = vcmask 1046528
      %v278 = vrot.slane %v196, 1
      %v279 = vrot.slane %v197, 1
      %v280 = vsel %vm277, %v278, %v279
      %v281 = vrot.slane %v198, 1
      %v282 = vsel %vm277, %v279, %v281
      %v283 = vrot.slane %v199, 1
      %v284 = vsel %vm277, %v281, %v283
      %v285 = vrot.slane %v200, 1
      %v286 = vsel %vm277, %v283, %v285
      %v287 = vrot.slane %v201, 1
      %v288 = vsel %vm277, %v285, %v287
      %v289 = vrot.slane %v202, 1
      %v290 = vsel %vm277, %v287, %v289
      %v291 = vrot.slane %v203, 1
      %v292 = vsel %vm277, %v289, %v291
      %v293 = vrot.slane %v204, 1
      %v294 = vsel %vm277, %v291, %v293
      %v295 = vrot.slane %v205, 1
      %v296 = vsel %vm277, %v293, %v295
      %v297 = vrot.slane %v206, 1
      %v298 = vsel %vm277, %v295, %v297
      %v299 = vrot.slane %v207, 1
      %v300 = vsel %vm277, %v297, %v299
      %v301 = vrot.slane %v208, 1
      %v302 = vsel %vm277, %v299, %v301
      %v303 = vrot.slane %v209, 1
      %v304 = vsel %vm277, %v301, %v303
      %v305 = vrot.slane %v210, 1
      %v306 = vsel %vm277, %v303, %v305
      %v307 = vrot.slane %v211, 1
      %v308 = vsel %vm277, %v305, %v307
      %v309 = vrot.slane %v212, 1
      %v310 = vsel %vm277, %v307, %v309
      %v311 = vrot.slane %v213, 1
      %v312 = vsel %vm277, %v309, %v311
      %v313 = vrot.slane %v214, 1
      %v314 = vsel %vm277, %v311, %v313
      %v315 = vrot.slane %v215, 1
      %v316 = vsel %vm277, %v313, %v315
      %v317 = vrot.slane %v216, 1
      %v318 = vsel %vm277, %v315, %v317
      %v319 = vrot.slane %v217, 1
      %v320 = vsel %vm277, %v317, %v319
      %v321 = vrot.slane %v218, 1
      %v322 = vsel %vm277, %v319, %v321
      %v323 = vrot.slane %v219, 1
      %v324 = vsel %vm277, %v321, %v323
      %v325 = vrot.slane %v220, 1
      %v326 = vsel %vm277, %v323, %v325
      %v327 = vrot.slane %v221, 1
      %v328 = vsel %vm277, %v325, %v327
      %v329 = vrot.slane %v222, 1
      %v330 = vsel %vm277, %v327, %v329
      %v331 = vrot.slane %v223, 1
      %v332 = vsel %vm277, %v329, %v331
      %v333 = vrot.slane %v224, 1
      %v334 = vsel %vm277, %v331, %v333
      %v335 = vrot.slane %v225, 1
      %v336 = vsel %vm277, %v333, %v335
      %v337 = vrot.slane %v226, 1
      %v338 = vsel %vm277, %v335, %v337
      %v339 = vrot.slane %v227, 1
      %v340 = vsel %vm277, %v337, %v339
      %v341 = vrot.slane %v228, 1
      %v342 = vsel %vm277, %v339, %v341
      %v343 = vrot.slane %v229, 1
      %v344 = vsel %vm277, %v341, %v343
      %v345 = vrot.slane %v230, 1
      %v346 = vsel %vm277, %v343, %v345
      %v347 = vrot.slane %v231, 1
      %v348 = vsel %vm277, %v345, %v347
      %v349 = vrot.slane %v232, 1
      %v350 = vsel %vm277, %v347, %v349
      %vm351 = vcmask 64512
      %v352 = vsel %vm351, %v280, 0
      %v354 = vsel %vm351, %v282, 0
      %v356 = vsel %vm351, %v284, 0
      %v358 = vsel %vm351, %v286, 0
      %v360 = vsel %vm351, %v288, 0
      %v362 = vsel %vm351, %v290, 0
      %v364 = vsel %vm351, %v292, 0
      %v366 = vsel %vm351, %v294, 0
      %v368 = vsel %vm351, %v296, 0
      %v370 = vsel %vm351, %v298, 0
      %v372 = vsel %vm351, %v300, 0
      %v374 = vsel %vm351, %v302, 0
      %v376 = vsel %vm351, %v304, 0
      %v378 = vsel %vm351, %v306, 0
      %v380 = vsel %vm351, %v308, 0
      %v382 = vsel %vm351, %v310, 0
      %v384 = vsel %vm351, %v312, 0
      %v386 = vsel %vm351, %v314, 0
      %v388 = vsel %vm351, %v316, 0
      %v390 = vsel %vm351, %v318, 0
      %v392 = vsel %vm351, %v320, 0
      %v394 = vsel %vm351, %v322, 0
      %v396 = vsel %vm351, %v324, 0
      %v398 = vsel %vm351, %v326, 0
      %v400 = vsel %vm351, %v328, 0
      %v402 = vsel %vm351, %v330, 0
      %v404 = vsel %vm351, %v332, 0
      %v406 = vsel %vm351, %v334, 0
      %v408 = vsel %vm351, %v336, 0
      %v410 = vsel %vm351, %v338, 0
      %v412 = vsel %vm351, %v340, 0
      %v414 = vsel %vm351, %v342, 0
      %v416 = vsel %vm351, %v344, 0
      %v418 = vsel %vm351, %v346, 0
      %v420 = vsel %vm351, %v348, 0
      %v422 = vsel %vm351, %v350, 0
      %424 = vmatprep.subr.mxu0 0.0
      %425 = vmatpush1.msra.mxu0 %v239
      %426 = vmatprep.subr.mxu0 0.0
      %427 = vmatpush1.msra.mxu0 0.0
      %428 = vmatprep.subr.mxu0 0.0
      %429 = vmatpush1.msra.mxu0 0.0
      %430 = vmatprep.subr.mxu0 0.0
      %431 = vmatpush1.msra.mxu0 0.0
      %432 = vmatprep.subr.mxu0 0.0
      %433 = vmatpush1.msra.mxu0 0.0
      %434 = vmatprep.subr.mxu0 0.0
      %435 = vmatpush1.msra.mxu0 0.0
      %436 = vmatprep.subr.mxu0 0.0
      %437 = vmatpush1.msra.mxu0 0.0
      %438 = vmatprep.subr.mxu0 0.0
      %439 = vmatpush1.msra.mxu0 0.0
      %440 = vmatprep.subr.mxu0 0.0
      %441 = vmatpush1.msra.mxu0 0.0
      %442 = vmatprep.subr.mxu0 0.0
      %443 = vmatpush1.msra.mxu0 0.0
      %444 = vmatprep.subr.mxu0 0.0
      %445 = vmatpush1.msra.mxu0 0.0
      %446 = vmatprep.subr.mxu0 0.0
      %447 = vmatpush1.msra.mxu0 0.0
      %448 = vmatprep.subr.mxu0 0.0
      %449 = vmatpush1.msra.mxu0 0.0
      %450 = vmatprep.subr.mxu0 0.0
      %451 = vmatpush1.msra.mxu0 0.0
      %452 = vmatprep.subr.mxu0 0.0
      %453 = vmatpush1.msra.mxu0 0.0
      %454 = vmatprep.subr.mxu0 0.0
      %455 = vmatpush1.msra.mxu0 0.0
      %456 = vmatprep.subr.mxu0 0.0
      %457 = vmatpush1.msra.mxu0 0.0
      %458 = vmatprep.subr.mxu0 0.0
      %459 = vmatpush1.msra.mxu0 0.0
      %460 = vmatprep.subr.mxu0 0.0
      %461 = vmatpush1.msra.mxu0 0.0
      %462 = vmatprep.subr.mxu0 0.0
      %463 = vmatpush1.msra.mxu0 0.0
      %464 = vmatprep.subr.mxu0 0.0
      %465 = vmatpush1.msra.mxu0 0.0
      %466 = vmatprep.subr.mxu0 0.0
      %467 = vmatpush1.msra.mxu0 0.0
      %468 = vmatprep.subr.mxu0 0.0
      %469 = vmatpush1.msra.mxu0 0.0
      %470 = vmatprep.subr.mxu0 0.0
      %471 = vmatpush1.msra.mxu0 0.0
      %472 = vmatprep.subr.mxu0 0.0
      %473 = vmatpush1.msra.mxu0 0.0
      %474 = vmatprep.subr.mxu0 0.0
      %475 = vmatpush1.msra.mxu0 0.0
      %476 = vmatprep.subr.mxu0 0.0
      %477 = vmatpush1.msra.mxu0 0.0
      %478 = vmatprep.subr.mxu0 0.0
      %479 = vmatpush1.msra.mxu0 0.0
      %480 = vmatprep.subr.mxu0 0.0
      %481 = vmatpush1.msra.mxu0 0.0
      %482 = vmatprep.subr.mxu0 0.0
      %483 = vmatpush1.msra.mxu0 0.0
      %484 = vmatprep.subr.mxu0 0.0
      %485 = vmatpush1.msra.mxu0 0.0
      %486 = vmatprep.subr.mxu0 0.0
      %487 = vmatpush1.msra.mxu0 0.0
      %488 = vmatprep.mubr.f32.mxu0 0.0
      %489 = vmatmul.mubr.f32.gmra.mrb[0].mxu0 %v352
      %v490 = vpop.f32.mrb[0].mxu0
      %v491 = vadd.f32 0.0, %v490
      %v492 = vpop.f32.mrb[0].mxu0
      %493 = vmatprep.mubr.f32.mxu0 0.0
      %494 = vmatmul.mubr.f32.gmra.mrb[0].mxu0 %v354
      %v495 = vpop.f32.mrb[0].mxu0
      %v496 = vadd.f32 0.0, %v495
      %v497 = vpop.f32.mrb[0].mxu0
      %498 = vmatprep.mubr.f32.mxu0 0.0
      %499 = vmatmul.mubr.f32.gmra.mrb[0].mxu0 %v356
      %v500 = vpop.f32.mrb[0].mxu0
      %v501 = vadd.f32 0.0, %v500
      %v502 = vpop.f32.mrb[0].mxu0
      %503 = vmatprep.mubr.f32.mxu0 0.0
      %504 = vmatmul.mubr.f32.gmra.mrb[0].mxu0 %v358
      %v505 = vpop.f32.mrb[0].mxu0
      %v506 = vadd.f32 0.0, %v505
      %v507 = vpop.f32.mrb[0].mxu0
      %508 = vmatprep.mubr.f32.mxu0 0.0
      %509 = vmatmul.mubr.f32.gmra.mrb[0].mxu0 %v360
      %v510 = vpop.f32.mrb[0].mxu0
      %v511 = vadd.f32 0.0, %v510
      %v512 = vpop.f32.mrb[0].mxu0
      %513 = vmatprep.mubr.f32.mxu0 0.0
      %514 = vmatmul.mubr.f32.gmra.mrb[0].mxu0 %v362
      %v515 = vpop.f32.mrb[0].mxu0
      %v516 = vadd.f32 0.0, %v515
      %v517 = vpop.f32.mrb[0].mxu0
      %518 = vmatprep.mubr.f32.mxu0 0.0
      %519 = vmatmul.mubr.f32.gmra.mrb[0].mxu0 %v364
      %v520 = vpop.f32.mrb[0].mxu0
      %v521 = vadd.f32 0.0, %v520
      %v522 = vpop.f32.mrb[0].mxu0
      %523 = vmatprep.mubr.f32.mxu0 0.0
      %524 = vmatmul.mubr.f32.gmra.mrb[0].mxu0 %v366
      %v525 = vpop.f32.mrb[0].mxu0
      %v526 = vadd.f32 0.0, %v525
      %v527 = vpop.f32.mrb[0].mxu0
      %528 = vmatprep.mubr.f32.mxu0 0.0
      %529 = vmatmul.mubr.f32.gmra.mrb[0].mxu0 %v368
      %v530 = vpop.f32.mrb[0].mxu0
      %v531 = vadd.f32 0.0, %v530
      %v532 = vpop.f32.mrb[0].mxu0
      %533 = vmatprep.mubr.f32.mxu0 0.0
      %534 = vmatmul.mubr.f32.gmra.mrb[0].mxu0 %v370
      %v535 = vpop.f32.mrb[0].mxu0
      %v536 = vadd.f32 0.0, %v535
      %v537 = vpop.f32.mrb[0].mxu0
      %538 = vmatprep.mubr.f32.mxu0 0.0
      %539 = vmatmul.mubr.f32.gmra.mrb[0].mxu0 %v372
      %v540 = vpop.f32.mrb[0].mxu0
      %v541 = vadd.f32 0.0, %v540
      %v542 = vpop.f32.mrb[0].mxu0
      %543 = vmatprep.mubr.f32.mxu0 0.0
      %544 = vmatmul.mubr.f32.gmra.mrb[0].mxu0 %v374
      %v545 = vpop.f32.mrb[0].mxu0
      %v546 = vadd.f32 0.0, %v545
      %v547 = vpop.f32.mrb[0].mxu0
      %548 = vmatprep.mubr.f32.mxu0 0.0
      %549 = vmatmul.mubr.f32.gmra.mrb[0].mxu0 %v376
      %v550 = vpop.f32.mrb[0].mxu0
      %v551 = vadd.f32 0.0, %v550
      %v552 = vpop.f32.mrb[0].mxu0
      %553 = vmatprep.mubr.f32.mxu0 0.0
      %554 = vmatmul.mubr.f32.gmra.mrb[0].mxu0 %v378
      %v555 = vpop.f32.mrb[0].mxu0
      %v556 = vadd.f32 0.0, %v555
      %v557 = vpop.f32.mrb[0].mxu0
      %558 = vmatprep.mubr.f32.mxu0 0.0
      %559 = vmatmul.mubr.f32.gmra.mrb[0].mxu0 %v380
      %v560 = vpop.f32.mrb[0].mxu0
      %v561 = vadd.f32 0.0, %v560
      %v562 = vpop.f32.mrb[0].mxu0
      %563 = vmatprep.mubr.f32.mxu0 0.0
      %564 = vmatmul.mubr.f32.gmra.mrb[0].mxu0 %v382
      %v565 = vpop.f32.mrb[0].mxu0
      %v566 = vadd.f32 0.0, %v565
      %v567 = vpop.f32.mrb[0].mxu0
      %568 = vmatprep.mubr.f32.mxu0 0.0
      %569 = vmatmul.mubr.f32.gmra.mrb[0].mxu0 %v384
      %v570 = vpop.f32.mrb[0].mxu0
      %v571 = vadd.f32 0.0, %v570
      %v572 = vpop.f32.mrb[0].mxu0
      %573 = vmatprep.mubr.f32.mxu0 0.0
      %574 = vmatmul.mubr.f32.gmra.mrb[0].mxu0 %v386
      %v575 = vpop.f32.mrb[0].mxu0
      %v576 = vadd.f32 0.0, %v575
      %v577 = vpop.f32.mrb[0].mxu0
      %578 = vmatprep.mubr.f32.mxu0 0.0
      %579 = vmatmul.mubr.f32.gmra.mrb[0].mxu0 %v388
      %v580 = vpop.f32.mrb[0].mxu0
      %v581 = vadd.f32 0.0, %v580
      %v582 = vpop.f32.mrb[0].mxu0
      %583 = vmatprep.mubr.f32.mxu0 0.0
      %584 = vmatmul.mubr.f32.gmra.mrb[0].mxu0 %v390
      %v585 = vpop.f32.mrb[0].mxu0
      %v586 = vadd.f32 0.0, %v585
      %v587 = vpop.f32.mrb[0].mxu0
      %588 = vmatprep.mubr.f32.mxu0 0.0
      %589 = vmatmul.mubr.f32.gmra.mrb[0].mxu0 %v392
      %v590 = vpop.f32.mrb[0].mxu0
      %v591 = vadd.f32 0.0, %v590
      %v592 = vpop.f32.mrb[0].mxu0
      %593 = vmatprep.mubr.f32.mxu0 0.0
      %594 = vmatmul.mubr.f32.gmra.mrb[0].mxu0 %v394
      %v595 = vpop.f32.mrb[0].mxu0
      %v596 = vadd.f32 0.0, %v595
      %v597 = vpop.f32.mrb[0].mxu0
      %598 = vmatprep.mubr.f32.mxu0 0.0
      %599 = vmatmul.mubr.f32.gmra.mrb[0].mxu0 %v396
      %v600 = vpop.f32.mrb[0].mxu0
      %v601 = vadd.f32 0.0, %v600
      %v602 = vpop.f32.mrb[0].mxu0
      %603 = vmatprep.mubr.f32.mxu0 0.0
      %604 = vmatmul.mubr.f32.gmra.mrb[0].mxu0 %v398
      %v605 = vpop.f32.mrb[0].mxu0
      %v606 = vadd.f32 0.0, %v605
      %v607 = vpop.f32.mrb[0].mxu0
      %608 = vmatprep.mubr.f32.mxu0 0.0
      %609 = vmatmul.mubr.f32.gmra.mrb[0].mxu0 %v400
      %v610 = vpop.f32.mrb[0].mxu0
      %v611 = vadd.f32 0.0, %v610
      %v612 = vpop.f32.mrb[0].mxu0
      %613 = vmatprep.mubr.f32.mxu0 0.0
      %614 = vmatmul.mubr.f32.gmra.mrb[0].mxu0 %v402
      %v615 = vpop.f32.mrb[0].mxu0
      %v616 = vadd.f32 0.0, %v615
      %v617 = vpop.f32.mrb[0].mxu0
      %618 = vmatprep.mubr.f32.mxu0 0.0
      %619 = vmatmul.mubr.f32.gmra.mrb[0].mxu0 %v404
      %v620 = vpop.f32.mrb[0].mxu0
      %v621 = vadd.f32 0.0, %v620
      %v622 = vpop.f32.mrb[0].mxu0
      %623 = vmatprep.mubr.f32.mxu0 0.0
      %624 = vmatmul.mubr.f32.gmra.mrb[0].mxu0 %v406
      %v625 = vpop.f32.mrb[0].mxu0
      %v626 = vadd.f32 0.0, %v625
      %v627 = vpop.f32.mrb[0].mxu0
      %628 = vmatprep.mubr.f32.mxu0 0.0
      %629 = vmatmul.mubr.f32.gmra.mrb[0].mxu0 %v408
      %v630 = vpop.f32.mrb[0].mxu0
      %v631 = vadd.f32 0.0, %v630
      %v632 = vpop.f32.mrb[0].mxu0
      %633 = vmatprep.mubr.f32.mxu0 0.0
      %634 = vmatmul.mubr.f32.gmra.mrb[0].mxu0 %v410
      %v635 = vpop.f32.mrb[0].mxu0
      %v636 = vadd.f32 0.0, %v635
      %v637 = vpop.f32.mrb[0].mxu0
      %638 = vmatprep.mubr.f32.mxu0 0.0
      %639 = vmatmul.mubr.f32.gmra.mrb[0].mxu0 %v412
      %v640 = vpop.f32.mrb[0].mxu0
      %v641 = vadd.f32 0.0, %v640
      %v642 = vpop.f32.mrb[0].mxu0
      %643 = vmatprep.mubr.f32.mxu0 0.0
      %644 = vmatmul.mubr.f32.gmra.mrb[0].mxu0 %v414
      %v645 = vpop.f32.mrb[0].mxu0
      %v646 = vadd.f32 0.0, %v645
      %v647 = vpop.f32.mrb[0].mxu0
      %648 = vmatprep.mubr.f32.mxu0 0.0
      %649 = vmatmul.mubr.f32.gmra.mrb[0].mxu0 %v416
      %v650 = vpop.f32.mrb[0].mxu0
      %v651 = vadd.f32 0.0, %v650
      %v652 = vpop.f32.mrb[0].mxu0
      %653 = vmatprep.mubr.f32.mxu0 0.0
      %654 = vmatmul.mubr.f32.gmra.mrb[0].mxu0 %v418
      %v655 = vpop.f32.mrb[0].mxu0
      %v656 = vadd.f32 0.0, %v655
      %v657 = vpop.f32.mrb[0].mxu0
      %658 = vmatprep.mubr.f32.mxu0 0.0
      %659 = vmatmul.mubr.f32.gmra.mrb[0].mxu0 %v420
      %v660 = vpop.f32.mrb[0].mxu0
      %v661 = vadd.f32 0.0, %v660
      %v662 = vpop.f32.mrb[0].mxu0
      %663 = vmatprep.mubr.f32.mxu0 0.0
      %664 = vmatmul.mubr.f32.gmra.mrb[0].mxu0 %v422
      %v665 = vpop.f32.mrb[0].mxu0
      %v666 = vadd.f32 0.0, %v665
      %v667 = vpop.f32.mrb[0].mxu0
      %668 = vdwg.mxu0
      %v669 = vsel %vm351, %v196, 0
      %v671 = vsel %vm351, %v197, 0
      %v673 = vsel %vm351, %v198, 0
      %v675 = vsel %vm351, %v199, 0
      %v677 = vsel %vm351, %v200, 0
      %v679 = vsel %vm351, %v201, 0
      %v681 = vsel %vm351, %v202, 0
      %v683 = vsel %vm351, %v203, 0
      %v685 = vsel %vm351, %v204, 0
      %v687 = vsel %vm351, %v205, 0
      %v689 = vsel %vm351, %v206, 0
      %v691 = vsel %vm351, %v207, 0
      %v693 = vsel %vm351, %v208, 0
      %v695 = vsel %vm351, %v209, 0
      %v697 = vsel %vm351, %v210, 0
      %v699 = vsel %vm351, %v211, 0
      %v701 = vsel %vm351, %v212, 0
      %v703 = vsel %vm351, %v213, 0
      %v705 = vsel %vm351, %v214, 0
      %v707 = vsel %vm351, %v215, 0
      %v709 = vsel %vm351, %v216, 0
      %v711 = vsel %vm351, %v217, 0
      %v713 = vsel %vm351, %v218, 0
      %v715 = vsel %vm351, %v219, 0
      %v717 = vsel %vm351, %v220, 0
      %v719 = vsel %vm351, %v221, 0
      %v721 = vsel %vm351, %v222, 0
      %v723 = vsel %vm351, %v223, 0
      %v725 = vsel %vm351, %v224, 0
      %v727 = vsel %vm351, %v225, 0
      %v729 = vsel %vm351, %v226, 0
      %v731 = vsel %vm351, %v227, 0
      %v733 = vsel %vm351, %v228, 0
      %v735 = vsel %vm351, %v229, 0
      %v737 = vsel %vm351, %v230, 0
      %v739 = vsel %vm351, %v231, 0
      %741 = vmatprep.subr.mxu0 0.0
      %742 = vmatpush1.msra.mxu0 %v237
      %743 = vmatprep.subr.mxu0 0.0
      %744 = vmatpush1.msra.mxu0 0.0
      %745 = vmatprep.subr.mxu0 0.0
      %746 = vmatpush1.msra.mxu0 0.0
      %747 = vmatprep.subr.mxu0 0.0
      %748 = vmatpush1.msra.mxu0 0.0
      %749 = vmatprep.subr.mxu0 0.0
      %750 = vmatpush1.msra.mxu0 0.0
      %751 = vmatprep.subr.mxu0 0.0
      %752 = vmatpush1.msra.mxu0 0.0
      %753 = vmatprep.subr.mxu0 0.0
      %754 = vmatpush1.msra.mxu0 0.0
      %755 = vmatprep.subr.mxu0 0.0
      %756 = vmatpush1.msra.mxu0 0.0
      %757 = vmatprep.subr.mxu0 0.0
      %758 = vmatpush1.msra.mxu0 0.0
      %759 = vmatprep.subr.mxu0 0.0
      %760 = vmatpush1.msra.mxu0 0.0
      %761 = vmatprep.subr.mxu0 0.0
      %762 = vmatpush1.msra.mxu0 0.0
      %763 = vmatprep.subr.mxu0 0.0
      %764 = vmatpush1.msra.mxu0 0.0
      %765 = vmatprep.subr.mxu0 0.0
      %766 = vmatpush1.msra.mxu0 0.0
      %767 = vmatprep.subr.mxu0 0.0
      %768 = vmatpush1.msra.mxu0 0.0
      %769 = vmatprep.subr.mxu0 0.0
      %770 = vmatpush1.msra.mxu0 0.0
      %771 = vmatprep.subr.mxu0 0.0
      %772 = vmatpush1.msra.mxu0 0.0
      %773 = vmatprep.subr.mxu0 0.0
      %774 = vmatpush1.msra.mxu0 0.0
      %775 = vmatprep.subr.mxu0 0.0
      %776 = vmatpush1.msra.mxu0 0.0
      %777 = vmatprep.subr.mxu0 0.0
      %778 = vmatpush1.msra.mxu0 0.0
      %779 = vmatprep.subr.mxu0 0.0
      %780 = vmatpush1.msra.mxu0 0.0
      %781 = vmatprep.subr.mxu0 0.0
      %782 = vmatpush1.msra.mxu0 0.0
      %783 = vmatprep.subr.mxu0 0.0
      %784 = vmatpush1.msra.mxu0 0.0
      %785 = vmatprep.subr.mxu0 0.0
      %786 = vmatpush1.msra.mxu0 0.0
      %787 = vmatprep.subr.mxu0 0.0
      %788 = vmatpush1.msra.mxu0 0.0
      %789 = vmatprep.subr.mxu0 0.0
      %790 = vmatpush1.msra.mxu0 0.0
      %791 = vmatprep.subr.mxu0 0.0
      %792 = vmatpush1.msra.mxu0 0.0
      %793 = vmatprep.subr.mxu0 0.0
      %794 = vmatpush1.msra.mxu0 0.0
      %795 = vmatprep.subr.mxu0 0.0
      %796 = vmatpush1.msra.mxu0 0.0
      %797 = vmatprep.subr.mxu0 0.0
      %798 = vmatpush1.msra.mxu0 0.0
      %799 = vmatprep.subr.mxu0 0.0
      %800 = vmatpush1.msra.mxu0 0.0
      %801 = vmatprep.subr.mxu0 0.0
      %802 = vmatpush1.msra.mxu0 0.0
      %803 = vmatprep.subr.mxu0 0.0
      %804 = vmatpush1.msra.mxu0 0.0
      %805 = vmatprep.mubr.f32.mxu0 0.0
      %806 = vmatmul.mubr.f32.gmra.mrb[0].mxu0 %v669
      %v807 = vpop.f32.mrb[0].mxu0
      %v808 = vadd.f32 %v491, %v807
      %v809 = vpop.f32.mrb[0].mxu0
      %810 = vmatprep.mubr.f32.mxu0 0.0
      %811 = vmatmul.mubr.f32.gmra.mrb[0].mxu0 %v671
      %v812 = vpop.f32.mrb[0].mxu0
      %v813 = vadd.f32 %v496, %v812
      %v814 = vpop.f32.mrb[0].mxu0
      %815 = vmatprep.mubr.f32.mxu0 0.0
      %816 = vmatmul.mubr.f32.gmra.mrb[0].mxu0 %v673
      %v817 = vpop.f32.mrb[0].mxu0
      %v818 = vadd.f32 %v501, %v817
      %v819 = vpop.f32.mrb[0].mxu0
      %820 = vmatprep.mubr.f32.mxu0 0.0
      %821 = vmatmul.mubr.f32.gmra.mrb[0].mxu0 %v675
      %v822 = vpop.f32.mrb[0].mxu0
      %v823 = vadd.f32 %v506, %v822
      %v824 = vpop.f32.mrb[0].mxu0
      %825 = vmatprep.mubr.f32.mxu0 0.0
      %826 = vmatmul.mubr.f32.gmra.mrb[0].mxu0 %v677
      %v827 = vpop.f32.mrb[0].mxu0
      %v828 = vadd.f32 %v511, %v827
      %v829 = vpop.f32.mrb[0].mxu0
      %830 = vmatprep.mubr.f32.mxu0 0.0
      %831 = vmatmul.mubr.f32.gmra.mrb[0].mxu0 %v679
      %v832 = vpop.f32.mrb[0].mxu0
      %v833 = vadd.f32 %v516, %v832
      %v834 = vpop.f32.mrb[0].mxu0
      %835 = vmatprep.mubr.f32.mxu0 0.0
      %836 = vmatmul.mubr.f32.gmra.mrb[0].mxu0 %v681
      %v837 = vpop.f32.mrb[0].mxu0
      %v838 = vadd.f32 %v521, %v837
      %v839 = vpop.f32.mrb[0].mxu0
      %840 = vmatprep.mubr.f32.mxu0 0.0
      %841 = vmatmul.mubr.f32.gmra.mrb[0].mxu0 %v683
      %v842 = vpop.f32.mrb[0].mxu0
      %v843 = vadd.f32 %v526, %v842
      %v844 = vpop.f32.mrb[0].mxu0
      %845 = vmatprep.mubr.f32.mxu0 0.0
      %846 = vmatmul.mubr.f32.gmra.mrb[0].mxu0 %v685
      %v847 = vpop.f32.mrb[0].mxu0
      %v848 = vadd.f32 %v531, %v847
      %v849 = vpop.f32.mrb[0].mxu0
      %850 = vmatprep.mubr.f32.mxu0 0.0
      %851 = vmatmul.mubr.f32.gmra.mrb[0].mxu0 %v687
      %v852 = vpop.f32.mrb[0].mxu0
      %v853 = vadd.f32 %v536, %v852
      %v854 = vpop.f32.mrb[0].mxu0
      %855 = vmatprep.mubr.f32.mxu0 0.0
      %856 = vmatmul.mubr.f32.gmra.mrb[0].mxu0 %v689
      %v857 = vpop.f32.mrb[0].mxu0
      %v858 = vadd.f32 %v541, %v857
      %v859 = vpop.f32.mrb[0].mxu0
      %860 = vmatprep.mubr.f32.mxu0 0.0
      %861 = vmatmul.mubr.f32.gmra.mrb[0].mxu0 %v691
      %v862 = vpop.f32.mrb[0].mxu0
      %v863 = vadd.f32 %v546, %v862
      %v864 = vpop.f32.mrb[0].mxu0
      %865 = vmatprep.mubr.f32.mxu0 0.0
      %866 = vmatmul.mubr.f32.gmra.mrb[0].mxu0 %v693
      %v867 = vpop.f32.mrb[0].mxu0
      %v868 = vadd.f32 %v551, %v867
      %v869 = vpop.f32.mrb[0].mxu0
      %870 = vmatprep.mubr.f32.mxu0 0.0
      %871 = vmatmul.mubr.f32.gmra.mrb[0].mxu0 %v695
      %v872 = vpop.f32.mrb[0].mxu0
      %v873 = vadd.f32 %v556, %v872
      %v874 = vpop.f32.mrb[0].mxu0
      %875 = vmatprep.mubr.f32.mxu0 0.0
      %876 = vmatmul.mubr.f32.gmra.mrb[0].mxu0 %v697
      %v877 = vpop.f32.mrb[0].mxu0
      %v878 = vadd.f32 %v561, %v877
      %v879 = vpop.f32.mrb[0].mxu0
      %880 = vmatprep.mubr.f32.mxu0 0.0
      %881 = vmatmul.mubr.f32.gmra.mrb[0].mxu0 %v699
      %v882 = vpop.f32.mrb[0].mxu0
      %v883 = vadd.f32 %v566, %v882
      %v884 = vpop.f32.mrb[0].mxu0
      %885 = vmatprep.mubr.f32.mxu0 0.0
      %886 = vmatmul.mubr.f32.gmra.mrb[0].mxu0 %v701
      %v887 = vpop.f32.mrb[0].mxu0
      %v888 = vadd.f32 %v571, %v887
      %v889 = vpop.f32.mrb[0].mxu0
      %890 = vmatprep.mubr.f32.mxu0 0.0
      %891 = vmatmul.mubr.f32.gmra.mrb[0].mxu0 %v703
      %v892 = vpop.f32.mrb[0].mxu0
      %v893 = vadd.f32 %v576, %v892
      %v894 = vpop.f32.mrb[0].mxu0
      %895 = vmatprep.mubr.f32.mxu0 0.0
      %896 = vmatmul.mubr.f32.gmra.mrb[0].mxu0 %v705
      %v897 = vpop.f32.mrb[0].mxu0
      %v898 = vadd.f32 %v581, %v897
      %v899 = vpop.f32.mrb[0].mxu0
      %900 = vmatprep.mubr.f32.mxu0 0.0
      %901 = vmatmul.mubr.f32.gmra.mrb[0].mxu0 %v707
      %v902 = vpop.f32.mrb[0].mxu0
      %v903 = vadd.f32 %v586, %v902
      %v904 = vpop.f32.mrb[0].mxu0
      %905 = vmatprep.mubr.f32.mxu0 0.0
      %906 = vmatmul.mubr.f32.gmra.mrb[0].mxu0 %v709
      %v907 = vpop.f32.mrb[0].mxu0
      %v908 = vadd.f32 %v591, %v907
      %v909 = vpop.f32.mrb[0].mxu0
      %910 = vmatprep.mubr.f32.mxu0 0.0
      %911 = vmatmul.mubr.f32.gmra.mrb[0].mxu0 %v711
      %v912 = vpop.f32.mrb[0].mxu0
      %v913 = vadd.f32 %v596, %v912
      %v914 = vpop.f32.mrb[0].mxu0
      %915 = vmatprep.mubr.f32.mxu0 0.0
      %916 = vmatmul.mubr.f32.gmra.mrb[0].mxu0 %v713
      %v917 = vpop.f32.mrb[0].mxu0
      %v918 = vadd.f32 %v601, %v917
      %v919 = vpop.f32.mrb[0].mxu0
      %920 = vmatprep.mubr.f32.mxu0 0.0
      %921 = vmatmul.mubr.f32.gmra.mrb[0].mxu0 %v715
      %v922 = vpop.f32.mrb[0].mxu0
      %v923 = vadd.f32 %v606, %v922
      %v924 = vpop.f32.mrb[0].mxu0
      %925 = vmatprep.mubr.f32.mxu0 0.0
      %926 = vmatmul.mubr.f32.gmra.mrb[0].mxu0 %v717
      %v927 = vpop.f32.mrb[0].mxu0
      %v928 = vadd.f32 %v611, %v927
      %v929 = vpop.f32.mrb[0].mxu0
      %930 = vmatprep.mubr.f32.mxu0 0.0
      %931 = vmatmul.mubr.f32.gmra.mrb[0].mxu0 %v719
      %v932 = vpop.f32.mrb[0].mxu0
      %v933 = vadd.f32 %v616, %v932
      %v934 = vpop.f32.mrb[0].mxu0
      %935 = vmatprep.mubr.f32.mxu0 0.0
      %936 = vmatmul.mubr.f32.gmra.mrb[0].mxu0 %v721
      %v937 = vpop.f32.mrb[0].mxu0
      %v938 = vadd.f32 %v621, %v937
      %v939 = vpop.f32.mrb[0].mxu0
      %940 = vmatprep.mubr.f32.mxu0 0.0
      %941 = vmatmul.mubr.f32.gmra.mrb[0].mxu0 %v723
      %v942 = vpop.f32.mrb[0].mxu0
      %v943 = vadd.f32 %v626, %v942
      %v944 = vpop.f32.mrb[0].mxu0
      %945 = vmatprep.mubr.f32.mxu0 0.0
      %946 = vmatmul.mubr.f32.gmra.mrb[0].mxu0 %v725
      %v947 = vpop.f32.mrb[0].mxu0
      %v948 = vadd.f32 %v631, %v947
      %v949 = vpop.f32.mrb[0].mxu0
      %950 = vmatprep.mubr.f32.mxu0 0.0
      %951 = vmatmul.mubr.f32.gmra.mrb[0].mxu0 %v727
      %v952 = vpop.f32.mrb[0].mxu0
      %v953 = vadd.f32 %v636, %v952
      %v954 = vpop.f32.mrb[0].mxu0
      %955 = vmatprep.mubr.f32.mxu0 0.0
      %956 = vmatmul.mubr.f32.gmra.mrb[0].mxu0 %v729
      %v957 = vpop.f32.mrb[0].mxu0
      %v958 = vadd.f32 %v641, %v957
      %v959 = vpop.f32.mrb[0].mxu0
      %960 = vmatprep.mubr.f32.mxu0 0.0
      %961 = vmatmul.mubr.f32.gmra.mrb[0].mxu0 %v731
      %v962 = vpop.f32.mrb[0].mxu0
      %v963 = vadd.f32 %v646, %v962
      %v964 = vpop.f32.mrb[0].mxu0
      %965 = vmatprep.mubr.f32.mxu0 0.0
      %966 = vmatmul.mubr.f32.gmra.mrb[0].mxu0 %v733
      %v967 = vpop.f32.mrb[0].mxu0
      %v968 = vadd.f32 %v651, %v967
      %v969 = vpop.f32.mrb[0].mxu0
      %970 = vmatprep.mubr.f32.mxu0 0.0
      %971 = vmatmul.mubr.f32.gmra.mrb[0].mxu0 %v735
      %v972 = vpop.f32.mrb[0].mxu0
      %v973 = vadd.f32 %v656, %v972
      %v974 = vpop.f32.mrb[0].mxu0
      %975 = vmatprep.mubr.f32.mxu0 0.0
      %976 = vmatmul.mubr.f32.gmra.mrb[0].mxu0 %v737
      %v977 = vpop.f32.mrb[0].mxu0
      %v978 = vadd.f32 %v661, %v977
      %v979 = vpop.f32.mrb[0].mxu0
      %980 = vmatprep.mubr.f32.mxu0 0.0
      %981 = vmatmul.mubr.f32.gmra.mrb[0].mxu0 %v739
      %v982 = vpop.f32.mrb[0].mxu0
      %v983 = vadd.f32 %v666, %v982
      %v984 = vpop.f32.mrb[0].mxu0
      %985 = vdwg.mxu0
      %s986 = scalar_lea.vmem %s1, 16
      %v987 = vld [vmem:[%s986] sm:$0xff]
      %vm988 = vcmask 1045504
      %v989 = vrot.slane %v196, 2
      %v990 = vrot.slane %v197, 2
      %v991 = vsel %vm988, %v989, %v990
      %v992 = vrot.slane %v198, 2
      %v993 = vsel %vm988, %v990, %v992
      %v994 = vrot.slane %v199, 2
      %v995 = vsel %vm988, %v992, %v994
      %v996 = vrot.slane %v200, 2
      %v997 = vsel %vm988, %v994, %v996
      %v998 = vrot.slane %v201, 2
      %v999 = vsel %vm988, %v996, %v998
      %v1000 = vrot.slane %v202, 2
      %v1001 = vsel %vm988, %v998, %v1000
      %v1002 = vrot.slane %v203, 2
      %v1003 = vsel %vm988, %v1000, %v1002
      %v1004 = vrot.slane %v204, 2
      %v1005 = vsel %vm988, %v1002, %v1004
      %v1006 = vrot.slane %v205, 2
      %v1007 = vsel %vm988, %v1004, %v1006
      %v1008 = vrot.slane %v206, 2
      %v1009 = vsel %vm988, %v1006, %v1008
      %v1010 = vrot.slane %v207, 2
      %v1011 = vsel %vm988, %v1008, %v1010
      %v1012 = vrot.slane %v208, 2
      %v1013 = vsel %vm988, %v1010, %v1012
      %v1014 = vrot.slane %v209, 2
      %v1015 = vsel %vm988, %v1012, %v1014
      %v1016 = vrot.slane %v210, 2
      %v1017 = vsel %vm988, %v1014, %v1016
      %v1018 = vrot.slane %v211, 2
      %v1019 = vsel %vm988, %v1016, %v1018
      %v1020 = vrot.slane %v212, 2
      %v1021 = vsel %vm988, %v1018, %v1020
      %v1022 = vrot.slane %v213, 2
      %v1023 = vsel %vm988, %v1020, %v1022
      %v1024 = vrot.slane %v214, 2
      %v1025 = vsel %vm988, %v1022, %v1024
      %v1026 = vrot.slane %v215, 2
      %v1027 = vsel %vm988, %v1024, %v1026
      %v1028 = vrot.slane %v216, 2
      %v1029 = vsel %vm988, %v1026, %v1028
      %v1030 = vrot.slane %v217, 2
      %v1031 = vsel %vm988, %v1028, %v1030
      %v1032 = vrot.slane %v218, 2
      %v1033 = vsel %vm988, %v1030, %v1032
      %v1034 = vrot.slane %v219, 2
      %v1035 = vsel %vm988, %v1032, %v1034
      %v1036 = vrot.slane %v220, 2
      %v1037 = vsel %vm988, %v1034, %v1036
      %v1038 = vrot.slane %v221, 2
      %v1039 = vsel %vm988, %v1036, %v1038
      %v1040 = vrot.slane %v222, 2
      %v1041 = vsel %vm988, %v1038, %v1040
      %v1042 = vrot.slane %v223, 2
      %v1043 = vsel %vm988, %v1040, %v1042
      %v1044 = vrot.slane %v224, 2
      %v1045 = vsel %vm988, %v1042, %v1044
      %v1046 = vrot.slane %v225, 2
      %v1047 = vsel %vm988, %v1044, %v1046
      %v1048 = vrot.slane %v226, 2
      %v1049 = vsel %vm988, %v1046, %v1048
      %v1050 = vrot.slane %v227, 2
      %v1051 = vsel %vm988, %v1048, %v1050
      %v1052 = vrot.slane %v228, 2
      %v1053 = vsel %vm988, %v1050, %v1052
      %v1054 = vrot.slane %v229, 2
      %v1055 = vsel %vm988, %v1052, %v1054
      %v1056 = vrot.slane %v230, 2
      %v1057 = vsel %vm988, %v1054, %v1056
      %v1058 = vrot.slane %v231, 2
      %v1059 = vsel %vm988, %v1056, %v1058
      %v1060 = vrot.slane %v232, 2
      %v1061 = vsel %vm988, %v1058, %v1060
      %v1062 = vsel %vm351, %v991, 0
      %v1064 = vsel %vm351, %v993, 0
      %v1066 = vsel %vm351, %v995, 0
      %v1068 = vsel %vm351, %v997, 0
      %v1070 = vsel %vm351, %v999, 0
      %v1072 = vsel %vm351, %v1001, 0
      %v1074 = vsel %vm351, %v1003, 0
      %v1076 = vsel %vm351, %v1005, 0
      %v1078 = vsel %vm351, %v1007, 0
      %v1080 = vsel %vm351, %v1009, 0
      %v1082 = vsel %vm351, %v1011, 0
      %v1084 = vsel %vm351, %v1013, 0
      %v1086 = vsel %vm351, %v1015, 0
      %v1088 = vsel %vm351, %v1017, 0
      %v1090 = vsel %vm351, %v1019, 0
      %v1092 = vsel %vm351, %v1021, 0
      %v1094 = vsel %vm351, %v1023, 0
      %v1096 = vsel %vm351, %v1025, 0
      %v1098 = vsel %vm351, %v1027, 0
      %v1100 = vsel %vm351, %v1029, 0
      %v1102 = vsel %vm351, %v1031, 0
      %v1104 = vsel %vm351, %v1033, 0
      %v1106 = vsel %vm351, %v1035, 0
      %v1108 = vsel %vm351, %v1037, 0
      %v1110 = vsel %vm351, %v1039, 0
      %v1112 = vsel %vm351, %v1041, 0
      %v1114 = vsel %vm351, %v1043, 0
      %v1116 = vsel %vm351, %v1045, 0
      %v1118 = vsel %vm351, %v1047, 0
      %v1120 = vsel %vm351, %v1049, 0
      %v1122 = vsel %vm351, %v1051, 0
      %v1124 = vsel %vm351, %v1053, 0
      %v1126 = vsel %vm351, %v1055, 0
      %v1128 = vsel %vm351, %v1057, 0
      %v1130 = vsel %vm351, %v1059, 0
      %v1132 = vsel %vm351, %v1061, 0
      %1134 = vmatprep.subr.mxu0 0.0
      %1135 = vmatpush1.msra.mxu0 %v987
      %1136 = vmatprep.subr.mxu0 0.0
      %1137 = vmatpush1.msra.mxu0 0.0
      %1138 = vmatprep.subr.mxu0 0.0
      %1139 = vmatpush1.msra.mxu0 0.0
      %1140 = vmatprep.subr.mxu0 0.0
      %1141 = vmatpush1.msra.mxu0 0.0
      %1142 = vmatprep.subr.mxu0 0.0
      %1143 = vmatpush1.msra.mxu0 0.0
      %1144 = vmatprep.subr.mxu0 0.0
      %1145 = vmatpush1.msra.mxu0 0.0
      %1146 = vmatprep.subr.mxu0 0.0
      %1147 = vmatpush1.msra.mxu0 0.0
      %1148 = vmatprep.subr.mxu0 0.0
      %1149 = vmatpush1.msra.mxu0 0.0
      %1150 = vmatprep.subr.mxu0 0.0
      %1151 = vmatpush1.msra.mxu0 0.0
      %1152 = vmatprep.subr.mxu0 0.0
      %1153 = vmatpush1.msra.mxu0 0.0
      %1154 = vmatprep.subr.mxu0 0.0
      %1155 = vmatpush1.msra.mxu0 0.0
      %1156 = vmatprep.subr.mxu0 0.0
      %1157 = vmatpush1.msra.mxu0 0.0
      %1158 = vmatprep.subr.mxu0 0.0
      %1159 = vmatpush1.msra.mxu0 0.0
      %1160 = vmatprep.subr.mxu0 0.0
      %1161 = vmatpush1.msra.mxu0 0.0
      %1162 = vmatprep.subr.mxu0 0.0
      %1163 = vmatpush1.msra.mxu0 0.0
      %1164 = vmatprep.subr.mxu0 0.0
      %1165 = vmatpush1.msra.mxu0 0.0
      %1166 = vmatprep.subr.mxu0 0.0
      %1167 = vmatpush1.msra.mxu0 0.0
      %1168 = vmatprep.subr.mxu0 0.0
      %1169 = vmatpush1.msra.mxu0 0.0
      %1170 = vmatprep.subr.mxu0 0.0
      %1171 = vmatpush1.msra.mxu0 0.0
      %1172 = vmatprep.subr.mxu0 0.0
      %1173 = vmatpush1.msra.mxu0 0.0
      %1174 = vmatprep.subr.mxu0 0.0
      %1175 = vmatpush1.msra.mxu0 0.0
      %1176 = vmatprep.subr.mxu0 0.0
      %1177 = vmatpush1.msra.mxu0 0.0
      %1178 = vmatprep.subr.mxu0 0.0
      %1179 = vmatpush1.msra.mxu0 0.0
      %1180 = vmatprep.subr.mxu0 0.0
      %1181 = vmatpush1.msra.mxu0 0.0
      %1182 = vmatprep.subr.mxu0 0.0
      %1183 = vmatpush1.msra.mxu0 0.0
      %1184 = vmatprep.subr.mxu0 0.0
      %1185 = vmatpush1.msra.mxu0 0.0
      %1186 = vmatprep.subr.mxu0 0.0
      %1187 = vmatpush1.msra.mxu0 0.0
      %1188 = vmatprep.subr.mxu0 0.0
      %1189 = vmatpush1.msra.mxu0 0.0
      %1190 = vmatprep.subr.mxu0 0.0
      %1191 = vmatpush1.msra.mxu0 0.0
      %1192 = vmatprep.subr.mxu0 0.0
      %1193 = vmatpush1.msra.mxu0 0.0
      %1194 = vmatprep.subr.mxu0 0.0
      %1195 = vmatpush1.msra.mxu0 0.0
      %1196 = vmatprep.subr.mxu0 0.0
      %1197 = vmatpush1.msra.mxu0 0.0
      %1198 = vmatprep.mubr.f32.mxu0 0.0
      %1199 = vmatmul.mubr.f32.gmra.mrb[0].mxu0 %v1062
      %v1200 = vpop.f32.mrb[0].mxu0
      %v1201 = vadd.f32 0.0, %v1200
      %v1202 = vpop.f32.mrb[0].mxu0
      %1203 = vmatprep.mubr.f32.mxu0 0.0
      %1204 = vmatmul.mubr.f32.gmra.mrb[0].mxu0 %v1064
      %v1205 = vpop.f32.mrb[0].mxu0
      %v1206 = vadd.f32 0.0, %v1205
      %v1207 = vpop.f32.mrb[0].mxu0
      %1208 = vmatprep.mubr.f32.mxu0 0.0
      %1209 = vmatmul.mubr.f32.gmra.mrb[0].mxu0 %v1066
      %v1210 = vpop.f32.mrb[0].mxu0
      %v1211 = vadd.f32 0.0, %v1210
      %v1212 = vpop.f32.mrb[0].mxu0
      %1213 = vmatprep.mubr.f32.mxu0 0.0
      %1214 = vmatmul.mubr.f32.gmra.mrb[0].mxu0 %v1068
      %v1215 = vpop.f32.mrb[0].mxu0
      %v1216 = vadd.f32 0.0, %v1215
      %v1217 = vpop.f32.mrb[0].mxu0
      %1218 = vmatprep.mubr.f32.mxu0 0.0
      %1219 = vmatmul.mubr.f32.gmra.mrb[0].mxu0 %v1070
      %v1220 = vpop.f32.mrb[0].mxu0
      %v1221 = vadd.f32 0.0, %v1220
      %v1222 = vpop.f32.mrb[0].mxu0
      %1223 = vmatprep.mubr.f32.mxu0 0.0
      %1224 = vmatmul.mubr.f32.gmra.mrb[0].mxu0 %v1072
      %v1225 = vpop.f32.mrb[0].mxu0
      %v1226 = vadd.f32 0.0, %v1225
      %v1227 = vpop.f32.mrb[0].mxu0
      %1228 = vmatprep.mubr.f32.mxu0 0.0
      %1229 = vmatmul.mubr.f32.gmra.mrb[0].mxu0 %v1074
      %v1230 = vpop.f32.mrb[0].mxu0
      %v1231 = vadd.f32 0.0, %v1230
      %v1232 = vpop.f32.mrb[0].mxu0
      %1233 = vmatprep.mubr.f32.mxu0 0.0
      %1234 = vmatmul.mubr.f32.gmra.mrb[0].mxu0 %v1076
      %v1235 = vpop.f32.mrb[0].mxu0
      %v1236 = vadd.f32 0.0, %v1235
      %v1237 = vpop.f32.mrb[0].mxu0
      %1238 = vmatprep.mubr.f32.mxu0 0.0
      %1239 = vmatmul.mubr.f32.gmra.mrb[0].mxu0 %v1078
      %v1240 = vpop.f32.mrb[0].mxu0
      %v1241 = vadd.f32 0.0, %v1240
      %v1242 = vpop.f32.mrb[0].mxu0
      %1243 = vmatprep.mubr.f32.mxu0 0.0
      %1244 = vmatmul.mubr.f32.gmra.mrb[0].mxu0 %v1080
      %v1245 = vpop.f32.mrb[0].mxu0
      %v1246 = vadd.f32 0.0, %v1245
      %v1247 = vpop.f32.mrb[0].mxu0
      %1248 = vmatprep.mubr.f32.mxu0 0.0
      %1249 = vmatmul.mubr.f32.gmra.mrb[0].mxu0 %v1082
      %v1250 = vpop.f32.mrb[0].mxu0
      %v1251 = vadd.f32 0.0, %v1250
      %v1252 = vpop.f32.mrb[0].mxu0
      %1253 = vmatprep.mubr.f32.mxu0 0.0
      %1254 = vmatmul.mubr.f32.gmra.mrb[0].mxu0 %v1084
      %v1255 = vpop.f32.mrb[0].mxu0
      %v1256 = vadd.f32 0.0, %v1255
      %v1257 = vpop.f32.mrb[0].mxu0
      %1258 = vmatprep.mubr.f32.mxu0 0.0
      %1259 = vmatmul.mubr.f32.gmra.mrb[0].mxu0 %v1086
      %v1260 = vpop.f32.mrb[0].mxu0
      %v1261 = vadd.f32 0.0, %v1260
      %v1262 = vpop.f32.mrb[0].mxu0
      %1263 = vmatprep.mubr.f32.mxu0 0.0
      %1264 = vmatmul.mubr.f32.gmra.mrb[0].mxu0 %v1088
      %v1265 = vpop.f32.mrb[0].mxu0
      %v1266 = vadd.f32 0.0, %v1265
      %v1267 = vpop.f32.mrb[0].mxu0
      %1268 = vmatprep.mubr.f32.mxu0 0.0
      %1269 = vmatmul.mubr.f32.gmra.mrb[0].mxu0 %v1090
      %v1270 = vpop.f32.mrb[0].mxu0
      %v1271 = vadd.f32 0.0, %v1270
      %v1272 = vpop.f32.mrb[0].mxu0
      %1273 = vmatprep.mubr.f32.mxu0 0.0
      %1274 = vmatmul.mubr.f32.gmra.mrb[0].mxu0 %v1092
      %v1275 = vpop.f32.mrb[0].mxu0
      %v1276 = vadd.f32 0.0, %v1275
      %v1277 = vpop.f32.mrb[0].mxu0
      %1278 = vmatprep.mubr.f32.mxu0 0.0
      %1279 = vmatmul.mubr.f32.gmra.mrb[0].mxu0 %v1094
      %v1280 = vpop.f32.mrb[0].mxu0
      %v1281 = vadd.f32 0.0, %v1280
      %v1282 = vpop.f32.mrb[0].mxu0
      %1283 = vmatprep.mubr.f32.mxu0 0.0
      %1284 = vmatmul.mubr.f32.gmra.mrb[0].mxu0 %v1096
      %v1285 = vpop.f32.mrb[0].mxu0
      %v1286 = vadd.f32 0.0, %v1285
      %v1287 = vpop.f32.mrb[0].mxu0
      %1288 = vmatprep.mubr.f32.mxu0 0.0
      %1289 = vmatmul.mubr.f32.gmra.mrb[0].mxu0 %v1098
      %v1290 = vpop.f32.mrb[0].mxu0
      %v1291 = vadd.f32 0.0, %v1290
      %v1292 = vpop.f32.mrb[0].mxu0
      %1293 = vmatprep.mubr.f32.mxu0 0.0
      %1294 = vmatmul.mubr.f32.gmra.mrb[0].mxu0 %v1100
      %v1295 = vpop.f32.mrb[0].mxu0
      %v1296 = vadd.f32 0.0, %v1295
      %v1297 = vpop.f32.mrb[0].mxu0
      %1298 = vmatprep.mubr.f32.mxu0 0.0
      %1299 = vmatmul.mubr.f32.gmra.mrb[0].mxu0 %v1102
      %v1300 = vpop.f32.mrb[0].mxu0
      %v1301 = vadd.f32 0.0, %v1300
      %v1302 = vpop.f32.mrb[0].mxu0
      %1303 = vmatprep.mubr.f32.mxu0 0.0
      %1304 = vmatmul.mubr.f32.gmra.mrb[0].mxu0 %v1104
      %v1305 = vpop.f32.mrb[0].mxu0
      %v1306 = vadd.f32 0.0, %v1305
      %v1307 = vpop.f32.mrb[0].mxu0
      %1308 = vmatprep.mubr.f32.mxu0 0.0
      %1309 = vmatmul.mubr.f32.gmra.mrb[0].mxu0 %v1106
      %v1310 = vpop.f32.mrb[0].mxu0
      %v1311 = vadd.f32 0.0, %v1310
      %v1312 = vpop.f32.mrb[0].mxu0
      %1313 = vmatprep.mubr.f32.mxu0 0.0
      %1314 = vmatmul.mubr.f32.gmra.mrb[0].mxu0 %v1108
      %v1315 = vpop.f32.mrb[0].mxu0
      %v1316 = vadd.f32 0.0, %v1315
      %v1317 = vpop.f32.mrb[0].mxu0
      %1318 = vmatprep.mubr.f32.mxu0 0.0
      %1319 = vmatmul.mubr.f32.gmra.mrb[0].mxu0 %v1110
      %v1320 = vpop.f32.mrb[0].mxu0
      %v1321 = vadd.f32 0.0, %v1320
      %v1322 = vpop.f32.mrb[0].mxu0
      %1323 = vmatprep.mubr.f32.mxu0 0.0
      %1324 = vmatmul.mubr.f32.gmra.mrb[0].mxu0 %v1112
      %v1325 = vpop.f32.mrb[0].mxu0
      %v1326 = vadd.f32 0.0, %v1325
      %v1327 = vpop.f32.mrb[0].mxu0
      %1328 = vmatprep.mubr.f32.mxu0 0.0
      %1329 = vmatmul.mubr.f32.gmra.mrb[0].mxu0 %v1114
      %v1330 = vpop.f32.mrb[0].mxu0
      %v1331 = vadd.f32 0.0, %v1330
      %v1332 = vpop.f32.mrb[0].mxu0
      %1333 = vmatprep.mubr.f32.mxu0 0.0
      %1334 = vmatmul.mubr.f32.gmra.mrb[0].mxu0 %v1116
      %v1335 = vpop.f32.mrb[0].mxu0
      %v1336 = vadd.f32 0.0, %v1335
      %v1337 = vpop.f32.mrb[0].mxu0
      %1338 = vmatprep.mubr.f32.mxu0 0.0
      %1339 = vmatmul.mubr.f32.gmra.mrb[0].mxu0 %v1118
      %v1340 = vpop.f32.mrb[0].mxu0
      %v1341 = vadd.f32 0.0, %v1340
      %v1342 = vpop.f32.mrb[0].mxu0
      %1343 = vmatprep.mubr.f32.mxu0 0.0
      %1344 = vmatmul.mubr.f32.gmra.mrb[0].mxu0 %v1120
      %v1345 = vpop.f32.mrb[0].mxu0
      %v1346 = vadd.f32 0.0, %v1345
      %v1347 = vpop.f32.mrb[0].mxu0
      %1348 = vmatprep.mubr.f32.mxu0 0.0
      %1349 = vmatmul.mubr.f32.gmra.mrb[0].mxu0 %v1122
      %v1350 = vpop.f32.mrb[0].mxu0
      %v1351 = vadd.f32 0.0, %v1350
      %v1352 = vpop.f32.mrb[0].mxu0
      %1353 = vmatprep.mubr.f32.mxu0 0.0
      %1354 = vmatmul.mubr.f32.gmra.mrb[0].mxu0 %v1124
      %v1355 = vpop.f32.mrb[0].mxu0
      %v1356 = vadd.f32 0.0, %v1355
      %v1357 = vpop.f32.mrb[0].mxu0
      %1358 = vmatprep.mubr.f32.mxu0 0.0
      %1359 = vmatmul.mubr.f32.gmra.mrb[0].mxu0 %v1126
      %v1360 = vpop.f32.mrb[0].mxu0
      %v1361 = vadd.f32 0.0, %v1360
      %v1362 = vpop.f32.mrb[0].mxu0
      %1363 = vmatprep.mubr.f32.mxu0 0.0
      %1364 = vmatmul.mubr.f32.gmra.mrb[0].mxu0 %v1128
      %v1365 = vpop.f32.mrb[0].mxu0
      %v1366 = vadd.f32 0.0, %v1365
      %v1367 = vpop.f32.mrb[0].mxu0
      %1368 = vmatprep.mubr.f32.mxu0 0.0
      %1369 = vmatmul.mubr.f32.gmra.mrb[0].mxu0 %v1130
      %v1370 = vpop.f32.mrb[0].mxu0
      %v1371 = vadd.f32 0.0, %v1370
      %v1372 = vpop.f32.mrb[0].mxu0
      %1373 = vmatprep.mubr.f32.mxu0 0.0
      %1374 = vmatmul.mubr.f32.gmra.mrb[0].mxu0 %v1132
      %v1375 = vpop.f32.mrb[0].mxu0
      %v1376 = vadd.f32 0.0, %v1375
      %v1377 = vpop.f32.mrb[0].mxu0
      %1378 = vdwg.mxu0
      %v1379 = vadd.f32 %v808, %v1201
      %v1380 = vadd.f32 %v813, %v1206
      %v1381 = vadd.f32 %v818, %v1211
      %v1382 = vadd.f32 %v823, %v1216
      %v1383 = vadd.f32 %v828, %v1221
      %v1384 = vadd.f32 %v833, %v1226
      %v1385 = vadd.f32 %v838, %v1231
      %v1386 = vadd.f32 %v843, %v1236
      %v1387 = vadd.f32 %v848, %v1241
      %v1388 = vadd.f32 %v853, %v1246
      %v1389 = vadd.f32 %v858, %v1251
      %v1390 = vadd.f32 %v863, %v1256
      %v1391 = vadd.f32 %v868, %v1261
      %v1392 = vadd.f32 %v873, %v1266
      %v1393 = vadd.f32 %v878, %v1271
      %v1394 = vadd.f32 %v883, %v1276
      %v1395 = vadd.f32 %v888, %v1281
      %v1396 = vadd.f32 %v893, %v1286
      %v1397 = vadd.f32 %v898, %v1291
      %v1398 = vadd.f32 %v903, %v1296
      %v1399 = vadd.f32 %v908, %v1301
      %v1400 = vadd.f32 %v913, %v1306
      %v1401 = vadd.f32 %v918, %v1311
      %v1402 = vadd.f32 %v923, %v1316
      %v1403 = vadd.f32 %v928, %v1321
      %v1404 = vadd.f32 %v933, %v1326
      %v1405 = vadd.f32 %v938, %v1331
      %v1406 = vadd.f32 %v943, %v1336
      %v1407 = vadd.f32 %v948, %v1341
      %v1408 = vadd.f32 %v953, %v1346
      %v1409 = vadd.f32 %v958, %v1351
      %v1410 = vadd.f32 %v963, %v1356
      %v1411 = vadd.f32 %v968, %v1361
      %v1412 = vadd.f32 %v973, %v1366
      %v1413 = vadd.f32 %v978, %v1371
      %v1414 = vadd.f32 %v983, %v1376
      %s1415 = scalar_lea.vmem %s1, 24
      %v1416 = vld [vmem:[%s1415] sm:$0xff]
      %v1419 = vrot.slane %v233, 2
      %v1420 = vsel %vm988, %v1060, %v1419
      %v1421 = vrot.slane %v234, 2
      %v1422 = vsel %vm988, %v1419, %v1421
      %v1423 = vsel %vm351, %v1420, 0
      %v1425 = vsel %vm351, %v1422, 0
      %1427 = vmatprep.subr.mxu0 0.0
      %1428 = vmatpush1.msra.mxu0 %v1416
      %1429 = vmatprep.subr.mxu0 0.0
      %1430 = vmatpush1.msra.mxu0 0.0
      %1431 = vmatprep.subr.mxu0 0.0
      %1432 = vmatpush1.msra.mxu0 0.0
      %1433 = vmatprep.subr.mxu0 0.0
      %1434 = vmatpush1.msra.mxu0 0.0
      %1435 = vmatprep.subr.mxu0 0.0
      %1436 = vmatpush1.msra.mxu0 0.0
      %1437 = vmatprep.subr.mxu0 0.0
      %1438 = vmatpush1.msra.mxu0 0.0
      %1439 = vmatprep.subr.mxu0 0.0
      %1440 = vmatpush1.msra.mxu0 0.0
      %1441 = vmatprep.subr.mxu0 0.0
      %1442 = vmatpush1.msra.mxu0 0.0
      %1443 = vmatprep.subr.mxu0 0.0
      %1444 = vmatpush1.msra.mxu0 0.0
      %1445 = vmatprep.subr.mxu0 0.0
      %1446 = vmatpush1.msra.mxu0 0.0
      %1447 = vmatprep.subr.mxu0 0.0
      %1448 = vmatpush1.msra.mxu0 0.0
      %1449 = vmatprep.subr.mxu0 0.0
      %1450 = vmatpush1.msra.mxu0 0.0
      %1451 = vmatprep.subr.mxu0 0.0
      %1452 = vmatpush1.msra.mxu0 0.0
      %1453 = vmatprep.subr.mxu0 0.0
      %1454 = vmatpush1.msra.mxu0 0.0
      %1455 = vmatprep.subr.mxu0 0.0
      %1456 = vmatpush1.msra.mxu0 0.0
      %1457 = vmatprep.subr.mxu0 0.0
      %1458 = vmatpush1.msra.mxu0 0.0
      %1459 = vmatprep.subr.mxu0 0.0
      %1460 = vmatpush1.msra.mxu0 0.0
      %1461 = vmatprep.subr.mxu0 0.0
      %1462 = vmatpush1.msra.mxu0 0.0
      %1463 = vmatprep.subr.mxu0 0.0
      %1464 = vmatpush1.msra.mxu0 0.0
      %1465 = vmatprep.subr.mxu0 0.0
      %1466 = vmatpush1.msra.mxu0 0.0
      %1467 = vmatprep.subr.mxu0 0.0
      %1468 = vmatpush1.msra.mxu0 0.0
      %1469 = vmatprep.subr.mxu0 0.0
      %1470 = vmatpush1.msra.mxu0 0.0
      %1471 = vmatprep.subr.mxu0 0.0
      %1472 = vmatpush1.msra.mxu0 0.0
      %1473 = vmatprep.subr.mxu0 0.0
      %1474 = vmatpush1.msra.mxu0 0.0
      %1475 = vmatprep.subr.mxu0 0.0
      %1476 = vmatpush1.msra.mxu0 0.0
      %1477 = vmatprep.subr.mxu0 0.0
      %1478 = vmatpush1.msra.mxu0 0.0
      %1479 = vmatprep.subr.mxu0 0.0
      %1480 = vmatpush1.msra.mxu0 0.0
      %1481 = vmatprep.subr.mxu0 0.0
      %1482 = vmatpush1.msra.mxu0 0.0
      %1483 = vmatprep.subr.mxu0 0.0
      %1484 = vmatpush1.msra.mxu0 0.0
      %1485 = vmatprep.subr.mxu0 0.0
      %1486 = vmatpush1.msra.mxu0 0.0
      %1487 = vmatprep.subr.mxu0 0.0
      %1488 = vmatpush1.msra.mxu0 0.0
      %1489 = vmatprep.subr.mxu0 0.0
      %1490 = vmatpush1.msra.mxu0 0.0
      %1491 = vmatprep.mubr.f32.mxu0 0.0
      %1492 = vmatmul.mubr.f32.gmra.mrb[0].mxu0 %v1066
      %v1493 = vpop.f32.mrb[0].mxu0
      %v1494 = vadd.f32 0.0, %v1493
      %v1495 = vpop.f32.mrb[0].mxu0
      %1496 = vmatprep.mubr.f32.mxu0 0.0
      %1497 = vmatmul.mubr.f32.gmra.mrb[0].mxu0 %v1068
      %v1498 = vpop.f32.mrb[0].mxu0
      %v1499 = vadd.f32 0.0, %v1498
      %v1500 = vpop.f32.mrb[0].mxu0
      %1501 = vmatprep.mubr.f32.mxu0 0.0
      %1502 = vmatmul.mubr.f32.gmra.mrb[0].mxu0 %v1070
      %v1503 = vpop.f32.mrb[0].mxu0
      %v1504 = vadd.f32 0.0, %v1503
      %v1505 = vpop.f32.mrb[0].mxu0
      %1506 = vmatprep.mubr.f32.mxu0 0.0
      %1507 = vmatmul.mubr.f32.gmra.mrb[0].mxu0 %v1072
      %v1508 = vpop.f32.mrb[0].mxu0
      %v1509 = vadd.f32 0.0, %v1508
      %v1510 = vpop.f32.mrb[0].mxu0
      %1511 = vmatprep.mubr.f32.mxu0 0.0
      %1512 = vmatmul.mubr.f32.gmra.mrb[0].mxu0 %v1074
      %v1513 = vpop.f32.mrb[0].mxu0
      %v1514 = vadd.f32 0.0, %v1513
      %v1515 = vpop.f32.mrb[0].mxu0
      %1516 = vmatprep.mubr.f32.mxu0 0.0
      %1517 = vmatmul.mubr.f32.gmra.mrb[0].mxu0 %v1076
      %v1518 = vpop.f32.mrb[0].mxu0
      %v1519 = vadd.f32 0.0, %v1518
      %v1520 = vpop.f32.mrb[0].mxu0
      %1521 = vmatprep.mubr.f32.mxu0 0.0
      %1522 = vmatmul.mubr.f32.gmra.mrb[0].mxu0 %v1078
      %v1523 = vpop.f32.mrb[0].mxu0
      %v1524 = vadd.f32 0.0, %v1523
      %v1525 = vpop.f32.mrb[0].mxu0
      %1526 = vmatprep.mubr.f32.mxu0 0.0
      %1527 = vmatmul.mubr.f32.gmra.mrb[0].mxu0 %v1080
      %v1528 = vpop.f32.mrb[0].mxu0
      %v1529 = vadd.f32 0.0, %v1528
      %v1530 = vpop.f32.mrb[0].mxu0
      %1531 = vmatprep.mubr.f32.mxu0 0.0
      %1532 = vmatmul.mubr.f32.gmra.mrb[0].mxu0 %v1082
      %v1533 = vpop.f32.mrb[0].mxu0
      %v1534 = vadd.f32 0.0, %v1533
      %v1535 = vpop.f32.mrb[0].mxu0
      %1536 = vmatprep.mubr.f32.mxu0 0.0
      %1537 = vmatmul.mubr.f32.gmra.mrb[0].mxu0 %v1084
      %v1538 = vpop.f32.mrb[0].mxu0
      %v1539 = vadd.f32 0.0, %v1538
      %v1540 = vpop.f32.mrb[0].mxu0
      %1541 = vmatprep.mubr.f32.mxu0 0.0
      %1542 = vmatmul.mubr.f32.gmra.mrb[0].mxu0 %v1086
      %v1543 = vpop.f32.mrb[0].mxu0
      %v1544 = vadd.f32 0.0, %v1543
      %v1545 = vpop.f32.mrb[0].mxu0
      %1546 = vmatprep.mubr.f32.mxu0 0.0
      %1547 = vmatmul.mubr.f32.gmra.mrb[0].mxu0 %v1088
      %v1548 = vpop.f32.mrb[0].mxu0
      %v1549 = vadd.f32 0.0, %v1548
      %v1550 = vpop.f32.mrb[0].mxu0
      %1551 = vmatprep.mubr.f32.mxu0 0.0
      %1552 = vmatmul.mubr.f32.gmra.mrb[0].mxu0 %v1090
      %v1553 = vpop.f32.mrb[0].mxu0
      %v1554 = vadd.f32 0.0, %v1553
      %v1555 = vpop.f32.mrb[0].mxu0
      %1556 = vmatprep.mubr.f32.mxu0 0.0
      %1557 = vmatmul.mubr.f32.gmra.mrb[0].mxu0 %v1092
      %v1558 = vpop.f32.mrb[0].mxu0
      %v1559 = vadd.f32 0.0, %v1558
      %v1560 = vpop.f32.mrb[0].mxu0
      %1561 = vmatprep.mubr.f32.mxu0 0.0
      %1562 = vmatmul.mubr.f32.gmra.mrb[0].mxu0 %v1094
      %v1563 = vpop.f32.mrb[0].mxu0
      %v1564 = vadd.f32 0.0, %v1563
      %v1565 = vpop.f32.mrb[0].mxu0
      %1566 = vmatprep.mubr.f32.mxu0 0.0
      %1567 = vmatmul.mubr.f32.gmra.mrb[0].mxu0 %v1096
      %v1568 = vpop.f32.mrb[0].mxu0
      %v1569 = vadd.f32 0.0, %v1568
      %v1570 = vpop.f32.mrb[0].mxu0
      %1571 = vmatprep.mubr.f32.mxu0 0.0
      %1572 = vmatmul.mubr.f32.gmra.mrb[0].mxu0 %v1098
      %v1573 = vpop.f32.mrb[0].mxu0
      %v1574 = vadd.f32 0.0, %v1573
      %v1575 = vpop.f32.mrb[0].mxu0
      %1576 = vmatprep.mubr.f32.mxu0 0.0
      %1577 = vmatmul.mubr.f32.gmra.mrb[0].mxu0 %v1100
      %v1578 = vpop.f32.mrb[0].mxu0
      %v1579 = vadd.f32 0.0, %v1578
      %v1580 = vpop.f32.mrb[0].mxu0
      %1581 = vmatprep.mubr.f32.mxu0 0.0
      %1582 = vmatmul.mubr.f32.gmra.mrb[0].mxu0 %v1102
      %v1583 = vpop.f32.mrb[0].mxu0
      %v1584 = vadd.f32 0.0, %v1583
      %v1585 = vpop.f32.mrb[0].mxu0
      %1586 = vmatprep.mubr.f32.mxu0 0.0
      %1587 = vmatmul.mubr.f32.gmra.mrb[0].mxu0 %v1104
      %v1588 = vpop.f32.mrb[0].mxu0
      %v1589 = vadd.f32 0.0, %v1588
      %v1590 = vpop.f32.mrb[0].mxu0
      %1591 = vmatprep.mubr.f32.mxu0 0.0
      %1592 = vmatmul.mubr.f32.gmra.mrb[0].mxu0 %v1106
      %v1593 = vpop.f32.mrb[0].mxu0
      %v1594 = vadd.f32 0.0, %v1593
      %v1595 = vpop.f32.mrb[0].mxu0
      %1596 = vmatprep.mubr.f32.mxu0 0.0
      %1597 = vmatmul.mubr.f32.gmra.mrb[0].mxu0 %v1108
      %v1598 = vpop.f32.mrb[0].mxu0
      %v1599 = vadd.f32 0.0, %v1598
      %v1600 = vpop.f32.mrb[0].mxu0
      %1601 = vmatprep.mubr.f32.mxu0 0.0
      %1602 = vmatmul.mubr.f32.gmra.mrb[0].mxu0 %v1110
      %v1603 = vpop.f32.mrb[0].mxu0
      %v1604 = vadd.f32 0.0, %v1603
      %v1605 = vpop.f32.mrb[0].mxu0
      %1606 = vmatprep.mubr.f32.mxu0 0.0
      %1607 = vmatmul.mubr.f32.gmra.mrb[0].mxu0 %v1112
      %v1608 = vpop.f32.mrb[0].mxu0
      %v1609 = vadd.f32 0.0, %v1608
      %v1610 = vpop.f32.mrb[0].mxu0
      %1611 = vmatprep.mubr.f32.mxu0 0.0
      %1612 = vmatmul.mubr.f32.gmra.mrb[0].mxu0 %v1114
      %v1613 = vpop.f32.mrb[0].mxu0
      %v1614 = vadd.f32 0.0, %v1613
      %v1615 = vpop.f32.mrb[0].mxu0
      %1616 = vmatprep.mubr.f32.mxu0 0.0
      %1617 = vmatmul.mubr.f32.gmra.mrb[0].mxu0 %v1116
      %v1618 = vpop.f32.mrb[0].mxu0
      %v1619 = vadd.f32 0.0, %v1618
      %v1620 = vpop.f32.mrb[0].mxu0
      %1621 = vmatprep.mubr.f32.mxu0 0.0
      %1622 = vmatmul.mubr.f32.gmra.mrb[0].mxu0 %v1118
      %v1623 = vpop.f32.mrb[0].mxu0
      %v1624 = vadd.f32 0.0, %v1623
      %v1625 = vpop.f32.mrb[0].mxu0
      %1626 = vmatprep.mubr.f32.mxu0 0.0
      %1627 = vmatmul.mubr.f32.gmra.mrb[0].mxu0 %v1120
      %v1628 = vpop.f32.mrb[0].mxu0
      %v1629 = vadd.f32 0.0, %v1628
      %v1630 = vpop.f32.mrb[0].mxu0
      %1631 = vmatprep.mubr.f32.mxu0 0.0
      %1632 = vmatmul.mubr.f32.gmra.mrb[0].mxu0 %v1122
      %v1633 = vpop.f32.mrb[0].mxu0
      %v1634 = vadd.f32 0.0, %v1633
      %v1635 = vpop.f32.mrb[0].mxu0
      %1636 = vmatprep.mubr.f32.mxu0 0.0
      %1637 = vmatmul.mubr.f32.gmra.mrb[0].mxu0 %v1124
      %v1638 = vpop.f32.mrb[0].mxu0
      %v1639 = vadd.f32 0.0, %v1638
      %v1640 = vpop.f32.mrb[0].mxu0
      %1641 = vmatprep.mubr.f32.mxu0 0.0
      %1642 = vmatmul.mubr.f32.gmra.mrb[0].mxu0 %v1126
      %v1643 = vpop.f32.mrb[0].mxu0
      %v1644 = vadd.f32 0.0, %v1643
      %v1645 = vpop.f32.mrb[0].mxu0
      %1646 = vmatprep.mubr.f32.mxu0 0.0
      %1647 = vmatmul.mubr.f32.gmra.mrb[0].mxu0 %v1128
      %v1648 = vpop.f32.mrb[0].mxu0
      %v1649 = vadd.f32 0.0, %v1648
      %v1650 = vpop.f32.mrb[0].mxu0
      %1651 = vmatprep.mubr.f32.mxu0 0.0
      %1652 = vmatmul.mubr.f32.gmra.mrb[0].mxu0 %v1130
      %v1653 = vpop.f32.mrb[0].mxu0
      %v1654 = vadd.f32 0.0, %v1653
      %v1655 = vpop.f32.mrb[0].mxu0
      %1656 = vmatprep.mubr.f32.mxu0 0.0
      %1657 = vmatmul.mubr.f32.gmra.mrb[0].mxu0 %v1132
      %v1658 = vpop.f32.mrb[0].mxu0
      %v1659 = vadd.f32 0.0, %v1658
      %v1660 = vpop.f32.mrb[0].mxu0
      %1661 = vmatprep.mubr.f32.mxu0 0.0
      %1662 = vmatmul.mubr.f32.gmra.mrb[0].mxu0 %v1423
      %v1663 = vpop.f32.mrb[0].mxu0
      %v1664 = vadd.f32 0.0, %v1663
      %v1665 = vpop.f32.mrb[0].mxu0
      %1666 = vmatprep.mubr.f32.mxu0 0.0
      %1667 = vmatmul.mubr.f32.gmra.mrb[0].mxu0 %v1425
      %v1668 = vpop.f32.mrb[0].mxu0
      %v1669 = vadd.f32 0.0, %v1668
      %v1670 = vpop.f32.mrb[0].mxu0
      %1671 = vdwg.mxu0
      %v1672 = vadd.f32 %v1379, %v1494
      %v1673 = vadd.f32 %v1380, %v1499
      %v1674 = vadd.f32 %v1381, %v1504
      %v1675 = vadd.f32 %v1382, %v1509
      %v1676 = vadd.f32 %v1383, %v1514
      %v1677 = vadd.f32 %v1384, %v1519
      %v1678 = vadd.f32 %v1385, %v1524
      %v1679 = vadd.f32 %v1386, %v1529
      %v1680 = vadd.f32 %v1387, %v1534
      %v1681 = vadd.f32 %v1388, %v1539
      %v1682 = vadd.f32 %v1389, %v1544
      %v1683 = vadd.f32 %v1390, %v1549
      %v1684 = vadd.f32 %v1391, %v1554
      %v1685 = vadd.f32 %v1392, %v1559
      %v1686 = vadd.f32 %v1393, %v1564
      %v1687 = vadd.f32 %v1394, %v1569
      %v1688 = vadd.f32 %v1395, %v1574
      %v1689 = vadd.f32 %v1396, %v1579
      %v1690 = vadd.f32 %v1397, %v1584
      %v1691 = vadd.f32 %v1398, %v1589
      %v1692 = vadd.f32 %v1399, %v1594
      %v1693 = vadd.f32 %v1400, %v1599
      %v1694 = vadd.f32 %v1401, %v1604
      %v1695 = vadd.f32 %v1402, %v1609
      %v1696 = vadd.f32 %v1403, %v1614
      %v1697 = vadd.f32 %v1404, %v1619
      %v1698 = vadd.f32 %v1405, %v1624
      %v1699 = vadd.f32 %v1406, %v1629
      %v1700 = vadd.f32 %v1407, %v1634
      %v1701 = vadd.f32 %v1408, %v1639
      %v1702 = vadd.f32 %v1409, %v1644
      %v1703 = vadd.f32 %v1410, %v1649
      %v1704 = vadd.f32 %v1411, %v1654
      %v1705 = vadd.f32 %v1412, %v1659
      %v1706 = vadd.f32 %v1413, %v1664
      %v1707 = vadd.f32 %v1414, %v1669
      %s1708 = scalar_lea.vmem %s1, 32
      %v1709 = vld [vmem:[%s1708] sm:$0xff]
      %vm1710 = vcmask 1044480
      %v1711 = vrot.slane %v198, 3
      %v1712 = vrot.slane %v199, 3
      %v1713 = vsel %vm1710, %v1711, %v1712
      %v1714 = vrot.slane %v200, 3
      %v1715 = vsel %vm1710, %v1712, %v1714
      %v1716 = vrot.slane %v201, 3
      %v1717 = vsel %vm1710, %v1714, %v1716
      %v1718 = vrot.slane %v202, 3
      %v1719 = vsel %vm1710, %v1716, %v1718
      %v1720 = vrot.slane %v203, 3
      %v1721 = vsel %vm1710, %v1718, %v1720
      %v1722 = vrot.slane %v204, 3
      %v1723 = vsel %vm1710, %v1720, %v1722
      %v1724 = vrot.slane %v205, 3
      %v1725 = vsel %vm1710, %v1722, %v1724
      %v1726 = vrot.slane %v206, 3
      %v1727 = vsel %vm1710, %v1724, %v1726
      %v1728 = vrot.slane %v207, 3
      %v1729 = vsel %vm1710, %v1726, %v1728
      %v1730 = vrot.slane %v208, 3
      %v1731 = vsel %vm1710, %v1728, %v1730
      %v1732 = vrot.slane %v209, 3
      %v1733 = vsel %vm1710, %v1730, %v1732
      %v1734 = vrot.slane %v210, 3
      %v1735 = vsel %vm1710, %v1732, %v1734
      %v1736 = vrot.slane %v211, 3
      %v1737 = vsel %vm1710, %v1734, %v1736
      %v1738 = vrot.slane %v212, 3
      %v1739 = vsel %vm1710, %v1736, %v1738
      %v1740 = vrot.slane %v213, 3
      %v1741 = vsel %vm1710, %v1738, %v1740
      %v1742 = vrot.slane %v214, 3
      %v1743 = vsel %vm1710, %v1740, %v1742
      %v1744 = vrot.slane %v215, 3
      %v1745 = vsel %vm1710, %v1742, %v1744
      %v1746 = vrot.slane %v216, 3
      %v1747 = vsel %vm1710, %v1744, %v1746
      %v1748 = vrot.slane %v217, 3
      %v1749 = vsel %vm1710, %v1746, %v1748
      %v1750 = vrot.slane %v218, 3
      %v1751 = vsel %vm1710, %v1748, %v1750
      %v1752 = vrot.slane %v219, 3
      %v1753 = vsel %vm1710, %v1750, %v1752
      %v1754 = vrot.slane %v220, 3
      %v1755 = vsel %vm1710, %v1752, %v1754
      %v1756 = vrot.slane %v221, 3
      %v1757 = vsel %vm1710, %v1754, %v1756
      %v1758 = vrot.slane %v222, 3
      %v1759 = vsel %vm1710, %v1756, %v1758
      %v1760 = vrot.slane %v223, 3
      %v1761 = vsel %vm1710, %v1758, %v1760
      %v1762 = vrot.slane %v224, 3
      %v1763 = vsel %vm1710, %v1760, %v1762
      %v1764 = vrot.slane %v225, 3
      %v1765 = vsel %vm1710, %v1762, %v1764
      %v1766 = vrot.slane %v226, 3
      %v1767 = vsel %vm1710, %v1764, %v1766
      %v1768 = vrot.slane %v227, 3
      %v1769 = vsel %vm1710, %v1766, %v1768
      %v1770 = vrot.slane %v228, 3
      %v1771 = vsel %vm1710, %v1768, %v1770
      %v1772 = vrot.slane %v229, 3
      %v1773 = vsel %vm1710, %v1770, %v1772
      %v1774 = vrot.slane %v230, 3
      %v1775 = vsel %vm1710, %v1772, %v1774
      %v1776 = vrot.slane %v231, 3
      %v1777 = vsel %vm1710, %v1774, %v1776
      %v1778 = vrot.slane %v232, 3
      %v1779 = vsel %vm1710, %v1776, %v1778
      %v1780 = vrot.slane %v233, 3
      %v1781 = vsel %vm1710, %v1778, %v1780
      %v1782 = vrot.slane %v234, 3
      %v1783 = vsel %vm1710, %v1780, %v1782
      %v1784 = vsel %vm351, %v1713, 0
      %v1786 = vsel %vm351, %v1715, 0
      %v1788 = vsel %vm351, %v1717, 0
      %v1790 = vsel %vm351, %v1719, 0
      %v1792 = vsel %vm351, %v1721, 0
      %v1794 = vsel %vm351, %v1723, 0
      %v1796 = vsel %vm351, %v1725, 0
      %v1798 = vsel %vm351, %v1727, 0
      %v1800 = vsel %vm351, %v1729, 0
      %v1802 = vsel %vm351, %v1731, 0
      %v1804 = vsel %vm351, %v1733, 0
      %v1806 = vsel %vm351, %v1735, 0
      %v1808 = vsel %vm351, %v1737, 0
      %v1810 = vsel %vm351, %v1739, 0
      %v1812 = vsel %vm351, %v1741, 0
      %v1814 = vsel %vm351, %v1743, 0
      %v1816 = vsel %vm351, %v1745, 0
      %v1818 = vsel %vm351, %v1747, 0
      %v1820 = vsel %vm351, %v1749, 0
      %v1822 = vsel %vm351, %v1751, 0
      %v1824 = vsel %vm351, %v1753, 0
      %v1826 = vsel %vm351, %v1755, 0
      %v1828 = vsel %vm351, %v1757, 0
      %v1830 = vsel %vm351, %v1759, 0
      %v1832 = vsel %vm351, %v1761, 0
      %v1834 = vsel %vm351, %v1763, 0
      %v1836 = vsel %vm351, %v1765, 0
      %v1838 = vsel %vm351, %v1767, 0
      %v1840 = vsel %vm351, %v1769, 0
      %v1842 = vsel %vm351, %v1771, 0
      %v1844 = vsel %vm351, %v1773, 0
      %v1846 = vsel %vm351, %v1775, 0
      %v1848 = vsel %vm351, %v1777, 0
      %v1850 = vsel %vm351, %v1779, 0
      %v1852 = vsel %vm351, %v1781, 0
      %v1854 = vsel %vm351, %v1783, 0
      %1856 = vmatprep.subr.mxu0 0.0
      %1857 = vmatpush1.msra.mxu0 %v1709
      %1858 = vmatprep.subr.mxu0 0.0
      %1859 = vmatpush1.msra.mxu0 0.0
      %1860 = vmatprep.subr.mxu0 0.0
      %1861 = vmatpush1.msra.mxu0 0.0
      %1862 = vmatprep.subr.mxu0 0.0
      %1863 = vmatpush1.msra.mxu0 0.0
      %1864 = vmatprep.subr.mxu0 0.0
      %1865 = vmatpush1.msra.mxu0 0.0
      %1866 = vmatprep.subr.mxu0 0.0
      %1867 = vmatpush1.msra.mxu0 0.0
      %1868 = vmatprep.subr.mxu0 0.0
      %1869 = vmatpush1.msra.mxu0 0.0
      %1870 = vmatprep.subr.mxu0 0.0
      %1871 = vmatpush1.msra.mxu0 0.0
      %1872 = vmatprep.subr.mxu0 0.0
      %1873 = vmatpush1.msra.mxu0 0.0
      %1874 = vmatprep.subr.mxu0 0.0
      %1875 = vmatpush1.msra.mxu0 0.0
      %1876 = vmatprep.subr.mxu0 0.0
      %1877 = vmatpush1.msra.mxu0 0.0
      %1878 = vmatprep.subr.mxu0 0.0
      %1879 = vmatpush1.msra.mxu0 0.0
      %1880 = vmatprep.subr.mxu0 0.0
      %1881 = vmatpush1.msra.mxu0 0.0
      %1882 = vmatprep.subr.mxu0 0.0
      %1883 = vmatpush1.msra.mxu0 0.0
      %1884 = vmatprep.subr.mxu0 0.0
      %1885 = vmatpush1.msra.mxu0 0.0
      %1886 = vmatprep.subr.mxu0 0.0
      %1887 = vmatpush1.msra.mxu0 0.0
      %1888 = vmatprep.subr.mxu0 0.0
      %1889 = vmatpush1.msra.mxu0 0.0
      %1890 = vmatprep.subr.mxu0 0.0
      %1891 = vmatpush1.msra.mxu0 0.0
      %1892 = vmatprep.subr.mxu0 0.0
      %1893 = vmatpush1.msra.mxu0 0.0
      %1894 = vmatprep.subr.mxu0 0.0
      %1895 = vmatpush1.msra.mxu0 0.0
      %1896 = vmatprep.subr.mxu0 0.0
      %1897 = vmatpush1.msra.mxu0 0.0
      %1898 = vmatprep.subr.mxu0 0.0
      %1899 = vmatpush1.msra.mxu0 0.0
      %1900 = vmatprep.subr.mxu0 0.0
      %1901 = vmatpush1.msra.mxu0 0.0
      %1902 = vmatprep.subr.mxu0 0.0
      %1903 = vmatpush1.msra.mxu0 0.0
      %1904 = vmatprep.subr.mxu0 0.0
      %1905 = vmatpush1.msra.mxu0 0.0
      %1906 = vmatprep.subr.mxu0 0.0
      %1907 = vmatpush1.msra.mxu0 0.0
      %1908 = vmatprep.subr.mxu0 0.0
      %1909 = vmatpush1.msra.mxu0 0.0
      %1910 = vmatprep.subr.mxu0 0.0
      %1911 = vmatpush1.msra.mxu0 0.0
      %1912 = vmatprep.subr.mxu0 0.0
      %1913 = vmatpush1.msra.mxu0 0.0
      %1914 = vmatprep.subr.mxu0 0.0
      %1915 = vmatpush1.msra.mxu0 0.0
      %1916 = vmatprep.subr.mxu0 0.0
      %1917 = vmatpush1.msra.mxu0 0.0
      %1918 = vmatprep.subr.mxu0 0.0
      %1919 = vmatpush1.msra.mxu0 0.0
      %1920 = vmatprep.mubr.f32.mxu0 0.0
      %1921 = vmatmul.mubr.f32.gmra.mrb[0].mxu0 %v1784
      %v1922 = vpop.f32.mrb[0].mxu0
      %v1923 = vadd.f32 0.0, %v1922
      %v1924 = vpop.f32.mrb[0].mxu0
      %1925 = vmatprep.mubr.f32.mxu0 0.0
      %1926 = vmatmul.mubr.f32.gmra.mrb[0].mxu0 %v1786
      %v1927 = vpop.f32.mrb[0].mxu0
      %v1928 = vadd.f32 0.0, %v1927
      %v1929 = vpop.f32.mrb[0].mxu0
      %1930 = vmatprep.mubr.f32.mxu0 0.0
      %1931 = vmatmul.mubr.f32.gmra.mrb[0].mxu0 %v1788
      %v1932 = vpop.f32.mrb[0].mxu0
      %v1933 = vadd.f32 0.0, %v1932
      %v1934 = vpop.f32.mrb[0].mxu0
      %1935 = vmatprep.mubr.f32.mxu0 0.0
      %1936 = vmatmul.mubr.f32.gmra.mrb[0].mxu0 %v1790
      %v1937 = vpop.f32.mrb[0].mxu0
      %v1938 = vadd.f32 0.0, %v1937
      %v1939 = vpop.f32.mrb[0].mxu0
      %1940 = vmatprep.mubr.f32.mxu0 0.0
      %1941 = vmatmul.mubr.f32.gmra.mrb[0].mxu0 %v1792
      %v1942 = vpop.f32.mrb[0].mxu0
      %v1943 = vadd.f32 0.0, %v1942
      %v1944 = vpop.f32.mrb[0].mxu0
      %1945 = vmatprep.mubr.f32.mxu0 0.0
      %1946 = vmatmul.mubr.f32.gmra.mrb[0].mxu0 %v1794
      %v1947 = vpop.f32.mrb[0].mxu0
      %v1948 = vadd.f32 0.0, %v1947
      %v1949 = vpop.f32.mrb[0].mxu0
      %1950 = vmatprep.mubr.f32.mxu0 0.0
      %1951 = vmatmul.mubr.f32.gmra.mrb[0].mxu0 %v1796
      %v1952 = vpop.f32.mrb[0].mxu0
      %v1953 = vadd.f32 0.0, %v1952
      %v1954 = vpop.f32.mrb[0].mxu0
      %1955 = vmatprep.mubr.f32.mxu0 0.0
      %1956 = vmatmul.mubr.f32.gmra.mrb[0].mxu0 %v1798
      %v1957 = vpop.f32.mrb[0].mxu0
      %v1958 = vadd.f32 0.0, %v1957
      %v1959 = vpop.f32.mrb[0].mxu0
      %1960 = vmatprep.mubr.f32.mxu0 0.0
      %1961 = vmatmul.mubr.f32.gmra.mrb[0].mxu0 %v1800
      %v1962 = vpop.f32.mrb[0].mxu0
      %v1963 = vadd.f32 0.0, %v1962
      %v1964 = vpop.f32.mrb[0].mxu0
      %1965 = vmatprep.mubr.f32.mxu0 0.0
      %1966 = vmatmul.mubr.f32.gmra.mrb[0].mxu0 %v1802
      %v1967 = vpop.f32.mrb[0].mxu0
      %v1968 = vadd.f32 0.0, %v1967
      %v1969 = vpop.f32.mrb[0].mxu0
      %1970 = vmatprep.mubr.f32.mxu0 0.0
      %1971 = vmatmul.mubr.f32.gmra.mrb[0].mxu0 %v1804
      %v1972 = vpop.f32.mrb[0].mxu0
      %v1973 = vadd.f32 0.0, %v1972
      %v1974 = vpop.f32.mrb[0].mxu0
      %1975 = vmatprep.mubr.f32.mxu0 0.0
      %1976 = vmatmul.mubr.f32.gmra.mrb[0].mxu0 %v1806
      %v1977 = vpop.f32.mrb[0].mxu0
      %v1978 = vadd.f32 0.0, %v1977
      %v1979 = vpop.f32.mrb[0].mxu0
      %1980 = vmatprep.mubr.f32.mxu0 0.0
      %1981 = vmatmul.mubr.f32.gmra.mrb[0].mxu0 %v1808
      %v1982 = vpop.f32.mrb[0].mxu0
      %v1983 = vadd.f32 0.0, %v1982
      %v1984 = vpop.f32.mrb[0].mxu0
      %1985 = vmatprep.mubr.f32.mxu0 0.0
      %1986 = vmatmul.mubr.f32.gmra.mrb[0].mxu0 %v1810
      %v1987 = vpop.f32.mrb[0].mxu0
      %v1988 = vadd.f32 0.0, %v1987
      %v1989 = vpop.f32.mrb[0].mxu0
      %1990 = vmatprep.mubr.f32.mxu0 0.0
      %1991 = vmatmul.mubr.f32.gmra.mrb[0].mxu0 %v1812
      %v1992 = vpop.f32.mrb[0].mxu0
      %v1993 = vadd.f32 0.0, %v1992
      %v1994 = vpop.f32.mrb[0].mxu0
      %1995 = vmatprep.mubr.f32.mxu0 0.0
      %1996 = vmatmul.mubr.f32.gmra.mrb[0].mxu0 %v1814
      %v1997 = vpop.f32.mrb[0].mxu0
      %v1998 = vadd.f32 0.0, %v1997
      %v1999 = vpop.f32.mrb[0].mxu0
      %2000 = vmatprep.mubr.f32.mxu0 0.0
      %2001 = vmatmul.mubr.f32.gmra.mrb[0].mxu0 %v1816
      %v2002 = vpop.f32.mrb[0].mxu0
      %v2003 = vadd.f32 0.0, %v2002
      %v2004 = vpop.f32.mrb[0].mxu0
      %2005 = vmatprep.mubr.f32.mxu0 0.0
      %2006 = vmatmul.mubr.f32.gmra.mrb[0].mxu0 %v1818
      %v2007 = vpop.f32.mrb[0].mxu0
      %v2008 = vadd.f32 0.0, %v2007
      %v2009 = vpop.f32.mrb[0].mxu0
      %2010 = vmatprep.mubr.f32.mxu0 0.0
      %2011 = vmatmul.mubr.f32.gmra.mrb[0].mxu0 %v1820
      %v2012 = vpop.f32.mrb[0].mxu0
      %v2013 = vadd.f32 0.0, %v2012
      %v2014 = vpop.f32.mrb[0].mxu0
      %2015 = vmatprep.mubr.f32.mxu0 0.0
      %2016 = vmatmul.mubr.f32.gmra.mrb[0].mxu0 %v1822
      %v2017 = vpop.f32.mrb[0].mxu0
      %v2018 = vadd.f32 0.0, %v2017
      %v2019 = vpop.f32.mrb[0].mxu0
      %2020 = vmatprep.mubr.f32.mxu0 0.0
      %2021 = vmatmul.mubr.f32.gmra.mrb[0].mxu0 %v1824
      %v2022 = vpop.f32.mrb[0].mxu0
      %v2023 = vadd.f32 0.0, %v2022
      %v2024 = vpop.f32.mrb[0].mxu0
      %2025 = vmatprep.mubr.f32.mxu0 0.0
      %2026 = vmatmul.mubr.f32.gmra.mrb[0].mxu0 %v1826
      %v2027 = vpop.f32.mrb[0].mxu0
      %v2028 = vadd.f32 0.0, %v2027
      %v2029 = vpop.f32.mrb[0].mxu0
      %2030 = vmatprep.mubr.f32.mxu0 0.0
      %2031 = vmatmul.mubr.f32.gmra.mrb[0].mxu0 %v1828
      %v2032 = vpop.f32.mrb[0].mxu0
      %v2033 = vadd.f32 0.0, %v2032
      %v2034 = vpop.f32.mrb[0].mxu0
      %2035 = vmatprep.mubr.f32.mxu0 0.0
      %2036 = vmatmul.mubr.f32.gmra.mrb[0].mxu0 %v1830
      %v2037 = vpop.f32.mrb[0].mxu0
      %v2038 = vadd.f32 0.0, %v2037
      %v2039 = vpop.f32.mrb[0].mxu0
      %2040 = vmatprep.mubr.f32.mxu0 0.0
      %2041 = vmatmul.mubr.f32.gmra.mrb[0].mxu0 %v1832
      %v2042 = vpop.f32.mrb[0].mxu0
      %v2043 = vadd.f32 0.0, %v2042
      %v2044 = vpop.f32.mrb[0].mxu0
      %2045 = vmatprep.mubr.f32.mxu0 0.0
      %2046 = vmatmul.mubr.f32.gmra.mrb[0].mxu0 %v1834
      %v2047 = vpop.f32.mrb[0].mxu0
      %v2048 = vadd.f32 0.0, %v2047
      %v2049 = vpop.f32.mrb[0].mxu0
      %2050 = vmatprep.mubr.f32.mxu0 0.0
      %2051 = vmatmul.mubr.f32.gmra.mrb[0].mxu0 %v1836
      %v2052 = vpop.f32.mrb[0].mxu0
      %v2053 = vadd.f32 0.0, %v2052
      %v2054 = vpop.f32.mrb[0].mxu0
      %2055 = vmatprep.mubr.f32.mxu0 0.0
      %2056 = vmatmul.mubr.f32.gmra.mrb[0].mxu0 %v1838
      %v2057 = vpop.f32.mrb[0].mxu0
      %v2058 = vadd.f32 0.0, %v2057
      %v2059 = vpop.f32.mrb[0].mxu0
      %2060 = vmatprep.mubr.f32.mxu0 0.0
      %2061 = vmatmul.mubr.f32.gmra.mrb[0].mxu0 %v1840
      %v2062 = vpop.f32.mrb[0].mxu0
      %v2063 = vadd.f32 0.0, %v2062
      %v2064 = vpop.f32.mrb[0].mxu0
      %2065 = vmatprep.mubr.f32.mxu0 0.0
      %2066 = vmatmul.mubr.f32.gmra.mrb[0].mxu0 %v1842
      %v2067 = vpop.f32.mrb[0].mxu0
      %v2068 = vadd.f32 0.0, %v2067
      %v2069 = vpop.f32.mrb[0].mxu0
      %2070 = vmatprep.mubr.f32.mxu0 0.0
      %2071 = vmatmul.mubr.f32.gmra.mrb[0].mxu0 %v1844
      %v2072 = vpop.f32.mrb[0].mxu0
      %v2073 = vadd.f32 0.0, %v2072
      %v2074 = vpop.f32.mrb[0].mxu0
      %2075 = vmatprep.mubr.f32.mxu0 0.0
      %2076 = vmatmul.mubr.f32.gmra.mrb[0].mxu0 %v1846
      %v2077 = vpop.f32.mrb[0].mxu0
      %v2078 = vadd.f32 0.0, %v2077
      %v2079 = vpop.f32.mrb[0].mxu0
      %2080 = vmatprep.mubr.f32.mxu0 0.0
      %2081 = vmatmul.mubr.f32.gmra.mrb[0].mxu0 %v1848
      %v2082 = vpop.f32.mrb[0].mxu0
      %v2083 = vadd.f32 0.0, %v2082
      %v2084 = vpop.f32.mrb[0].mxu0
      %2085 = vmatprep.mubr.f32.mxu0 0.0
      %2086 = vmatmul.mubr.f32.gmra.mrb[0].mxu0 %v1850
      %v2087 = vpop.f32.mrb[0].mxu0
      %v2088 = vadd.f32 0.0, %v2087
      %v2089 = vpop.f32.mrb[0].mxu0
      %2090 = vmatprep.mubr.f32.mxu0 0.0
      %2091 = vmatmul.mubr.f32.gmra.mrb[0].mxu0 %v1852
      %v2092 = vpop.f32.mrb[0].mxu0
      %v2093 = vadd.f32 0.0, %v2092
      %v2094 = vpop.f32.mrb[0].mxu0
      %2095 = vmatprep.mubr.f32.mxu0 0.0
      %2096 = vmatmul.mubr.f32.gmra.mrb[0].mxu0 %v1854
      %v2097 = vpop.f32.mrb[0].mxu0
      %v2098 = vadd.f32 0.0, %v2097
      %v2099 = vpop.f32.mrb[0].mxu0
      %2100 = vdwg.mxu0
      %v2101 = vadd.f32 %v1672, %v1923
      %v2102 = vadd.f32 %v1673, %v1928
      %v2103 = vadd.f32 %v1674, %v1933
      %v2104 = vadd.f32 %v1675, %v1938
      %v2105 = vadd.f32 %v1676, %v1943
      %v2106 = vadd.f32 %v1677, %v1948
      %v2107 = vadd.f32 %v1678, %v1953
      %v2108 = vadd.f32 %v1679, %v1958
      %v2109 = vadd.f32 %v1680, %v1963
      %v2110 = vadd.f32 %v1681, %v1968
      %v2111 = vadd.f32 %v1682, %v1973
      %v2112 = vadd.f32 %v1683, %v1978
      %v2113 = vadd.f32 %v1684, %v1983
      %v2114 = vadd.f32 %v1685, %v1988
      %v2115 = vadd.f32 %v1686, %v1993
      %v2116 = vadd.f32 %v1687, %v1998
      %v2117 = vadd.f32 %v1688, %v2003
      %v2118 = vadd.f32 %v1689, %v2008
      %v2119 = vadd.f32 %v1690, %v2013
      %v2120 = vadd.f32 %v1691, %v2018
      %v2121 = vadd.f32 %v1692, %v2023
      %v2122 = vadd.f32 %v1693, %v2028
      %v2123 = vadd.f32 %v1694, %v2033
      %v2124 = vadd.f32 %v1695, %v2038
      %v2125 = vadd.f32 %v1696, %v2043
      %v2126 = vadd.f32 %v1697, %v2048
      %v2127 = vadd.f32 %v1698, %v2053
      %v2128 = vadd.f32 %v1699, %v2058
      %v2129 = vadd.f32 %v1700, %v2063
      %v2130 = vadd.f32 %v1701, %v2068
      %v2131 = vadd.f32 %v1702, %v2073
      %v2132 = vadd.f32 %v1703, %v2078
      %v2133 = vadd.f32 %v1704, %v2083
      %v2134 = vadd.f32 %v1705, %v2088
      %v2135 = vadd.f32 %v1706, %v2093
      %v2136 = vadd.f32 %v1707, %v2098
      %s2137 = scalar_lea.vmem %s1, 40
      %v2138 = vld [vmem:[%s2137] sm:$0xff]
      %vm2139 = vcmask 1043456
      %v2140 = vrot.slane %v198, 4
      %v2141 = vrot.slane %v199, 4
      %v2142 = vsel %vm2139, %v2140, %v2141
      %v2143 = vrot.slane %v200, 4
      %v2144 = vsel %vm2139, %v2141, %v2143
      %v2145 = vrot.slane %v201, 4
      %v2146 = vsel %vm2139, %v2143, %v2145
      %v2147 = vrot.slane %v202, 4
      %v2148 = vsel %vm2139, %v2145, %v2147
      %v2149 = vrot.slane %v203, 4
      %v2150 = vsel %vm2139, %v2147, %v2149
      %v2151 = vrot.slane %v204, 4
      %v2152 = vsel %vm2139, %v2149, %v2151
      %v2153 = vrot.slane %v205, 4
      %v2154 = vsel %vm2139, %v2151, %v2153
      %v2155 = vrot.slane %v206, 4
      %v2156 = vsel %vm2139, %v2153, %v2155
      %v2157 = vrot.slane %v207, 4
      %v2158 = vsel %vm2139, %v2155, %v2157
      %v2159 = vrot.slane %v208, 4
      %v2160 = vsel %vm2139, %v2157, %v2159
      %v2161 = vrot.slane %v209, 4
      %v2162 = vsel %vm2139, %v2159, %v2161
      %v2163 = vrot.slane %v210, 4
      %v2164 = vsel %vm2139, %v2161, %v2163
      %v2165 = vrot.slane %v211, 4
      %v2166 = vsel %vm2139, %v2163, %v2165
      %v2167 = vrot.slane %v212, 4
      %v2168 = vsel %vm2139, %v2165, %v2167
      %v2169 = vrot.slane %v213, 4
      %v2170 = vsel %vm2139, %v2167, %v2169
      %v2171 = vrot.slane %v214, 4
      %v2172 = vsel %vm2139, %v2169, %v2171
      %v2173 = vrot.slane %v215, 4
      %v2174 = vsel %vm2139, %v2171, %v2173
      %v2175 = vrot.slane %v216, 4
      %v2176 = vsel %vm2139, %v2173, %v2175
      %v2177 = vrot.slane %v217, 4
      %v2178 = vsel %vm2139, %v2175, %v2177
      %v2179 = vrot.slane %v218, 4
      %v2180 = vsel %vm2139, %v2177, %v2179
      %v2181 = vrot.slane %v219, 4
      %v2182 = vsel %vm2139, %v2179, %v2181
      %v2183 = vrot.slane %v220, 4
      %v2184 = vsel %vm2139, %v2181, %v2183
      %v2185 = vrot.slane %v221, 4
      %v2186 = vsel %vm2139, %v2183, %v2185
      %v2187 = vrot.slane %v222, 4
      %v2188 = vsel %vm2139, %v2185, %v2187
      %v2189 = vrot.slane %v223, 4
      %v2190 = vsel %vm2139, %v2187, %v2189
      %v2191 = vrot.slane %v224, 4
      %v2192 = vsel %vm2139, %v2189, %v2191
      %v2193 = vrot.slane %v225, 4
      %v2194 = vsel %vm2139, %v2191, %v2193
      %v2195 = vrot.slane %v226, 4
      %v2196 = vsel %vm2139, %v2193, %v2195
      %v2197 = vrot.slane %v227, 4
      %v2198 = vsel %vm2139, %v2195, %v2197
      %v2199 = vrot.slane %v228, 4
      %v2200 = vsel %vm2139, %v2197, %v2199
      %v2201 = vrot.slane %v229, 4
      %v2202 = vsel %vm2139, %v2199, %v2201
      %v2203 = vrot.slane %v230, 4
      %v2204 = vsel %vm2139, %v2201, %v2203
      %v2205 = vrot.slane %v231, 4
      %v2206 = vsel %vm2139, %v2203, %v2205
      %v2207 = vrot.slane %v232, 4
      %v2208 = vsel %vm2139, %v2205, %v2207
      %v2209 = vrot.slane %v233, 4
      %v2210 = vsel %vm2139, %v2207, %v2209
      %v2211 = vrot.slane %v234, 4
      %v2212 = vsel %vm2139, %v2209, %v2211
      %v2213 = vsel %vm351, %v2142, 0
      %v2215 = vsel %vm351, %v2144, 0
      %v2217 = vsel %vm351, %v2146, 0
      %v2219 = vsel %vm351, %v2148, 0
      %v2221 = vsel %vm351, %v2150, 0
      %v2223 = vsel %vm351, %v2152, 0
      %v2225 = vsel %vm351, %v2154, 0
      %v2227 = vsel %vm351, %v2156, 0
      %v2229 = vsel %vm351, %v2158, 0
      %v2231 = vsel %vm351, %v2160, 0
      %v2233 = vsel %vm351, %v2162, 0
      %v2235 = vsel %vm351, %v2164, 0
      %v2237 = vsel %vm351, %v2166, 0
      %v2239 = vsel %vm351, %v2168, 0
      %v2241 = vsel %vm351, %v2170, 0
      %v2243 = vsel %vm351, %v2172, 0
      %v2245 = vsel %vm351, %v2174, 0
      %v2247 = vsel %vm351, %v2176, 0
      %v2249 = vsel %vm351, %v2178, 0
      %v2251 = vsel %vm351, %v2180, 0
      %v2253 = vsel %vm351, %v2182, 0
      %v2255 = vsel %vm351, %v2184, 0
      %v2257 = vsel %vm351, %v2186, 0
      %v2259 = vsel %vm351, %v2188, 0
      %v2261 = vsel %vm351, %v2190, 0
      %v2263 = vsel %vm351, %v2192, 0
      %v2265 = vsel %vm351, %v2194, 0
      %v2267 = vsel %vm351, %v2196, 0
      %v2269 = vsel %vm351, %v2198, 0
      %v2271 = vsel %vm351, %v2200, 0
      %v2273 = vsel %vm351, %v2202, 0
      %v2275 = vsel %vm351, %v2204, 0
      %v2277 = vsel %vm351, %v2206, 0
      %v2279 = vsel %vm351, %v2208, 0
      %v2281 = vsel %vm351, %v2210, 0
      %v2283 = vsel %vm351, %v2212, 0
      %2285 = vmatprep.subr.mxu0 0.0
      %2286 = vmatpush1.msra.mxu0 %v2138
      %2287 = vmatprep.subr.mxu0 0.0
      %2288 = vmatpush1.msra.mxu0 0.0
      %2289 = vmatprep.subr.mxu0 0.0
      %2290 = vmatpush1.msra.mxu0 0.0
      %2291 = vmatprep.subr.mxu0 0.0
      %2292 = vmatpush1.msra.mxu0 0.0
      %2293 = vmatprep.subr.mxu0 0.0
      %2294 = vmatpush1.msra.mxu0 0.0
      %2295 = vmatprep.subr.mxu0 0.0
      %2296 = vmatpush1.msra.mxu0 0.0
      %2297 = vmatprep.subr.mxu0 0.0
      %2298 = vmatpush1.msra.mxu0 0.0
      %2299 = vmatprep.subr.mxu0 0.0
      %2300 = vmatpush1.msra.mxu0 0.0
      %2301 = vmatprep.subr.mxu0 0.0
      %2302 = vmatpush1.msra.mxu0 0.0
      %2303 = vmatprep.subr.mxu0 0.0
      %2304 = vmatpush1.msra.mxu0 0.0
      %2305 = vmatprep.subr.mxu0 0.0
      %2306 = vmatpush1.msra.mxu0 0.0
      %2307 = vmatprep.subr.mxu0 0.0
      %2308 = vmatpush1.msra.mxu0 0.0
      %2309 = vmatprep.subr.mxu0 0.0
      %2310 = vmatpush1.msra.mxu0 0.0
      %2311 = vmatprep.subr.mxu0 0.0
      %2312 = vmatpush1.msra.mxu0 0.0
      %2313 = vmatprep.subr.mxu0 0.0
      %2314 = vmatpush1.msra.mxu0 0.0
      %2315 = vmatprep.subr.mxu0 0.0
      %2316 = vmatpush1.msra.mxu0 0.0
      %2317 = vmatprep.subr.mxu0 0.0
      %2318 = vmatpush1.msra.mxu0 0.0
      %2319 = vmatprep.subr.mxu0 0.0
      %2320 = vmatpush1.msra.mxu0 0.0
      %2321 = vmatprep.subr.mxu0 0.0
      %2322 = vmatpush1.msra.mxu0 0.0
      %2323 = vmatprep.subr.mxu0 0.0
      %2324 = vmatpush1.msra.mxu0 0.0
      %2325 = vmatprep.subr.mxu0 0.0
      %2326 = vmatpush1.msra.mxu0 0.0
      %2327 = vmatprep.subr.mxu0 0.0
      %2328 = vmatpush1.msra.mxu0 0.0
      %2329 = vmatprep.subr.mxu0 0.0
      %2330 = vmatpush1.msra.mxu0 0.0
      %2331 = vmatprep.subr.mxu0 0.0
      %2332 = vmatpush1.msra.mxu0 0.0
      %2333 = vmatprep.subr.mxu0 0.0
      %2334 = vmatpush1.msra.mxu0 0.0
      %2335 = vmatprep.subr.mxu0 0.0
      %2336 = vmatpush1.msra.mxu0 0.0
      %2337 = vmatprep.subr.mxu0 0.0
      %2338 = vmatpush1.msra.mxu0 0.0
      %2339 = vmatprep.subr.mxu0 0.0
      %2340 = vmatpush1.msra.mxu0 0.0
      %2341 = vmatprep.subr.mxu0 0.0
      %2342 = vmatpush1.msra.mxu0 0.0
      %2343 = vmatprep.subr.mxu0 0.0
      %2344 = vmatpush1.msra.mxu0 0.0
      %2345 = vmatprep.subr.mxu0 0.0
      %2346 = vmatpush1.msra.mxu0 0.0
      %2347 = vmatprep.subr.mxu0 0.0
      %2348 = vmatpush1.msra.mxu0 0.0
      %2349 = vmatprep.mubr.f32.mxu0 0.0
      %2350 = vmatmul.mubr.f32.gmra.mrb[0].mxu0 %v2213
      %v2351 = vpop.f32.mrb[0].mxu0
      %v2352 = vadd.f32 0.0, %v2351
      %v2353 = vpop.f32.mrb[0].mxu0
      %2354 = vmatprep.mubr.f32.mxu0 0.0
      %2355 = vmatmul.mubr.f32.gmra.mrb[0].mxu0 %v2215
      %v2356 = vpop.f32.mrb[0].mxu0
      %v2357 = vadd.f32 0.0, %v2356
      %v2358 = vpop.f32.mrb[0].mxu0
      %2359 = vmatprep.mubr.f32.mxu0 0.0
      %2360 = vmatmul.mubr.f32.gmra.mrb[0].mxu0 %v2217
      %v2361 = vpop.f32.mrb[0].mxu0
      %v2362 = vadd.f32 0.0, %v2361
      %v2363 = vpop.f32.mrb[0].mxu0
      %2364 = vmatprep.mubr.f32.mxu0 0.0
      %2365 = vmatmul.mubr.f32.gmra.mrb[0].mxu0 %v2219
      %v2366 = vpop.f32.mrb[0].mxu0
      %v2367 = vadd.f32 0.0, %v2366
      %v2368 = vpop.f32.mrb[0].mxu0
      %2369 = vmatprep.mubr.f32.mxu0 0.0
      %2370 = vmatmul.mubr.f32.gmra.mrb[0].mxu0 %v2221
      %v2371 = vpop.f32.mrb[0].mxu0
      %v2372 = vadd.f32 0.0, %v2371
      %v2373 = vpop.f32.mrb[0].mxu0
      %2374 = vmatprep.mubr.f32.mxu0 0.0
      %2375 = vmatmul.mubr.f32.gmra.mrb[0].mxu0 %v2223
      %v2376 = vpop.f32.mrb[0].mxu0
      %v2377 = vadd.f32 0.0, %v2376
      %v2378 = vpop.f32.mrb[0].mxu0
      %2379 = vmatprep.mubr.f32.mxu0 0.0
      %2380 = vmatmul.mubr.f32.gmra.mrb[0].mxu0 %v2225
      %v2381 = vpop.f32.mrb[0].mxu0
      %v2382 = vadd.f32 0.0, %v2381
      %v2383 = vpop.f32.mrb[0].mxu0
      %2384 = vmatprep.mubr.f32.mxu0 0.0
      %2385 = vmatmul.mubr.f32.gmra.mrb[0].mxu0 %v2227
      %v2386 = vpop.f32.mrb[0].mxu0
      %v2387 = vadd.f32 0.0, %v2386
      %v2388 = vpop.f32.mrb[0].mxu0
      %2389 = vmatprep.mubr.f32.mxu0 0.0
      %2390 = vmatmul.mubr.f32.gmra.mrb[0].mxu0 %v2229
      %v2391 = vpop.f32.mrb[0].mxu0
      %v2392 = vadd.f32 0.0, %v2391
      %v2393 = vpop.f32.mrb[0].mxu0
      %2394 = vmatprep.mubr.f32.mxu0 0.0
      %2395 = vmatmul.mubr.f32.gmra.mrb[0].mxu0 %v2231
      %v2396 = vpop.f32.mrb[0].mxu0
      %v2397 = vadd.f32 0.0, %v2396
      %v2398 = vpop.f32.mrb[0].mxu0
      %2399 = vmatprep.mubr.f32.mxu0 0.0
      %2400 = vmatmul.mubr.f32.gmra.mrb[0].mxu0 %v2233
      %v2401 = vpop.f32.mrb[0].mxu0
      %v2402 = vadd.f32 0.0, %v2401
      %v2403 = vpop.f32.mrb[0].mxu0
      %2404 = vmatprep.mubr.f32.mxu0 0.0
      %2405 = vmatmul.mubr.f32.gmra.mrb[0].mxu0 %v2235
      %v2406 = vpop.f32.mrb[0].mxu0
      %v2407 = vadd.f32 0.0, %v2406
      %v2408 = vpop.f32.mrb[0].mxu0
      %2409 = vmatprep.mubr.f32.mxu0 0.0
      %2410 = vmatmul.mubr.f32.gmra.mrb[0].mxu0 %v2237
      %v2411 = vpop.f32.mrb[0].mxu0
      %v2412 = vadd.f32 0.0, %v2411
      %v2413 = vpop.f32.mrb[0].mxu0
      %2414 = vmatprep.mubr.f32.mxu0 0.0
      %2415 = vmatmul.mubr.f32.gmra.mrb[0].mxu0 %v2239
      %v2416 = vpop.f32.mrb[0].mxu0
      %v2417 = vadd.f32 0.0, %v2416
      %v2418 = vpop.f32.mrb[0].mxu0
      %2419 = vmatprep.mubr.f32.mxu0 0.0
      %2420 = vmatmul.mubr.f32.gmra.mrb[0].mxu0 %v2241
      %v2421 = vpop.f32.mrb[0].mxu0
      %v2422 = vadd.f32 0.0, %v2421
      %v2423 = vpop.f32.mrb[0].mxu0
      %2424 = vmatprep.mubr.f32.mxu0 0.0
      %2425 = vmatmul.mubr.f32.gmra.mrb[0].mxu0 %v2243
      %v2426 = vpop.f32.mrb[0].mxu0
      %v2427 = vadd.f32 0.0, %v2426
      %v2428 = vpop.f32.mrb[0].mxu0
      %2429 = vmatprep.mubr.f32.mxu0 0.0
      %2430 = vmatmul.mubr.f32.gmra.mrb[0].mxu0 %v2245
      %v2431 = vpop.f32.mrb[0].mxu0
      %v2432 = vadd.f32 0.0, %v2431
      %v2433 = vpop.f32.mrb[0].mxu0
      %2434 = vmatprep.mubr.f32.mxu0 0.0
      %2435 = vmatmul.mubr.f32.gmra.mrb[0].mxu0 %v2247
      %v2436 = vpop.f32.mrb[0].mxu0
      %v2437 = vadd.f32 0.0, %v2436
      %v2438 = vpop.f32.mrb[0].mxu0
      %2439 = vmatprep.mubr.f32.mxu0 0.0
      %2440 = vmatmul.mubr.f32.gmra.mrb[0].mxu0 %v2249
      %v2441 = vpop.f32.mrb[0].mxu0
      %v2442 = vadd.f32 0.0, %v2441
      %v2443 = vpop.f32.mrb[0].mxu0
      %2444 = vmatprep.mubr.f32.mxu0 0.0
      %2445 = vmatmul.mubr.f32.gmra.mrb[0].mxu0 %v2251
      %v2446 = vpop.f32.mrb[0].mxu0
      %v2447 = vadd.f32 0.0, %v2446
      %v2448 = vpop.f32.mrb[0].mxu0
      %2449 = vmatprep.mubr.f32.mxu0 0.0
      %2450 = vmatmul.mubr.f32.gmra.mrb[0].mxu0 %v2253
      %v2451 = vpop.f32.mrb[0].mxu0
      %v2452 = vadd.f32 0.0, %v2451
      %v2453 = vpop.f32.mrb[0].mxu0
      %2454 = vmatprep.mubr.f32.mxu0 0.0
      %2455 = vmatmul.mubr.f32.gmra.mrb[0].mxu0 %v2255
      %v2456 = vpop.f32.mrb[0].mxu0
      %v2457 = vadd.f32 0.0, %v2456
      %v2458 = vpop.f32.mrb[0].mxu0
      %2459 = vmatprep.mubr.f32.mxu0 0.0
      %2460 = vmatmul.mubr.f32.gmra.mrb[0].mxu0 %v2257
      %v2461 = vpop.f32.mrb[0].mxu0
      %v2462 = vadd.f32 0.0, %v2461
      %v2463 = vpop.f32.mrb[0].mxu0
      %2464 = vmatprep.mubr.f32.mxu0 0.0
      %2465 = vmatmul.mubr.f32.gmra.mrb[0].mxu0 %v2259
      %v2466 = vpop.f32.mrb[0].mxu0
      %v2467 = vadd.f32 0.0, %v2466
      %v2468 = vpop.f32.mrb[0].mxu0
      %2469 = vmatprep.mubr.f32.mxu0 0.0
      %2470 = vmatmul.mubr.f32.gmra.mrb[0].mxu0 %v2261
      %v2471 = vpop.f32.mrb[0].mxu0
      %v2472 = vadd.f32 0.0, %v2471
      %v2473 = vpop.f32.mrb[0].mxu0
      %2474 = vmatprep.mubr.f32.mxu0 0.0
      %2475 = vmatmul.mubr.f32.gmra.mrb[0].mxu0 %v2263
      %v2476 = vpop.f32.mrb[0].mxu0
      %v2477 = vadd.f32 0.0, %v2476
      %v2478 = vpop.f32.mrb[0].mxu0
      %2479 = vmatprep.mubr.f32.mxu0 0.0
      %2480 = vmatmul.mubr.f32.gmra.mrb[0].mxu0 %v2265
      %v2481 = vpop.f32.mrb[0].mxu0
      %v2482 = vadd.f32 0.0, %v2481
      %v2483 = vpop.f32.mrb[0].mxu0
      %2484 = vmatprep.mubr.f32.mxu0 0.0
      %2485 = vmatmul.mubr.f32.gmra.mrb[0].mxu0 %v2267
      %v2486 = vpop.f32.mrb[0].mxu0
      %v2487 = vadd.f32 0.0, %v2486
      %v2488 = vpop.f32.mrb[0].mxu0
      %2489 = vmatprep.mubr.f32.mxu0 0.0
      %2490 = vmatmul.mubr.f32.gmra.mrb[0].mxu0 %v2269
      %v2491 = vpop.f32.mrb[0].mxu0
      %v2492 = vadd.f32 0.0, %v2491
      %v2493 = vpop.f32.mrb[0].mxu0
      %2494 = vmatprep.mubr.f32.mxu0 0.0
      %2495 = vmatmul.mubr.f32.gmra.mrb[0].mxu0 %v2271
      %v2496 = vpop.f32.mrb[0].mxu0
      %v2497 = vadd.f32 0.0, %v2496
      %v2498 = vpop.f32.mrb[0].mxu0
      %2499 = vmatprep.mubr.f32.mxu0 0.0
      %2500 = vmatmul.mubr.f32.gmra.mrb[0].mxu0 %v2273
      %v2501 = vpop.f32.mrb[0].mxu0
      %v2502 = vadd.f32 0.0, %v2501
      %v2503 = vpop.f32.mrb[0].mxu0
      %2504 = vmatprep.mubr.f32.mxu0 0.0
      %2505 = vmatmul.mubr.f32.gmra.mrb[0].mxu0 %v2275
      %v2506 = vpop.f32.mrb[0].mxu0
      %v2507 = vadd.f32 0.0, %v2506
      %v2508 = vpop.f32.mrb[0].mxu0
      %2509 = vmatprep.mubr.f32.mxu0 0.0
      %2510 = vmatmul.mubr.f32.gmra.mrb[0].mxu0 %v2277
      %v2511 = vpop.f32.mrb[0].mxu0
      %v2512 = vadd.f32 0.0, %v2511
      %v2513 = vpop.f32.mrb[0].mxu0
      %2514 = vmatprep.mubr.f32.mxu0 0.0
      %2515 = vmatmul.mubr.f32.gmra.mrb[0].mxu0 %v2279
      %v2516 = vpop.f32.mrb[0].mxu0
      %v2517 = vadd.f32 0.0, %v2516
      %v2518 = vpop.f32.mrb[0].mxu0
      %2519 = vmatprep.mubr.f32.mxu0 0.0
      %2520 = vmatmul.mubr.f32.gmra.mrb[0].mxu0 %v2281
      %v2521 = vpop.f32.mrb[0].mxu0
      %v2522 = vadd.f32 0.0, %v2521
      %v2523 = vpop.f32.mrb[0].mxu0
      %2524 = vmatprep.mubr.f32.mxu0 0.0
      %2525 = vmatmul.mubr.f32.gmra.mrb[0].mxu0 %v2283
      %v2526 = vpop.f32.mrb[0].mxu0
      %v2527 = vadd.f32 0.0, %v2526
      %v2528 = vpop.f32.mrb[0].mxu0
      %2529 = vdwg.mxu0
      %v2530 = vadd.f32 %v2101, %v2352
      %v2531 = vadd.f32 %v2102, %v2357
      %v2532 = vadd.f32 %v2103, %v2362
      %v2533 = vadd.f32 %v2104, %v2367
      %v2534 = vadd.f32 %v2105, %v2372
      %v2535 = vadd.f32 %v2106, %v2377
      %v2536 = vadd.f32 %v2107, %v2382
      %v2537 = vadd.f32 %v2108, %v2387
      %v2538 = vadd.f32 %v2109, %v2392
      %v2539 = vadd.f32 %v2110, %v2397
      %v2540 = vadd.f32 %v2111, %v2402
      %v2541 = vadd.f32 %v2112, %v2407
      %v2542 = vadd.f32 %v2113, %v2412
      %v2543 = vadd.f32 %v2114, %v2417
      %v2544 = vadd.f32 %v2115, %v2422
      %v2545 = vadd.f32 %v2116, %v2427
      %v2546 = vadd.f32 %v2117, %v2432
      %v2547 = vadd.f32 %v2118, %v2437
      %v2548 = vadd.f32 %v2119, %v2442
      %v2549 = vadd.f32 %v2120, %v2447
      %v2550 = vadd.f32 %v2121, %v2452
      %v2551 = vadd.f32 %v2122, %v2457
      %v2552 = vadd.f32 %v2123, %v2462
      %v2553 = vadd.f32 %v2124, %v2467
      %v2554 = vadd.f32 %v2125, %v2472
      %v2555 = vadd.f32 %v2126, %v2477
      %v2556 = vadd.f32 %v2127, %v2482
      %v2557 = vadd.f32 %v2128, %v2487
      %v2558 = vadd.f32 %v2129, %v2492
      %v2559 = vadd.f32 %v2130, %v2497
      %v2560 = vadd.f32 %v2131, %v2502
      %v2561 = vadd.f32 %v2132, %v2507
      %v2562 = vadd.f32 %v2133, %v2512
      %v2563 = vadd.f32 %v2134, %v2517
      %v2564 = vadd.f32 %v2135, %v2522
      %v2565 = vadd.f32 %v2136, %v2527
      %s2566 = scalar_lea.vmem %s1, 48
      %v2567 = vld [vmem:[%s2566] sm:$0xff]
      %v2570 = vrot.slane %v235, 4
      %v2571 = vsel %vm2139, %v2211, %v2570
      %v2572 = vrot.slane %v236, 4
      %v2573 = vsel %vm2139, %v2570, %v2572
      %v2574 = vsel %vm351, %v2571, 0
      %v2576 = vsel %vm351, %v2573, 0
      %2578 = vmatprep.subr.mxu0 0.0
      %2579 = vmatpush1.msra.mxu0 %v2567
      %2580 = vmatprep.subr.mxu0 0.0
      %2581 = vmatpush1.msra.mxu0 0.0
      %2582 = vmatprep.subr.mxu0 0.0
      %2583 = vmatpush1.msra.mxu0 0.0
      %2584 = vmatprep.subr.mxu0 0.0
      %2585 = vmatpush1.msra.mxu0 0.0
      %2586 = vmatprep.subr.mxu0 0.0
      %2587 = vmatpush1.msra.mxu0 0.0
      %2588 = vmatprep.subr.mxu0 0.0
      %2589 = vmatpush1.msra.mxu0 0.0
      %2590 = vmatprep.subr.mxu0 0.0
      %2591 = vmatpush1.msra.mxu0 0.0
      %2592 = vmatprep.subr.mxu0 0.0
      %2593 = vmatpush1.msra.mxu0 0.0
      %2594 = vmatprep.subr.mxu0 0.0
      %2595 = vmatpush1.msra.mxu0 0.0
      %2596 = vmatprep.subr.mxu0 0.0
      %2597 = vmatpush1.msra.mxu0 0.0
      %2598 = vmatprep.subr.mxu0 0.0
      %2599 = vmatpush1.msra.mxu0 0.0
      %2600 = vmatprep.subr.mxu0 0.0
      %2601 = vmatpush1.msra.mxu0 0.0
      %2602 = vmatprep.subr.mxu0 0.0
      %2603 = vmatpush1.msra.mxu0 0.0
      %2604 = vmatprep.subr.mxu0 0.0
      %2605 = vmatpush1.msra.mxu0 0.0
      %2606 = vmatprep.subr.mxu0 0.0
      %2607 = vmatpush1.msra.mxu0 0.0
      %2608 = vmatprep.subr.mxu0 0.0
      %2609 = vmatpush1.msra.mxu0 0.0
      %2610 = vmatprep.subr.mxu0 0.0
      %2611 = vmatpush1.msra.mxu0 0.0
      %2612 = vmatprep.subr.mxu0 0.0
      %2613 = vmatpush1.msra.mxu0 0.0
      %2614 = vmatprep.subr.mxu0 0.0
      %2615 = vmatpush1.msra.mxu0 0.0
      %2616 = vmatprep.subr.mxu0 0.0
      %2617 = vmatpush1.msra.mxu0 0.0
      %2618 = vmatprep.subr.mxu0 0.0
      %2619 = vmatpush1.msra.mxu0 0.0
      %2620 = vmatprep.subr.mxu0 0.0
      %2621 = vmatpush1.msra.mxu0 0.0
      %2622 = vmatprep.subr.mxu0 0.0
      %2623 = vmatpush1.msra.mxu0 0.0
      %2624 = vmatprep.subr.mxu0 0.0
      %2625 = vmatpush1.msra.mxu0 0.0
      %2626 = vmatprep.subr.mxu0 0.0
      %2627 = vmatpush1.msra.mxu0 0.0
      %2628 = vmatprep.subr.mxu0 0.0
      %2629 = vmatpush1.msra.mxu0 0.0
      %2630 = vmatprep.subr.mxu0 0.0
      %2631 = vmatpush1.msra.mxu0 0.0
      %2632 = vmatprep.subr.mxu0 0.0
      %2633 = vmatpush1.msra.mxu0 0.0
      %2634 = vmatprep.subr.mxu0 0.0
      %2635 = vmatpush1.msra.mxu0 0.0
      %2636 = vmatprep.subr.mxu0 0.0
      %2637 = vmatpush1.msra.mxu0 0.0
      %2638 = vmatprep.subr.mxu0 0.0
      %2639 = vmatpush1.msra.mxu0 0.0
      %2640 = vmatprep.subr.mxu0 0.0
      %2641 = vmatpush1.msra.mxu0 0.0
      %2642 = vmatprep.mubr.f32.mxu0 0.0
      %2643 = vmatmul.mubr.f32.gmra.mrb[0].mxu0 %v2217
      %v2644 = vpop.f32.mrb[0].mxu0
      %v2645 = vadd.f32 0.0, %v2644
      %v2646 = vpop.f32.mrb[0].mxu0
      %2647 = vmatprep.mubr.f32.mxu0 0.0
      %2648 = vmatmul.mubr.f32.gmra.mrb[0].mxu0 %v2219
      %v2649 = vpop.f32.mrb[0].mxu0
      %v2650 = vadd.f32 0.0, %v2649
      %v2651 = vpop.f32.mrb[0].mxu0
      %2652 = vmatprep.mubr.f32.mxu0 0.0
      %2653 = vmatmul.mubr.f32.gmra.mrb[0].mxu0 %v2221
      %v2654 = vpop.f32.mrb[0].mxu0
      %v2655 = vadd.f32 0.0, %v2654
      %v2656 = vpop.f32.mrb[0].mxu0
      %2657 = vmatprep.mubr.f32.mxu0 0.0
      %2658 = vmatmul.mubr.f32.gmra.mrb[0].mxu0 %v2223
      %v2659 = vpop.f32.mrb[0].mxu0
      %v2660 = vadd.f32 0.0, %v2659
      %v2661 = vpop.f32.mrb[0].mxu0
      %2662 = vmatprep.mubr.f32.mxu0 0.0
      %2663 = vmatmul.mubr.f32.gmra.mrb[0].mxu0 %v2225
      %v2664 = vpop.f32.mrb[0].mxu0
      %v2665 = vadd.f32 0.0, %v2664
      %v2666 = vpop.f32.mrb[0].mxu0
      %2667 = vmatprep.mubr.f32.mxu0 0.0
      %2668 = vmatmul.mubr.f32.gmra.mrb[0].mxu0 %v2227
      %v2669 = vpop.f32.mrb[0].mxu0
      %v2670 = vadd.f32 0.0, %v2669
      %v2671 = vpop.f32.mrb[0].mxu0
      %2672 = vmatprep.mubr.f32.mxu0 0.0
      %2673 = vmatmul.mubr.f32.gmra.mrb[0].mxu0 %v2229
      %v2674 = vpop.f32.mrb[0].mxu0
      %v2675 = vadd.f32 0.0, %v2674
      %v2676 = vpop.f32.mrb[0].mxu0
      %2677 = vmatprep.mubr.f32.mxu0 0.0
      %2678 = vmatmul.mubr.f32.gmra.mrb[0].mxu0 %v2231
      %v2679 = vpop.f32.mrb[0].mxu0
      %v2680 = vadd.f32 0.0, %v2679
      %v2681 = vpop.f32.mrb[0].mxu0
      %2682 = vmatprep.mubr.f32.mxu0 0.0
      %2683 = vmatmul.mubr.f32.gmra.mrb[0].mxu0 %v2233
      %v2684 = vpop.f32.mrb[0].mxu0
      %v2685 = vadd.f32 0.0, %v2684
      %v2686 = vpop.f32.mrb[0].mxu0
      %2687 = vmatprep.mubr.f32.mxu0 0.0
      %2688 = vmatmul.mubr.f32.gmra.mrb[0].mxu0 %v2235
      %v2689 = vpop.f32.mrb[0].mxu0
      %v2690 = vadd.f32 0.0, %v2689
      %v2691 = vpop.f32.mrb[0].mxu0
      %2692 = vmatprep.mubr.f32.mxu0 0.0
      %2693 = vmatmul.mubr.f32.gmra.mrb[0].mxu0 %v2237
      %v2694 = vpop.f32.mrb[0].mxu0
      %v2695 = vadd.f32 0.0, %v2694
      %v2696 = vpop.f32.mrb[0].mxu0
      %2697 = vmatprep.mubr.f32.mxu0 0.0
      %2698 = vmatmul.mubr.f32.gmra.mrb[0].mxu0 %v2239
      %v2699 = vpop.f32.mrb[0].mxu0
      %v2700 = vadd.f32 0.0, %v2699
      %v2701 = vpop.f32.mrb[0].mxu0
      %2702 = vmatprep.mubr.f32.mxu0 0.0
      %2703 = vmatmul.mubr.f32.gmra.mrb[0].mxu0 %v2241
      %v2704 = vpop.f32.mrb[0].mxu0
      %v2705 = vadd.f32 0.0, %v2704
      %v2706 = vpop.f32.mrb[0].mxu0
      %2707 = vmatprep.mubr.f32.mxu0 0.0
      %2708 = vmatmul.mubr.f32.gmra.mrb[0].mxu0 %v2243
      %v2709 = vpop.f32.mrb[0].mxu0
      %v2710 = vadd.f32 0.0, %v2709
      %v2711 = vpop.f32.mrb[0].mxu0
      %2712 = vmatprep.mubr.f32.mxu0 0.0
      %2713 = vmatmul.mubr.f32.gmra.mrb[0].mxu0 %v2245
      %v2714 = vpop.f32.mrb[0].mxu0
      %v2715 = vadd.f32 0.0, %v2714
      %v2716 = vpop.f32.mrb[0].mxu0
      %2717 = vmatprep.mubr.f32.mxu0 0.0
      %2718 = vmatmul.mubr.f32.gmra.mrb[0].mxu0 %v2247
      %v2719 = vpop.f32.mrb[0].mxu0
      %v2720 = vadd.f32 0.0, %v2719
      %v2721 = vpop.f32.mrb[0].mxu0
      %2722 = vmatprep.mubr.f32.mxu0 0.0
      %2723 = vmatmul.mubr.f32.gmra.mrb[0].mxu0 %v2249
      %v2724 = vpop.f32.mrb[0].mxu0
      %v2725 = vadd.f32 0.0, %v2724
      %v2726 = vpop.f32.mrb[0].mxu0
      %2727 = vmatprep.mubr.f32.mxu0 0.0
      %2728 = vmatmul.mubr.f32.gmra.mrb[0].mxu0 %v2251
      %v2729 = vpop.f32.mrb[0].mxu0
      %v2730 = vadd.f32 0.0, %v2729
      %v2731 = vpop.f32.mrb[0].mxu0
      %2732 = vmatprep.mubr.f32.mxu0 0.0
      %2733 = vmatmul.mubr.f32.gmra.mrb[0].mxu0 %v2253
      %v2734 = vpop.f32.mrb[0].mxu0
      %v2735 = vadd.f32 0.0, %v2734
      %v2736 = vpop.f32.mrb[0].mxu0
      %2737 = vmatprep.mubr.f32.mxu0 0.0
      %2738 = vmatmul.mubr.f32.gmra.mrb[0].mxu0 %v2255
      %v2739 = vpop.f32.mrb[0].mxu0
      %v2740 = vadd.f32 0.0, %v2739
      %v2741 = vpop.f32.mrb[0].mxu0
      %2742 = vmatprep.mubr.f32.mxu0 0.0
      %2743 = vmatmul.mubr.f32.gmra.mrb[0].mxu0 %v2257
      %v2744 = vpop.f32.mrb[0].mxu0
      %v2745 = vadd.f32 0.0, %v2744
      %v2746 = vpop.f32.mrb[0].mxu0
      %2747 = vmatprep.mubr.f32.mxu0 0.0
      %2748 = vmatmul.mubr.f32.gmra.mrb[0].mxu0 %v2259
      %v2749 = vpop.f32.mrb[0].mxu0
      %v2750 = vadd.f32 0.0, %v2749
      %v2751 = vpop.f32.mrb[0].mxu0
      %2752 = vmatprep.mubr.f32.mxu0 0.0
      %2753 = vmatmul.mubr.f32.gmra.mrb[0].mxu0 %v2261
      %v2754 = vpop.f32.mrb[0].mxu0
      %v2755 = vadd.f32 0.0, %v2754
      %v2756 = vpop.f32.mrb[0].mxu0
      %2757 = vmatprep.mubr.f32.mxu0 0.0
      %2758 = vmatmul.mubr.f32.gmra.mrb[0].mxu0 %v2263
      %v2759 = vpop.f32.mrb[0].mxu0
      %v2760 = vadd.f32 0.0, %v2759
      %v2761 = vpop.f32.mrb[0].mxu0
      %2762 = vmatprep.mubr.f32.mxu0 0.0
      %2763 = vmatmul.mubr.f32.gmra.mrb[0].mxu0 %v2265
      %v2764 = vpop.f32.mrb[0].mxu0
      %v2765 = vadd.f32 0.0, %v2764
      %v2766 = vpop.f32.mrb[0].mxu0
      %2767 = vmatprep.mubr.f32.mxu0 0.0
      %2768 = vmatmul.mubr.f32.gmra.mrb[0].mxu0 %v2267
      %v2769 = vpop.f32.mrb[0].mxu0
      %v2770 = vadd.f32 0.0, %v2769
      %v2771 = vpop.f32.mrb[0].mxu0
      %2772 = vmatprep.mubr.f32.mxu0 0.0
      %2773 = vmatmul.mubr.f32.gmra.mrb[0].mxu0 %v2269
      %v2774 = vpop.f32.mrb[0].mxu0
      %v2775 = vadd.f32 0.0, %v2774
      %v2776 = vpop.f32.mrb[0].mxu0
      %2777 = vmatprep.mubr.f32.mxu0 0.0
      %2778 = vmatmul.mubr.f32.gmra.mrb[0].mxu0 %v2271
      %v2779 = vpop.f32.mrb[0].mxu0
      %v2780 = vadd.f32 0.0, %v2779
      %v2781 = vpop.f32.mrb[0].mxu0
      %2782 = vmatprep.mubr.f32.mxu0 0.0
      %2783 = vmatmul.mubr.f32.gmra.mrb[0].mxu0 %v2273
      %v2784 = vpop.f32.mrb[0].mxu0
      %v2785 = vadd.f32 0.0, %v2784
      %v2786 = vpop.f32.mrb[0].mxu0
      %2787 = vmatprep.mubr.f32.mxu0 0.0
      %2788 = vmatmul.mubr.f32.gmra.mrb[0].mxu0 %v2275
      %v2789 = vpop.f32.mrb[0].mxu0
      %v2790 = vadd.f32 0.0, %v2789
      %v2791 = vpop.f32.mrb[0].mxu0
      %2792 = vmatprep.mubr.f32.mxu0 0.0
      %2793 = vmatmul.mubr.f32.gmra.mrb[0].mxu0 %v2277
      %v2794 = vpop.f32.mrb[0].mxu0
      %v2795 = vadd.f32 0.0, %v2794
      %v2796 = vpop.f32.mrb[0].mxu0
      %2797 = vmatprep.mubr.f32.mxu0 0.0
      %2798 = vmatmul.mubr.f32.gmra.mrb[0].mxu0 %v2279
      %v2799 = vpop.f32.mrb[0].mxu0
      %v2800 = vadd.f32 0.0, %v2799
      %v2801 = vpop.f32.mrb[0].mxu0
      %2802 = vmatprep.mubr.f32.mxu0 0.0
      %2803 = vmatmul.mubr.f32.gmra.mrb[0].mxu0 %v2281
      %v2804 = vpop.f32.mrb[0].mxu0
      %v2805 = vadd.f32 0.0, %v2804
      %v2806 = vpop.f32.mrb[0].mxu0
      %2807 = vmatprep.mubr.f32.mxu0 0.0
      %2808 = vmatmul.mubr.f32.gmra.mrb[0].mxu0 %v2283
      %v2809 = vpop.f32.mrb[0].mxu0
      %v2810 = vadd.f32 0.0, %v2809
      %v2811 = vpop.f32.mrb[0].mxu0
      %2812 = vmatprep.mubr.f32.mxu0 0.0
      %2813 = vmatmul.mubr.f32.gmra.mrb[0].mxu0 %v2574
      %v2814 = vpop.f32.mrb[0].mxu0
      %v2815 = vadd.f32 0.0, %v2814
      %v2816 = vpop.f32.mrb[0].mxu0
      %2817 = vmatprep.mubr.f32.mxu0 0.0
      %2818 = vmatmul.mubr.f32.gmra.mrb[0].mxu0 %v2576
      %v2819 = vpop.f32.mrb[0].mxu0
      %v2820 = vadd.f32 0.0, %v2819
      %v2821 = vpop.f32.mrb[0].mxu0
      %2822 = vdwg.mxu0
      %v2823 = vadd.f32 %v2530, %v2645
      %v2824 = vadd.f32 %v2531, %v2650
      %v2825 = vadd.f32 %v2532, %v2655
      %v2826 = vadd.f32 %v2533, %v2660
      %v2827 = vadd.f32 %v2534, %v2665
      %v2828 = vadd.f32 %v2535, %v2670
      %v2829 = vadd.f32 %v2536, %v2675
      %v2830 = vadd.f32 %v2537, %v2680
      %v2831 = vadd.f32 %v2538, %v2685
      %v2832 = vadd.f32 %v2539, %v2690
      %v2833 = vadd.f32 %v2540, %v2695
      %v2834 = vadd.f32 %v2541, %v2700
      %v2835 = vadd.f32 %v2542, %v2705
      %v2836 = vadd.f32 %v2543, %v2710
      %v2837 = vadd.f32 %v2544, %v2715
      %v2838 = vadd.f32 %v2545, %v2720
      %v2839 = vadd.f32 %v2546, %v2725
      %v2840 = vadd.f32 %v2547, %v2730
      %v2841 = vadd.f32 %v2548, %v2735
      %v2842 = vadd.f32 %v2549, %v2740
      %v2843 = vadd.f32 %v2550, %v2745
      %v2844 = vadd.f32 %v2551, %v2750
      %v2845 = vadd.f32 %v2552, %v2755
      %v2846 = vadd.f32 %v2553, %v2760
      %v2847 = vadd.f32 %v2554, %v2765
      %v2848 = vadd.f32 %v2555, %v2770
      %v2849 = vadd.f32 %v2556, %v2775
      %v2850 = vadd.f32 %v2557, %v2780
      %v2851 = vadd.f32 %v2558, %v2785
      %v2852 = vadd.f32 %v2559, %v2790
      %v2853 = vadd.f32 %v2560, %v2795
      %v2854 = vadd.f32 %v2561, %v2800
      %v2855 = vadd.f32 %v2562, %v2805
      %v2856 = vadd.f32 %v2563, %v2810
      %v2857 = vadd.f32 %v2564, %v2815
      %v2858 = vadd.f32 %v2565, %v2820
      %s2859 = scalar_lea.vmem %s1, 56
      %v2860 = vld [vmem:[%s2859] sm:$0xff]
      %vm2861 = vcmask 1042432
      %v2862 = vrot.slane %v200, 5
      %v2863 = vrot.slane %v201, 5
      %v2864 = vsel %vm2861, %v2862, %v2863
      %v2865 = vrot.slane %v202, 5
      %v2866 = vsel %vm2861, %v2863, %v2865
      %v2867 = vrot.slane %v203, 5
      %v2868 = vsel %vm2861, %v2865, %v2867
      %v2869 = vrot.slane %v204, 5
      %v2870 = vsel %vm2861, %v2867, %v2869
      %v2871 = vrot.slane %v205, 5
      %v2872 = vsel %vm2861, %v2869, %v2871
      %v2873 = vrot.slane %v206, 5
      %v2874 = vsel %vm2861, %v2871, %v2873
      %v2875 = vrot.slane %v207, 5
      %v2876 = vsel %vm2861, %v2873, %v2875
      %v2877 = vrot.slane %v208, 5
      %v2878 = vsel %vm2861, %v2875, %v2877
      %v2879 = vrot.slane %v209, 5
      %v2880 = vsel %vm2861, %v2877, %v2879
      %v2881 = vrot.slane %v210, 5
      %v2882 = vsel %vm2861, %v2879, %v2881
      %v2883 = vrot.slane %v211, 5
      %v2884 = vsel %vm2861, %v2881, %v2883
      %v2885 = vrot.slane %v212, 5
      %v2886 = vsel %vm2861, %v2883, %v2885
      %v2887 = vrot.slane %v213, 5
      %v2888 = vsel %vm2861, %v2885, %v2887
      %v2889 = vrot.slane %v214, 5
      %v2890 = vsel %vm2861, %v2887, %v2889
      %v2891 = vrot.slane %v215, 5
      %v2892 = vsel %vm2861, %v2889, %v2891
      %v2893 = vrot.slane %v216, 5
      %v2894 = vsel %vm2861, %v2891, %v2893
      %v2895 = vrot.slane %v217, 5
      %v2896 = vsel %vm2861, %v2893, %v2895
      %v2897 = vrot.slane %v218, 5
      %v2898 = vsel %vm2861, %v2895, %v2897
      %v2899 = vrot.slane %v219, 5
      %v2900 = vsel %vm2861, %v2897, %v2899
      %v2901 = vrot.slane %v220, 5
      %v2902 = vsel %vm2861, %v2899, %v2901
      %v2903 = vrot.slane %v221, 5
      %v2904 = vsel %vm2861, %v2901, %v2903
      %v2905 = vrot.slane %v222, 5
      %v2906 = vsel %vm2861, %v2903, %v2905
      %v2907 = vrot.slane %v223, 5
      %v2908 = vsel %vm2861, %v2905, %v2907
      %v2909 = vrot.slane %v224, 5
      %v2910 = vsel %vm2861, %v2907, %v2909
      %v2911 = vrot.slane %v225, 5
      %v2912 = vsel %vm2861, %v2909, %v2911
      %v2913 = vrot.slane %v226, 5
      %v2914 = vsel %vm2861, %v2911, %v2913
      %v2915 = vrot.slane %v227, 5
      %v2916 = vsel %vm2861, %v2913, %v2915
      %v2917 = vrot.slane %v228, 5
      %v2918 = vsel %vm2861, %v2915, %v2917
      %v2919 = vrot.slane %v229, 5
      %v2920 = vsel %vm2861, %v2917, %v2919
      %v2921 = vrot.slane %v230, 5
      %v2922 = vsel %vm2861, %v2919, %v2921
      %v2923 = vrot.slane %v231, 5
      %v2924 = vsel %vm2861, %v2921, %v2923
      %v2925 = vrot.slane %v232, 5
      %v2926 = vsel %vm2861, %v2923, %v2925
      %v2927 = vrot.slane %v233, 5
      %v2928 = vsel %vm2861, %v2925, %v2927
      %v2929 = vrot.slane %v234, 5
      %v2930 = vsel %vm2861, %v2927, %v2929
      %v2931 = vrot.slane %v235, 5
      %v2932 = vsel %vm2861, %v2929, %v2931
      %v2933 = vrot.slane %v236, 5
      %v2934 = vsel %vm2861, %v2931, %v2933
      %v2935 = vsel %vm351, %v2864, 0
      %v2937 = vsel %vm351, %v2866, 0
      %v2939 = vsel %vm351, %v2868, 0
      %v2941 = vsel %vm351, %v2870, 0
      %v2943 = vsel %vm351, %v2872, 0
      %v2945 = vsel %vm351, %v2874, 0
      %v2947 = vsel %vm351, %v2876, 0
      %v2949 = vsel %vm351, %v2878, 0
      %v2951 = vsel %vm351, %v2880, 0
      %v2953 = vsel %vm351, %v2882, 0
      %v2955 = vsel %vm351, %v2884, 0
      %v2957 = vsel %vm351, %v2886, 0
      %v2959 = vsel %vm351, %v2888, 0
      %v2961 = vsel %vm351, %v2890, 0
      %v2963 = vsel %vm351, %v2892, 0
      %v2965 = vsel %vm351, %v2894, 0
      %v2967 = vsel %vm351, %v2896, 0
      %v2969 = vsel %vm351, %v2898, 0
      %v2971 = vsel %vm351, %v2900, 0
      %v2973 = vsel %vm351, %v2902, 0
      %v2975 = vsel %vm351, %v2904, 0
      %v2977 = vsel %vm351, %v2906, 0
      %v2979 = vsel %vm351, %v2908, 0
      %v2981 = vsel %vm351, %v2910, 0
      %v2983 = vsel %vm351, %v2912, 0
      %v2985 = vsel %vm351, %v2914, 0
      %v2987 = vsel %vm351, %v2916, 0
      %v2989 = vsel %vm351, %v2918, 0
      %v2991 = vsel %vm351, %v2920, 0
      %v2993 = vsel %vm351, %v2922, 0
      %v2995 = vsel %vm351, %v2924, 0
      %v2997 = vsel %vm351, %v2926, 0
      %v2999 = vsel %vm351, %v2928, 0
      %v3001 = vsel %vm351, %v2930, 0
      %v3003 = vsel %vm351, %v2932, 0
      %v3005 = vsel %vm351, %v2934, 0
      %3007 = vmatprep.subr.mxu0 0.0
      %3008 = vmatpush1.msra.mxu0 %v2860
      %3009 = vmatprep.subr.mxu0 0.0
      %3010 = vmatpush1.msra.mxu0 0.0
      %3011 = vmatprep.subr.mxu0 0.0
      %3012 = vmatpush1.msra.mxu0 0.0
      %3013 = vmatprep.subr.mxu0 0.0
      %3014 = vmatpush1.msra.mxu0 0.0
      %3015 = vmatprep.subr.mxu0 0.0
      %3016 = vmatpush1.msra.mxu0 0.0
      %3017 = vmatprep.subr.mxu0 0.0
      %3018 = vmatpush1.msra.mxu0 0.0
      %3019 = vmatprep.subr.mxu0 0.0
      %3020 = vmatpush1.msra.mxu0 0.0
      %3021 = vmatprep.subr.mxu0 0.0
      %3022 = vmatpush1.msra.mxu0 0.0
      %3023 = vmatprep.subr.mxu0 0.0
      %3024 = vmatpush1.msra.mxu0 0.0
      %3025 = vmatprep.subr.mxu0 0.0
      %3026 = vmatpush1.msra.mxu0 0.0
      %3027 = vmatprep.subr.mxu0 0.0
      %3028 = vmatpush1.msra.mxu0 0.0
      %3029 = vmatprep.subr.mxu0 0.0
      %3030 = vmatpush1.msra.mxu0 0.0
      %3031 = vmatprep.subr.mxu0 0.0
      %3032 = vmatpush1.msra.mxu0 0.0
      %3033 = vmatprep.subr.mxu0 0.0
      %3034 = vmatpush1.msra.mxu0 0.0
      %3035 = vmatprep.subr.mxu0 0.0
      %3036 = vmatpush1.msra.mxu0 0.0
      %3037 = vmatprep.subr.mxu0 0.0
      %3038 = vmatpush1.msra.mxu0 0.0
      %3039 = vmatprep.subr.mxu0 0.0
      %3040 = vmatpush1.msra.mxu0 0.0
      %3041 = vmatprep.subr.mxu0 0.0
      %3042 = vmatpush1.msra.mxu0 0.0
      %3043 = vmatprep.subr.mxu0 0.0
      %3044 = vmatpush1.msra.mxu0 0.0
      %3045 = vmatprep.subr.mxu0 0.0
      %3046 = vmatpush1.msra.mxu0 0.0
      %3047 = vmatprep.subr.mxu0 0.0
      %3048 = vmatpush1.msra.mxu0 0.0
      %3049 = vmatprep.subr.mxu0 0.0
      %3050 = vmatpush1.msra.mxu0 0.0
      %3051 = vmatprep.subr.mxu0 0.0
      %3052 = vmatpush1.msra.mxu0 0.0
      %3053 = vmatprep.subr.mxu0 0.0
      %3054 = vmatpush1.msra.mxu0 0.0
      %3055 = vmatprep.subr.mxu0 0.0
      %3056 = vmatpush1.msra.mxu0 0.0
      %3057 = vmatprep.subr.mxu0 0.0
      %3058 = vmatpush1.msra.mxu0 0.0
      %3059 = vmatprep.subr.mxu0 0.0
      %3060 = vmatpush1.msra.mxu0 0.0
      %3061 = vmatprep.subr.mxu0 0.0
      %3062 = vmatpush1.msra.mxu0 0.0
      %3063 = vmatprep.subr.mxu0 0.0
      %3064 = vmatpush1.msra.mxu0 0.0
      %3065 = vmatprep.subr.mxu0 0.0
      %3066 = vmatpush1.msra.mxu0 0.0
      %3067 = vmatprep.subr.mxu0 0.0
      %3068 = vmatpush1.msra.mxu0 0.0
      %3069 = vmatprep.subr.mxu0 0.0
      %3070 = vmatpush1.msra.mxu0 0.0
      %3071 = vmatprep.mubr.f32.mxu0 0.0
      %3072 = vmatmul.mubr.f32.gmra.mrb[0].mxu0 %v2935
      %v3073 = vpop.f32.mrb[0].mxu0
      %v3074 = vadd.f32 0.0, %v3073
      %v3075 = vpop.f32.mrb[0].mxu0
      %3076 = vmatprep.mubr.f32.mxu0 0.0
      %3077 = vmatmul.mubr.f32.gmra.mrb[0].mxu0 %v2937
      %v3078 = vpop.f32.mrb[0].mxu0
      %v3079 = vadd.f32 0.0, %v3078
      %v3080 = vpop.f32.mrb[0].mxu0
      %3081 = vmatprep.mubr.f32.mxu0 0.0
      %3082 = vmatmul.mubr.f32.gmra.mrb[0].mxu0 %v2939
      %v3083 = vpop.f32.mrb[0].mxu0
      %v3084 = vadd.f32 0.0, %v3083
      %v3085 = vpop.f32.mrb[0].mxu0
      %3086 = vmatprep.mubr.f32.mxu0 0.0
      %3087 = vmatmul.mubr.f32.gmra.mrb[0].mxu0 %v2941
      %v3088 = vpop.f32.mrb[0].mxu0
      %v3089 = vadd.f32 0.0, %v3088
      %v3090 = vpop.f32.mrb[0].mxu0
      %3091 = vmatprep.mubr.f32.mxu0 0.0
      %3092 = vmatmul.mubr.f32.gmra.mrb[0].mxu0 %v2943
      %v3093 = vpop.f32.mrb[0].mxu0
      %v3094 = vadd.f32 0.0, %v3093
      %v3095 = vpop.f32.mrb[0].mxu0
      %3096 = vmatprep.mubr.f32.mxu0 0.0
      %3097 = vmatmul.mubr.f32.gmra.mrb[0].mxu0 %v2945
      %v3098 = vpop.f32.mrb[0].mxu0
      %v3099 = vadd.f32 0.0, %v3098
      %v3100 = vpop.f32.mrb[0].mxu0
      %3101 = vmatprep.mubr.f32.mxu0 0.0
      %3102 = vmatmul.mubr.f32.gmra.mrb[0].mxu0 %v2947
      %v3103 = vpop.f32.mrb[0].mxu0
      %v3104 = vadd.f32 0.0, %v3103
      %v3105 = vpop.f32.mrb[0].mxu0
      %3106 = vmatprep.mubr.f32.mxu0 0.0
      %3107 = vmatmul.mubr.f32.gmra.mrb[0].mxu0 %v2949
      %v3108 = vpop.f32.mrb[0].mxu0
      %v3109 = vadd.f32 0.0, %v3108
      %v3110 = vpop.f32.mrb[0].mxu0
      %3111 = vmatprep.mubr.f32.mxu0 0.0
      %3112 = vmatmul.mubr.f32.gmra.mrb[0].mxu0 %v2951
      %v3113 = vpop.f32.mrb[0].mxu0
      %v3114 = vadd.f32 0.0, %v3113
      %v3115 = vpop.f32.mrb[0].mxu0
      %3116 = vmatprep.mubr.f32.mxu0 0.0
      %3117 = vmatmul.mubr.f32.gmra.mrb[0].mxu0 %v2953
      %v3118 = vpop.f32.mrb[0].mxu0
      %v3119 = vadd.f32 0.0, %v3118
      %v3120 = vpop.f32.mrb[0].mxu0
      %3121 = vmatprep.mubr.f32.mxu0 0.0
      %3122 = vmatmul.mubr.f32.gmra.mrb[0].mxu0 %v2955
      %v3123 = vpop.f32.mrb[0].mxu0
      %v3124 = vadd.f32 0.0, %v3123
      %v3125 = vpop.f32.mrb[0].mxu0
      %3126 = vmatprep.mubr.f32.mxu0 0.0
      %3127 = vmatmul.mubr.f32.gmra.mrb[0].mxu0 %v2957
      %v3128 = vpop.f32.mrb[0].mxu0
      %v3129 = vadd.f32 0.0, %v3128
      %v3130 = vpop.f32.mrb[0].mxu0
      %3131 = vmatprep.mubr.f32.mxu0 0.0
      %3132 = vmatmul.mubr.f32.gmra.mrb[0].mxu0 %v2959
      %v3133 = vpop.f32.mrb[0].mxu0
      %v3134 = vadd.f32 0.0, %v3133
      %v3135 = vpop.f32.mrb[0].mxu0
      %3136 = vmatprep.mubr.f32.mxu0 0.0
      %3137 = vmatmul.mubr.f32.gmra.mrb[0].mxu0 %v2961
      %v3138 = vpop.f32.mrb[0].mxu0
      %v3139 = vadd.f32 0.0, %v3138
      %v3140 = vpop.f32.mrb[0].mxu0
      %3141 = vmatprep.mubr.f32.mxu0 0.0
      %3142 = vmatmul.mubr.f32.gmra.mrb[0].mxu0 %v2963
      %v3143 = vpop.f32.mrb[0].mxu0
      %v3144 = vadd.f32 0.0, %v3143
      %v3145 = vpop.f32.mrb[0].mxu0
      %3146 = vmatprep.mubr.f32.mxu0 0.0
      %3147 = vmatmul.mubr.f32.gmra.mrb[0].mxu0 %v2965
      %v3148 = vpop.f32.mrb[0].mxu0
      %v3149 = vadd.f32 0.0, %v3148
      %v3150 = vpop.f32.mrb[0].mxu0
      %3151 = vmatprep.mubr.f32.mxu0 0.0
      %3152 = vmatmul.mubr.f32.gmra.mrb[0].mxu0 %v2967
      %v3153 = vpop.f32.mrb[0].mxu0
      %v3154 = vadd.f32 0.0, %v3153
      %v3155 = vpop.f32.mrb[0].mxu0
      %3156 = vmatprep.mubr.f32.mxu0 0.0
      %3157 = vmatmul.mubr.f32.gmra.mrb[0].mxu0 %v2969
      %v3158 = vpop.f32.mrb[0].mxu0
      %v3159 = vadd.f32 0.0, %v3158
      %v3160 = vpop.f32.mrb[0].mxu0
      %3161 = vmatprep.mubr.f32.mxu0 0.0
      %3162 = vmatmul.mubr.f32.gmra.mrb[0].mxu0 %v2971
      %v3163 = vpop.f32.mrb[0].mxu0
      %v3164 = vadd.f32 0.0, %v3163
      %v3165 = vpop.f32.mrb[0].mxu0
      %3166 = vmatprep.mubr.f32.mxu0 0.0
      %3167 = vmatmul.mubr.f32.gmra.mrb[0].mxu0 %v2973
      %v3168 = vpop.f32.mrb[0].mxu0
      %v3169 = vadd.f32 0.0, %v3168
      %v3170 = vpop.f32.mrb[0].mxu0
      %3171 = vmatprep.mubr.f32.mxu0 0.0
      %3172 = vmatmul.mubr.f32.gmra.mrb[0].mxu0 %v2975
      %v3173 = vpop.f32.mrb[0].mxu0
      %v3174 = vadd.f32 0.0, %v3173
      %v3175 = vpop.f32.mrb[0].mxu0
      %3176 = vmatprep.mubr.f32.mxu0 0.0
      %3177 = vmatmul.mubr.f32.gmra.mrb[0].mxu0 %v2977
      %v3178 = vpop.f32.mrb[0].mxu0
      %v3179 = vadd.f32 0.0, %v3178
      %v3180 = vpop.f32.mrb[0].mxu0
      %3181 = vmatprep.mubr.f32.mxu0 0.0
      %3182 = vmatmul.mubr.f32.gmra.mrb[0].mxu0 %v2979
      %v3183 = vpop.f32.mrb[0].mxu0
      %v3184 = vadd.f32 0.0, %v3183
      %v3185 = vpop.f32.mrb[0].mxu0
      %3186 = vmatprep.mubr.f32.mxu0 0.0
      %3187 = vmatmul.mubr.f32.gmra.mrb[0].mxu0 %v2981
      %v3188 = vpop.f32.mrb[0].mxu0
      %v3189 = vadd.f32 0.0, %v3188
      %v3190 = vpop.f32.mrb[0].mxu0
      %3191 = vmatprep.mubr.f32.mxu0 0.0
      %3192 = vmatmul.mubr.f32.gmra.mrb[0].mxu0 %v2983
      %v3193 = vpop.f32.mrb[0].mxu0
      %v3194 = vadd.f32 0.0, %v3193
      %v3195 = vpop.f32.mrb[0].mxu0
      %3196 = vmatprep.mubr.f32.mxu0 0.0
      %3197 = vmatmul.mubr.f32.gmra.mrb[0].mxu0 %v2985
      %v3198 = vpop.f32.mrb[0].mxu0
      %v3199 = vadd.f32 0.0, %v3198
      %v3200 = vpop.f32.mrb[0].mxu0
      %3201 = vmatprep.mubr.f32.mxu0 0.0
      %3202 = vmatmul.mubr.f32.gmra.mrb[0].mxu0 %v2987
      %v3203 = vpop.f32.mrb[0].mxu0
      %v3204 = vadd.f32 0.0, %v3203
      %v3205 = vpop.f32.mrb[0].mxu0
      %3206 = vmatprep.mubr.f32.mxu0 0.0
      %3207 = vmatmul.mubr.f32.gmra.mrb[0].mxu0 %v2989
      %v3208 = vpop.f32.mrb[0].mxu0
      %v3209 = vadd.f32 0.0, %v3208
      %v3210 = vpop.f32.mrb[0].mxu0
      %3211 = vmatprep.mubr.f32.mxu0 0.0
      %3212 = vmatmul.mubr.f32.gmra.mrb[0].mxu0 %v2991
      %v3213 = vpop.f32.mrb[0].mxu0
      %v3214 = vadd.f32 0.0, %v3213
      %v3215 = vpop.f32.mrb[0].mxu0
      %3216 = vmatprep.mubr.f32.mxu0 0.0
      %3217 = vmatmul.mubr.f32.gmra.mrb[0].mxu0 %v2993
      %v3218 = vpop.f32.mrb[0].mxu0
      %v3219 = vadd.f32 0.0, %v3218
      %v3220 = vpop.f32.mrb[0].mxu0
      %3221 = vmatprep.mubr.f32.mxu0 0.0
      %3222 = vmatmul.mubr.f32.gmra.mrb[0].mxu0 %v2995
      %v3223 = vpop.f32.mrb[0].mxu0
      %v3224 = vadd.f32 0.0, %v3223
      %v3225 = vpop.f32.mrb[0].mxu0
      %3226 = vmatprep.mubr.f32.mxu0 0.0
      %3227 = vmatmul.mubr.f32.gmra.mrb[0].mxu0 %v2997
      %v3228 = vpop.f32.mrb[0].mxu0
      %v3229 = vadd.f32 0.0, %v3228
      %v3230 = vpop.f32.mrb[0].mxu0
      %3231 = vmatprep.mubr.f32.mxu0 0.0
      %3232 = vmatmul.mubr.f32.gmra.mrb[0].mxu0 %v2999
      %v3233 = vpop.f32.mrb[0].mxu0
      %v3234 = vadd.f32 0.0, %v3233
      %v3235 = vpop.f32.mrb[0].mxu0
      %3236 = vmatprep.mubr.f32.mxu0 0.0
      %3237 = vmatmul.mubr.f32.gmra.mrb[0].mxu0 %v3001
      %v3238 = vpop.f32.mrb[0].mxu0
      %v3239 = vadd.f32 0.0, %v3238
      %v3240 = vpop.f32.mrb[0].mxu0
      %3241 = vmatprep.mubr.f32.mxu0 0.0
      %3242 = vmatmul.mubr.f32.gmra.mrb[0].mxu0 %v3003
      %v3243 = vpop.f32.mrb[0].mxu0
      %v3244 = vadd.f32 0.0, %v3243
      %v3245 = vpop.f32.mrb[0].mxu0
      %3246 = vmatprep.mubr.f32.mxu0 0.0
      %3247 = vmatmul.mubr.f32.gmra.mrb[0].mxu0 %v3005
      %v3248 = vpop.f32.mrb[0].mxu0
      %v3249 = vadd.f32 0.0, %v3248
      %v3250 = vpop.f32.mrb[0].mxu0
      %3251 = vdwg.mxu0
      %v3252 = vadd.f32 %v2823, %v3074
      %v3253 = vadd.f32 %v2824, %v3079
      %v3254 = vadd.f32 %v2825, %v3084
      %v3255 = vadd.f32 %v2826, %v3089
      %v3256 = vadd.f32 %v2827, %v3094
      %v3257 = vadd.f32 %v2828, %v3099
      %v3258 = vadd.f32 %v2829, %v3104
      %v3259 = vadd.f32 %v2830, %v3109
      %v3260 = vadd.f32 %v2831, %v3114
      %v3261 = vadd.f32 %v2832, %v3119
      %v3262 = vadd.f32 %v2833, %v3124
      %v3263 = vadd.f32 %v2834, %v3129
      %v3264 = vadd.f32 %v2835, %v3134
      %v3265 = vadd.f32 %v2836, %v3139
      %v3266 = vadd.f32 %v2837, %v3144
      %v3267 = vadd.f32 %v2838, %v3149
      %v3268 = vadd.f32 %v2839, %v3154
      %v3269 = vadd.f32 %v2840, %v3159
      %v3270 = vadd.f32 %v2841, %v3164
      %v3271 = vadd.f32 %v2842, %v3169
      %v3272 = vadd.f32 %v2843, %v3174
      %v3273 = vadd.f32 %v2844, %v3179
      %v3274 = vadd.f32 %v2845, %v3184
      %v3275 = vadd.f32 %v2846, %v3189
      %v3276 = vadd.f32 %v2847, %v3194
      %v3277 = vadd.f32 %v2848, %v3199
      %v3278 = vadd.f32 %v2849, %v3204
      %v3279 = vadd.f32 %v2850, %v3209
      %v3280 = vadd.f32 %v2851, %v3214
      %v3281 = vadd.f32 %v2852, %v3219
      %v3282 = vadd.f32 %v2853, %v3224
      %v3283 = vadd.f32 %v2854, %v3229
      %v3284 = vadd.f32 %v2855, %v3234
      %v3285 = vadd.f32 %v2856, %v3239
      %v3286 = vadd.f32 %v2857, %v3244
      %v3287 = vadd.f32 %v2858, %v3249
      %s3288 = scalar_lea.vmem %s1, 64
      %v3289 = vld [vmem:[%s3288] sm:$0xff]
      %vm3290 = vcmask 1041408
      %v3291 = vrot.slane %v200, 6
      %v3292 = vrot.slane %v201, 6
      %v3293 = vsel %vm3290, %v3291, %v3292
      %v3294 = vrot.slane %v202, 6
      %v3295 = vsel %vm3290, %v3292, %v3294
      %v3296 = vrot.slane %v203, 6
      %v3297 = vsel %vm3290, %v3294, %v3296
      %v3298 = vrot.slane %v204, 6
      %v3299 = vsel %vm3290, %v3296, %v3298
      %v3300 = vrot.slane %v205, 6
      %v3301 = vsel %vm3290, %v3298, %v3300
      %v3302 = vrot.slane %v206, 6
      %v3303 = vsel %vm3290, %v3300, %v3302
      %v3304 = vrot.slane %v207, 6
      %v3305 = vsel %vm3290, %v3302, %v3304
      %v3306 = vrot.slane %v208, 6
      %v3307 = vsel %vm3290, %v3304, %v3306
      %v3308 = vrot.slane %v209, 6
      %v3309 = vsel %vm3290, %v3306, %v3308
      %v3310 = vrot.slane %v210, 6
      %v3311 = vsel %vm3290, %v3308, %v3310
      %v3312 = vrot.slane %v211, 6
      %v3313 = vsel %vm3290, %v3310, %v3312
      %v3314 = vrot.slane %v212, 6
      %v3315 = vsel %vm3290, %v3312, %v3314
      %v3316 = vrot.slane %v213, 6
      %v3317 = vsel %vm3290, %v3314, %v3316
      %v3318 = vrot.slane %v214, 6
      %v3319 = vsel %vm3290, %v3316, %v3318
      %v3320 = vrot.slane %v215, 6
      %v3321 = vsel %vm3290, %v3318, %v3320
      %v3322 = vrot.slane %v216, 6
      %v3323 = vsel %vm3290, %v3320, %v3322
      %v3324 = vrot.slane %v217, 6
      %v3325 = vsel %vm3290, %v3322, %v3324
      %v3326 = vrot.slane %v218, 6
      %v3327 = vsel %vm3290, %v3324, %v3326
      %v3328 = vrot.slane %v219, 6
      %v3329 = vsel %vm3290, %v3326, %v3328
      %v3330 = vrot.slane %v220, 6
      %v3331 = vsel %vm3290, %v3328, %v3330
      %v3332 = vrot.slane %v221, 6
      %v3333 = vsel %vm3290, %v3330, %v3332
      %v3334 = vrot.slane %v222, 6
      %v3335 = vsel %vm3290, %v3332, %v3334
      %v3336 = vrot.slane %v223, 6
      %v3337 = vsel %vm3290, %v3334, %v3336
      %v3338 = vrot.slane %v224, 6
      %v3339 = vsel %vm3290, %v3336, %v3338
      %v3340 = vrot.slane %v225, 6
      %v3341 = vsel %vm3290, %v3338, %v3340
      %v3342 = vrot.slane %v226, 6
      %v3343 = vsel %vm3290, %v3340, %v3342
      %v3344 = vrot.slane %v227, 6
      %v3345 = vsel %vm3290, %v3342, %v3344
      %v3346 = vrot.slane %v228, 6
      %v3347 = vsel %vm3290, %v3344, %v3346
      %v3348 = vrot.slane %v229, 6
      %v3349 = vsel %vm3290, %v3346, %v3348
      %v3350 = vrot.slane %v230, 6
      %v3351 = vsel %vm3290, %v3348, %v3350
      %v3352 = vrot.slane %v231, 6
      %v3353 = vsel %vm3290, %v3350, %v3352
      %v3354 = vrot.slane %v232, 6
      %v3355 = vsel %vm3290, %v3352, %v3354
      %v3356 = vrot.slane %v233, 6
      %v3357 = vsel %vm3290, %v3354, %v3356
      %v3358 = vrot.slane %v234, 6
      %v3359 = vsel %vm3290, %v3356, %v3358
      %v3360 = vrot.slane %v235, 6
      %v3361 = vsel %vm3290, %v3358, %v3360
      %v3362 = vrot.slane %v236, 6
      %v3363 = vsel %vm3290, %v3360, %v3362
      %v3364 = vsel %vm351, %v3293, 0
      %v3366 = vsel %vm351, %v3295, 0
      %v3368 = vsel %vm351, %v3297, 0
      %v3370 = vsel %vm351, %v3299, 0
      %v3372 = vsel %vm351, %v3301, 0
      %v3374 = vsel %vm351, %v3303, 0
      %v3376 = vsel %vm351, %v3305, 0
      %v3378 = vsel %vm351, %v3307, 0
      %v3380 = vsel %vm351, %v3309, 0
      %v3382 = vsel %vm351, %v3311, 0
      %v3384 = vsel %vm351, %v3313, 0
      %v3386 = vsel %vm351, %v3315, 0
      %v3388 = vsel %vm351, %v3317, 0
      %v3390 = vsel %vm351, %v3319, 0
      %v3392 = vsel %vm351, %v3321, 0
      %v3394 = vsel %vm351, %v3323, 0
      %v3396 = vsel %vm351, %v3325, 0
      %v3398 = vsel %vm351, %v3327, 0
      %v3400 = vsel %vm351, %v3329, 0
      %v3402 = vsel %vm351, %v3331, 0
      %v3404 = vsel %vm351, %v3333, 0
      %v3406 = vsel %vm351, %v3335, 0
      %v3408 = vsel %vm351, %v3337, 0
      %v3410 = vsel %vm351, %v3339, 0
      %v3412 = vsel %vm351, %v3341, 0
      %v3414 = vsel %vm351, %v3343, 0
      %v3416 = vsel %vm351, %v3345, 0
      %v3418 = vsel %vm351, %v3347, 0
      %v3420 = vsel %vm351, %v3349, 0
      %v3422 = vsel %vm351, %v3351, 0
      %v3424 = vsel %vm351, %v3353, 0
      %v3426 = vsel %vm351, %v3355, 0
      %v3428 = vsel %vm351, %v3357, 0
      %v3430 = vsel %vm351, %v3359, 0
      %v3432 = vsel %vm351, %v3361, 0
      %v3434 = vsel %vm351, %v3363, 0
      %3436 = vmatprep.subr.mxu0 0.0
      %3437 = vmatpush1.msra.mxu0 %v3289
      %3438 = vmatprep.subr.mxu0 0.0
      %3439 = vmatpush1.msra.mxu0 0.0
      %3440 = vmatprep.subr.mxu0 0.0
      %3441 = vmatpush1.msra.mxu0 0.0
      %3442 = vmatprep.subr.mxu0 0.0
      %3443 = vmatpush1.msra.mxu0 0.0
      %3444 = vmatprep.subr.mxu0 0.0
      %3445 = vmatpush1.msra.mxu0 0.0
      %3446 = vmatprep.subr.mxu0 0.0
      %3447 = vmatpush1.msra.mxu0 0.0
      %3448 = vmatprep.subr.mxu0 0.0
      %3449 = vmatpush1.msra.mxu0 0.0
      %3450 = vmatprep.subr.mxu0 0.0
      %3451 = vmatpush1.msra.mxu0 0.0
      %3452 = vmatprep.subr.mxu0 0.0
      %3453 = vmatpush1.msra.mxu0 0.0
      %3454 = vmatprep.subr.mxu0 0.0
      %3455 = vmatpush1.msra.mxu0 0.0
      %3456 = vmatprep.subr.mxu0 0.0
      %3457 = vmatpush1.msra.mxu0 0.0
      %3458 = vmatprep.subr.mxu0 0.0
      %3459 = vmatpush1.msra.mxu0 0.0
      %3460 = vmatprep.subr.mxu0 0.0
      %3461 = vmatpush1.msra.mxu0 0.0
      %3462 = vmatprep.subr.mxu0 0.0
      %3463 = vmatpush1.msra.mxu0 0.0
      %3464 = vmatprep.subr.mxu0 0.0
      %3465 = vmatpush1.msra.mxu0 0.0
      %3466 = vmatprep.subr.mxu0 0.0
      %3467 = vmatpush1.msra.mxu0 0.0
      %3468 = vmatprep.subr.mxu0 0.0
      %3469 = vmatpush1.msra.mxu0 0.0
      %3470 = vmatprep.subr.mxu0 0.0
      %3471 = vmatpush1.msra.mxu0 0.0
      %3472 = vmatprep.subr.mxu0 0.0
      %3473 = vmatpush1.msra.mxu0 0.0
      %3474 = vmatprep.subr.mxu0 0.0
      %3475 = vmatpush1.msra.mxu0 0.0
      %3476 = vmatprep.subr.mxu0 0.0
      %3477 = vmatpush1.msra.mxu0 0.0
      %3478 = vmatprep.subr.mxu0 0.0
      %3479 = vmatpush1.msra.mxu0 0.0
      %3480 = vmatprep.subr.mxu0 0.0
      %3481 = vmatpush1.msra.mxu0 0.0
      %3482 = vmatprep.subr.mxu0 0.0
      %3483 = vmatpush1.msra.mxu0 0.0
      %3484 = vmatprep.subr.mxu0 0.0
      %3485 = vmatpush1.msra.mxu0 0.0
      %3486 = vmatprep.subr.mxu0 0.0
      %3487 = vmatpush1.msra.mxu0 0.0
      %3488 = vmatprep.subr.mxu0 0.0
      %3489 = vmatpush1.msra.mxu0 0.0
      %3490 = vmatprep.subr.mxu0 0.0
      %3491 = vmatpush1.msra.mxu0 0.0
      %3492 = vmatprep.subr.mxu0 0.0
      %3493 = vmatpush1.msra.mxu0 0.0
      %3494 = vmatprep.subr.mxu0 0.0
      %3495 = vmatpush1.msra.mxu0 0.0
      %3496 = vmatprep.subr.mxu0 0.0
      %3497 = vmatpush1.msra.mxu0 0.0
      %3498 = vmatprep.subr.mxu0 0.0
      %3499 = vmatpush1.msra.mxu0 0.0
      %3500 = vmatprep.mubr.f32.mxu0 0.0
      %3501 = vmatmul.mubr.f32.gmra.mrb[0].mxu0 %v3364
      %v3502 = vpop.f32.mrb[0].mxu0
      %v3503 = vadd.f32 0.0, %v3502
      %v3504 = vpop.f32.mrb[0].mxu0
      %3505 = vmatprep.mubr.f32.mxu0 0.0
      %3506 = vmatmul.mubr.f32.gmra.mrb[0].mxu0 %v3366
      %v3507 = vpop.f32.mrb[0].mxu0
      %v3508 = vadd.f32 0.0, %v3507
      %v3509 = vpop.f32.mrb[0].mxu0
      %3510 = vmatprep.mubr.f32.mxu0 0.0
      %3511 = vmatmul.mubr.f32.gmra.mrb[0].mxu0 %v3368
      %v3512 = vpop.f32.mrb[0].mxu0
      %v3513 = vadd.f32 0.0, %v3512
      %v3514 = vpop.f32.mrb[0].mxu0
      %3515 = vmatprep.mubr.f32.mxu0 0.0
      %3516 = vmatmul.mubr.f32.gmra.mrb[0].mxu0 %v3370
      %v3517 = vpop.f32.mrb[0].mxu0
      %v3518 = vadd.f32 0.0, %v3517
      %v3519 = vpop.f32.mrb[0].mxu0
      %3520 = vmatprep.mubr.f32.mxu0 0.0
      %3521 = vmatmul.mubr.f32.gmra.mrb[0].mxu0 %v3372
      %v3522 = vpop.f32.mrb[0].mxu0
      %v3523 = vadd.f32 0.0, %v3522
      %v3524 = vpop.f32.mrb[0].mxu0
      %3525 = vmatprep.mubr.f32.mxu0 0.0
      %3526 = vmatmul.mubr.f32.gmra.mrb[0].mxu0 %v3374
      %v3527 = vpop.f32.mrb[0].mxu0
      %v3528 = vadd.f32 0.0, %v3527
      %v3529 = vpop.f32.mrb[0].mxu0
      %3530 = vmatprep.mubr.f32.mxu0 0.0
      %3531 = vmatmul.mubr.f32.gmra.mrb[0].mxu0 %v3376
      %v3532 = vpop.f32.mrb[0].mxu0
      %v3533 = vadd.f32 0.0, %v3532
      %v3534 = vpop.f32.mrb[0].mxu0
      %3535 = vmatprep.mubr.f32.mxu0 0.0
      %3536 = vmatmul.mubr.f32.gmra.mrb[0].mxu0 %v3378
      %v3537 = vpop.f32.mrb[0].mxu0
      %v3538 = vadd.f32 0.0, %v3537
      %v3539 = vpop.f32.mrb[0].mxu0
      %3540 = vmatprep.mubr.f32.mxu0 0.0
      %3541 = vmatmul.mubr.f32.gmra.mrb[0].mxu0 %v3380
      %v3542 = vpop.f32.mrb[0].mxu0
      %v3543 = vadd.f32 0.0, %v3542
      %v3544 = vpop.f32.mrb[0].mxu0
      %3545 = vmatprep.mubr.f32.mxu0 0.0
      %3546 = vmatmul.mubr.f32.gmra.mrb[0].mxu0 %v3382
      %v3547 = vpop.f32.mrb[0].mxu0
      %v3548 = vadd.f32 0.0, %v3547
      %v3549 = vpop.f32.mrb[0].mxu0
      %3550 = vmatprep.mubr.f32.mxu0 0.0
      %3551 = vmatmul.mubr.f32.gmra.mrb[0].mxu0 %v3384
      %v3552 = vpop.f32.mrb[0].mxu0
      %v3553 = vadd.f32 0.0, %v3552
      %v3554 = vpop.f32.mrb[0].mxu0
      %3555 = vmatprep.mubr.f32.mxu0 0.0
      %3556 = vmatmul.mubr.f32.gmra.mrb[0].mxu0 %v3386
      %v3557 = vpop.f32.mrb[0].mxu0
      %v3558 = vadd.f32 0.0, %v3557
      %v3559 = vpop.f32.mrb[0].mxu0
      %3560 = vmatprep.mubr.f32.mxu0 0.0
      %3561 = vmatmul.mubr.f32.gmra.mrb[0].mxu0 %v3388
      %v3562 = vpop.f32.mrb[0].mxu0
      %v3563 = vadd.f32 0.0, %v3562
      %v3564 = vpop.f32.mrb[0].mxu0
      %3565 = vmatprep.mubr.f32.mxu0 0.0
      %3566 = vmatmul.mubr.f32.gmra.mrb[0].mxu0 %v3390
      %v3567 = vpop.f32.mrb[0].mxu0
      %v3568 = vadd.f32 0.0, %v3567
      %v3569 = vpop.f32.mrb[0].mxu0
      %3570 = vmatprep.mubr.f32.mxu0 0.0
      %3571 = vmatmul.mubr.f32.gmra.mrb[0].mxu0 %v3392
      %v3572 = vpop.f32.mrb[0].mxu0
      %v3573 = vadd.f32 0.0, %v3572
      %v3574 = vpop.f32.mrb[0].mxu0
      %3575 = vmatprep.mubr.f32.mxu0 0.0
      %3576 = vmatmul.mubr.f32.gmra.mrb[0].mxu0 %v3394
      %v3577 = vpop.f32.mrb[0].mxu0
      %v3578 = vadd.f32 0.0, %v3577
      %v3579 = vpop.f32.mrb[0].mxu0
      %3580 = vmatprep.mubr.f32.mxu0 0.0
      %3581 = vmatmul.mubr.f32.gmra.mrb[0].mxu0 %v3396
      %v3582 = vpop.f32.mrb[0].mxu0
      %v3583 = vadd.f32 0.0, %v3582
      %v3584 = vpop.f32.mrb[0].mxu0
      %3585 = vmatprep.mubr.f32.mxu0 0.0
      %3586 = vmatmul.mubr.f32.gmra.mrb[0].mxu0 %v3398
      %v3587 = vpop.f32.mrb[0].mxu0
      %v3588 = vadd.f32 0.0, %v3587
      %v3589 = vpop.f32.mrb[0].mxu0
      %3590 = vmatprep.mubr.f32.mxu0 0.0
      %3591 = vmatmul.mubr.f32.gmra.mrb[0].mxu0 %v3400
      %v3592 = vpop.f32.mrb[0].mxu0
      %v3593 = vadd.f32 0.0, %v3592
      %v3594 = vpop.f32.mrb[0].mxu0
      %3595 = vmatprep.mubr.f32.mxu0 0.0
      %3596 = vmatmul.mubr.f32.gmra.mrb[0].mxu0 %v3402
      %v3597 = vpop.f32.mrb[0].mxu0
      %v3598 = vadd.f32 0.0, %v3597
      %v3599 = vpop.f32.mrb[0].mxu0
      %3600 = vmatprep.mubr.f32.mxu0 0.0
      %3601 = vmatmul.mubr.f32.gmra.mrb[0].mxu0 %v3404
      %v3602 = vpop.f32.mrb[0].mxu0
      %v3603 = vadd.f32 0.0, %v3602
      %v3604 = vpop.f32.mrb[0].mxu0
      %3605 = vmatprep.mubr.f32.mxu0 0.0
      %3606 = vmatmul.mubr.f32.gmra.mrb[0].mxu0 %v3406
      %v3607 = vpop.f32.mrb[0].mxu0
      %v3608 = vadd.f32 0.0, %v3607
      %v3609 = vpop.f32.mrb[0].mxu0
      %3610 = vmatprep.mubr.f32.mxu0 0.0
      %3611 = vmatmul.mubr.f32.gmra.mrb[0].mxu0 %v3408
      %v3612 = vpop.f32.mrb[0].mxu0
      %v3613 = vadd.f32 0.0, %v3612
      %v3614 = vpop.f32.mrb[0].mxu0
      %3615 = vmatprep.mubr.f32.mxu0 0.0
      %3616 = vmatmul.mubr.f32.gmra.mrb[0].mxu0 %v3410
      %v3617 = vpop.f32.mrb[0].mxu0
      %v3618 = vadd.f32 0.0, %v3617
      %v3619 = vpop.f32.mrb[0].mxu0
      %3620 = vmatprep.mubr.f32.mxu0 0.0
      %3621 = vmatmul.mubr.f32.gmra.mrb[0].mxu0 %v3412
      %v3622 = vpop.f32.mrb[0].mxu0
      %v3623 = vadd.f32 0.0, %v3622
      %v3624 = vpop.f32.mrb[0].mxu0
      %3625 = vmatprep.mubr.f32.mxu0 0.0
      %3626 = vmatmul.mubr.f32.gmra.mrb[0].mxu0 %v3414
      %v3627 = vpop.f32.mrb[0].mxu0
      %v3628 = vadd.f32 0.0, %v3627
      %v3629 = vpop.f32.mrb[0].mxu0
      %3630 = vmatprep.mubr.f32.mxu0 0.0
      %3631 = vmatmul.mubr.f32.gmra.mrb[0].mxu0 %v3416
      %v3632 = vpop.f32.mrb[0].mxu0
      %v3633 = vadd.f32 0.0, %v3632
      %v3634 = vpop.f32.mrb[0].mxu0
      %3635 = vmatprep.mubr.f32.mxu0 0.0
      %3636 = vmatmul.mubr.f32.gmra.mrb[0].mxu0 %v3418
      %v3637 = vpop.f32.mrb[0].mxu0
      %v3638 = vadd.f32 0.0, %v3637
      %v3639 = vpop.f32.mrb[0].mxu0
      %3640 = vmatprep.mubr.f32.mxu0 0.0
      %3641 = vmatmul.mubr.f32.gmra.mrb[0].mxu0 %v3420
      %v3642 = vpop.f32.mrb[0].mxu0
      %v3643 = vadd.f32 0.0, %v3642
      %v3644 = vpop.f32.mrb[0].mxu0
      %3645 = vmatprep.mubr.f32.mxu0 0.0
      %3646 = vmatmul.mubr.f32.gmra.mrb[0].mxu0 %v3422
      %v3647 = vpop.f32.mrb[0].mxu0
      %v3648 = vadd.f32 0.0, %v3647
      %v3649 = vpop.f32.mrb[0].mxu0
      %3650 = vmatprep.mubr.f32.mxu0 0.0
      %3651 = vmatmul.mubr.f32.gmra.mrb[0].mxu0 %v3424
      %v3652 = vpop.f32.mrb[0].mxu0
      %v3653 = vadd.f32 0.0, %v3652
      %v3654 = vpop.f32.mrb[0].mxu0
      %3655 = vmatprep.mubr.f32.mxu0 0.0
      %3656 = vmatmul.mubr.f32.gmra.mrb[0].mxu0 %v3426
      %v3657 = vpop.f32.mrb[0].mxu0
      %v3658 = vadd.f32 0.0, %v3657
      %v3659 = vpop.f32.mrb[0].mxu0
      %3660 = vmatprep.mubr.f32.mxu0 0.0
      %3661 = vmatmul.mubr.f32.gmra.mrb[0].mxu0 %v3428
      %v3662 = vpop.f32.mrb[0].mxu0
      %v3663 = vadd.f32 0.0, %v3662
      %v3664 = vpop.f32.mrb[0].mxu0
      %3665 = vmatprep.mubr.f32.mxu0 0.0
      %3666 = vmatmul.mubr.f32.gmra.mrb[0].mxu0 %v3430
      %v3667 = vpop.f32.mrb[0].mxu0
      %v3668 = vadd.f32 0.0, %v3667
      %v3669 = vpop.f32.mrb[0].mxu0
      %3670 = vmatprep.mubr.f32.mxu0 0.0
      %3671 = vmatmul.mubr.f32.gmra.mrb[0].mxu0 %v3432
      %v3672 = vpop.f32.mrb[0].mxu0
      %v3673 = vadd.f32 0.0, %v3672
      %v3674 = vpop.f32.mrb[0].mxu0
      %3675 = vmatprep.mubr.f32.mxu0 0.0
      %3676 = vmatmul.mubr.f32.gmra.mrb[0].mxu0 %v3434
      %v3677 = vpop.f32.mrb[0].mxu0
      %v3678 = vadd.f32 0.0, %v3677
      %v3679 = vpop.f32.mrb[0].mxu0
      %3680 = vdwg.mxu0
      %v3681 = vadd.f32 %v3252, %v3503
      %v3682 = vadd.f32 %v3253, %v3508
      %v3683 = vadd.f32 %v3254, %v3513
      %v3684 = vadd.f32 %v3255, %v3518
      %v3685 = vadd.f32 %v3256, %v3523
      %v3686 = vadd.f32 %v3257, %v3528
      %v3687 = vadd.f32 %v3258, %v3533
      %v3688 = vadd.f32 %v3259, %v3538
      %v3689 = vadd.f32 %v3260, %v3543
      %v3690 = vadd.f32 %v3261, %v3548
      %v3691 = vadd.f32 %v3262, %v3553
      %v3692 = vadd.f32 %v3263, %v3558
      %v3693 = vadd.f32 %v3264, %v3563
      %v3694 = vadd.f32 %v3265, %v3568
      %v3695 = vadd.f32 %v3266, %v3573
      %v3696 = vadd.f32 %v3267, %v3578
      %v3697 = vadd.f32 %v3268, %v3583
      %v3698 = vadd.f32 %v3269, %v3588
      %v3699 = vadd.f32 %v3270, %v3593
      %v3700 = vadd.f32 %v3271, %v3598
      %v3701 = vadd.f32 %v3272, %v3603
      %v3702 = vadd.f32 %v3273, %v3608
      %v3703 = vadd.f32 %v3274, %v3613
      %v3704 = vadd.f32 %v3275, %v3618
      %v3705 = vadd.f32 %v3276, %v3623
      %v3706 = vadd.f32 %v3277, %v3628
      %v3707 = vadd.f32 %v3278, %v3633
      %v3708 = vadd.f32 %v3279, %v3638
      %v3709 = vadd.f32 %v3280, %v3643
      %v3710 = vadd.f32 %v3281, %v3648
      %v3711 = vadd.f32 %v3282, %v3653
      %v3712 = vadd.f32 %v3283, %v3658
      %v3713 = vadd.f32 %v3284, %v3663
      %v3714 = vadd.f32 %v3285, %v3668
      %v3715 = vadd.f32 %v3286, %v3673
      %v3716 = vadd.f32 %v3287, %v3678
      %v3717 = vld [vmem:[%s2] sm:$0x1]
      %v3719 = vlaneseq
      %v3720 = vshrl.u32 %v3719, 7
      %v3721 = vsub.s32 0, %v3720
      %v3722 = vrot.slane %v3717, %v3721
      %v3724 = vadd.f32 %v3681, %v3722
      %v3725 = vadd.f32 %v3682, %v3722
      %v3726 = vadd.f32 %v3683, %v3722
      %v3727 = vadd.f32 %v3684, %v3722
      %v3728 = vadd.f32 %v3685, %v3722
      %v3729 = vadd.f32 %v3686, %v3722
      %v3730 = vadd.f32 %v3687, %v3722
      %v3731 = vadd.f32 %v3688, %v3722
      %v3732 = vadd.f32 %v3689, %v3722
      %v3733 = vadd.f32 %v3690, %v3722
      %v3734 = vadd.f32 %v3691, %v3722
      %v3735 = vadd.f32 %v3692, %v3722
      %v3736 = vadd.f32 %v3693, %v3722
      %v3737 = vadd.f32 %v3694, %v3722
      %v3738 = vadd.f32 %v3695, %v3722
      %v3739 = vadd.f32 %v3696, %v3722
      %v3740 = vadd.f32 %v3697, %v3722
      %v3741 = vadd.f32 %v3698, %v3722
      %v3742 = vadd.f32 %v3699, %v3722
      %v3743 = vadd.f32 %v3700, %v3722
      %v3744 = vadd.f32 %v3701, %v3722
      %v3745 = vadd.f32 %v3702, %v3722
      %v3746 = vadd.f32 %v3703, %v3722
      %v3747 = vadd.f32 %v3704, %v3722
      %v3748 = vadd.f32 %v3705, %v3722
      %v3749 = vadd.f32 %v3706, %v3722
      %v3750 = vadd.f32 %v3707, %v3722
      %v3751 = vadd.f32 %v3708, %v3722
      %v3752 = vadd.f32 %v3709, %v3722
      %v3753 = vadd.f32 %v3710, %v3722
      %v3754 = vadd.f32 %v3711, %v3722
      %v3755 = vadd.f32 %v3712, %v3722
      %v3756 = vadd.f32 %v3713, %v3722
      %v3757 = vadd.f32 %v3714, %v3722
      %v3758 = vadd.f32 %v3715, %v3722
      %v3759 = vadd.f32 %v3716, %v3722
      %3760 = vst [vmem:[%s192] sm:$0xff] %v3724
      %3761 = vst [vmem:[%s192 + $0x8] sm:$0xff] %v3725
      %3762 = vst [vmem:[%s192 + $0x10] sm:$0xff] %v3726
      %3763 = vst [vmem:[%s192 + $0x18] sm:$0xff] %v3727
      %3764 = vst [vmem:[%s192 + $0x20] sm:$0xff] %v3728
      %3765 = vst [vmem:[%s192 + $0x28] sm:$0xff] %v3729
      %3766 = vst [vmem:[%s192 + $0x30] sm:$0xff] %v3730
      %3767 = vst [vmem:[%s192 + $0x38] sm:$0xff] %v3731
      %3768 = vst [vmem:[%s192 + $0x40] sm:$0xff] %v3732
      %3769 = vst [vmem:[%s192 + $0x48] sm:$0xff] %v3733
      %3770 = vst [vmem:[%s192 + $0x50] sm:$0xff] %v3734
      %3771 = vst [vmem:[%s192 + $0x58] sm:$0xff] %v3735
      %3772 = vst [vmem:[%s192 + $0x60] sm:$0xff] %v3736
      %3773 = vst [vmem:[%s192 + $0x68] sm:$0xff] %v3737
      %3774 = vst [vmem:[%s192 + $0x70] sm:$0xff] %v3738
      %3775 = vst [vmem:[%s192 + $0x78] sm:$0xff] %v3739
      %3776 = vst [vmem:[%s192 + $0x80] sm:$0xff] %v3740
      %3777 = vst [vmem:[%s192 + $0x88] sm:$0xff] %v3741
      %3778 = vst [vmem:[%s192 + $0x90] sm:$0xff] %v3742
      %3779 = vst [vmem:[%s192 + $0x98] sm:$0xff] %v3743
      %3780 = vst [vmem:[%s192 + $0xa0] sm:$0xff] %v3744
      %3781 = vst [vmem:[%s192 + $0xa8] sm:$0xff] %v3745
      %3782 = vst [vmem:[%s192 + $0xb0] sm:$0xff] %v3746
      %3783 = vst [vmem:[%s192 + $0xb8] sm:$0xff] %v3747
      %3784 = vst [vmem:[%s192 + $0xc0] sm:$0xff] %v3748
      %3785 = vst [vmem:[%s192 + $0xc8] sm:$0xff] %v3749
      %3786 = vst [vmem:[%s192 + $0xd0] sm:$0xff] %v3750
      %3787 = vst [vmem:[%s192 + $0xd8] sm:$0xff] %v3751
      %3788 = vst [vmem:[%s192 + $0xe0] sm:$0xff] %v3752
      %3789 = vst [vmem:[%s192 + $0xe8] sm:$0xff] %v3753
      %3790 = vst [vmem:[%s192 + $0xf0] sm:$0xff] %v3754
      %3791 = vst [vmem:[%s192 + $0xf8] sm:$0xff] %v3755
      %3792 = vst [vmem:[%s192 + $0x100] sm:$0xff] %v3756
      %3793 = vst [vmem:[%s192 + $0x108] sm:$0xff] %v3757
      %3794 = vst [vmem:[%s192 + $0x110] sm:$0xff] %v3758
      %3795 = vst [vmem:[%s192 + $0x118] sm:$0xff] %v3759
      %s3796 = smul.u32 36, %s19
      %p3797 = scmp.lt.s32.totalorder %s18, 1
      %s3798 = scalar_select %p3797, %s18, 1
      %p3799 = scmp.lt.s32.totalorder %s3796, 35
      %s3800 = scalar_select %p3799, %s3796, 35
      %s3801 = smul.addr %s3798, 36
      %s3802 = sadd.s32 %s3800, %s3801
      %s3803 = smul.addr %s3802, 8
      %s3804 = scalar_lea.vmem %s3, %s3803
      // Predicated region
      $region33: #{up_forward.1} parent=31 // pred_check
        %p3805 = pneg %p114
      $region34: #{up_forward.1} parent=31 // pred_check_branch
        %3807 = sbr.rel (%p3805) target = $region36
      $region35: #{up_forward.1} parent=31 // pred_region
        %s3808 = smul.u32 36, %s19
      $region36: #{up_forward.1} parent=31 // pred_fallthru
        _
    $region32: #{up_forward.1} parent=5 // pred_fallthru
      _
    %p3809 = scmp.le.s32.totalorder 2, %s9
    // Predicated region
    $region37: #{up_forward.1} parent=5 // pred_check
      %p3810 = pneg %p3809
    $region38: #{up_forward.1} parent=5 // pred_check_branch
      %3812 = sbr.rel (%p3810) target = $region40
    $region39: #{up_forward.1} parent=5 // pred_region
      %s3813 = ssub.s32 %s9, 2
      // Predicated region
      $region41: #{up_forward.1} parent=39 // pred_check
        %p3814 = pneg %p120
      $region42: #{up_forward.1} parent=39 // pred_check_branch
        %3816 = sbr.rel (%p3814) target = $region44
      $region43: #{up_forward.1} parent=39 // pred_region
        %s3817 = smul.u32 36, %s21
        %p3818 = scmp.lt.s32.totalorder %s20, 1
        %s3819 = scalar_select %p3818, %s20, 1
        %p3820 = scmp.lt.s32.totalorder %s3817, 35
        %s3821 = scalar_select %p3820, %s3817, 35
        %s3822 = smul.addr %s3819, 36
        %s3823 = sadd.s32 %s3821, %s3822
        %s3824 = smul.addr %s3823, 8
        %s3825 = scalar_lea.vmem %s3, %s3824
      $region44: #{up_forward.1} parent=39 // pred_fallthru
        _
    $region40: #{up_forward.1} parent=5 // pred_fallthru
      _
  $region6: #{up_forward.1} parent=0 // loop_footer
    %s13 = sadd.s32 1, %s9
  $region7: #{up_forward.1} parent=0 // loop_footer_branch
    %8 = sbr.rel target = $region3
  $region8: #{up_forward.1} parent=0 // loop_exit
    _

</llo_original>
